<compile_context>
chip_gen: v6e
topology: v6e:2x2x1
jax: 0.10.0
libtpu: 0.0.40
codegen_flags: <defaults>
</compile_context>

<pallas_src>
import functools
import math

import jax
import jax.numpy as jnp
from jax.experimental import pallas as pl
from jax.experimental.pallas import tpu as pltpu


# ----------------------------------------------------------------------------- helpers
def _erf(x):
    # Abramowitz & Stegun 7.1.26 rational approximation, |err| < 1.5e-7.
    sign = jnp.where(x >= 0.0, 1.0, -1.0)
    a = jnp.abs(x)
    t = 1.0 / (1.0 + 0.3275911 * a)
    poly = t * (0.254829592 + t * (-0.284496736 + t * (1.421413741
               + t * (-1.453152027 + t * 1.061405429))))
    return sign * (1.0 - poly * jnp.exp(-a * a))


def _gelu_exact(x):
    # torch nn.GELU default (erf form); erf via polynomial approximation.
    return 0.5 * x * (1.0 + _erf(x * (1.0 / math.sqrt(2.0))))


def _layernorm(x, g, b, eps=1e-5):
    mu = jnp.mean(x, axis=-1, keepdims=True)
    xc = x - mu
    var = jnp.mean(xc * xc, axis=-1, keepdims=True)
    return xc * jax.lax.rsqrt(var + eps) * g + b


def _softplus(x):
    return jnp.maximum(x, 0.0) + jnp.log(1.0 + jnp.exp(-jnp.abs(x)))


# ----------------------------------------------------------------------------- kernel
def _sa_encoder_layer_kernel(
    # data refs
    x1d_full_ref, x1d_q_ref, x2d_ref, t_full_ref, t_q_ref, r_full_ref, r_q_ref, bias_ref,
    # weights
    ln1g_ref, ln1b_ref,
    wq_ref, wk_ref, wv_ref, wpb_ref,
    wpqx_ref, wpqy_ref, wpqz_ref,
    wpkx_ref, wpky_ref, wpkz_ref,
    wpvx_ref, wpvy_ref, wpvz_ref,
    tpw_ref,
    wouts_ref, woutplx_ref, woutply_ref, woutplz_ref, wpo_ref, woutn_ref, bout_ref,
    ln2g_ref, ln2b_ref, w1_ref, b1_ref, w2_ref, b2_ref,
    # output
    o_ref,
    # scratch: per-batch K/V cache (persists across inner qi axis) + per-tile accumulators
    k_sc, v_sc, kgxT_sc, kgyT_sc, kgzT_sc, vgx_sc, vgy_sc, vgz_sc,
    attn_sc, os_sc, ogx_sc, ogy_sc, ogz_sc,
    *, L, D, P, H, dk, tq,
):
    f32 = jnp.float32
    nt = (((1,), (1,)), ((), ()))  # A @ B.T contraction for dot_general

    ln1g = ln1g_ref[...]
    ln1b = ln1b_ref[...]

    # ---------- K/V side: computed ONCE per batch element (qi == 0), cached in VMEM ----
    @pl.when(pl.program_id(1) == 0)
    def _build_kv_cache():
        xn_full = _layernorm(x1d_full_ref[0], ln1g, ln1b)                   # (L, D)
        k_sc[...] = jnp.dot(xn_full, wk_ref[...], preferred_element_type=f32)
        v_sc[...] = jnp.dot(xn_full, wv_ref[...], preferred_element_type=f32)
        kpx = jnp.dot(xn_full, wpkx_ref[...], preferred_element_type=f32)   # (L, 4H)
        kpy = jnp.dot(xn_full, wpky_ref[...], preferred_element_type=f32)
        kpz = jnp.dot(xn_full, wpkz_ref[...], preferred_element_type=f32)
        vpx = jnp.dot(xn_full, wpvx_ref[...], preferred_element_type=f32)   # (L, 8H)
        vpy = jnp.dot(xn_full, wpvy_ref[...], preferred_element_type=f32)
        vpz = jnp.dot(xn_full, wpvz_ref[...], preferred_element_type=f32)

        Rf = r_full_ref[0]                                                  # (L, 9)
        Tf = t_full_ref[0]                                                  # (L, 3)
        Rfc = [[Rf[:, 3 * a + b:3 * a + b + 1] for b in range(3)] for a in range(3)]
        Tfc = [Tf[:, a:a + 1] for a in range(3)]

        def to_global(px, py, pz):                                          # R @ p + T
            return (Rfc[0][0] * px + Rfc[0][1] * py + Rfc[0][2] * pz + Tfc[0],
                    Rfc[1][0] * px + Rfc[1][1] * py + Rfc[1][2] * pz + Tfc[1],
                    Rfc[2][0] * px + Rfc[2][1] * py + Rfc[2][2] * pz + Tfc[2])

        kgx, kgy, kgz = to_global(kpx, kpy, kpz)                            # (L, 4H)
        vgx, vgy, vgz = to_global(vpx, vpy, vpz)                            # (L, 8H)
        kgxT_sc[...] = kgx.T                                                # (4H, L)
        kgyT_sc[...] = kgy.T
        kgzT_sc[...] = kgz.T
        vgx_sc[...] = vgx
        vgy_sc[...] = vgy
        vgz_sc[...] = vgz

    # ---------- query side: this query tile ---------------------------------------------
    x_q_in = x1d_q_ref[0]                                                   # (tq, D)
    xn_q = _layernorm(x_q_in, ln1g, ln1b)
    scalar_w = 1.0 / math.sqrt(3 * dk)
    q = jnp.dot(xn_q, wq_ref[...], preferred_element_type=f32) * scalar_w   # (tq, D)
    qpx = jnp.dot(xn_q, wpqx_ref[...], preferred_element_type=f32)          # (tq, 4H)
    qpy = jnp.dot(xn_q, wpqy_ref[...], preferred_element_type=f32)
    qpz = jnp.dot(xn_q, wpqz_ref[...], preferred_element_type=f32)

    Rq = r_q_ref[0]                                                         # (tq, 9)
    Tq = t_q_ref[0]                                                         # (tq, 3)
    Rqc = [[Rq[:, 3 * a + b:3 * a + b + 1] for b in range(3)] for a in range(3)]
    Tqc = [Tq[:, a:a + 1] for a in range(3)]
    qgx = Rqc[0][0] * qpx + Rqc[0][1] * qpy + Rqc[0][2] * qpz + Tqc[0]       # (tq, 4H)
    qgy = Rqc[1][0] * qpx + Rqc[1][1] * qpy + Rqc[1][2] * qpz + Tqc[1]
    qgz = Rqc[2][0] * qpx + Rqc[2][1] * qpy + Rqc[2][2] * qpz + Tqc[2]

    # ---------- pair bias for all heads: one matmul + one transpose (head-major) --------
    x2d3 = x2d_ref[0]                                                       # (tq, L, P)
    x2d_flat = x2d3.reshape(tq * L, P)
    pair_w = 1.0 / math.sqrt(3.0)
    pb_all = pair_w * jnp.dot(x2d_flat, wpb_ref[...], preferred_element_type=f32)
    pb_hql = jnp.transpose(pb_all.reshape(tq, L, H), (2, 0, 1))             # (H, tq, L)

    point_w = (1.0 / math.sqrt(3 * 4 * 9 / 2)) * _softplus(tpw_ref[...])    # (1, H)

    k_all = k_sc[...]                                                        # (L, D)
    v_all = v_sc[...]                                                        # (L, D)
    kgxT = kgxT_sc[...]                                                      # (4H, L)
    kgyT = kgyT_sc[...]
    kgzT = kgzT_sc[...]
    vgx_all = vgx_sc[...]                                                    # (L, 8H)
    vgy_all = vgy_sc[...]
    vgz_all = vgz_sc[...]
    bias_h = bias_ref[0]                                                     # (H, tq, L)

    # ---------- head loop: logits / softmax only; results stashed in VMEM scratch -------
    for h in range(H):
        q_h = q[:, h * dk:(h + 1) * dk]
        k_h = k_all[:, h * dk:(h + 1) * dk]
        logits = jax.lax.dot_general(q_h, k_h, nt, preferred_element_type=f32)  # (tq, L)

        # invariant point attention: sum over 4 points of Euclidean distances
        dist = jnp.zeros((tq, L), f32)
        for p in range(4):
            c = h * 4 + p
            dx = qgx[:, c:c + 1] - kgxT[c:c + 1, :]
            dy = qgy[:, c:c + 1] - kgyT[c:c + 1, :]
            dz = qgz[:, c:c + 1] - kgzT[c:c + 1, :]
            dist = dist + jnp.sqrt(dx * dx + dy * dy + dz * dz)
        logits = logits - (0.5 * point_w[:, h:h + 1]) * dist

        logits = logits + pb_hql[h] + bias_h[h]

        m = jnp.max(logits, axis=-1, keepdims=True)
        e = jnp.exp(logits - m)
        attn = e * pl.reciprocal(jnp.sum(e, axis=-1, keepdims=True), approx=True)

        attn_sc[h] = attn
        os_sc[:, h * dk:(h + 1) * dk] = jnp.dot(
            attn, v_all[:, h * dk:(h + 1) * dk], preferred_element_type=f32)
        ogx_sc[:, h * 8:(h + 1) * 8] = jnp.dot(
            attn, vgx_all[:, h * 8:(h + 1) * 8], preferred_element_type=f32)
        ogy_sc[:, h * 8:(h + 1) * 8] = jnp.dot(
            attn, vgy_all[:, h * 8:(h + 1) * 8], preferred_element_type=f32)
        ogz_sc[:, h * 8:(h + 1) * 8] = jnp.dot(
            attn, vgz_all[:, h * 8:(h + 1) * 8], preferred_element_type=f32)

    # ---------- consolidated output projections (wide-K MXU matmuls) --------------------
    acc = jnp.dot(os_sc[...], wouts_ref[...], preferred_element_type=f32)    # (tq, D)

    # pair path: batched over heads, x2d slab read exactly once
    attn_thl = jnp.swapaxes(attn_sc[...], 0, 1)                              # (tq, H, L)
    g_all = jax.lax.dot_general(
        attn_thl, x2d3,
        dimension_numbers=(((2,), (1,)), ((0,), (0,))),
        preferred_element_type=f32)                                          # (tq, H, P)
    acc = acc + jnp.dot(g_all.reshape(tq, H * P), wpo_ref[...],
                        preferred_element_type=f32)

    # point path: back to the query-local frame for all heads/points at once
    dxl = ogx_sc[...] - Tqc[0]                                               # (tq, 8H)
    dyl = ogy_sc[...] - Tqc[1]
    dzl = ogz_sc[...] - Tqc[2]
    lx = Rqc[0][0] * dxl + Rqc[1][0] * dyl + Rqc[2][0] * dzl                  # R^T (g - T)
    ly = Rqc[0][1] * dxl + Rqc[1][1] * dyl + Rqc[2][1] * dzl
    lz = Rqc[0][2] * dxl + Rqc[1][2] * dyl + Rqc[2][2] * dzl
    onrm = jnp.sqrt(lx * lx + ly * ly + lz * lz)                             # (tq, 8H)
    acc = acc + jnp.dot(lx, woutplx_ref[...], preferred_element_type=f32)
    acc = acc + jnp.dot(ly, woutply_ref[...], preferred_element_type=f32)
    acc = acc + jnp.dot(lz, woutplz_ref[...], preferred_element_type=f32)
    acc = acc + jnp.dot(onrm, woutn_ref[...], preferred_element_type=f32)

    # fc_out bias + residual 1
    # TODO(synk): nn.Dropout layers are inference-mode identity here (no RNG dropout).
    x_res = x_q_in + acc + bout_ref[...]

    # feed-forward block (norm2 + MLP, erf GELU)
    xn2 = _layernorm(x_res, ln2g_ref[...], ln2b_ref[...])
    h1 = _gelu_exact(jnp.dot(xn2, w1_ref[...], preferred_element_type=f32) + b1_ref[...])
    ff = jnp.dot(h1, w2_ref[...], preferred_element_type=f32) + b2_ref[...]
    o_ref[0] = (x_res + ff).astype(o_ref.dtype)


# ----------------------------------------------------------------------------- host-side weight prep
def _prepare_layer_weights(params, D, P, H):
    """Regroup torch-layout weights into kernel-friendly, axis/group-split blocks."""
    dk = D // H
    wpq = jnp.asarray(params["wpq"], jnp.float32)   # (D, H*12), col = h*12 + p*3 + axis
    wpk = jnp.asarray(params["wpk"], jnp.float32)   # (D, H*12)
    wpv = jnp.asarray(params["wpv"], jnp.float32)   # (D, H*24), col = h*24 + p*3 + axis
    wout = jnp.asarray(params["wout"], jnp.float32)  # (2D + 32H, D)
    wpair_v = jnp.asarray(params["wpair_v"], jnp.float32)   # (P, D)
    wpl = wout[D:D + 24 * H].reshape(H, 8, 3, D)
    woutp = wout[D + 24 * H:2 * D + 24 * H]                  # (D, D) pair rows of fc_out
    # host-fuse pair_value with the fc_out pair rows -> (H*P, D), rows h-major
    w_po = jnp.concatenate(
        [wpair_v[:, h * dk:(h + 1) * dk] @ woutp[h * dk:(h + 1) * dk, :] for h in range(H)],
        axis=0)
    weights = [
        params["ln1_g"], params["ln1_b"],
        params["wq"], params["wk"], params["wv"], params["wpb"],
        wpq[:, 0::3], wpq[:, 1::3], wpq[:, 2::3],           # (D, 4H) per axis, col = h*4+p
        wpk[:, 0::3], wpk[:, 1::3], wpk[:, 2::3],           # (D, 4H)
        wpv[:, 0::3], wpv[:, 1::3], wpv[:, 2::3],           # (D, 8H), col = h*8+p
        params["tpw"],
        wout[:D],                                           # fc_out rows: scalar block
        wpl[:, :, 0, :].reshape(H * 8, D),                  # point-local x rows
        wpl[:, :, 1, :].reshape(H * 8, D),                  # point-local y rows
        wpl[:, :, 2, :].reshape(H * 8, D),                  # point-local z rows
        w_po,                                               # fused pair_value @ fc_out pair rows
        wout[2 * D + 24 * H:],                              # point-norm rows
        params["bout"],
        params["ln2_g"], params["ln2_b"],
        params["w1"], params["b1"], params["w2"], params["b2"],
    ]
    return [jnp.asarray(w, jnp.float32) for w in weights]


# ----------------------------------------------------------------------------- tiling / VMEM budget
def _vmem_bytes_estimate(tq, L, D, P, H, w_elems):
    f = 4  # f32
    stream = 2 * (tq * L * P            # x2d slab (double-buffered)
                  + H * tq * L          # bias slab
                  + L * D + tq * D      # x1d full + x1d query tile
                  + (L + tq) * 12       # T(3) + R(9)
                  + tq * D)             # output tile
    scratch = (2 * L * D                # k, v
               + 12 * H * L             # kg^T (3 x (4H, L))
               + 24 * H * L             # vg   (3 x (L, 8H))
               + H * tq * L             # attn stack
               + tq * D                 # out_scalar
               + 24 * H * tq)           # out_point global (3 x (tq, 8H))
    return f * (stream + scratch + 2 * w_elems)


def _choose_tiling(L, D, P, H, w_elems, budget_bytes=40 * 2**20):
    """Pick a query-tile size and a vmem limit sized from the actual buffer sum
    (budget keeps the working set v7x-safe: < 64 MiB physical VMEM per TC)."""
    if L <= 128:
        tq = L
    else:
        tq = max((t for t in (128, 64, 32, 16, 8) if L % t == 0), default=L)
    while (_vmem_bytes_estimate(tq, L, D, P, H, w_elems) > budget_bytes
           and tq % 16 == 0 and L % (tq // 2) == 0):
        tq //= 2
    est = _vmem_bytes_estimate(tq, L, D, P, H, w_elems)
    vmem_limit = int(min(100 * 2**20, max(32 * 2**20, int(1.35 * est))))
    return tq, vmem_limit


# ----------------------------------------------------------------------------- wrappers
def sa_encoder_layer_apply(x1d, x2d, pose_t, r_flat, bias, weights, *, tq, vmem_limit):
    B, L, D = x1d.shape
    P = x2d.shape[-1]
    H = bias.shape[1]
    dk = D // H
    assert L % tq == 0 and (tq == L or tq % 8 == 0), "bad query tile"
    nq = L // tq

    data_specs = [
        pl.BlockSpec((1, L, D), lambda b, qi: (b, 0, 0)),          # x1d full (K/V side)
        pl.BlockSpec((1, tq, D), lambda b, qi: (b, qi, 0)),        # x1d query tile
        pl.BlockSpec((1, tq, L, P), lambda b, qi: (b, qi, 0, 0)),  # x2d query-row slab
        pl.BlockSpec((1, L, 3), lambda b, qi: (b, 0, 0)),          # T full
        pl.BlockSpec((1, tq, 3), lambda b, qi: (b, qi, 0)),        # T query rows
        pl.BlockSpec((1, L, 9), lambda b, qi: (b, 0, 0)),          # R full
        pl.BlockSpec((1, tq, 9), lambda b, qi: (b, qi, 0)),        # R query rows
        pl.BlockSpec((1, H, tq, L), lambda b, qi: (b, 0, qi, 0)),  # additive bias slab
    ]
    weight_specs = [pl.BlockSpec(w.shape, lambda b, qi, n=w.ndim: (0,) * n) for w in weights]

    scratch_shapes = [
        pltpu.VMEM((L, D), jnp.float32),          # k cache
        pltpu.VMEM((L, D), jnp.float32),          # v cache
        pltpu.VMEM((4 * H, L), jnp.float32),      # kg^T x
        pltpu.VMEM((4 * H, L), jnp.float32),      # kg^T y
        pltpu.VMEM((4 * H, L), jnp.float32),      # kg^T z
        pltpu.VMEM((L, 8 * H), jnp.float32),      # vg x
        pltpu.VMEM((L, 8 * H), jnp.float32),      # vg y
        pltpu.VMEM((L, 8 * H), jnp.float32),      # vg z
        pltpu.VMEM((H, tq, L), jnp.float32),      # attn stack
        pltpu.VMEM((tq, D), jnp.float32),         # out_scalar
        pltpu.VMEM((tq, 8 * H), jnp.float32),     # out_point global x
        pltpu.VMEM((tq, 8 * H), jnp.float32),     # out_point global y
        pltpu.VMEM((tq, 8 * H), jnp.float32),     # out_point global z
    ]

    kern = functools.partial(_sa_encoder_layer_kernel,
                             L=L, D=D, P=P, H=H, dk=dk, tq=tq)
    return pl.pallas_call(
        kern,
        grid=(B, nq),
        in_specs=data_specs + weight_specs,
        out_specs=pl.BlockSpec((1, tq, D), lambda b, qi: (b, qi, 0)),
        out_shape=jax.ShapeDtypeStruct((B, L, D), jnp.float32),
        scratch_shapes=scratch_shapes,
        compiler_params=pltpu.CompilerParams(
            # qi must be "arbitrary" so the per-batch K/V VMEM cache is legal; the batch
            # axis stays "parallel" for megacore sharding (needs >= 2 batch elements).
            dimension_semantics=("parallel", "arbitrary"),
            vmem_limit_bytes=vmem_limit,
        ),
    )(x1d, x1d, x2d, pose_t, pose_t, r_flat, r_flat, bias, *weights)


def sa_encoder_forward(x1d, x2d, pose, bias, layer_params, *, tq=None):
    """SAEncoder.forward: stack of SAEncoderLayer, one pallas_call per layer."""
    pose_t, pose_rot_inv = pose
    B, L, D = x1d.shape
    P = x2d.shape[-1]
    H = bias.shape[1]
    assert D % H == 0
    # glue: R = pose[1].transpose(-1, -2), flattened row-major to (B, L, 9)
    r_flat = jnp.swapaxes(pose_rot_inv, -1, -2).reshape(B, L, 9).astype(jnp.float32)
    x1d = x1d.astype(jnp.float32)
    x2d = x2d.astype(jnp.float32)
    bias = bias.astype(jnp.float32)
    pose_t = pose_t.astype(jnp.float32)

    all_weights = [_prepare_layer_weights(p, D, P, H) for p in layer_params]
    w_elems = sum(int(w.size) for w in all_weights[0])
    auto_tq, vmem_limit = _choose_tiling(L, D, P, H, w_elems)
    if tq is None:
        tq = auto_tq
    for weights in all_weights:
        x1d = sa_encoder_layer_apply(x1d, x2d, pose_t, r_flat, bias, weights,
                                     tq=tq, vmem_limit=vmem_limit)
    return x1d


# ----------------------------------------------------------------------------- params
def init_layer_params(key, D, P, H, F):
    ks = jax.random.split(key, 14)

    def lin(k, fi, fo):
        return (jax.random.normal(k, (fi, fo), jnp.float32) / math.sqrt(fi)).astype(jnp.float32)

    return dict(
        ln1_g=jnp.ones((1, D), jnp.float32), ln1_b=jnp.zeros((1, D), jnp.float32),
        wq=lin(ks[0], D, D), wk=lin(ks[1], D, D), wv=lin(ks[2], D, D),
        wpb=lin(ks[3], P, H),
        wpq=lin(ks[4], D, H * 12), wpk=lin(ks[5], D, H * 12), wpv=lin(ks[6], D, H * 24),
        tpw=jax.random.uniform(ks[7], (1, H), jnp.float32),          # torch.rand(n_head)
        wpair_v=lin(ks[8], P, D),
        wout=lin(ks[9], 2 * D + H * 32, D),
        bout=(0.01 * jax.random.normal(ks[10], (1, D))).astype(jnp.float32),
        ln2_g=jnp.ones((1, D), jnp.float32), ln2_b=jnp.zeros((1, D), jnp.float32),
        w1=lin(ks[11], D, F), b1=jnp.zeros((1, F), jnp.float32),
        w2=lin(ks[12], F, D), b2=jnp.zeros((1, D), jnp.float32),
    )


def random_rotations(key, B, L):
    m = jax.random.normal(key, (B, L, 3, 3), jnp.float32)
    q, _ = jnp.linalg.qr(m)
    return q.astype(jnp.float32)


# ----------------------------------------------------------------------------- main
if __name__ == "__main__":
    B, L, D, P, H, F, n_layer = 2, 8, 32, 16, 4, 64, 2
    key = jax.random.PRNGKey(0)
    k_x1, k_x2, k_t, k_r, k_b, k_p = jax.random.split(key, 6)

    x1d = 0.5 * jax.random.normal(k_x1, (B, L, D), jnp.float32)
    x2d = 0.5 * jax.random.normal(k_x2, (B, L, L, P), jnp.float32)
    pose_t = jax.random.normal(k_t, (B, L, 3), jnp.float32)
    pose_rot_inv = random_rotations(k_r, B, L)
    bias = 0.1 * jax.random.normal(k_b, (B, H, L, L), jnp.float32)

    layer_params = [init_layer_params(k, D, P, H, F)
                    for k in jax.random.split(k_p, n_layer)]

    out = sa_encoder_forward(x1d, x2d, (pose_t, pose_rot_inv), bias, layer_params)
    out = jax.block_until_ready(out)
    assert out.shape == (B, L, D)
    assert bool(jnp.all(jnp.isfinite(out)))
    print("KERNEL_OK")
</pallas_src>

<mosaic_0001>
module attributes {stable_mosaic.version = 11 : i64} {
  func.func @_sa_encoder_layer_kernel(%arg0: i32, %arg1: i32, %arg2: memref<1x8x32xf32, #tpu.memory_space<vmem>>, %arg3: memref<1x8x32xf32, #tpu.memory_space<vmem>>, %arg4: memref<1x8x8x16xf32, #tpu.memory_space<vmem>>, %arg5: memref<1x8x3xf32, #tpu.memory_space<vmem>>, %arg6: memref<1x8x3xf32, #tpu.memory_space<vmem>>, %arg7: memref<1x8x9xf32, #tpu.memory_space<vmem>>, %arg8: memref<1x8x9xf32, #tpu.memory_space<vmem>>, %arg9: memref<1x4x8x8xf32, #tpu.memory_space<vmem>>, %arg10: memref<1x32xf32, #tpu.memory_space<vmem>>, %arg11: memref<1x32xf32, #tpu.memory_space<vmem>>, %arg12: memref<32x32xf32, #tpu.memory_space<vmem>>, %arg13: memref<32x32xf32, #tpu.memory_space<vmem>>, %arg14: memref<32x32xf32, #tpu.memory_space<vmem>>, %arg15: memref<16x4xf32, #tpu.memory_space<vmem>>, %arg16: memref<32x16xf32, #tpu.memory_space<vmem>>, %arg17: memref<32x16xf32, #tpu.memory_space<vmem>>, %arg18: memref<32x16xf32, #tpu.memory_space<vmem>>, %arg19: memref<32x16xf32, #tpu.memory_space<vmem>>, %arg20: memref<32x16xf32, #tpu.memory_space<vmem>>, %arg21: memref<32x16xf32, #tpu.memory_space<vmem>>, %arg22: memref<32x32xf32, #tpu.memory_space<vmem>>, %arg23: memref<32x32xf32, #tpu.memory_space<vmem>>, %arg24: memref<32x32xf32, #tpu.memory_space<vmem>>, %arg25: memref<1x4xf32, #tpu.memory_space<vmem>>, %arg26: memref<32x32xf32, #tpu.memory_space<vmem>>, %arg27: memref<32x32xf32, #tpu.memory_space<vmem>>, %arg28: memref<32x32xf32, #tpu.memory_space<vmem>>, %arg29: memref<32x32xf32, #tpu.memory_space<vmem>>, %arg30: memref<64x32xf32, #tpu.memory_space<vmem>>, %arg31: memref<32x32xf32, #tpu.memory_space<vmem>>, %arg32: memref<1x32xf32, #tpu.memory_space<vmem>>, %arg33: memref<1x32xf32, #tpu.memory_space<vmem>>, %arg34: memref<1x32xf32, #tpu.memory_space<vmem>>, %arg35: memref<32x64xf32, #tpu.memory_space<vmem>>, %arg36: memref<1x64xf32, #tpu.memory_space<vmem>>, %arg37: memref<64x32xf32, #tpu.memory_space<vmem>>, %arg38: memref<1x32xf32, #tpu.memory_space<vmem>>, %arg39: memref<1x8x32xf32, #tpu.memory_space<vmem>>, %arg40: memref<8x32xf32, #tpu.memory_space<vmem>>, %arg41: memref<8x32xf32, #tpu.memory_space<vmem>>, %arg42: memref<16x8xf32, #tpu.memory_space<vmem>>, %arg43: memref<16x8xf32, #tpu.memory_space<vmem>>, %arg44: memref<16x8xf32, #tpu.memory_space<vmem>>, %arg45: memref<8x32xf32, #tpu.memory_space<vmem>>, %arg46: memref<8x32xf32, #tpu.memory_space<vmem>>, %arg47: memref<8x32xf32, #tpu.memory_space<vmem>>, %arg48: memref<4x8x8xf32, #tpu.memory_space<vmem>>, %arg49: memref<8x32xf32, #tpu.memory_space<vmem>>, %arg50: memref<8x32xf32, #tpu.memory_space<vmem>>, %arg51: memref<8x32xf32, #tpu.memory_space<vmem>>, %arg52: memref<8x32xf32, #tpu.memory_space<vmem>>) attributes {dimension_semantics = [#tpu.dimension_semantics<parallel>, #tpu.dimension_semantics<arbitrary>], iteration_bounds = array<i64: 2, 1>, scalar_prefetch = 0 : i64, scratch_operands = 13 : i64, tpu.core_type = #tpu.core_type<tc>, window_params = [{transform_indices = @transform_0, window_bounds = array<i64: 1, 8, 32>}, {transform_indices = @transform_1, window_bounds = array<i64: 1, 8, 32>}, {transform_indices = @transform_2, window_bounds = array<i64: 1, 8, 8, 16>}, {transform_indices = @transform_3, window_bounds = array<i64: 1, 8, 3>}, {transform_indices = @transform_4, window_bounds = array<i64: 1, 8, 3>}, {transform_indices = @transform_5, window_bounds = array<i64: 1, 8, 9>}, {transform_indices = @transform_6, window_bounds = array<i64: 1, 8, 9>}, {transform_indices = @transform_7, window_bounds = array<i64: 1, 4, 8, 8>}, {pipeline_mode = #tpu.pipeline_mode<synchronous>, transform_indices = @transform_8, window_bounds = array<i64: 1, 32>}, {pipeline_mode = #tpu.pipeline_mode<synchronous>, transform_indices = @transform_9, window_bounds = array<i64: 1, 32>}, {pipeline_mode = #tpu.pipeline_mode<synchronous>, transform_indices = @transform_10, window_bounds = array<i64: 32, 32>}, {pipeline_mode = #tpu.pipeline_mode<synchronous>, transform_indices = @transform_11, window_bounds = array<i64: 32, 32>}, {pipeline_mode = #tpu.pipeline_mode<synchronous>, transform_indices = @transform_12, window_bounds = array<i64: 32, 32>}, {pipeline_mode = #tpu.pipeline_mode<synchronous>, transform_indices = @transform_13, window_bounds = array<i64: 16, 4>}, {pipeline_mode = #tpu.pipeline_mode<synchronous>, transform_indices = @transform_14, window_bounds = array<i64: 32, 16>}, {pipeline_mode = #tpu.pipeline_mode<synchronous>, transform_indices = @transform_15, window_bounds = array<i64: 32, 16>}, {pipeline_mode = #tpu.pipeline_mode<synchronous>, transform_indices = @transform_16, window_bounds = array<i64: 32, 16>}, {pipeline_mode = #tpu.pipeline_mode<synchronous>, transform_indices = @transform_17, window_bounds = array<i64: 32, 16>}, {pipeline_mode = #tpu.pipeline_mode<synchronous>, transform_indices = @transform_18, window_bounds = array<i64: 32, 16>}, {pipeline_mode = #tpu.pipeline_mode<synchronous>, transform_indices = @transform_19, window_bounds = array<i64: 32, 16>}, {pipeline_mode = #tpu.pipeline_mode<synchronous>, transform_indices = @transform_20, window_bounds = array<i64: 32, 32>}, {pipeline_mode = #tpu.pipeline_mode<synchronous>, transform_indices = @transform_21, window_bounds = array<i64: 32, 32>}, {pipeline_mode = #tpu.pipeline_mode<synchronous>, transform_indices = @transform_22, window_bounds = array<i64: 32, 32>}, {pipeline_mode = #tpu.pipeline_mode<synchronous>, transform_indices = @transform_23, window_bounds = array<i64: 1, 4>}, {pipeline_mode = #tpu.pipeline_mode<synchronous>, transform_indices = @transform_24, window_bounds = array<i64: 32, 32>}, {pipeline_mode = #tpu.pipeline_mode<synchronous>, transform_indices = @transform_25, window_bounds = array<i64: 32, 32>}, {pipeline_mode = #tpu.pipeline_mode<synchronous>, transform_indices = @transform_26, window_bounds = array<i64: 32, 32>}, {pipeline_mode = #tpu.pipeline_mode<synchronous>, transform_indices = @transform_27, window_bounds = array<i64: 32, 32>}, {pipeline_mode = #tpu.pipeline_mode<synchronous>, transform_indices = @transform_28, window_bounds = array<i64: 64, 32>}, {pipeline_mode = #tpu.pipeline_mode<synchronous>, transform_indices = @transform_29, window_bounds = array<i64: 32, 32>}, {pipeline_mode = #tpu.pipeline_mode<synchronous>, transform_indices = @transform_30, window_bounds = array<i64: 1, 32>}, {pipeline_mode = #tpu.pipeline_mode<synchronous>, transform_indices = @transform_31, window_bounds = array<i64: 1, 32>}, {pipeline_mode = #tpu.pipeline_mode<synchronous>, transform_indices = @transform_32, window_bounds = array<i64: 1, 32>}, {pipeline_mode = #tpu.pipeline_mode<synchronous>, transform_indices = @transform_33, window_bounds = array<i64: 32, 64>}, {pipeline_mode = #tpu.pipeline_mode<synchronous>, transform_indices = @transform_34, window_bounds = array<i64: 1, 64>}, {pipeline_mode = #tpu.pipeline_mode<synchronous>, transform_indices = @transform_35, window_bounds = array<i64: 64, 32>}, {pipeline_mode = #tpu.pipeline_mode<synchronous>, transform_indices = @transform_36, window_bounds = array<i64: 1, 32>}, {transform_indices = @transform_37, window_bounds = array<i64: 1, 8, 32>}]} {
    %c0 = arith.constant 0 : index
    %c0_0 = arith.constant 0 : index
    %0 = vector.load %arg10[%c0, %c0_0] : memref<1x32xf32, #tpu.memory_space<vmem>>, vector<1x32xf32>
    %c0_1 = arith.constant 0 : index
    %c0_2 = arith.constant 0 : index
    %1 = vector.load %arg11[%c0_1, %c0_2] : memref<1x32xf32, #tpu.memory_space<vmem>>, vector<1x32xf32>
    %c0_i32 = arith.constant 0 : i32
    %2 = arith.cmpi eq, %arg1, %c0_i32 : i32
    %3 = arith.extui %2 : i1 to i32
    %c0_i32_3 = arith.constant 0 : i32
    %4 = arith.cmpi ne, %3, %c0_i32_3 : i32
    scf.if %4 {
      %c0_208 = arith.constant 0 : index
      %c0_209 = arith.constant 0 : index
      %c0_210 = arith.constant 0 : index
      %773 = vector.load %arg2[%c0_208, %c0_209, %c0_210] : memref<1x8x32xf32, #tpu.memory_space<vmem>>, vector<1x8x32xf32>
      %774 = vector.shape_cast %773 : vector<1x8x32xf32> to vector<8x32xf32>
      %cst_211 = arith.constant dense<0.000000e+00> : vector<8xf32>
      %775 = vector.multi_reduction <add>, %774, %cst_211 [1] : vector<8x32xf32> to vector<8xf32>
      %776 = vector.shape_cast %775 : vector<8xf32> to vector<8x1xf32>
      %cst_212 = arith.constant 3.200000e+01 : f32
      %777 = vector.broadcast %cst_212 : f32 to vector<8x1xf32>
      %778 = arith.divf %776, %777 : vector<8x1xf32>
      %779 = vector.broadcast %778 : vector<8x1xf32> to vector<8x32xf32>
      %780 = arith.subf %774, %779 : vector<8x32xf32>
      %781 = arith.mulf %780, %780 : vector<8x32xf32>
      %cst_213 = arith.constant dense<0.000000e+00> : vector<8xf32>
      %782 = vector.multi_reduction <add>, %781, %cst_213 [1] : vector<8x32xf32> to vector<8xf32>
      %783 = vector.shape_cast %782 : vector<8xf32> to vector<8x1xf32>
      %cst_214 = arith.constant 3.200000e+01 : f32
      %784 = vector.broadcast %cst_214 : f32 to vector<8x1xf32>
      %785 = arith.divf %783, %784 : vector<8x1xf32>
      %cst_215 = arith.constant 9.99999974E-6 : f32
      %786 = vector.broadcast %cst_215 : f32 to vector<8x1xf32>
      %787 = arith.addf %785, %786 : vector<8x1xf32>
      %788 = math.rsqrt %787 : vector<8x1xf32>
      %789 = vector.broadcast %788 : vector<8x1xf32> to vector<8x32xf32>
      %790 = arith.mulf %780, %789 : vector<8x32xf32>
      %791 = vector.broadcast %0 : vector<1x32xf32> to vector<8x32xf32>
      %792 = arith.mulf %790, %791 : vector<8x32xf32>
      %793 = vector.broadcast %1 : vector<1x32xf32> to vector<8x32xf32>
      %794 = arith.addf %792, %793 : vector<8x32xf32>
      %c0_216 = arith.constant 0 : index
      %c0_217 = arith.constant 0 : index
      %795 = vector.load %arg13[%c0_216, %c0_217] : memref<32x32xf32, #tpu.memory_space<vmem>>, vector<32x32xf32>
      %cst_218 = arith.constant dense<0.000000e+00> : vector<8x32xf32>
      %796 = tpu.matmul %794, %795, %cst_218 {dimension_numbers = #tpu.dot_dimension_numbers<[1], [0], [0], [1], [0, 0, 1, 1], [], []>} : vector<8x32xf32>, vector<32x32xf32>, vector<8x32xf32> -> vector<8x32xf32>
      %c0_219 = arith.constant 0 : index
      %c0_220 = arith.constant 0 : index
      %797 = vector.load %arg40[%c0_219, %c0_220] : memref<8x32xf32, #tpu.memory_space<vmem>>, vector<8x32xf32>
      tpu.vector_store %arg40[%c0_219, %c0_220], %796 {strides = array<i32>} : memref<8x32xf32, #tpu.memory_space<vmem>>, vector<8x32xf32>,
      %c0_221 = arith.constant 0 : index
      %c0_222 = arith.constant 0 : index
      %798 = vector.load %arg14[%c0_221, %c0_222] : memref<32x32xf32, #tpu.memory_space<vmem>>, vector<32x32xf32>
      %cst_223 = arith.constant dense<0.000000e+00> : vector<8x32xf32>
      %799 = tpu.matmul %794, %798, %cst_223 {dimension_numbers = #tpu.dot_dimension_numbers<[1], [0], [0], [1], [0, 0, 1, 1], [], []>} : vector<8x32xf32>, vector<32x32xf32>, vector<8x32xf32> -> vector<8x32xf32>
      %c0_224 = arith.constant 0 : index
      %c0_225 = arith.constant 0 : index
      %800 = vector.load %arg41[%c0_224, %c0_225] : memref<8x32xf32, #tpu.memory_space<vmem>>, vector<8x32xf32>
      tpu.vector_store %arg41[%c0_224, %c0_225], %799 {strides = array<i32>} : memref<8x32xf32, #tpu.memory_space<vmem>>, vector<8x32xf32>,
      %c0_226 = arith.constant 0 : index
      %c0_227 = arith.constant 0 : index
      %801 = vector.load %arg19[%c0_226, %c0_227] : memref<32x16xf32, #tpu.memory_space<vmem>>, vector<32x16xf32>
      %cst_228 = arith.constant dense<0.000000e+00> : vector<8x16xf32>
      %802 = tpu.matmul %794, %801, %cst_228 {dimension_numbers = #tpu.dot_dimension_numbers<[1], [0], [0], [1], [0, 0, 1, 1], [], []>} : vector<8x32xf32>, vector<32x16xf32>, vector<8x16xf32> -> vector<8x16xf32>
      %c0_229 = arith.constant 0 : index
      %c0_230 = arith.constant 0 : index
      %803 = vector.load %arg20[%c0_229, %c0_230] : memref<32x16xf32, #tpu.memory_space<vmem>>, vector<32x16xf32>
      %cst_231 = arith.constant dense<0.000000e+00> : vector<8x16xf32>
      %804 = tpu.matmul %794, %803, %cst_231 {dimension_numbers = #tpu.dot_dimension_numbers<[1], [0], [0], [1], [0, 0, 1, 1], [], []>} : vector<8x32xf32>, vector<32x16xf32>, vector<8x16xf32> -> vector<8x16xf32>
      %c0_232 = arith.constant 0 : index
      %c0_233 = arith.constant 0 : index
      %805 = vector.load %arg21[%c0_232, %c0_233] : memref<32x16xf32, #tpu.memory_space<vmem>>, vector<32x16xf32>
      %cst_234 = arith.constant dense<0.000000e+00> : vector<8x16xf32>
      %806 = tpu.matmul %794, %805, %cst_234 {dimension_numbers = #tpu.dot_dimension_numbers<[1], [0], [0], [1], [0, 0, 1, 1], [], []>} : vector<8x32xf32>, vector<32x16xf32>, vector<8x16xf32> -> vector<8x16xf32>
      %c0_235 = arith.constant 0 : index
      %c0_236 = arith.constant 0 : index
      %807 = vector.load %arg22[%c0_235, %c0_236] : memref<32x32xf32, #tpu.memory_space<vmem>>, vector<32x32xf32>
      %cst_237 = arith.constant dense<0.000000e+00> : vector<8x32xf32>
      %808 = tpu.matmul %794, %807, %cst_237 {dimension_numbers = #tpu.dot_dimension_numbers<[1], [0], [0], [1], [0, 0, 1, 1], [], []>} : vector<8x32xf32>, vector<32x32xf32>, vector<8x32xf32> -> vector<8x32xf32>
      %c0_238 = arith.constant 0 : index
      %c0_239 = arith.constant 0 : index
      %809 = vector.load %arg23[%c0_238, %c0_239] : memref<32x32xf32, #tpu.memory_space<vmem>>, vector<32x32xf32>
      %cst_240 = arith.constant dense<0.000000e+00> : vector<8x32xf32>
      %810 = tpu.matmul %794, %809, %cst_240 {dimension_numbers = #tpu.dot_dimension_numbers<[1], [0], [0], [1], [0, 0, 1, 1], [], []>} : vector<8x32xf32>, vector<32x32xf32>, vector<8x32xf32> -> vector<8x32xf32>
      %c0_241 = arith.constant 0 : index
      %c0_242 = arith.constant 0 : index
      %811 = vector.load %arg24[%c0_241, %c0_242] : memref<32x32xf32, #tpu.memory_space<vmem>>, vector<32x32xf32>
      %cst_243 = arith.constant dense<0.000000e+00> : vector<8x32xf32>
      %812 = tpu.matmul %794, %811, %cst_243 {dimension_numbers = #tpu.dot_dimension_numbers<[1], [0], [0], [1], [0, 0, 1, 1], [], []>} : vector<8x32xf32>, vector<32x32xf32>, vector<8x32xf32> -> vector<8x32xf32>
      %c0_244 = arith.constant 0 : index
      %c0_245 = arith.constant 0 : index
      %c0_246 = arith.constant 0 : index
      %813 = vector.load %arg7[%c0_244, %c0_245, %c0_246] : memref<1x8x9xf32, #tpu.memory_space<vmem>>, vector<1x8x9xf32>
      %814 = vector.shape_cast %813 : vector<1x8x9xf32> to vector<8x9xf32>
      %c0_247 = arith.constant 0 : index
      %c0_248 = arith.constant 0 : index
      %c0_249 = arith.constant 0 : index
      %815 = vector.load %arg5[%c0_247, %c0_248, %c0_249] : memref<1x8x3xf32, #tpu.memory_space<vmem>>, vector<1x8x3xf32>
      %816 = vector.shape_cast %815 : vector<1x8x3xf32> to vector<8x3xf32>
      %817 = vector.extract_strided_slice %814 {offsets = [0, 0], sizes = [8, 1], strides = [1, 1]} : vector<8x9xf32> to vector<8x1xf32>
      %818 = vector.extract_strided_slice %814 {offsets = [0, 1], sizes = [8, 1], strides = [1, 1]} : vector<8x9xf32> to vector<8x1xf32>
      %819 = vector.extract_strided_slice %814 {offsets = [0, 2], sizes = [8, 1], strides = [1, 1]} : vector<8x9xf32> to vector<8x1xf32>
      %820 = vector.extract_strided_slice %814 {offsets = [0, 3], sizes = [8, 1], strides = [1, 1]} : vector<8x9xf32> to vector<8x1xf32>
      %821 = vector.extract_strided_slice %814 {offsets = [0, 4], sizes = [8, 1], strides = [1, 1]} : vector<8x9xf32> to vector<8x1xf32>
      %822 = vector.extract_strided_slice %814 {offsets = [0, 5], sizes = [8, 1], strides = [1, 1]} : vector<8x9xf32> to vector<8x1xf32>
      %823 = vector.extract_strided_slice %814 {offsets = [0, 6], sizes = [8, 1], strides = [1, 1]} : vector<8x9xf32> to vector<8x1xf32>
      %824 = vector.extract_strided_slice %814 {offsets = [0, 7], sizes = [8, 1], strides = [1, 1]} : vector<8x9xf32> to vector<8x1xf32>
      %825 = vector.extract_strided_slice %814 {offsets = [0, 8], sizes = [8, 1], strides = [1, 1]} : vector<8x9xf32> to vector<8x1xf32>
      %826 = vector.extract_strided_slice %816 {offsets = [0, 0], sizes = [8, 1], strides = [1, 1]} : vector<8x3xf32> to vector<8x1xf32>
      %827 = vector.extract_strided_slice %816 {offsets = [0, 1], sizes = [8, 1], strides = [1, 1]} : vector<8x3xf32> to vector<8x1xf32>
      %828 = vector.extract_strided_slice %816 {offsets = [0, 2], sizes = [8, 1], strides = [1, 1]} : vector<8x3xf32> to vector<8x1xf32>
      %829 = vector.broadcast %817 : vector<8x1xf32> to vector<8x16xf32>
      %830 = arith.mulf %829, %802 : vector<8x16xf32>
      %831 = vector.broadcast %818 : vector<8x1xf32> to vector<8x16xf32>
      %832 = arith.mulf %831, %804 : vector<8x16xf32>
      %833 = arith.addf %830, %832 : vector<8x16xf32>
      %834 = vector.broadcast %819 : vector<8x1xf32> to vector<8x16xf32>
      %835 = arith.mulf %834, %806 : vector<8x16xf32>
      %836 = arith.addf %833, %835 : vector<8x16xf32>
      %837 = vector.broadcast %826 : vector<8x1xf32> to vector<8x16xf32>
      %838 = arith.addf %836, %837 : vector<8x16xf32>
      %839 = vector.broadcast %820 : vector<8x1xf32> to vector<8x16xf32>
      %840 = arith.mulf %839, %802 : vector<8x16xf32>
      %841 = vector.broadcast %821 : vector<8x1xf32> to vector<8x16xf32>
      %842 = arith.mulf %841, %804 : vector<8x16xf32>
      %843 = arith.addf %840, %842 : vector<8x16xf32>
      %844 = vector.broadcast %822 : vector<8x1xf32> to vector<8x16xf32>
      %845 = arith.mulf %844, %806 : vector<8x16xf32>
      %846 = arith.addf %843, %845 : vector<8x16xf32>
      %847 = vector.broadcast %827 : vector<8x1xf32> to vector<8x16xf32>
      %848 = arith.addf %846, %847 : vector<8x16xf32>
      %849 = vector.broadcast %823 : vector<8x1xf32> to vector<8x16xf32>
      %850 = arith.mulf %849, %802 : vector<8x16xf32>
      %851 = vector.broadcast %824 : vector<8x1xf32> to vector<8x16xf32>
      %852 = arith.mulf %851, %804 : vector<8x16xf32>
      %853 = arith.addf %850, %852 : vector<8x16xf32>
      %854 = vector.broadcast %825 : vector<8x1xf32> to vector<8x16xf32>
      %855 = arith.mulf %854, %806 : vector<8x16xf32>
      %856 = arith.addf %853, %855 : vector<8x16xf32>
      %857 = vector.broadcast %828 : vector<8x1xf32> to vector<8x16xf32>
      %858 = arith.addf %856, %857 : vector<8x16xf32>
      %859 = vector.broadcast %817 : vector<8x1xf32> to vector<8x32xf32>
      %860 = arith.mulf %859, %808 : vector<8x32xf32>
      %861 = vector.broadcast %818 : vector<8x1xf32> to vector<8x32xf32>
      %862 = arith.mulf %861, %810 : vector<8x32xf32>
      %863 = arith.addf %860, %862 : vector<8x32xf32>
      %864 = vector.broadcast %819 : vector<8x1xf32> to vector<8x32xf32>
      %865 = arith.mulf %864, %812 : vector<8x32xf32>
      %866 = arith.addf %863, %865 : vector<8x32xf32>
      %867 = vector.broadcast %826 : vector<8x1xf32> to vector<8x32xf32>
      %868 = arith.addf %866, %867 : vector<8x32xf32>
      %869 = vector.broadcast %820 : vector<8x1xf32> to vector<8x32xf32>
      %870 = arith.mulf %869, %808 : vector<8x32xf32>
      %871 = vector.broadcast %821 : vector<8x1xf32> to vector<8x32xf32>
      %872 = arith.mulf %871, %810 : vector<8x32xf32>
      %873 = arith.addf %870, %872 : vector<8x32xf32>
      %874 = vector.broadcast %822 : vector<8x1xf32> to vector<8x32xf32>
      %875 = arith.mulf %874, %812 : vector<8x32xf32>
      %876 = arith.addf %873, %875 : vector<8x32xf32>
      %877 = vector.broadcast %827 : vector<8x1xf32> to vector<8x32xf32>
      %878 = arith.addf %876, %877 : vector<8x32xf32>
      %879 = vector.broadcast %823 : vector<8x1xf32> to vector<8x32xf32>
      %880 = arith.mulf %879, %808 : vector<8x32xf32>
      %881 = vector.broadcast %824 : vector<8x1xf32> to vector<8x32xf32>
      %882 = arith.mulf %881, %810 : vector<8x32xf32>
      %883 = arith.addf %880, %882 : vector<8x32xf32>
      %884 = vector.broadcast %825 : vector<8x1xf32> to vector<8x32xf32>
      %885 = arith.mulf %884, %812 : vector<8x32xf32>
      %886 = arith.addf %883, %885 : vector<8x32xf32>
      %887 = vector.broadcast %828 : vector<8x1xf32> to vector<8x32xf32>
      %888 = arith.addf %886, %887 : vector<8x32xf32>
      %889 = tpu.transpose %838, [1, 0] : vector<8x16xf32> -> vector<16x8xf32>
      %c0_250 = arith.constant 0 : index
      %c0_251 = arith.constant 0 : index
      %890 = vector.load %arg42[%c0_250, %c0_251] : memref<16x8xf32, #tpu.memory_space<vmem>>, vector<16x8xf32>
      tpu.vector_store %arg42[%c0_250, %c0_251], %889 {strides = array<i32>} : memref<16x8xf32, #tpu.memory_space<vmem>>, vector<16x8xf32>,
      %891 = tpu.transpose %848, [1, 0] : vector<8x16xf32> -> vector<16x8xf32>
      %c0_252 = arith.constant 0 : index
      %c0_253 = arith.constant 0 : index
      %892 = vector.load %arg43[%c0_252, %c0_253] : memref<16x8xf32, #tpu.memory_space<vmem>>, vector<16x8xf32>
      tpu.vector_store %arg43[%c0_252, %c0_253], %891 {strides = array<i32>} : memref<16x8xf32, #tpu.memory_space<vmem>>, vector<16x8xf32>,
      %893 = tpu.transpose %858, [1, 0] : vector<8x16xf32> -> vector<16x8xf32>
      %c0_254 = arith.constant 0 : index
      %c0_255 = arith.constant 0 : index
      %894 = vector.load %arg44[%c0_254, %c0_255] : memref<16x8xf32, #tpu.memory_space<vmem>>, vector<16x8xf32>
      tpu.vector_store %arg44[%c0_254, %c0_255], %893 {strides = array<i32>} : memref<16x8xf32, #tpu.memory_space<vmem>>, vector<16x8xf32>,
      %c0_256 = arith.constant 0 : index
      %c0_257 = arith.constant 0 : index
      %895 = vector.load %arg45[%c0_256, %c0_257] : memref<8x32xf32, #tpu.memory_space<vmem>>, vector<8x32xf32>
      tpu.vector_store %arg45[%c0_256, %c0_257], %868 {strides = array<i32>} : memref<8x32xf32, #tpu.memory_space<vmem>>, vector<8x32xf32>,
      %c0_258 = arith.constant 0 : index
      %c0_259 = arith.constant 0 : index
      %896 = vector.load %arg46[%c0_258, %c0_259] : memref<8x32xf32, #tpu.memory_space<vmem>>, vector<8x32xf32>
      tpu.vector_store %arg46[%c0_258, %c0_259], %878 {strides = array<i32>} : memref<8x32xf32, #tpu.memory_space<vmem>>, vector<8x32xf32>,
      %c0_260 = arith.constant 0 : index
      %c0_261 = arith.constant 0 : index
      %897 = vector.load %arg47[%c0_260, %c0_261] : memref<8x32xf32, #tpu.memory_space<vmem>>, vector<8x32xf32>
      tpu.vector_store %arg47[%c0_260, %c0_261], %888 {strides = array<i32>} : memref<8x32xf32, #tpu.memory_space<vmem>>, vector<8x32xf32>,
    } else {
    }
    %c0_4 = arith.constant 0 : index
    %c0_5 = arith.constant 0 : index
    %c0_6 = arith.constant 0 : index
    %5 = vector.load %arg3[%c0_4, %c0_5, %c0_6] : memref<1x8x32xf32, #tpu.memory_space<vmem>>, vector<1x8x32xf32>
    %6 = vector.shape_cast %5 : vector<1x8x32xf32> to vector<8x32xf32>
    %cst = arith.constant dense<0.000000e+00> : vector<8xf32>
    %7 = vector.multi_reduction <add>, %6, %cst [1] : vector<8x32xf32> to vector<8xf32>
    %8 = vector.shape_cast %7 : vector<8xf32> to vector<8x1xf32>
    %cst_7 = arith.constant 3.200000e+01 : f32
    %9 = vector.broadcast %cst_7 : f32 to vector<8x1xf32>
    %10 = arith.divf %8, %9 : vector<8x1xf32>
    %11 = vector.broadcast %10 : vector<8x1xf32> to vector<8x32xf32>
    %12 = arith.subf %6, %11 : vector<8x32xf32>
    %13 = arith.mulf %12, %12 : vector<8x32xf32>
    %cst_8 = arith.constant dense<0.000000e+00> : vector<8xf32>
    %14 = vector.multi_reduction <add>, %13, %cst_8 [1] : vector<8x32xf32> to vector<8xf32>
    %15 = vector.shape_cast %14 : vector<8xf32> to vector<8x1xf32>
    %cst_9 = arith.constant 3.200000e+01 : f32
    %16 = vector.broadcast %cst_9 : f32 to vector<8x1xf32>
    %17 = arith.divf %15, %16 : vector<8x1xf32>
    %cst_10 = arith.constant 9.99999974E-6 : f32
    %18 = vector.broadcast %cst_10 : f32 to vector<8x1xf32>
    %19 = arith.addf %17, %18 : vector<8x1xf32>
    %20 = math.rsqrt %19 : vector<8x1xf32>
    %21 = vector.broadcast %20 : vector<8x1xf32> to vector<8x32xf32>
    %22 = arith.mulf %12, %21 : vector<8x32xf32>
    %23 = vector.broadcast %0 : vector<1x32xf32> to vector<8x32xf32>
    %24 = arith.mulf %22, %23 : vector<8x32xf32>
    %25 = vector.broadcast %1 : vector<1x32xf32> to vector<8x32xf32>
    %26 = arith.addf %24, %25 : vector<8x32xf32>
    %c0_11 = arith.constant 0 : index
    %c0_12 = arith.constant 0 : index
    %27 = vector.load %arg12[%c0_11, %c0_12] : memref<32x32xf32, #tpu.memory_space<vmem>>, vector<32x32xf32>
    %cst_13 = arith.constant dense<0.000000e+00> : vector<8x32xf32>
    %28 = tpu.matmul %26, %27, %cst_13 {dimension_numbers = #tpu.dot_dimension_numbers<[1], [0], [0], [1], [0, 0, 1, 1], [], []>} : vector<8x32xf32>, vector<32x32xf32>, vector<8x32xf32> -> vector<8x32xf32>
    %cst_14 = arith.constant 0.204124153 : f32
    %29 = vector.broadcast %cst_14 : f32 to vector<8x32xf32>
    %30 = arith.mulf %28, %29 : vector<8x32xf32>
    %c0_15 = arith.constant 0 : index
    %c0_16 = arith.constant 0 : index
    %31 = vector.load %arg16[%c0_15, %c0_16] : memref<32x16xf32, #tpu.memory_space<vmem>>, vector<32x16xf32>
    %cst_17 = arith.constant dense<0.000000e+00> : vector<8x16xf32>
    %32 = tpu.matmul %26, %31, %cst_17 {dimension_numbers = #tpu.dot_dimension_numbers<[1], [0], [0], [1], [0, 0, 1, 1], [], []>} : vector<8x32xf32>, vector<32x16xf32>, vector<8x16xf32> -> vector<8x16xf32>
    %c0_18 = arith.constant 0 : index
    %c0_19 = arith.constant 0 : index
    %33 = vector.load %arg17[%c0_18, %c0_19] : memref<32x16xf32, #tpu.memory_space<vmem>>, vector<32x16xf32>
    %cst_20 = arith.constant dense<0.000000e+00> : vector<8x16xf32>
    %34 = tpu.matmul %26, %33, %cst_20 {dimension_numbers = #tpu.dot_dimension_numbers<[1], [0], [0], [1], [0, 0, 1, 1], [], []>} : vector<8x32xf32>, vector<32x16xf32>, vector<8x16xf32> -> vector<8x16xf32>
    %c0_21 = arith.constant 0 : index
    %c0_22 = arith.constant 0 : index
    %35 = vector.load %arg18[%c0_21, %c0_22] : memref<32x16xf32, #tpu.memory_space<vmem>>, vector<32x16xf32>
    %cst_23 = arith.constant dense<0.000000e+00> : vector<8x16xf32>
    %36 = tpu.matmul %26, %35, %cst_23 {dimension_numbers = #tpu.dot_dimension_numbers<[1], [0], [0], [1], [0, 0, 1, 1], [], []>} : vector<8x32xf32>, vector<32x16xf32>, vector<8x16xf32> -> vector<8x16xf32>
    %c0_24 = arith.constant 0 : index
    %c0_25 = arith.constant 0 : index
    %c0_26 = arith.constant 0 : index
    %37 = vector.load %arg8[%c0_24, %c0_25, %c0_26] : memref<1x8x9xf32, #tpu.memory_space<vmem>>, vector<1x8x9xf32>
    %38 = vector.shape_cast %37 : vector<1x8x9xf32> to vector<8x9xf32>
    %c0_27 = arith.constant 0 : index
    %c0_28 = arith.constant 0 : index
    %c0_29 = arith.constant 0 : index
    %39 = vector.load %arg6[%c0_27, %c0_28, %c0_29] : memref<1x8x3xf32, #tpu.memory_space<vmem>>, vector<1x8x3xf32>
    %40 = vector.shape_cast %39 : vector<1x8x3xf32> to vector<8x3xf32>
    %41 = vector.extract_strided_slice %38 {offsets = [0, 0], sizes = [8, 1], strides = [1, 1]} : vector<8x9xf32> to vector<8x1xf32>
    %42 = vector.extract_strided_slice %38 {offsets = [0, 1], sizes = [8, 1], strides = [1, 1]} : vector<8x9xf32> to vector<8x1xf32>
    %43 = vector.extract_strided_slice %38 {offsets = [0, 2], sizes = [8, 1], strides = [1, 1]} : vector<8x9xf32> to vector<8x1xf32>
    %44 = vector.extract_strided_slice %38 {offsets = [0, 3], sizes = [8, 1], strides = [1, 1]} : vector<8x9xf32> to vector<8x1xf32>
    %45 = vector.extract_strided_slice %38 {offsets = [0, 4], sizes = [8, 1], strides = [1, 1]} : vector<8x9xf32> to vector<8x1xf32>
    %46 = vector.extract_strided_slice %38 {offsets = [0, 5], sizes = [8, 1], strides = [1, 1]} : vector<8x9xf32> to vector<8x1xf32>
    %47 = vector.extract_strided_slice %38 {offsets = [0, 6], sizes = [8, 1], strides = [1, 1]} : vector<8x9xf32> to vector<8x1xf32>
    %48 = vector.extract_strided_slice %38 {offsets = [0, 7], sizes = [8, 1], strides = [1, 1]} : vector<8x9xf32> to vector<8x1xf32>
    %49 = vector.extract_strided_slice %38 {offsets = [0, 8], sizes = [8, 1], strides = [1, 1]} : vector<8x9xf32> to vector<8x1xf32>
    %50 = vector.extract_strided_slice %40 {offsets = [0, 0], sizes = [8, 1], strides = [1, 1]} : vector<8x3xf32> to vector<8x1xf32>
    %51 = vector.extract_strided_slice %40 {offsets = [0, 1], sizes = [8, 1], strides = [1, 1]} : vector<8x3xf32> to vector<8x1xf32>
    %52 = vector.extract_strided_slice %40 {offsets = [0, 2], sizes = [8, 1], strides = [1, 1]} : vector<8x3xf32> to vector<8x1xf32>
    %53 = vector.broadcast %41 : vector<8x1xf32> to vector<8x16xf32>
    %54 = arith.mulf %53, %32 : vector<8x16xf32>
    %55 = vector.broadcast %42 : vector<8x1xf32> to vector<8x16xf32>
    %56 = arith.mulf %55, %34 : vector<8x16xf32>
    %57 = arith.addf %54, %56 : vector<8x16xf32>
    %58 = vector.broadcast %43 : vector<8x1xf32> to vector<8x16xf32>
    %59 = arith.mulf %58, %36 : vector<8x16xf32>
    %60 = arith.addf %57, %59 : vector<8x16xf32>
    %61 = vector.broadcast %50 : vector<8x1xf32> to vector<8x16xf32>
    %62 = arith.addf %60, %61 : vector<8x16xf32>
    %63 = vector.broadcast %44 : vector<8x1xf32> to vector<8x16xf32>
    %64 = arith.mulf %63, %32 : vector<8x16xf32>
    %65 = vector.broadcast %45 : vector<8x1xf32> to vector<8x16xf32>
    %66 = arith.mulf %65, %34 : vector<8x16xf32>
    %67 = arith.addf %64, %66 : vector<8x16xf32>
    %68 = vector.broadcast %46 : vector<8x1xf32> to vector<8x16xf32>
    %69 = arith.mulf %68, %36 : vector<8x16xf32>
    %70 = arith.addf %67, %69 : vector<8x16xf32>
    %71 = vector.broadcast %51 : vector<8x1xf32> to vector<8x16xf32>
    %72 = arith.addf %70, %71 : vector<8x16xf32>
    %73 = vector.broadcast %47 : vector<8x1xf32> to vector<8x16xf32>
    %74 = arith.mulf %73, %32 : vector<8x16xf32>
    %75 = vector.broadcast %48 : vector<8x1xf32> to vector<8x16xf32>
    %76 = arith.mulf %75, %34 : vector<8x16xf32>
    %77 = arith.addf %74, %76 : vector<8x16xf32>
    %78 = vector.broadcast %49 : vector<8x1xf32> to vector<8x16xf32>
    %79 = arith.mulf %78, %36 : vector<8x16xf32>
    %80 = arith.addf %77, %79 : vector<8x16xf32>
    %81 = vector.broadcast %52 : vector<8x1xf32> to vector<8x16xf32>
    %82 = arith.addf %80, %81 : vector<8x16xf32>
    %c0_30 = arith.constant 0 : index
    %c0_31 = arith.constant 0 : index
    %c0_32 = arith.constant 0 : index
    %c0_33 = arith.constant 0 : index
    %83 = vector.load %arg4[%c0_30, %c0_31, %c0_32, %c0_33] : memref<1x8x8x16xf32, #tpu.memory_space<vmem>>, vector<1x8x8x16xf32>
    %84 = vector.shape_cast %83 : vector<1x8x8x16xf32> to vector<8x8x16xf32>
    %85 = vector.shape_cast %84 : vector<8x8x16xf32> to vector<64x16xf32>
    %c0_34 = arith.constant 0 : index
    %c0_35 = arith.constant 0 : index
    %86 = vector.load %arg15[%c0_34, %c0_35] : memref<16x4xf32, #tpu.memory_space<vmem>>, vector<16x4xf32>
    %cst_36 = arith.constant dense<0.000000e+00> : vector<64x4xf32>
    %87 = tpu.matmul %85, %86, %cst_36 {dimension_numbers = #tpu.dot_dimension_numbers<[1], [0], [0], [1], [0, 0, 1, 1], [], []>} : vector<64x16xf32>, vector<16x4xf32>, vector<64x4xf32> -> vector<64x4xf32>
    %cst_37 = arith.constant 0.577350259 : f32
    %88 = vector.broadcast %cst_37 : f32 to vector<64x4xf32>
    %89 = arith.mulf %88, %87 : vector<64x4xf32>
    %90 = vector.shape_cast %89 : vector<64x4xf32> to vector<8x8x4xf32>
    %91 = tpu.transpose %90, [2, 0, 1] : vector<8x8x4xf32> -> vector<4x8x8xf32>
    %c0_38 = arith.constant 0 : index
    %c0_39 = arith.constant 0 : index
    %92 = vector.load %arg25[%c0_38, %c0_39] : memref<1x4xf32, #tpu.memory_space<vmem>>, vector<1x4xf32>
    %cst_40 = arith.constant 0.000000e+00 : f32
    %93 = vector.broadcast %cst_40 : f32 to vector<1x4xf32>
    %94 = arith.maximumf %92, %93 : vector<1x4xf32>
    %95 = math.absf %92 : vector<1x4xf32>
    %cst_41 = arith.constant 0.000000e+00 : f32
    %96 = vector.broadcast %cst_41 : f32 to vector<1x4xf32>
    %97 = arith.subf %96, %95 : vector<1x4xf32>
    %98 = math.exp %97 : vector<1x4xf32>
    %cst_42 = arith.constant 1.000000e+00 : f32
    %99 = vector.broadcast %cst_42 : f32 to vector<1x4xf32>
    %100 = arith.addf %99, %98 : vector<1x4xf32>
    %101 = math.log %100 : vector<1x4xf32>
    %102 = arith.addf %94, %101 : vector<1x4xf32>
    %cst_43 = arith.constant 0.136082768 : f32
    %103 = vector.broadcast %cst_43 : f32 to vector<1x4xf32>
    %104 = arith.mulf %103, %102 : vector<1x4xf32>
    %c0_44 = arith.constant 0 : index
    %c0_45 = arith.constant 0 : index
    %105 = vector.load %arg40[%c0_44, %c0_45] : memref<8x32xf32, #tpu.memory_space<vmem>>, vector<8x32xf32>
    %c0_46 = arith.constant 0 : index
    %c0_47 = arith.constant 0 : index
    %106 = vector.load %arg41[%c0_46, %c0_47] : memref<8x32xf32, #tpu.memory_space<vmem>>, vector<8x32xf32>
    %c0_48 = arith.constant 0 : index
    %c0_49 = arith.constant 0 : index
    %107 = vector.load %arg42[%c0_48, %c0_49] : memref<16x8xf32, #tpu.memory_space<vmem>>, vector<16x8xf32>
    %c0_50 = arith.constant 0 : index
    %c0_51 = arith.constant 0 : index
    %108 = vector.load %arg43[%c0_50, %c0_51] : memref<16x8xf32, #tpu.memory_space<vmem>>, vector<16x8xf32>
    %c0_52 = arith.constant 0 : index
    %c0_53 = arith.constant 0 : index
    %109 = vector.load %arg44[%c0_52, %c0_53] : memref<16x8xf32, #tpu.memory_space<vmem>>, vector<16x8xf32>
    %c0_54 = arith.constant 0 : index
    %c0_55 = arith.constant 0 : index
    %110 = vector.load %arg45[%c0_54, %c0_55] : memref<8x32xf32, #tpu.memory_space<vmem>>, vector<8x32xf32>
    %c0_56 = arith.constant 0 : index
    %c0_57 = arith.constant 0 : index
    %111 = vector.load %arg46[%c0_56, %c0_57] : memref<8x32xf32, #tpu.memory_space<vmem>>, vector<8x32xf32>
    %c0_58 = arith.constant 0 : index
    %c0_59 = arith.constant 0 : index
    %112 = vector.load %arg47[%c0_58, %c0_59] : memref<8x32xf32, #tpu.memory_space<vmem>>, vector<8x32xf32>
    %c0_60 = arith.constant 0 : index
    %c0_61 = arith.constant 0 : index
    %c0_62 = arith.constant 0 : index
    %c0_63 = arith.constant 0 : index
    %113 = vector.load %arg9[%c0_60, %c0_61, %c0_62, %c0_63] : memref<1x4x8x8xf32, #tpu.memory_space<vmem>>, vector<1x4x8x8xf32>
    %114 = vector.shape_cast %113 : vector<1x4x8x8xf32> to vector<4x8x8xf32>
    %115 = vector.extract_strided_slice %30 {offsets = [0, 0], sizes = [8, 8], strides = [1, 1]} : vector<8x32xf32> to vector<8x8xf32>
    %116 = vector.extract_strided_slice %105 {offsets = [0, 0], sizes = [8, 8], strides = [1, 1]} : vector<8x32xf32> to vector<8x8xf32>
    %cst_64 = arith.constant dense<0.000000e+00> : vector<8x8xf32>
    %117 = tpu.matmul %115, %116, %cst_64 {dimension_numbers = #tpu.dot_dimension_numbers<[1], [1], [0], [0], [0, 0, 1, 0], [], []>} : vector<8x8xf32>, vector<8x8xf32>, vector<8x8xf32> -> vector<8x8xf32>
    %cst_65 = arith.constant 0.000000e+00 : f32
    %118 = vector.broadcast %cst_65 : f32 to vector<8x8xf32>
    %119 = vector.extract_strided_slice %62 {offsets = [0, 0], sizes = [8, 1], strides = [1, 1]} : vector<8x16xf32> to vector<8x1xf32>
    %120 = vector.extract_strided_slice %107 {offsets = [0, 0], sizes = [1, 8], strides = [1, 1]} : vector<16x8xf32> to vector<1x8xf32>
    %121 = vector.broadcast %119 : vector<8x1xf32> to vector<8x8xf32>
    %122 = vector.broadcast %120 : vector<1x8xf32> to vector<8x8xf32>
    %123 = arith.subf %121, %122 : vector<8x8xf32>
    %124 = vector.extract_strided_slice %72 {offsets = [0, 0], sizes = [8, 1], strides = [1, 1]} : vector<8x16xf32> to vector<8x1xf32>
    %125 = vector.extract_strided_slice %108 {offsets = [0, 0], sizes = [1, 8], strides = [1, 1]} : vector<16x8xf32> to vector<1x8xf32>
    %126 = vector.broadcast %124 : vector<8x1xf32> to vector<8x8xf32>
    %127 = vector.broadcast %125 : vector<1x8xf32> to vector<8x8xf32>
    %128 = arith.subf %126, %127 : vector<8x8xf32>
    %129 = vector.extract_strided_slice %82 {offsets = [0, 0], sizes = [8, 1], strides = [1, 1]} : vector<8x16xf32> to vector<8x1xf32>
    %130 = vector.extract_strided_slice %109 {offsets = [0, 0], sizes = [1, 8], strides = [1, 1]} : vector<16x8xf32> to vector<1x8xf32>
    %131 = vector.broadcast %129 : vector<8x1xf32> to vector<8x8xf32>
    %132 = vector.broadcast %130 : vector<1x8xf32> to vector<8x8xf32>
    %133 = arith.subf %131, %132 : vector<8x8xf32>
    %134 = arith.mulf %123, %123 : vector<8x8xf32>
    %135 = arith.mulf %128, %128 : vector<8x8xf32>
    %136 = arith.addf %134, %135 : vector<8x8xf32>
    %137 = arith.mulf %133, %133 : vector<8x8xf32>
    %138 = arith.addf %136, %137 : vector<8x8xf32>
    %139 = math.sqrt %138 : vector<8x8xf32>
    %140 = arith.addf %118, %139 : vector<8x8xf32>
    %141 = vector.extract_strided_slice %62 {offsets = [0, 1], sizes = [8, 1], strides = [1, 1]} : vector<8x16xf32> to vector<8x1xf32>
    %142 = vector.extract_strided_slice %107 {offsets = [1, 0], sizes = [1, 8], strides = [1, 1]} : vector<16x8xf32> to vector<1x8xf32>
    %143 = vector.broadcast %141 : vector<8x1xf32> to vector<8x8xf32>
    %144 = vector.broadcast %142 : vector<1x8xf32> to vector<8x8xf32>
    %145 = arith.subf %143, %144 : vector<8x8xf32>
    %146 = vector.extract_strided_slice %72 {offsets = [0, 1], sizes = [8, 1], strides = [1, 1]} : vector<8x16xf32> to vector<8x1xf32>
    %147 = vector.extract_strided_slice %108 {offsets = [1, 0], sizes = [1, 8], strides = [1, 1]} : vector<16x8xf32> to vector<1x8xf32>
    %148 = vector.broadcast %146 : vector<8x1xf32> to vector<8x8xf32>
    %149 = vector.broadcast %147 : vector<1x8xf32> to vector<8x8xf32>
    %150 = arith.subf %148, %149 : vector<8x8xf32>
    %151 = vector.extract_strided_slice %82 {offsets = [0, 1], sizes = [8, 1], strides = [1, 1]} : vector<8x16xf32> to vector<8x1xf32>
    %152 = vector.extract_strided_slice %109 {offsets = [1, 0], sizes = [1, 8], strides = [1, 1]} : vector<16x8xf32> to vector<1x8xf32>
    %153 = vector.broadcast %151 : vector<8x1xf32> to vector<8x8xf32>
    %154 = vector.broadcast %152 : vector<1x8xf32> to vector<8x8xf32>
    %155 = arith.subf %153, %154 : vector<8x8xf32>
    %156 = arith.mulf %145, %145 : vector<8x8xf32>
    %157 = arith.mulf %150, %150 : vector<8x8xf32>
    %158 = arith.addf %156, %157 : vector<8x8xf32>
    %159 = arith.mulf %155, %155 : vector<8x8xf32>
    %160 = arith.addf %158, %159 : vector<8x8xf32>
    %161 = math.sqrt %160 : vector<8x8xf32>
    %162 = arith.addf %140, %161 : vector<8x8xf32>
    %163 = vector.extract_strided_slice %62 {offsets = [0, 2], sizes = [8, 1], strides = [1, 1]} : vector<8x16xf32> to vector<8x1xf32>
    %164 = vector.extract_strided_slice %107 {offsets = [2, 0], sizes = [1, 8], strides = [1, 1]} : vector<16x8xf32> to vector<1x8xf32>
    %165 = vector.broadcast %163 : vector<8x1xf32> to vector<8x8xf32>
    %166 = vector.broadcast %164 : vector<1x8xf32> to vector<8x8xf32>
    %167 = arith.subf %165, %166 : vector<8x8xf32>
    %168 = vector.extract_strided_slice %72 {offsets = [0, 2], sizes = [8, 1], strides = [1, 1]} : vector<8x16xf32> to vector<8x1xf32>
    %169 = vector.extract_strided_slice %108 {offsets = [2, 0], sizes = [1, 8], strides = [1, 1]} : vector<16x8xf32> to vector<1x8xf32>
    %170 = vector.broadcast %168 : vector<8x1xf32> to vector<8x8xf32>
    %171 = vector.broadcast %169 : vector<1x8xf32> to vector<8x8xf32>
    %172 = arith.subf %170, %171 : vector<8x8xf32>
    %173 = vector.extract_strided_slice %82 {offsets = [0, 2], sizes = [8, 1], strides = [1, 1]} : vector<8x16xf32> to vector<8x1xf32>
    %174 = vector.extract_strided_slice %109 {offsets = [2, 0], sizes = [1, 8], strides = [1, 1]} : vector<16x8xf32> to vector<1x8xf32>
    %175 = vector.broadcast %173 : vector<8x1xf32> to vector<8x8xf32>
    %176 = vector.broadcast %174 : vector<1x8xf32> to vector<8x8xf32>
    %177 = arith.subf %175, %176 : vector<8x8xf32>
    %178 = arith.mulf %167, %167 : vector<8x8xf32>
    %179 = arith.mulf %172, %172 : vector<8x8xf32>
    %180 = arith.addf %178, %179 : vector<8x8xf32>
    %181 = arith.mulf %177, %177 : vector<8x8xf32>
    %182 = arith.addf %180, %181 : vector<8x8xf32>
    %183 = math.sqrt %182 : vector<8x8xf32>
    %184 = arith.addf %162, %183 : vector<8x8xf32>
    %185 = vector.extract_strided_slice %62 {offsets = [0, 3], sizes = [8, 1], strides = [1, 1]} : vector<8x16xf32> to vector<8x1xf32>
    %186 = vector.extract_strided_slice %107 {offsets = [3, 0], sizes = [1, 8], strides = [1, 1]} : vector<16x8xf32> to vector<1x8xf32>
    %187 = vector.broadcast %185 : vector<8x1xf32> to vector<8x8xf32>
    %188 = vector.broadcast %186 : vector<1x8xf32> to vector<8x8xf32>
    %189 = arith.subf %187, %188 : vector<8x8xf32>
    %190 = vector.extract_strided_slice %72 {offsets = [0, 3], sizes = [8, 1], strides = [1, 1]} : vector<8x16xf32> to vector<8x1xf32>
    %191 = vector.extract_strided_slice %108 {offsets = [3, 0], sizes = [1, 8], strides = [1, 1]} : vector<16x8xf32> to vector<1x8xf32>
    %192 = vector.broadcast %190 : vector<8x1xf32> to vector<8x8xf32>
    %193 = vector.broadcast %191 : vector<1x8xf32> to vector<8x8xf32>
    %194 = arith.subf %192, %193 : vector<8x8xf32>
    %195 = vector.extract_strided_slice %82 {offsets = [0, 3], sizes = [8, 1], strides = [1, 1]} : vector<8x16xf32> to vector<8x1xf32>
    %196 = vector.extract_strided_slice %109 {offsets = [3, 0], sizes = [1, 8], strides = [1, 1]} : vector<16x8xf32> to vector<1x8xf32>
    %197 = vector.broadcast %195 : vector<8x1xf32> to vector<8x8xf32>
    %198 = vector.broadcast %196 : vector<1x8xf32> to vector<8x8xf32>
    %199 = arith.subf %197, %198 : vector<8x8xf32>
    %200 = arith.mulf %189, %189 : vector<8x8xf32>
    %201 = arith.mulf %194, %194 : vector<8x8xf32>
    %202 = arith.addf %200, %201 : vector<8x8xf32>
    %203 = arith.mulf %199, %199 : vector<8x8xf32>
    %204 = arith.addf %202, %203 : vector<8x8xf32>
    %205 = math.sqrt %204 : vector<8x8xf32>
    %206 = arith.addf %184, %205 : vector<8x8xf32>
    %207 = vector.extract_strided_slice %104 {offsets = [0, 0], sizes = [1, 1], strides = [1, 1]} : vector<1x4xf32> to vector<1x1xf32>
    %cst_66 = arith.constant 5.000000e-01 : f32
    %208 = vector.broadcast %cst_66 : f32 to vector<1x1xf32>
    %209 = arith.mulf %208, %207 : vector<1x1xf32>
    %210 = vector.broadcast %209 : vector<1x1xf32> to vector<8x8xf32>
    %211 = arith.mulf %210, %206 : vector<8x8xf32>
    %212 = arith.subf %117, %211 : vector<8x8xf32>
    %213 = vector.extract_strided_slice %91 {offsets = [0, 0, 0], sizes = [1, 8, 8], strides = [1, 1, 1]} : vector<4x8x8xf32> to vector<1x8x8xf32>
    %214 = vector.shape_cast %213 : vector<1x8x8xf32> to vector<8x8xf32>
    %215 = arith.addf %212, %214 : vector<8x8xf32>
    %216 = vector.extract_strided_slice %114 {offsets = [0, 0, 0], sizes = [1, 8, 8], strides = [1, 1, 1]} : vector<4x8x8xf32> to vector<1x8x8xf32>
    %217 = vector.shape_cast %216 : vector<1x8x8xf32> to vector<8x8xf32>
    %218 = arith.addf %215, %217 : vector<8x8xf32>
    %cst_67 = arith.constant dense<0xFF800000> : vector<8xf32>
    %219 = vector.multi_reduction <maximumf>, %218, %cst_67 [1] : vector<8x8xf32> to vector<8xf32>
    %220 = vector.shape_cast %219 : vector<8xf32> to vector<8x1xf32>
    %221 = vector.broadcast %220 : vector<8x1xf32> to vector<8x8xf32>
    %222 = arith.subf %218, %221 : vector<8x8xf32>
    %223 = math.exp %222 : vector<8x8xf32>
    %cst_68 = arith.constant dense<0.000000e+00> : vector<8xf32>
    %224 = vector.multi_reduction <add>, %223, %cst_68 [1] : vector<8x8xf32> to vector<8xf32>
    %225 = vector.shape_cast %224 : vector<8xf32> to vector<8x1xf32>
    %226 = tpu.reciprocal %225 {approx = true} : vector<8x1xf32> -> vector<8x1xf32>
    %227 = vector.broadcast %226 : vector<8x1xf32> to vector<8x8xf32>
    %228 = arith.mulf %223, %227 : vector<8x8xf32>
    %c0_69 = arith.constant 0 : index
    %c0_70 = arith.constant 0 : index
    %c0_71 = arith.constant 0 : index
    %229 = vector.load %arg48[%c0_69, %c0_70, %c0_71] : memref<4x8x8xf32, #tpu.memory_space<vmem>>, vector<1x8x8xf32>
    %230 = vector.shape_cast %229 : vector<1x8x8xf32> to vector<8x8xf32>
    %231 = vector.shape_cast %228 : vector<8x8xf32> to vector<1x8x8xf32>
    tpu.vector_store %arg48[%c0_69, %c0_70, %c0_71], %231 {strides = array<i32>} : memref<4x8x8xf32, #tpu.memory_space<vmem>>, vector<1x8x8xf32>,
    %232 = vector.extract_strided_slice %106 {offsets = [0, 0], sizes = [8, 8], strides = [1, 1]} : vector<8x32xf32> to vector<8x8xf32>
    %cst_72 = arith.constant dense<0.000000e+00> : vector<8x8xf32>
    %233 = tpu.matmul %228, %232, %cst_72 {dimension_numbers = #tpu.dot_dimension_numbers<[1], [0], [0], [1], [0, 0, 1, 1], [], []>} : vector<8x8xf32>, vector<8x8xf32>, vector<8x8xf32> -> vector<8x8xf32>
    %c0_73 = arith.constant 0 : index
    %c0_74 = arith.constant 0 : index
    %234 = vector.load %arg49[%c0_73, %c0_74] : memref<8x32xf32, #tpu.memory_space<vmem>>, vector<8x8xf32>
    tpu.vector_store %arg49[%c0_73, %c0_74], %233 {strides = array<i32>} : memref<8x32xf32, #tpu.memory_space<vmem>>, vector<8x8xf32>,
    %235 = vector.extract_strided_slice %110 {offsets = [0, 0], sizes = [8, 8], strides = [1, 1]} : vector<8x32xf32> to vector<8x8xf32>
    %cst_75 = arith.constant dense<0.000000e+00> : vector<8x8xf32>
    %236 = tpu.matmul %228, %235, %cst_75 {dimension_numbers = #tpu.dot_dimension_numbers<[1], [0], [0], [1], [0, 0, 1, 1], [], []>} : vector<8x8xf32>, vector<8x8xf32>, vector<8x8xf32> -> vector<8x8xf32>
    %c0_76 = arith.constant 0 : index
    %c0_77 = arith.constant 0 : index
    %237 = vector.load %arg50[%c0_76, %c0_77] : memref<8x32xf32, #tpu.memory_space<vmem>>, vector<8x8xf32>
    tpu.vector_store %arg50[%c0_76, %c0_77], %236 {strides = array<i32>} : memref<8x32xf32, #tpu.memory_space<vmem>>, vector<8x8xf32>,
    %238 = vector.extract_strided_slice %111 {offsets = [0, 0], sizes = [8, 8], strides = [1, 1]} : vector<8x32xf32> to vector<8x8xf32>
    %cst_78 = arith.constant dense<0.000000e+00> : vector<8x8xf32>
    %239 = tpu.matmul %228, %238, %cst_78 {dimension_numbers = #tpu.dot_dimension_numbers<[1], [0], [0], [1], [0, 0, 1, 1], [], []>} : vector<8x8xf32>, vector<8x8xf32>, vector<8x8xf32> -> vector<8x8xf32>
    %c0_79 = arith.constant 0 : index
    %c0_80 = arith.constant 0 : index
    %240 = vector.load %arg51[%c0_79, %c0_80] : memref<8x32xf32, #tpu.memory_space<vmem>>, vector<8x8xf32>
    tpu.vector_store %arg51[%c0_79, %c0_80], %239 {strides = array<i32>} : memref<8x32xf32, #tpu.memory_space<vmem>>, vector<8x8xf32>,
    %241 = vector.extract_strided_slice %112 {offsets = [0, 0], sizes = [8, 8], strides = [1, 1]} : vector<8x32xf32> to vector<8x8xf32>
    %cst_81 = arith.constant dense<0.000000e+00> : vector<8x8xf32>
    %242 = tpu.matmul %228, %241, %cst_81 {dimension_numbers = #tpu.dot_dimension_numbers<[1], [0], [0], [1], [0, 0, 1, 1], [], []>} : vector<8x8xf32>, vector<8x8xf32>, vector<8x8xf32> -> vector<8x8xf32>
    %c0_82 = arith.constant 0 : index
    %c0_83 = arith.constant 0 : index
    %243 = vector.load %arg52[%c0_82, %c0_83] : memref<8x32xf32, #tpu.memory_space<vmem>>, vector<8x8xf32>
    tpu.vector_store %arg52[%c0_82, %c0_83], %242 {strides = array<i32>} : memref<8x32xf32, #tpu.memory_space<vmem>>, vector<8x8xf32>,
    %244 = vector.extract_strided_slice %30 {offsets = [0, 8], sizes = [8, 8], strides = [1, 1]} : vector<8x32xf32> to vector<8x8xf32>
    %245 = vector.extract_strided_slice %105 {offsets = [0, 8], sizes = [8, 8], strides = [1, 1]} : vector<8x32xf32> to vector<8x8xf32>
    %cst_84 = arith.constant dense<0.000000e+00> : vector<8x8xf32>
    %246 = tpu.matmul %244, %245, %cst_84 {dimension_numbers = #tpu.dot_dimension_numbers<[1], [1], [0], [0], [0, 0, 1, 0], [], []>} : vector<8x8xf32>, vector<8x8xf32>, vector<8x8xf32> -> vector<8x8xf32>
    %cst_85 = arith.constant 0.000000e+00 : f32
    %247 = vector.broadcast %cst_85 : f32 to vector<8x8xf32>
    %248 = vector.extract_strided_slice %62 {offsets = [0, 4], sizes = [8, 1], strides = [1, 1]} : vector<8x16xf32> to vector<8x1xf32>
    %249 = vector.extract_strided_slice %107 {offsets = [4, 0], sizes = [1, 8], strides = [1, 1]} : vector<16x8xf32> to vector<1x8xf32>
    %250 = vector.broadcast %248 : vector<8x1xf32> to vector<8x8xf32>
    %251 = vector.broadcast %249 : vector<1x8xf32> to vector<8x8xf32>
    %252 = arith.subf %250, %251 : vector<8x8xf32>
    %253 = vector.extract_strided_slice %72 {offsets = [0, 4], sizes = [8, 1], strides = [1, 1]} : vector<8x16xf32> to vector<8x1xf32>
    %254 = vector.extract_strided_slice %108 {offsets = [4, 0], sizes = [1, 8], strides = [1, 1]} : vector<16x8xf32> to vector<1x8xf32>
    %255 = vector.broadcast %253 : vector<8x1xf32> to vector<8x8xf32>
    %256 = vector.broadcast %254 : vector<1x8xf32> to vector<8x8xf32>
    %257 = arith.subf %255, %256 : vector<8x8xf32>
    %258 = vector.extract_strided_slice %82 {offsets = [0, 4], sizes = [8, 1], strides = [1, 1]} : vector<8x16xf32> to vector<8x1xf32>
    %259 = vector.extract_strided_slice %109 {offsets = [4, 0], sizes = [1, 8], strides = [1, 1]} : vector<16x8xf32> to vector<1x8xf32>
    %260 = vector.broadcast %258 : vector<8x1xf32> to vector<8x8xf32>
    %261 = vector.broadcast %259 : vector<1x8xf32> to vector<8x8xf32>
    %262 = arith.subf %260, %261 : vector<8x8xf32>
    %263 = arith.mulf %252, %252 : vector<8x8xf32>
    %264 = arith.mulf %257, %257 : vector<8x8xf32>
    %265 = arith.addf %263, %264 : vector<8x8xf32>
    %266 = arith.mulf %262, %262 : vector<8x8xf32>
    %267 = arith.addf %265, %266 : vector<8x8xf32>
    %268 = math.sqrt %267 : vector<8x8xf32>
    %269 = arith.addf %247, %268 : vector<8x8xf32>
    %270 = vector.extract_strided_slice %62 {offsets = [0, 5], sizes = [8, 1], strides = [1, 1]} : vector<8x16xf32> to vector<8x1xf32>
    %271 = vector.extract_strided_slice %107 {offsets = [5, 0], sizes = [1, 8], strides = [1, 1]} : vector<16x8xf32> to vector<1x8xf32>
    %272 = vector.broadcast %270 : vector<8x1xf32> to vector<8x8xf32>
    %273 = vector.broadcast %271 : vector<1x8xf32> to vector<8x8xf32>
    %274 = arith.subf %272, %273 : vector<8x8xf32>
    %275 = vector.extract_strided_slice %72 {offsets = [0, 5], sizes = [8, 1], strides = [1, 1]} : vector<8x16xf32> to vector<8x1xf32>
    %276 = vector.extract_strided_slice %108 {offsets = [5, 0], sizes = [1, 8], strides = [1, 1]} : vector<16x8xf32> to vector<1x8xf32>
    %277 = vector.broadcast %275 : vector<8x1xf32> to vector<8x8xf32>
    %278 = vector.broadcast %276 : vector<1x8xf32> to vector<8x8xf32>
    %279 = arith.subf %277, %278 : vector<8x8xf32>
    %280 = vector.extract_strided_slice %82 {offsets = [0, 5], sizes = [8, 1], strides = [1, 1]} : vector<8x16xf32> to vector<8x1xf32>
    %281 = vector.extract_strided_slice %109 {offsets = [5, 0], sizes = [1, 8], strides = [1, 1]} : vector<16x8xf32> to vector<1x8xf32>
    %282 = vector.broadcast %280 : vector<8x1xf32> to vector<8x8xf32>
    %283 = vector.broadcast %281 : vector<1x8xf32> to vector<8x8xf32>
    %284 = arith.subf %282, %283 : vector<8x8xf32>
    %285 = arith.mulf %274, %274 : vector<8x8xf32>
    %286 = arith.mulf %279, %279 : vector<8x8xf32>
    %287 = arith.addf %285, %286 : vector<8x8xf32>
    %288 = arith.mulf %284, %284 : vector<8x8xf32>
    %289 = arith.addf %287, %288 : vector<8x8xf32>
    %290 = math.sqrt %289 : vector<8x8xf32>
    %291 = arith.addf %269, %290 : vector<8x8xf32>
    %292 = vector.extract_strided_slice %62 {offsets = [0, 6], sizes = [8, 1], strides = [1, 1]} : vector<8x16xf32> to vector<8x1xf32>
    %293 = vector.extract_strided_slice %107 {offsets = [6, 0], sizes = [1, 8], strides = [1, 1]} : vector<16x8xf32> to vector<1x8xf32>
    %294 = vector.broadcast %292 : vector<8x1xf32> to vector<8x8xf32>
    %295 = vector.broadcast %293 : vector<1x8xf32> to vector<8x8xf32>
    %296 = arith.subf %294, %295 : vector<8x8xf32>
    %297 = vector.extract_strided_slice %72 {offsets = [0, 6], sizes = [8, 1], strides = [1, 1]} : vector<8x16xf32> to vector<8x1xf32>
    %298 = vector.extract_strided_slice %108 {offsets = [6, 0], sizes = [1, 8], strides = [1, 1]} : vector<16x8xf32> to vector<1x8xf32>
    %299 = vector.broadcast %297 : vector<8x1xf32> to vector<8x8xf32>
    %300 = vector.broadcast %298 : vector<1x8xf32> to vector<8x8xf32>
    %301 = arith.subf %299, %300 : vector<8x8xf32>
    %302 = vector.extract_strided_slice %82 {offsets = [0, 6], sizes = [8, 1], strides = [1, 1]} : vector<8x16xf32> to vector<8x1xf32>
    %303 = vector.extract_strided_slice %109 {offsets = [6, 0], sizes = [1, 8], strides = [1, 1]} : vector<16x8xf32> to vector<1x8xf32>
    %304 = vector.broadcast %302 : vector<8x1xf32> to vector<8x8xf32>
    %305 = vector.broadcast %303 : vector<1x8xf32> to vector<8x8xf32>
    %306 = arith.subf %304, %305 : vector<8x8xf32>
    %307 = arith.mulf %296, %296 : vector<8x8xf32>
    %308 = arith.mulf %301, %301 : vector<8x8xf32>
    %309 = arith.addf %307, %308 : vector<8x8xf32>
    %310 = arith.mulf %306, %306 : vector<8x8xf32>
    %311 = arith.addf %309, %310 : vector<8x8xf32>
    %312 = math.sqrt %311 : vector<8x8xf32>
    %313 = arith.addf %291, %312 : vector<8x8xf32>
    %314 = vector.extract_strided_slice %62 {offsets = [0, 7], sizes = [8, 1], strides = [1, 1]} : vector<8x16xf32> to vector<8x1xf32>
    %315 = vector.extract_strided_slice %107 {offsets = [7, 0], sizes = [1, 8], strides = [1, 1]} : vector<16x8xf32> to vector<1x8xf32>
    %316 = vector.broadcast %314 : vector<8x1xf32> to vector<8x8xf32>
    %317 = vector.broadcast %315 : vector<1x8xf32> to vector<8x8xf32>
    %318 = arith.subf %316, %317 : vector<8x8xf32>
    %319 = vector.extract_strided_slice %72 {offsets = [0, 7], sizes = [8, 1], strides = [1, 1]} : vector<8x16xf32> to vector<8x1xf32>
    %320 = vector.extract_strided_slice %108 {offsets = [7, 0], sizes = [1, 8], strides = [1, 1]} : vector<16x8xf32> to vector<1x8xf32>
    %321 = vector.broadcast %319 : vector<8x1xf32> to vector<8x8xf32>
    %322 = vector.broadcast %320 : vector<1x8xf32> to vector<8x8xf32>
    %323 = arith.subf %321, %322 : vector<8x8xf32>
    %324 = vector.extract_strided_slice %82 {offsets = [0, 7], sizes = [8, 1], strides = [1, 1]} : vector<8x16xf32> to vector<8x1xf32>
    %325 = vector.extract_strided_slice %109 {offsets = [7, 0], sizes = [1, 8], strides = [1, 1]} : vector<16x8xf32> to vector<1x8xf32>
    %326 = vector.broadcast %324 : vector<8x1xf32> to vector<8x8xf32>
    %327 = vector.broadcast %325 : vector<1x8xf32> to vector<8x8xf32>
    %328 = arith.subf %326, %327 : vector<8x8xf32>
    %329 = arith.mulf %318, %318 : vector<8x8xf32>
    %330 = arith.mulf %323, %323 : vector<8x8xf32>
    %331 = arith.addf %329, %330 : vector<8x8xf32>
    %332 = arith.mulf %328, %328 : vector<8x8xf32>
    %333 = arith.addf %331, %332 : vector<8x8xf32>
    %334 = math.sqrt %333 : vector<8x8xf32>
    %335 = arith.addf %313, %334 : vector<8x8xf32>
    %336 = vector.extract_strided_slice %104 {offsets = [0, 1], sizes = [1, 1], strides = [1, 1]} : vector<1x4xf32> to vector<1x1xf32>
    %cst_86 = arith.constant 5.000000e-01 : f32
    %337 = vector.broadcast %cst_86 : f32 to vector<1x1xf32>
    %338 = arith.mulf %337, %336 : vector<1x1xf32>
    %339 = vector.broadcast %338 : vector<1x1xf32> to vector<8x8xf32>
    %340 = arith.mulf %339, %335 : vector<8x8xf32>
    %341 = arith.subf %246, %340 : vector<8x8xf32>
    %342 = vector.extract_strided_slice %91 {offsets = [1, 0, 0], sizes = [1, 8, 8], strides = [1, 1, 1]} : vector<4x8x8xf32> to vector<1x8x8xf32>
    %343 = vector.shape_cast %342 : vector<1x8x8xf32> to vector<8x8xf32>
    %344 = arith.addf %341, %343 : vector<8x8xf32>
    %345 = vector.extract_strided_slice %114 {offsets = [1, 0, 0], sizes = [1, 8, 8], strides = [1, 1, 1]} : vector<4x8x8xf32> to vector<1x8x8xf32>
    %346 = vector.shape_cast %345 : vector<1x8x8xf32> to vector<8x8xf32>
    %347 = arith.addf %344, %346 : vector<8x8xf32>
    %cst_87 = arith.constant dense<0xFF800000> : vector<8xf32>
    %348 = vector.multi_reduction <maximumf>, %347, %cst_87 [1] : vector<8x8xf32> to vector<8xf32>
    %349 = vector.shape_cast %348 : vector<8xf32> to vector<8x1xf32>
    %350 = vector.broadcast %349 : vector<8x1xf32> to vector<8x8xf32>
    %351 = arith.subf %347, %350 : vector<8x8xf32>
    %352 = math.exp %351 : vector<8x8xf32>
    %cst_88 = arith.constant dense<0.000000e+00> : vector<8xf32>
    %353 = vector.multi_reduction <add>, %352, %cst_88 [1] : vector<8x8xf32> to vector<8xf32>
    %354 = vector.shape_cast %353 : vector<8xf32> to vector<8x1xf32>
    %355 = tpu.reciprocal %354 {approx = true} : vector<8x1xf32> -> vector<8x1xf32>
    %356 = vector.broadcast %355 : vector<8x1xf32> to vector<8x8xf32>
    %357 = arith.mulf %352, %356 : vector<8x8xf32>
    %c1 = arith.constant 1 : index
    %c0_89 = arith.constant 0 : index
    %c0_90 = arith.constant 0 : index
    %358 = vector.load %arg48[%c1, %c0_89, %c0_90] : memref<4x8x8xf32, #tpu.memory_space<vmem>>, vector<1x8x8xf32>
    %359 = vector.shape_cast %358 : vector<1x8x8xf32> to vector<8x8xf32>
    %360 = vector.shape_cast %357 : vector<8x8xf32> to vector<1x8x8xf32>
    tpu.vector_store %arg48[%c1, %c0_89, %c0_90], %360 {strides = array<i32>} : memref<4x8x8xf32, #tpu.memory_space<vmem>>, vector<1x8x8xf32>,
    %361 = vector.extract_strided_slice %106 {offsets = [0, 8], sizes = [8, 8], strides = [1, 1]} : vector<8x32xf32> to vector<8x8xf32>
    %cst_91 = arith.constant dense<0.000000e+00> : vector<8x8xf32>
    %362 = tpu.matmul %357, %361, %cst_91 {dimension_numbers = #tpu.dot_dimension_numbers<[1], [0], [0], [1], [0, 0, 1, 1], [], []>} : vector<8x8xf32>, vector<8x8xf32>, vector<8x8xf32> -> vector<8x8xf32>
    %c0_92 = arith.constant 0 : index
    %c8 = arith.constant 8 : index
    %363 = vector.load %arg49[%c0_92, %c8] : memref<8x32xf32, #tpu.memory_space<vmem>>, vector<8x8xf32>
    tpu.vector_store %arg49[%c0_92, %c8], %362 {strides = array<i32>} : memref<8x32xf32, #tpu.memory_space<vmem>>, vector<8x8xf32>,
    %364 = vector.extract_strided_slice %110 {offsets = [0, 8], sizes = [8, 8], strides = [1, 1]} : vector<8x32xf32> to vector<8x8xf32>
    %cst_93 = arith.constant dense<0.000000e+00> : vector<8x8xf32>
    %365 = tpu.matmul %357, %364, %cst_93 {dimension_numbers = #tpu.dot_dimension_numbers<[1], [0], [0], [1], [0, 0, 1, 1], [], []>} : vector<8x8xf32>, vector<8x8xf32>, vector<8x8xf32> -> vector<8x8xf32>
    %c0_94 = arith.constant 0 : index
    %c8_95 = arith.constant 8 : index
    %366 = vector.load %arg50[%c0_94, %c8_95] : memref<8x32xf32, #tpu.memory_space<vmem>>, vector<8x8xf32>
    tpu.vector_store %arg50[%c0_94, %c8_95], %365 {strides = array<i32>} : memref<8x32xf32, #tpu.memory_space<vmem>>, vector<8x8xf32>,
    %367 = vector.extract_strided_slice %111 {offsets = [0, 8], sizes = [8, 8], strides = [1, 1]} : vector<8x32xf32> to vector<8x8xf32>
    %cst_96 = arith.constant dense<0.000000e+00> : vector<8x8xf32>
    %368 = tpu.matmul %357, %367, %cst_96 {dimension_numbers = #tpu.dot_dimension_numbers<[1], [0], [0], [1], [0, 0, 1, 1], [], []>} : vector<8x8xf32>, vector<8x8xf32>, vector<8x8xf32> -> vector<8x8xf32>
    %c0_97 = arith.constant 0 : index
    %c8_98 = arith.constant 8 : index
    %369 = vector.load %arg51[%c0_97, %c8_98] : memref<8x32xf32, #tpu.memory_space<vmem>>, vector<8x8xf32>
    tpu.vector_store %arg51[%c0_97, %c8_98], %368 {strides = array<i32>} : memref<8x32xf32, #tpu.memory_space<vmem>>, vector<8x8xf32>,
    %370 = vector.extract_strided_slice %112 {offsets = [0, 8], sizes = [8, 8], strides = [1, 1]} : vector<8x32xf32> to vector<8x8xf32>
    %cst_99 = arith.constant dense<0.000000e+00> : vector<8x8xf32>
    %371 = tpu.matmul %357, %370, %cst_99 {dimension_numbers = #tpu.dot_dimension_numbers<[1], [0], [0], [1], [0, 0, 1, 1], [], []>} : vector<8x8xf32>, vector<8x8xf32>, vector<8x8xf32> -> vector<8x8xf32>
    %c0_100 = arith.constant 0 : index
    %c8_101 = arith.constant 8 : index
    %372 = vector.load %arg52[%c0_100, %c8_101] : memref<8x32xf32, #tpu.memory_space<vmem>>, vector<8x8xf32>
    tpu.vector_store %arg52[%c0_100, %c8_101], %371 {strides = array<i32>} : memref<8x32xf32, #tpu.memory_space<vmem>>, vector<8x8xf32>,
    %373 = vector.extract_strided_slice %30 {offsets = [0, 16], sizes = [8, 8], strides = [1, 1]} : vector<8x32xf32> to vector<8x8xf32>
    %374 = vector.extract_strided_slice %105 {offsets = [0, 16], sizes = [8, 8], strides = [1, 1]} : vector<8x32xf32> to vector<8x8xf32>
    %cst_102 = arith.constant dense<0.000000e+00> : vector<8x8xf32>
    %375 = tpu.matmul %373, %374, %cst_102 {dimension_numbers = #tpu.dot_dimension_numbers<[1], [1], [0], [0], [0, 0, 1, 0], [], []>} : vector<8x8xf32>, vector<8x8xf32>, vector<8x8xf32> -> vector<8x8xf32>
    %cst_103 = arith.constant 0.000000e+00 : f32
    %376 = vector.broadcast %cst_103 : f32 to vector<8x8xf32>
    %377 = vector.extract_strided_slice %62 {offsets = [0, 8], sizes = [8, 1], strides = [1, 1]} : vector<8x16xf32> to vector<8x1xf32>
    %378 = vector.extract_strided_slice %107 {offsets = [8, 0], sizes = [1, 8], strides = [1, 1]} : vector<16x8xf32> to vector<1x8xf32>
    %379 = vector.broadcast %377 : vector<8x1xf32> to vector<8x8xf32>
    %380 = vector.broadcast %378 : vector<1x8xf32> to vector<8x8xf32>
    %381 = arith.subf %379, %380 : vector<8x8xf32>
    %382 = vector.extract_strided_slice %72 {offsets = [0, 8], sizes = [8, 1], strides = [1, 1]} : vector<8x16xf32> to vector<8x1xf32>
    %383 = vector.extract_strided_slice %108 {offsets = [8, 0], sizes = [1, 8], strides = [1, 1]} : vector<16x8xf32> to vector<1x8xf32>
    %384 = vector.broadcast %382 : vector<8x1xf32> to vector<8x8xf32>
    %385 = vector.broadcast %383 : vector<1x8xf32> to vector<8x8xf32>
    %386 = arith.subf %384, %385 : vector<8x8xf32>
    %387 = vector.extract_strided_slice %82 {offsets = [0, 8], sizes = [8, 1], strides = [1, 1]} : vector<8x16xf32> to vector<8x1xf32>
    %388 = vector.extract_strided_slice %109 {offsets = [8, 0], sizes = [1, 8], strides = [1, 1]} : vector<16x8xf32> to vector<1x8xf32>
    %389 = vector.broadcast %387 : vector<8x1xf32> to vector<8x8xf32>
    %390 = vector.broadcast %388 : vector<1x8xf32> to vector<8x8xf32>
    %391 = arith.subf %389, %390 : vector<8x8xf32>
    %392 = arith.mulf %381, %381 : vector<8x8xf32>
    %393 = arith.mulf %386, %386 : vector<8x8xf32>
    %394 = arith.addf %392, %393 : vector<8x8xf32>
    %395 = arith.mulf %391, %391 : vector<8x8xf32>
    %396 = arith.addf %394, %395 : vector<8x8xf32>
    %397 = math.sqrt %396 : vector<8x8xf32>
    %398 = arith.addf %376, %397 : vector<8x8xf32>
    %399 = vector.extract_strided_slice %62 {offsets = [0, 9], sizes = [8, 1], strides = [1, 1]} : vector<8x16xf32> to vector<8x1xf32>
    %400 = vector.extract_strided_slice %107 {offsets = [9, 0], sizes = [1, 8], strides = [1, 1]} : vector<16x8xf32> to vector<1x8xf32>
    %401 = vector.broadcast %399 : vector<8x1xf32> to vector<8x8xf32>
    %402 = vector.broadcast %400 : vector<1x8xf32> to vector<8x8xf32>
    %403 = arith.subf %401, %402 : vector<8x8xf32>
    %404 = vector.extract_strided_slice %72 {offsets = [0, 9], sizes = [8, 1], strides = [1, 1]} : vector<8x16xf32> to vector<8x1xf32>
    %405 = vector.extract_strided_slice %108 {offsets = [9, 0], sizes = [1, 8], strides = [1, 1]} : vector<16x8xf32> to vector<1x8xf32>
    %406 = vector.broadcast %404 : vector<8x1xf32> to vector<8x8xf32>
    %407 = vector.broadcast %405 : vector<1x8xf32> to vector<8x8xf32>
    %408 = arith.subf %406, %407 : vector<8x8xf32>
    %409 = vector.extract_strided_slice %82 {offsets = [0, 9], sizes = [8, 1], strides = [1, 1]} : vector<8x16xf32> to vector<8x1xf32>
    %410 = vector.extract_strided_slice %109 {offsets = [9, 0], sizes = [1, 8], strides = [1, 1]} : vector<16x8xf32> to vector<1x8xf32>
    %411 = vector.broadcast %409 : vector<8x1xf32> to vector<8x8xf32>
    %412 = vector.broadcast %410 : vector<1x8xf32> to vector<8x8xf32>
    %413 = arith.subf %411, %412 : vector<8x8xf32>
    %414 = arith.mulf %403, %403 : vector<8x8xf32>
    %415 = arith.mulf %408, %408 : vector<8x8xf32>
    %416 = arith.addf %414, %415 : vector<8x8xf32>
    %417 = arith.mulf %413, %413 : vector<8x8xf32>
    %418 = arith.addf %416, %417 : vector<8x8xf32>
    %419 = math.sqrt %418 : vector<8x8xf32>
    %420 = arith.addf %398, %419 : vector<8x8xf32>
    %421 = vector.extract_strided_slice %62 {offsets = [0, 10], sizes = [8, 1], strides = [1, 1]} : vector<8x16xf32> to vector<8x1xf32>
    %422 = vector.extract_strided_slice %107 {offsets = [10, 0], sizes = [1, 8], strides = [1, 1]} : vector<16x8xf32> to vector<1x8xf32>
    %423 = vector.broadcast %421 : vector<8x1xf32> to vector<8x8xf32>
    %424 = vector.broadcast %422 : vector<1x8xf32> to vector<8x8xf32>
    %425 = arith.subf %423, %424 : vector<8x8xf32>
    %426 = vector.extract_strided_slice %72 {offsets = [0, 10], sizes = [8, 1], strides = [1, 1]} : vector<8x16xf32> to vector<8x1xf32>
    %427 = vector.extract_strided_slice %108 {offsets = [10, 0], sizes = [1, 8], strides = [1, 1]} : vector<16x8xf32> to vector<1x8xf32>
    %428 = vector.broadcast %426 : vector<8x1xf32> to vector<8x8xf32>
    %429 = vector.broadcast %427 : vector<1x8xf32> to vector<8x8xf32>
    %430 = arith.subf %428, %429 : vector<8x8xf32>
    %431 = vector.extract_strided_slice %82 {offsets = [0, 10], sizes = [8, 1], strides = [1, 1]} : vector<8x16xf32> to vector<8x1xf32>
    %432 = vector.extract_strided_slice %109 {offsets = [10, 0], sizes = [1, 8], strides = [1, 1]} : vector<16x8xf32> to vector<1x8xf32>
    %433 = vector.broadcast %431 : vector<8x1xf32> to vector<8x8xf32>
    %434 = vector.broadcast %432 : vector<1x8xf32> to vector<8x8xf32>
    %435 = arith.subf %433, %434 : vector<8x8xf32>
    %436 = arith.mulf %425, %425 : vector<8x8xf32>
    %437 = arith.mulf %430, %430 : vector<8x8xf32>
    %438 = arith.addf %436, %437 : vector<8x8xf32>
    %439 = arith.mulf %435, %435 : vector<8x8xf32>
    %440 = arith.addf %438, %439 : vector<8x8xf32>
    %441 = math.sqrt %440 : vector<8x8xf32>
    %442 = arith.addf %420, %441 : vector<8x8xf32>
    %443 = vector.extract_strided_slice %62 {offsets = [0, 11], sizes = [8, 1], strides = [1, 1]} : vector<8x16xf32> to vector<8x1xf32>
    %444 = vector.extract_strided_slice %107 {offsets = [11, 0], sizes = [1, 8], strides = [1, 1]} : vector<16x8xf32> to vector<1x8xf32>
    %445 = vector.broadcast %443 : vector<8x1xf32> to vector<8x8xf32>
    %446 = vector.broadcast %444 : vector<1x8xf32> to vector<8x8xf32>
    %447 = arith.subf %445, %446 : vector<8x8xf32>
    %448 = vector.extract_strided_slice %72 {offsets = [0, 11], sizes = [8, 1], strides = [1, 1]} : vector<8x16xf32> to vector<8x1xf32>
    %449 = vector.extract_strided_slice %108 {offsets = [11, 0], sizes = [1, 8], strides = [1, 1]} : vector<16x8xf32> to vector<1x8xf32>
    %450 = vector.broadcast %448 : vector<8x1xf32> to vector<8x8xf32>
    %451 = vector.broadcast %449 : vector<1x8xf32> to vector<8x8xf32>
    %452 = arith.subf %450, %451 : vector<8x8xf32>
    %453 = vector.extract_strided_slice %82 {offsets = [0, 11], sizes = [8, 1], strides = [1, 1]} : vector<8x16xf32> to vector<8x1xf32>
    %454 = vector.extract_strided_slice %109 {offsets = [11, 0], sizes = [1, 8], strides = [1, 1]} : vector<16x8xf32> to vector<1x8xf32>
    %455 = vector.broadcast %453 : vector<8x1xf32> to vector<8x8xf32>
    %456 = vector.broadcast %454 : vector<1x8xf32> to vector<8x8xf32>
    %457 = arith.subf %455, %456 : vector<8x8xf32>
    %458 = arith.mulf %447, %447 : vector<8x8xf32>
    %459 = arith.mulf %452, %452 : vector<8x8xf32>
    %460 = arith.addf %458, %459 : vector<8x8xf32>
    %461 = arith.mulf %457, %457 : vector<8x8xf32>
    %462 = arith.addf %460, %461 : vector<8x8xf32>
    %463 = math.sqrt %462 : vector<8x8xf32>
    %464 = arith.addf %442, %463 : vector<8x8xf32>
    %465 = vector.extract_strided_slice %104 {offsets = [0, 2], sizes = [1, 1], strides = [1, 1]} : vector<1x4xf32> to vector<1x1xf32>
    %cst_104 = arith.constant 5.000000e-01 : f32
    %466 = vector.broadcast %cst_104 : f32 to vector<1x1xf32>
    %467 = arith.mulf %466, %465 : vector<1x1xf32>
    %468 = vector.broadcast %467 : vector<1x1xf32> to vector<8x8xf32>
    %469 = arith.mulf %468, %464 : vector<8x8xf32>
    %470 = arith.subf %375, %469 : vector<8x8xf32>
    %471 = vector.extract_strided_slice %91 {offsets = [2, 0, 0], sizes = [1, 8, 8], strides = [1, 1, 1]} : vector<4x8x8xf32> to vector<1x8x8xf32>
    %472 = vector.shape_cast %471 : vector<1x8x8xf32> to vector<8x8xf32>
    %473 = arith.addf %470, %472 : vector<8x8xf32>
    %474 = vector.extract_strided_slice %114 {offsets = [2, 0, 0], sizes = [1, 8, 8], strides = [1, 1, 1]} : vector<4x8x8xf32> to vector<1x8x8xf32>
    %475 = vector.shape_cast %474 : vector<1x8x8xf32> to vector<8x8xf32>
    %476 = arith.addf %473, %475 : vector<8x8xf32>
    %cst_105 = arith.constant dense<0xFF800000> : vector<8xf32>
    %477 = vector.multi_reduction <maximumf>, %476, %cst_105 [1] : vector<8x8xf32> to vector<8xf32>
    %478 = vector.shape_cast %477 : vector<8xf32> to vector<8x1xf32>
    %479 = vector.broadcast %478 : vector<8x1xf32> to vector<8x8xf32>
    %480 = arith.subf %476, %479 : vector<8x8xf32>
    %481 = math.exp %480 : vector<8x8xf32>
    %cst_106 = arith.constant dense<0.000000e+00> : vector<8xf32>
    %482 = vector.multi_reduction <add>, %481, %cst_106 [1] : vector<8x8xf32> to vector<8xf32>
    %483 = vector.shape_cast %482 : vector<8xf32> to vector<8x1xf32>
    %484 = tpu.reciprocal %483 {approx = true} : vector<8x1xf32> -> vector<8x1xf32>
    %485 = vector.broadcast %484 : vector<8x1xf32> to vector<8x8xf32>
    %486 = arith.mulf %481, %485 : vector<8x8xf32>
    %c2 = arith.constant 2 : index
    %c0_107 = arith.constant 0 : index
    %c0_108 = arith.constant 0 : index
    %487 = vector.load %arg48[%c2, %c0_107, %c0_108] : memref<4x8x8xf32, #tpu.memory_space<vmem>>, vector<1x8x8xf32>
    %488 = vector.shape_cast %487 : vector<1x8x8xf32> to vector<8x8xf32>
    %489 = vector.shape_cast %486 : vector<8x8xf32> to vector<1x8x8xf32>
    tpu.vector_store %arg48[%c2, %c0_107, %c0_108], %489 {strides = array<i32>} : memref<4x8x8xf32, #tpu.memory_space<vmem>>, vector<1x8x8xf32>,
    %490 = vector.extract_strided_slice %106 {offsets = [0, 16], sizes = [8, 8], strides = [1, 1]} : vector<8x32xf32> to vector<8x8xf32>
    %cst_109 = arith.constant dense<0.000000e+00> : vector<8x8xf32>
    %491 = tpu.matmul %486, %490, %cst_109 {dimension_numbers = #tpu.dot_dimension_numbers<[1], [0], [0], [1], [0, 0, 1, 1], [], []>} : vector<8x8xf32>, vector<8x8xf32>, vector<8x8xf32> -> vector<8x8xf32>
    %c0_110 = arith.constant 0 : index
    %c16 = arith.constant 16 : index
    %492 = vector.load %arg49[%c0_110, %c16] : memref<8x32xf32, #tpu.memory_space<vmem>>, vector<8x8xf32>
    tpu.vector_store %arg49[%c0_110, %c16], %491 {strides = array<i32>} : memref<8x32xf32, #tpu.memory_space<vmem>>, vector<8x8xf32>,
    %493 = vector.extract_strided_slice %110 {offsets = [0, 16], sizes = [8, 8], strides = [1, 1]} : vector<8x32xf32> to vector<8x8xf32>
    %cst_111 = arith.constant dense<0.000000e+00> : vector<8x8xf32>
    %494 = tpu.matmul %486, %493, %cst_111 {dimension_numbers = #tpu.dot_dimension_numbers<[1], [0], [0], [1], [0, 0, 1, 1], [], []>} : vector<8x8xf32>, vector<8x8xf32>, vector<8x8xf32> -> vector<8x8xf32>
    %c0_112 = arith.constant 0 : index
    %c16_113 = arith.constant 16 : index
    %495 = vector.load %arg50[%c0_112, %c16_113] : memref<8x32xf32, #tpu.memory_space<vmem>>, vector<8x8xf32>
    tpu.vector_store %arg50[%c0_112, %c16_113], %494 {strides = array<i32>} : memref<8x32xf32, #tpu.memory_space<vmem>>, vector<8x8xf32>,
    %496 = vector.extract_strided_slice %111 {offsets = [0, 16], sizes = [8, 8], strides = [1, 1]} : vector<8x32xf32> to vector<8x8xf32>
    %cst_114 = arith.constant dense<0.000000e+00> : vector<8x8xf32>
    %497 = tpu.matmul %486, %496, %cst_114 {dimension_numbers = #tpu.dot_dimension_numbers<[1], [0], [0], [1], [0, 0, 1, 1], [], []>} : vector<8x8xf32>, vector<8x8xf32>, vector<8x8xf32> -> vector<8x8xf32>
    %c0_115 = arith.constant 0 : index
    %c16_116 = arith.constant 16 : index
    %498 = vector.load %arg51[%c0_115, %c16_116] : memref<8x32xf32, #tpu.memory_space<vmem>>, vector<8x8xf32>
    tpu.vector_store %arg51[%c0_115, %c16_116], %497 {strides = array<i32>} : memref<8x32xf32, #tpu.memory_space<vmem>>, vector<8x8xf32>,
    %499 = vector.extract_strided_slice %112 {offsets = [0, 16], sizes = [8, 8], strides = [1, 1]} : vector<8x32xf32> to vector<8x8xf32>
    %cst_117 = arith.constant dense<0.000000e+00> : vector<8x8xf32>
    %500 = tpu.matmul %486, %499, %cst_117 {dimension_numbers = #tpu.dot_dimension_numbers<[1], [0], [0], [1], [0, 0, 1, 1], [], []>} : vector<8x8xf32>, vector<8x8xf32>, vector<8x8xf32> -> vector<8x8xf32>
    %c0_118 = arith.constant 0 : index
    %c16_119 = arith.constant 16 : index
    %501 = vector.load %arg52[%c0_118, %c16_119] : memref<8x32xf32, #tpu.memory_space<vmem>>, vector<8x8xf32>
    tpu.vector_store %arg52[%c0_118, %c16_119], %500 {strides = array<i32>} : memref<8x32xf32, #tpu.memory_space<vmem>>, vector<8x8xf32>,
    %502 = vector.extract_strided_slice %30 {offsets = [0, 24], sizes = [8, 8], strides = [1, 1]} : vector<8x32xf32> to vector<8x8xf32>
    %503 = vector.extract_strided_slice %105 {offsets = [0, 24], sizes = [8, 8], strides = [1, 1]} : vector<8x32xf32> to vector<8x8xf32>
    %cst_120 = arith.constant dense<0.000000e+00> : vector<8x8xf32>
    %504 = tpu.matmul %502, %503, %cst_120 {dimension_numbers = #tpu.dot_dimension_numbers<[1], [1], [0], [0], [0, 0, 1, 0], [], []>} : vector<8x8xf32>, vector<8x8xf32>, vector<8x8xf32> -> vector<8x8xf32>
    %cst_121 = arith.constant 0.000000e+00 : f32
    %505 = vector.broadcast %cst_121 : f32 to vector<8x8xf32>
    %506 = vector.extract_strided_slice %62 {offsets = [0, 12], sizes = [8, 1], strides = [1, 1]} : vector<8x16xf32> to vector<8x1xf32>
    %507 = vector.extract_strided_slice %107 {offsets = [12, 0], sizes = [1, 8], strides = [1, 1]} : vector<16x8xf32> to vector<1x8xf32>
    %508 = vector.broadcast %506 : vector<8x1xf32> to vector<8x8xf32>
    %509 = vector.broadcast %507 : vector<1x8xf32> to vector<8x8xf32>
    %510 = arith.subf %508, %509 : vector<8x8xf32>
    %511 = vector.extract_strided_slice %72 {offsets = [0, 12], sizes = [8, 1], strides = [1, 1]} : vector<8x16xf32> to vector<8x1xf32>
    %512 = vector.extract_strided_slice %108 {offsets = [12, 0], sizes = [1, 8], strides = [1, 1]} : vector<16x8xf32> to vector<1x8xf32>
    %513 = vector.broadcast %511 : vector<8x1xf32> to vector<8x8xf32>
    %514 = vector.broadcast %512 : vector<1x8xf32> to vector<8x8xf32>
    %515 = arith.subf %513, %514 : vector<8x8xf32>
    %516 = vector.extract_strided_slice %82 {offsets = [0, 12], sizes = [8, 1], strides = [1, 1]} : vector<8x16xf32> to vector<8x1xf32>
    %517 = vector.extract_strided_slice %109 {offsets = [12, 0], sizes = [1, 8], strides = [1, 1]} : vector<16x8xf32> to vector<1x8xf32>
    %518 = vector.broadcast %516 : vector<8x1xf32> to vector<8x8xf32>
    %519 = vector.broadcast %517 : vector<1x8xf32> to vector<8x8xf32>
    %520 = arith.subf %518, %519 : vector<8x8xf32>
    %521 = arith.mulf %510, %510 : vector<8x8xf32>
    %522 = arith.mulf %515, %515 : vector<8x8xf32>
    %523 = arith.addf %521, %522 : vector<8x8xf32>
    %524 = arith.mulf %520, %520 : vector<8x8xf32>
    %525 = arith.addf %523, %524 : vector<8x8xf32>
    %526 = math.sqrt %525 : vector<8x8xf32>
    %527 = arith.addf %505, %526 : vector<8x8xf32>
    %528 = vector.extract_strided_slice %62 {offsets = [0, 13], sizes = [8, 1], strides = [1, 1]} : vector<8x16xf32> to vector<8x1xf32>
    %529 = vector.extract_strided_slice %107 {offsets = [13, 0], sizes = [1, 8], strides = [1, 1]} : vector<16x8xf32> to vector<1x8xf32>
    %530 = vector.broadcast %528 : vector<8x1xf32> to vector<8x8xf32>
    %531 = vector.broadcast %529 : vector<1x8xf32> to vector<8x8xf32>
    %532 = arith.subf %530, %531 : vector<8x8xf32>
    %533 = vector.extract_strided_slice %72 {offsets = [0, 13], sizes = [8, 1], strides = [1, 1]} : vector<8x16xf32> to vector<8x1xf32>
    %534 = vector.extract_strided_slice %108 {offsets = [13, 0], sizes = [1, 8], strides = [1, 1]} : vector<16x8xf32> to vector<1x8xf32>
    %535 = vector.broadcast %533 : vector<8x1xf32> to vector<8x8xf32>
    %536 = vector.broadcast %534 : vector<1x8xf32> to vector<8x8xf32>
    %537 = arith.subf %535, %536 : vector<8x8xf32>
    %538 = vector.extract_strided_slice %82 {offsets = [0, 13], sizes = [8, 1], strides = [1, 1]} : vector<8x16xf32> to vector<8x1xf32>
    %539 = vector.extract_strided_slice %109 {offsets = [13, 0], sizes = [1, 8], strides = [1, 1]} : vector<16x8xf32> to vector<1x8xf32>
    %540 = vector.broadcast %538 : vector<8x1xf32> to vector<8x8xf32>
    %541 = vector.broadcast %539 : vector<1x8xf32> to vector<8x8xf32>
    %542 = arith.subf %540, %541 : vector<8x8xf32>
    %543 = arith.mulf %532, %532 : vector<8x8xf32>
    %544 = arith.mulf %537, %537 : vector<8x8xf32>
    %545 = arith.addf %543, %544 : vector<8x8xf32>
    %546 = arith.mulf %542, %542 : vector<8x8xf32>
    %547 = arith.addf %545, %546 : vector<8x8xf32>
    %548 = math.sqrt %547 : vector<8x8xf32>
    %549 = arith.addf %527, %548 : vector<8x8xf32>
    %550 = vector.extract_strided_slice %62 {offsets = [0, 14], sizes = [8, 1], strides = [1, 1]} : vector<8x16xf32> to vector<8x1xf32>
    %551 = vector.extract_strided_slice %107 {offsets = [14, 0], sizes = [1, 8], strides = [1, 1]} : vector<16x8xf32> to vector<1x8xf32>
    %552 = vector.broadcast %550 : vector<8x1xf32> to vector<8x8xf32>
    %553 = vector.broadcast %551 : vector<1x8xf32> to vector<8x8xf32>
    %554 = arith.subf %552, %553 : vector<8x8xf32>
    %555 = vector.extract_strided_slice %72 {offsets = [0, 14], sizes = [8, 1], strides = [1, 1]} : vector<8x16xf32> to vector<8x1xf32>
    %556 = vector.extract_strided_slice %108 {offsets = [14, 0], sizes = [1, 8], strides = [1, 1]} : vector<16x8xf32> to vector<1x8xf32>
    %557 = vector.broadcast %555 : vector<8x1xf32> to vector<8x8xf32>
    %558 = vector.broadcast %556 : vector<1x8xf32> to vector<8x8xf32>
    %559 = arith.subf %557, %558 : vector<8x8xf32>
    %560 = vector.extract_strided_slice %82 {offsets = [0, 14], sizes = [8, 1], strides = [1, 1]} : vector<8x16xf32> to vector<8x1xf32>
    %561 = vector.extract_strided_slice %109 {offsets = [14, 0], sizes = [1, 8], strides = [1, 1]} : vector<16x8xf32> to vector<1x8xf32>
    %562 = vector.broadcast %560 : vector<8x1xf32> to vector<8x8xf32>
    %563 = vector.broadcast %561 : vector<1x8xf32> to vector<8x8xf32>
    %564 = arith.subf %562, %563 : vector<8x8xf32>
    %565 = arith.mulf %554, %554 : vector<8x8xf32>
    %566 = arith.mulf %559, %559 : vector<8x8xf32>
    %567 = arith.addf %565, %566 : vector<8x8xf32>
    %568 = arith.mulf %564, %564 : vector<8x8xf32>
    %569 = arith.addf %567, %568 : vector<8x8xf32>
    %570 = math.sqrt %569 : vector<8x8xf32>
    %571 = arith.addf %549, %570 : vector<8x8xf32>
    %572 = vector.extract_strided_slice %62 {offsets = [0, 15], sizes = [8, 1], strides = [1, 1]} : vector<8x16xf32> to vector<8x1xf32>
    %573 = vector.extract_strided_slice %107 {offsets = [15, 0], sizes = [1, 8], strides = [1, 1]} : vector<16x8xf32> to vector<1x8xf32>
    %574 = vector.broadcast %572 : vector<8x1xf32> to vector<8x8xf32>
    %575 = vector.broadcast %573 : vector<1x8xf32> to vector<8x8xf32>
    %576 = arith.subf %574, %575 : vector<8x8xf32>
    %577 = vector.extract_strided_slice %72 {offsets = [0, 15], sizes = [8, 1], strides = [1, 1]} : vector<8x16xf32> to vector<8x1xf32>
    %578 = vector.extract_strided_slice %108 {offsets = [15, 0], sizes = [1, 8], strides = [1, 1]} : vector<16x8xf32> to vector<1x8xf32>
    %579 = vector.broadcast %577 : vector<8x1xf32> to vector<8x8xf32>
    %580 = vector.broadcast %578 : vector<1x8xf32> to vector<8x8xf32>
    %581 = arith.subf %579, %580 : vector<8x8xf32>
    %582 = vector.extract_strided_slice %82 {offsets = [0, 15], sizes = [8, 1], strides = [1, 1]} : vector<8x16xf32> to vector<8x1xf32>
    %583 = vector.extract_strided_slice %109 {offsets = [15, 0], sizes = [1, 8], strides = [1, 1]} : vector<16x8xf32> to vector<1x8xf32>
    %584 = vector.broadcast %582 : vector<8x1xf32> to vector<8x8xf32>
    %585 = vector.broadcast %583 : vector<1x8xf32> to vector<8x8xf32>
    %586 = arith.subf %584, %585 : vector<8x8xf32>
    %587 = arith.mulf %576, %576 : vector<8x8xf32>
    %588 = arith.mulf %581, %581 : vector<8x8xf32>
    %589 = arith.addf %587, %588 : vector<8x8xf32>
    %590 = arith.mulf %586, %586 : vector<8x8xf32>
    %591 = arith.addf %589, %590 : vector<8x8xf32>
    %592 = math.sqrt %591 : vector<8x8xf32>
    %593 = arith.addf %571, %592 : vector<8x8xf32>
    %594 = vector.extract_strided_slice %104 {offsets = [0, 3], sizes = [1, 1], strides = [1, 1]} : vector<1x4xf32> to vector<1x1xf32>
    %cst_122 = arith.constant 5.000000e-01 : f32
    %595 = vector.broadcast %cst_122 : f32 to vector<1x1xf32>
    %596 = arith.mulf %595, %594 : vector<1x1xf32>
    %597 = vector.broadcast %596 : vector<1x1xf32> to vector<8x8xf32>
    %598 = arith.mulf %597, %593 : vector<8x8xf32>
    %599 = arith.subf %504, %598 : vector<8x8xf32>
    %600 = vector.extract_strided_slice %91 {offsets = [3, 0, 0], sizes = [1, 8, 8], strides = [1, 1, 1]} : vector<4x8x8xf32> to vector<1x8x8xf32>
    %601 = vector.shape_cast %600 : vector<1x8x8xf32> to vector<8x8xf32>
    %602 = arith.addf %599, %601 : vector<8x8xf32>
    %603 = vector.extract_strided_slice %114 {offsets = [3, 0, 0], sizes = [1, 8, 8], strides = [1, 1, 1]} : vector<4x8x8xf32> to vector<1x8x8xf32>
    %604 = vector.shape_cast %603 : vector<1x8x8xf32> to vector<8x8xf32>
    %605 = arith.addf %602, %604 : vector<8x8xf32>
    %cst_123 = arith.constant dense<0xFF800000> : vector<8xf32>
    %606 = vector.multi_reduction <maximumf>, %605, %cst_123 [1] : vector<8x8xf32> to vector<8xf32>
    %607 = vector.shape_cast %606 : vector<8xf32> to vector<8x1xf32>
    %608 = vector.broadcast %607 : vector<8x1xf32> to vector<8x8xf32>
    %609 = arith.subf %605, %608 : vector<8x8xf32>
    %610 = math.exp %609 : vector<8x8xf32>
    %cst_124 = arith.constant dense<0.000000e+00> : vector<8xf32>
    %611 = vector.multi_reduction <add>, %610, %cst_124 [1] : vector<8x8xf32> to vector<8xf32>
    %612 = vector.shape_cast %611 : vector<8xf32> to vector<8x1xf32>
    %613 = tpu.reciprocal %612 {approx = true} : vector<8x1xf32> -> vector<8x1xf32>
    %614 = vector.broadcast %613 : vector<8x1xf32> to vector<8x8xf32>
    %615 = arith.mulf %610, %614 : vector<8x8xf32>
    %c3 = arith.constant 3 : index
    %c0_125 = arith.constant 0 : index
    %c0_126 = arith.constant 0 : index
    %616 = vector.load %arg48[%c3, %c0_125, %c0_126] : memref<4x8x8xf32, #tpu.memory_space<vmem>>, vector<1x8x8xf32>
    %617 = vector.shape_cast %616 : vector<1x8x8xf32> to vector<8x8xf32>
    %618 = vector.shape_cast %615 : vector<8x8xf32> to vector<1x8x8xf32>
    tpu.vector_store %arg48[%c3, %c0_125, %c0_126], %618 {strides = array<i32>} : memref<4x8x8xf32, #tpu.memory_space<vmem>>, vector<1x8x8xf32>,
    %619 = vector.extract_strided_slice %106 {offsets = [0, 24], sizes = [8, 8], strides = [1, 1]} : vector<8x32xf32> to vector<8x8xf32>
    %cst_127 = arith.constant dense<0.000000e+00> : vector<8x8xf32>
    %620 = tpu.matmul %615, %619, %cst_127 {dimension_numbers = #tpu.dot_dimension_numbers<[1], [0], [0], [1], [0, 0, 1, 1], [], []>} : vector<8x8xf32>, vector<8x8xf32>, vector<8x8xf32> -> vector<8x8xf32>
    %c0_128 = arith.constant 0 : index
    %c24 = arith.constant 24 : index
    %621 = vector.load %arg49[%c0_128, %c24] : memref<8x32xf32, #tpu.memory_space<vmem>>, vector<8x8xf32>
    tpu.vector_store %arg49[%c0_128, %c24], %620 {strides = array<i32>} : memref<8x32xf32, #tpu.memory_space<vmem>>, vector<8x8xf32>,
    %622 = vector.extract_strided_slice %110 {offsets = [0, 24], sizes = [8, 8], strides = [1, 1]} : vector<8x32xf32> to vector<8x8xf32>
    %cst_129 = arith.constant dense<0.000000e+00> : vector<8x8xf32>
    %623 = tpu.matmul %615, %622, %cst_129 {dimension_numbers = #tpu.dot_dimension_numbers<[1], [0], [0], [1], [0, 0, 1, 1], [], []>} : vector<8x8xf32>, vector<8x8xf32>, vector<8x8xf32> -> vector<8x8xf32>
    %c0_130 = arith.constant 0 : index
    %c24_131 = arith.constant 24 : index
    %624 = vector.load %arg50[%c0_130, %c24_131] : memref<8x32xf32, #tpu.memory_space<vmem>>, vector<8x8xf32>
    tpu.vector_store %arg50[%c0_130, %c24_131], %623 {strides = array<i32>} : memref<8x32xf32, #tpu.memory_space<vmem>>, vector<8x8xf32>,
    %625 = vector.extract_strided_slice %111 {offsets = [0, 24], sizes = [8, 8], strides = [1, 1]} : vector<8x32xf32> to vector<8x8xf32>
    %cst_132 = arith.constant dense<0.000000e+00> : vector<8x8xf32>
    %626 = tpu.matmul %615, %625, %cst_132 {dimension_numbers = #tpu.dot_dimension_numbers<[1], [0], [0], [1], [0, 0, 1, 1], [], []>} : vector<8x8xf32>, vector<8x8xf32>, vector<8x8xf32> -> vector<8x8xf32>
    %c0_133 = arith.constant 0 : index
    %c24_134 = arith.constant 24 : index
    %627 = vector.load %arg51[%c0_133, %c24_134] : memref<8x32xf32, #tpu.memory_space<vmem>>, vector<8x8xf32>
    tpu.vector_store %arg51[%c0_133, %c24_134], %626 {strides = array<i32>} : memref<8x32xf32, #tpu.memory_space<vmem>>, vector<8x8xf32>,
    %628 = vector.extract_strided_slice %112 {offsets = [0, 24], sizes = [8, 8], strides = [1, 1]} : vector<8x32xf32> to vector<8x8xf32>
    %cst_135 = arith.constant dense<0.000000e+00> : vector<8x8xf32>
    %629 = tpu.matmul %615, %628, %cst_135 {dimension_numbers = #tpu.dot_dimension_numbers<[1], [0], [0], [1], [0, 0, 1, 1], [], []>} : vector<8x8xf32>, vector<8x8xf32>, vector<8x8xf32> -> vector<8x8xf32>
    %c0_136 = arith.constant 0 : index
    %c24_137 = arith.constant 24 : index
    %630 = vector.load %arg52[%c0_136, %c24_137] : memref<8x32xf32, #tpu.memory_space<vmem>>, vector<8x8xf32>
    tpu.vector_store %arg52[%c0_136, %c24_137], %629 {strides = array<i32>} : memref<8x32xf32, #tpu.memory_space<vmem>>, vector<8x8xf32>,
    %c0_138 = arith.constant 0 : index
    %c0_139 = arith.constant 0 : index
    %631 = vector.load %arg49[%c0_138, %c0_139] : memref<8x32xf32, #tpu.memory_space<vmem>>, vector<8x32xf32>
    %c0_140 = arith.constant 0 : index
    %c0_141 = arith.constant 0 : index
    %632 = vector.load %arg26[%c0_140, %c0_141] : memref<32x32xf32, #tpu.memory_space<vmem>>, vector<32x32xf32>
    %cst_142 = arith.constant dense<0.000000e+00> : vector<8x32xf32>
    %633 = tpu.matmul %631, %632, %cst_142 {dimension_numbers = #tpu.dot_dimension_numbers<[1], [0], [0], [1], [0, 0, 1, 1], [], []>} : vector<8x32xf32>, vector<32x32xf32>, vector<8x32xf32> -> vector<8x32xf32>
    %c0_143 = arith.constant 0 : index
    %c0_144 = arith.constant 0 : index
    %c0_145 = arith.constant 0 : index
    %634 = vector.load %arg48[%c0_143, %c0_144, %c0_145] : memref<4x8x8xf32, #tpu.memory_space<vmem>>, vector<4x8x8xf32>
    %635 = tpu.transpose %634, [1, 0, 2] : vector<4x8x8xf32> -> vector<8x4x8xf32>
    %cst_146 = arith.constant dense<0.000000e+00> : vector<8x4x16xf32>
    %636 = tpu.matmul %635, %84, %cst_146 {dimension_numbers = #tpu.dot_dimension_numbers<[2], [1], [1], [2], [0, 0, 0, 1, 1, 2], [0], [0]>} : vector<8x4x8xf32>, vector<8x8x16xf32>, vector<8x4x16xf32> -> vector<8x4x16xf32>
    %637 = vector.shape_cast %636 : vector<8x4x16xf32> to vector<8x64xf32>
    %c0_147 = arith.constant 0 : index
    %c0_148 = arith.constant 0 : index
    %638 = vector.load %arg30[%c0_147, %c0_148] : memref<64x32xf32, #tpu.memory_space<vmem>>, vector<64x32xf32>
    %cst_149 = arith.constant dense<0.000000e+00> : vector<8x32xf32>
    %639 = tpu.matmul %637, %638, %cst_149 {dimension_numbers = #tpu.dot_dimension_numbers<[1], [0], [0], [1], [0, 0, 1, 1], [], []>} : vector<8x64xf32>, vector<64x32xf32>, vector<8x32xf32> -> vector<8x32xf32>
    %640 = arith.addf %633, %639 : vector<8x32xf32>
    %c0_150 = arith.constant 0 : index
    %c0_151 = arith.constant 0 : index
    %641 = vector.load %arg50[%c0_150, %c0_151] : memref<8x32xf32, #tpu.memory_space<vmem>>, vector<8x32xf32>
    %642 = vector.broadcast %50 : vector<8x1xf32> to vector<8x32xf32>
    %643 = arith.subf %641, %642 : vector<8x32xf32>
    %c0_152 = arith.constant 0 : index
    %c0_153 = arith.constant 0 : index
    %644 = vector.load %arg51[%c0_152, %c0_153] : memref<8x32xf32, #tpu.memory_space<vmem>>, vector<8x32xf32>
    %645 = vector.broadcast %51 : vector<8x1xf32> to vector<8x32xf32>
    %646 = arith.subf %644, %645 : vector<8x32xf32>
    %c0_154 = arith.constant 0 : index
    %c0_155 = arith.constant 0 : index
    %647 = vector.load %arg52[%c0_154, %c0_155] : memref<8x32xf32, #tpu.memory_space<vmem>>, vector<8x32xf32>
    %648 = vector.broadcast %52 : vector<8x1xf32> to vector<8x32xf32>
    %649 = arith.subf %647, %648 : vector<8x32xf32>
    %650 = vector.broadcast %41 : vector<8x1xf32> to vector<8x32xf32>
    %651 = arith.mulf %650, %643 : vector<8x32xf32>
    %652 = vector.broadcast %44 : vector<8x1xf32> to vector<8x32xf32>
    %653 = arith.mulf %652, %646 : vector<8x32xf32>
    %654 = arith.addf %651, %653 : vector<8x32xf32>
    %655 = vector.broadcast %47 : vector<8x1xf32> to vector<8x32xf32>
    %656 = arith.mulf %655, %649 : vector<8x32xf32>
    %657 = arith.addf %654, %656 : vector<8x32xf32>
    %658 = vector.broadcast %42 : vector<8x1xf32> to vector<8x32xf32>
    %659 = arith.mulf %658, %643 : vector<8x32xf32>
    %660 = vector.broadcast %45 : vector<8x1xf32> to vector<8x32xf32>
    %661 = arith.mulf %660, %646 : vector<8x32xf32>
    %662 = arith.addf %659, %661 : vector<8x32xf32>
    %663 = vector.broadcast %48 : vector<8x1xf32> to vector<8x32xf32>
    %664 = arith.mulf %663, %649 : vector<8x32xf32>
    %665 = arith.addf %662, %664 : vector<8x32xf32>
    %666 = vector.broadcast %43 : vector<8x1xf32> to vector<8x32xf32>
    %667 = arith.mulf %666, %643 : vector<8x32xf32>
    %668 = vector.broadcast %46 : vector<8x1xf32> to vector<8x32xf32>
    %669 = arith.mulf %668, %646 : vector<8x32xf32>
    %670 = arith.addf %667, %669 : vector<8x32xf32>
    %671 = vector.broadcast %49 : vector<8x1xf32> to vector<8x32xf32>
    %672 = arith.mulf %671, %649 : vector<8x32xf32>
    %673 = arith.addf %670, %672 : vector<8x32xf32>
    %674 = arith.mulf %657, %657 : vector<8x32xf32>
    %675 = arith.mulf %665, %665 : vector<8x32xf32>
    %676 = arith.addf %674, %675 : vector<8x32xf32>
    %677 = arith.mulf %673, %673 : vector<8x32xf32>
    %678 = arith.addf %676, %677 : vector<8x32xf32>
    %679 = math.sqrt %678 : vector<8x32xf32>
    %c0_156 = arith.constant 0 : index
    %c0_157 = arith.constant 0 : index
    %680 = vector.load %arg27[%c0_156, %c0_157] : memref<32x32xf32, #tpu.memory_space<vmem>>, vector<32x32xf32>
    %cst_158 = arith.constant dense<0.000000e+00> : vector<8x32xf32>
    %681 = tpu.matmul %657, %680, %cst_158 {dimension_numbers = #tpu.dot_dimension_numbers<[1], [0], [0], [1], [0, 0, 1, 1], [], []>} : vector<8x32xf32>, vector<32x32xf32>, vector<8x32xf32> -> vector<8x32xf32>
    %682 = arith.addf %640, %681 : vector<8x32xf32>
    %c0_159 = arith.constant 0 : index
    %c0_160 = arith.constant 0 : index
    %683 = vector.load %arg28[%c0_159, %c0_160] : memref<32x32xf32, #tpu.memory_space<vmem>>, vector<32x32xf32>
    %cst_161 = arith.constant dense<0.000000e+00> : vector<8x32xf32>
    %684 = tpu.matmul %665, %683, %cst_161 {dimension_numbers = #tpu.dot_dimension_numbers<[1], [0], [0], [1], [0, 0, 1, 1], [], []>} : vector<8x32xf32>, vector<32x32xf32>, vector<8x32xf32> -> vector<8x32xf32>
    %685 = arith.addf %682, %684 : vector<8x32xf32>
    %c0_162 = arith.constant 0 : index
    %c0_163 = arith.constant 0 : index
    %686 = vector.load %arg29[%c0_162, %c0_163] : memref<32x32xf32, #tpu.memory_space<vmem>>, vector<32x32xf32>
    %cst_164 = arith.constant dense<0.000000e+00> : vector<8x32xf32>
    %687 = tpu.matmul %673, %686, %cst_164 {dimension_numbers = #tpu.dot_dimension_numbers<[1], [0], [0], [1], [0, 0, 1, 1], [], []>} : vector<8x32xf32>, vector<32x32xf32>, vector<8x32xf32> -> vector<8x32xf32>
    %688 = arith.addf %685, %687 : vector<8x32xf32>
    %c0_165 = arith.constant 0 : index
    %c0_166 = arith.constant 0 : index
    %689 = vector.load %arg31[%c0_165, %c0_166] : memref<32x32xf32, #tpu.memory_space<vmem>>, vector<32x32xf32>
    %cst_167 = arith.constant dense<0.000000e+00> : vector<8x32xf32>
    %690 = tpu.matmul %679, %689, %cst_167 {dimension_numbers = #tpu.dot_dimension_numbers<[1], [0], [0], [1], [0, 0, 1, 1], [], []>} : vector<8x32xf32>, vector<32x32xf32>, vector<8x32xf32> -> vector<8x32xf32>
    %691 = arith.addf %688, %690 : vector<8x32xf32>
    %692 = arith.addf %6, %691 : vector<8x32xf32>
    %c0_168 = arith.constant 0 : index
    %c0_169 = arith.constant 0 : index
    %693 = vector.load %arg32[%c0_168, %c0_169] : memref<1x32xf32, #tpu.memory_space<vmem>>, vector<1x32xf32>
    %694 = vector.broadcast %693 : vector<1x32xf32> to vector<8x32xf32>
    %695 = arith.addf %692, %694 : vector<8x32xf32>
    %c0_170 = arith.constant 0 : index
    %c0_171 = arith.constant 0 : index
    %696 = vector.load %arg33[%c0_170, %c0_171] : memref<1x32xf32, #tpu.memory_space<vmem>>, vector<1x32xf32>
    %c0_172 = arith.constant 0 : index
    %c0_173 = arith.constant 0 : index
    %697 = vector.load %arg34[%c0_172, %c0_173] : memref<1x32xf32, #tpu.memory_space<vmem>>, vector<1x32xf32>
    %cst_174 = arith.constant dense<0.000000e+00> : vector<8xf32>
    %698 = vector.multi_reduction <add>, %695, %cst_174 [1] : vector<8x32xf32> to vector<8xf32>
    %699 = vector.shape_cast %698 : vector<8xf32> to vector<8x1xf32>
    %cst_175 = arith.constant 3.200000e+01 : f32
    %700 = vector.broadcast %cst_175 : f32 to vector<8x1xf32>
    %701 = arith.divf %699, %700 : vector<8x1xf32>
    %702 = vector.broadcast %701 : vector<8x1xf32> to vector<8x32xf32>
    %703 = arith.subf %695, %702 : vector<8x32xf32>
    %704 = arith.mulf %703, %703 : vector<8x32xf32>
    %cst_176 = arith.constant dense<0.000000e+00> : vector<8xf32>
    %705 = vector.multi_reduction <add>, %704, %cst_176 [1] : vector<8x32xf32> to vector<8xf32>
    %706 = vector.shape_cast %705 : vector<8xf32> to vector<8x1xf32>
    %cst_177 = arith.constant 3.200000e+01 : f32
    %707 = vector.broadcast %cst_177 : f32 to vector<8x1xf32>
    %708 = arith.divf %706, %707 : vector<8x1xf32>
    %cst_178 = arith.constant 9.99999974E-6 : f32
    %709 = vector.broadcast %cst_178 : f32 to vector<8x1xf32>
    %710 = arith.addf %708, %709 : vector<8x1xf32>
    %711 = math.rsqrt %710 : vector<8x1xf32>
    %712 = vector.broadcast %711 : vector<8x1xf32> to vector<8x32xf32>
    %713 = arith.mulf %703, %712 : vector<8x32xf32>
    %714 = vector.broadcast %696 : vector<1x32xf32> to vector<8x32xf32>
    %715 = arith.mulf %713, %714 : vector<8x32xf32>
    %716 = vector.broadcast %697 : vector<1x32xf32> to vector<8x32xf32>
    %717 = arith.addf %715, %716 : vector<8x32xf32>
    %c0_179 = arith.constant 0 : index
    %c0_180 = arith.constant 0 : index
    %718 = vector.load %arg35[%c0_179, %c0_180] : memref<32x64xf32, #tpu.memory_space<vmem>>, vector<32x64xf32>
    %cst_181 = arith.constant dense<0.000000e+00> : vector<8x64xf32>
    %719 = tpu.matmul %717, %718, %cst_181 {dimension_numbers = #tpu.dot_dimension_numbers<[1], [0], [0], [1], [0, 0, 1, 1], [], []>} : vector<8x32xf32>, vector<32x64xf32>, vector<8x64xf32> -> vector<8x64xf32>
    %c0_182 = arith.constant 0 : index
    %c0_183 = arith.constant 0 : index
    %720 = vector.load %arg36[%c0_182, %c0_183] : memref<1x64xf32, #tpu.memory_space<vmem>>, vector<1x64xf32>
    %721 = vector.broadcast %720 : vector<1x64xf32> to vector<8x64xf32>
    %722 = arith.addf %719, %721 : vector<8x64xf32>
    %cst_184 = arith.constant 5.000000e-01 : f32
    %723 = vector.broadcast %cst_184 : f32 to vector<8x64xf32>
    %724 = arith.mulf %723, %722 : vector<8x64xf32>
    %cst_185 = arith.constant 0.707106769 : f32
    %725 = vector.broadcast %cst_185 : f32 to vector<8x64xf32>
    %726 = arith.mulf %722, %725 : vector<8x64xf32>
    %cst_186 = arith.constant 0.000000e+00 : f32
    %727 = vector.broadcast %cst_186 : f32 to vector<8x64xf32>
    %728 = arith.cmpf oge, %726, %727 : vector<8x64xf32>
    %cst_187 = arith.constant 1.000000e+00 : f32
    %cst_188 = arith.constant -1.000000e+00 : f32
    %729 = vector.broadcast %cst_187 : f32 to vector<8x64xf32>
    %730 = vector.broadcast %cst_188 : f32 to vector<8x64xf32>
    %731 = arith.select %728, %729, %730 : vector<8x64xi1>, vector<8x64xf32>
    %732 = math.absf %726 : vector<8x64xf32>
    %cst_189 = arith.constant 0.327591091 : f32
    %733 = vector.broadcast %cst_189 : f32 to vector<8x64xf32>
    %734 = arith.mulf %733, %732 : vector<8x64xf32>
    %cst_190 = arith.constant 1.000000e+00 : f32
    %735 = vector.broadcast %cst_190 : f32 to vector<8x64xf32>
    %736 = arith.addf %735, %734 : vector<8x64xf32>
    %cst_191 = arith.constant 1.000000e+00 : f32
    %737 = vector.broadcast %cst_191 : f32 to vector<8x64xf32>
    %738 = arith.divf %737, %736 : vector<8x64xf32>
    %cst_192 = arith.constant 1.06140542 : f32
    %739 = vector.broadcast %cst_192 : f32 to vector<8x64xf32>
    %740 = arith.mulf %738, %739 : vector<8x64xf32>
    %cst_193 = arith.constant -1.45315206 : f32
    %741 = vector.broadcast %cst_193 : f32 to vector<8x64xf32>
    %742 = arith.addf %741, %740 : vector<8x64xf32>
    %743 = arith.mulf %738, %742 : vector<8x64xf32>
    %cst_194 = arith.constant 1.42141378 : f32
    %744 = vector.broadcast %cst_194 : f32 to vector<8x64xf32>
    %745 = arith.addf %744, %743 : vector<8x64xf32>
    %746 = arith.mulf %738, %745 : vector<8x64xf32>
    %cst_195 = arith.constant -0.284496725 : f32
    %747 = vector.broadcast %cst_195 : f32 to vector<8x64xf32>
    %748 = arith.addf %747, %746 : vector<8x64xf32>
    %749 = arith.mulf %738, %748 : vector<8x64xf32>
    %cst_196 = arith.constant 0.254829586 : f32
    %750 = vector.broadcast %cst_196 : f32 to vector<8x64xf32>
    %751 = arith.addf %750, %749 : vector<8x64xf32>
    %752 = arith.mulf %738, %751 : vector<8x64xf32>
    %cst_197 = arith.constant 0.000000e+00 : f32
    %753 = vector.broadcast %cst_197 : f32 to vector<8x64xf32>
    %754 = arith.subf %753, %732 : vector<8x64xf32>
    %755 = arith.mulf %754, %732 : vector<8x64xf32>
    %756 = math.exp %755 : vector<8x64xf32>
    %757 = arith.mulf %752, %756 : vector<8x64xf32>
    %cst_198 = arith.constant 1.000000e+00 : f32
    %758 = vector.broadcast %cst_198 : f32 to vector<8x64xf32>
    %759 = arith.subf %758, %757 : vector<8x64xf32>
    %760 = arith.mulf %731, %759 : vector<8x64xf32>
    %cst_199 = arith.constant 1.000000e+00 : f32
    %761 = vector.broadcast %cst_199 : f32 to vector<8x64xf32>
    %762 = arith.addf %761, %760 : vector<8x64xf32>
    %763 = arith.mulf %724, %762 : vector<8x64xf32>
    %c0_200 = arith.constant 0 : index
    %c0_201 = arith.constant 0 : index
    %764 = vector.load %arg37[%c0_200, %c0_201] : memref<64x32xf32, #tpu.memory_space<vmem>>, vector<64x32xf32>
    %cst_202 = arith.constant dense<0.000000e+00> : vector<8x32xf32>
    %765 = tpu.matmul %763, %764, %cst_202 {dimension_numbers = #tpu.dot_dimension_numbers<[1], [0], [0], [1], [0, 0, 1, 1], [], []>} : vector<8x64xf32>, vector<64x32xf32>, vector<8x32xf32> -> vector<8x32xf32>
    %c0_203 = arith.constant 0 : index
    %c0_204 = arith.constant 0 : index
    %766 = vector.load %arg38[%c0_203, %c0_204] : memref<1x32xf32, #tpu.memory_space<vmem>>, vector<1x32xf32>
    %767 = vector.broadcast %766 : vector<1x32xf32> to vector<8x32xf32>
    %768 = arith.addf %765, %767 : vector<8x32xf32>
    %769 = arith.addf %695, %768 : vector<8x32xf32>
    %c0_205 = arith.constant 0 : index
    %c0_206 = arith.constant 0 : index
    %c0_207 = arith.constant 0 : index
    %770 = vector.load %arg39[%c0_205, %c0_206, %c0_207] : memref<1x8x32xf32, #tpu.memory_space<vmem>>, vector<1x8x32xf32>
    %771 = vector.shape_cast %770 : vector<1x8x32xf32> to vector<8x32xf32>
    %772 = vector.shape_cast %769 : vector<8x32xf32> to vector<1x8x32xf32>
    tpu.vector_store %arg39[%c0_205, %c0_206, %c0_207], %772 {strides = array<i32>} : memref<1x8x32xf32, #tpu.memory_space<vmem>>, vector<1x8x32xf32>,
    return
  }
  func.func @transform_0(%arg0: i32, %arg1: i32) -> (i32, i32, i32) {
    %c0_i32 = arith.constant 0 : i32
    %c0_i32_0 = arith.constant 0 : i32
    %c0_i32_1 = arith.constant 0 : i32
    return %arg0, %c0_i32, %c0_i32_0 : i32, i32, i32
  }
  func.func @transform_1(%arg0: i32, %arg1: i32) -> (i32, i32, i32) {
    %c0_i32 = arith.constant 0 : i32
    %c0_i32_0 = arith.constant 0 : i32
    return %arg0, %arg1, %c0_i32 : i32, i32, i32
  }
  func.func @transform_2(%arg0: i32, %arg1: i32) -> (i32, i32, i32, i32) {
    %c0_i32 = arith.constant 0 : i32
    %c0_i32_0 = arith.constant 0 : i32
    %c0_i32_1 = arith.constant 0 : i32
    return %arg0, %arg1, %c0_i32, %c0_i32_0 : i32, i32, i32, i32
  }
  func.func @transform_3(%arg0: i32, %arg1: i32) -> (i32, i32, i32) {
    %c0_i32 = arith.constant 0 : i32
    %c0_i32_0 = arith.constant 0 : i32
    %c0_i32_1 = arith.constant 0 : i32
    return %arg0, %c0_i32, %c0_i32_0 : i32, i32, i32
  }
  func.func @transform_4(%arg0: i32, %arg1: i32) -> (i32, i32, i32) {
    %c0_i32 = arith.constant 0 : i32
    %c0_i32_0 = arith.constant 0 : i32
    return %arg0, %arg1, %c0_i32 : i32, i32, i32
  }
  func.func @transform_5(%arg0: i32, %arg1: i32) -> (i32, i32, i32) {
    %c0_i32 = arith.constant 0 : i32
    %c0_i32_0 = arith.constant 0 : i32
    %c0_i32_1 = arith.constant 0 : i32
    return %arg0, %c0_i32, %c0_i32_0 : i32, i32, i32
  }
  func.func @transform_6(%arg0: i32, %arg1: i32) -> (i32, i32, i32) {
    %c0_i32 = arith.constant 0 : i32
    %c0_i32_0 = arith.constant 0 : i32
    return %arg0, %arg1, %c0_i32 : i32, i32, i32
  }
  func.func @transform_7(%arg0: i32, %arg1: i32) -> (i32, i32, i32, i32) {
    %c0_i32 = arith.constant 0 : i32
    %c0_i32_0 = arith.constant 0 : i32
    %c0_i32_1 = arith.constant 0 : i32
    return %arg0, %c0_i32, %arg1, %c0_i32_0 : i32, i32, i32, i32
  }
  func.func @transform_8(%arg0: i32, %arg1: i32) -> (i32, i32) {
    %c0_i32 = arith.constant 0 : i32
    %c0_i32_0 = arith.constant 0 : i32
    %c0_i32_1 = arith.constant 0 : i32
    return %c0_i32, %c0_i32_0 : i32, i32
  }
  func.func @transform_9(%arg0: i32, %arg1: i32) -> (i32, i32) {
    %c0_i32 = arith.constant 0 : i32
    %c0_i32_0 = arith.constant 0 : i32
    %c0_i32_1 = arith.constant 0 : i32
    return %c0_i32, %c0_i32_0 : i32, i32
  }
  func.func @transform_10(%arg0: i32, %arg1: i32) -> (i32, i32) {
    %c0_i32 = arith.constant 0 : i32
    %c0_i32_0 = arith.constant 0 : i32
    %c0_i32_1 = arith.constant 0 : i32
    return %c0_i32, %c0_i32_0 : i32, i32
  }
  func.func @transform_11(%arg0: i32, %arg1: i32) -> (i32, i32) {
    %c0_i32 = arith.constant 0 : i32
    %c0_i32_0 = arith.constant 0 : i32
    %c0_i32_1 = arith.constant 0 : i32
    return %c0_i32, %c0_i32_0 : i32, i32
  }
  func.func @transform_12(%arg0: i32, %arg1: i32) -> (i32, i32) {
    %c0_i32 = arith.constant 0 : i32
    %c0_i32_0 = arith.constant 0 : i32
    %c0_i32_1 = arith.constant 0 : i32
    return %c0_i32, %c0_i32_0 : i32, i32
  }
  func.func @transform_13(%arg0: i32, %arg1: i32) -> (i32, i32) {
    %c0_i32 = arith.constant 0 : i32
    %c0_i32_0 = arith.constant 0 : i32
    %c0_i32_1 = arith.constant 0 : i32
    return %c0_i32, %c0_i32_0 : i32, i32
  }
  func.func @transform_14(%arg0: i32, %arg1: i32) -> (i32, i32) {
    %c0_i32 = arith.constant 0 : i32
    %c0_i32_0 = arith.constant 0 : i32
    %c0_i32_1 = arith.constant 0 : i32
    return %c0_i32, %c0_i32_0 : i32, i32
  }
  func.func @transform_15(%arg0: i32, %arg1: i32) -> (i32, i32) {
    %c0_i32 = arith.constant 0 : i32
    %c0_i32_0 = arith.constant 0 : i32
    %c0_i32_1 = arith.constant 0 : i32
    return %c0_i32, %c0_i32_0 : i32, i32
  }
  func.func @transform_16(%arg0: i32, %arg1: i32) -> (i32, i32) {
    %c0_i32 = arith.constant 0 : i32
    %c0_i32_0 = arith.constant 0 : i32
    %c0_i32_1 = arith.constant 0 : i32
    return %c0_i32, %c0_i32_0 : i32, i32
  }
  func.func @transform_17(%arg0: i32, %arg1: i32) -> (i32, i32) {
    %c0_i32 = arith.constant 0 : i32
    %c0_i32_0 = arith.constant 0 : i32
    %c0_i32_1 = arith.constant 0 : i32
    return %c0_i32, %c0_i32_0 : i32, i32
  }
  func.func @transform_18(%arg0: i32, %arg1: i32) -> (i32, i32) {
    %c0_i32 = arith.constant 0 : i32
    %c0_i32_0 = arith.constant 0 : i32
    %c0_i32_1 = arith.constant 0 : i32
    return %c0_i32, %c0_i32_0 : i32, i32
  }
  func.func @transform_19(%arg0: i32, %arg1: i32) -> (i32, i32) {
    %c0_i32 = arith.constant 0 : i32
    %c0_i32_0 = arith.constant 0 : i32
    %c0_i32_1 = arith.constant 0 : i32
    return %c0_i32, %c0_i32_0 : i32, i32
  }
  func.func @transform_20(%arg0: i32, %arg1: i32) -> (i32, i32) {
    %c0_i32 = arith.constant 0 : i32
    %c0_i32_0 = arith.constant 0 : i32
    %c0_i32_1 = arith.constant 0 : i32
    return %c0_i32, %c0_i32_0 : i32, i32
  }
  func.func @transform_21(%arg0: i32, %arg1: i32) -> (i32, i32) {
    %c0_i32 = arith.constant 0 : i32
    %c0_i32_0 = arith.constant 0 : i32
    %c0_i32_1 = arith.constant 0 : i32
    return %c0_i32, %c0_i32_0 : i32, i32
  }
  func.func @transform_22(%arg0: i32, %arg1: i32) -> (i32, i32) {
    %c0_i32 = arith.constant 0 : i32
    %c0_i32_0 = arith.constant 0 : i32
    %c0_i32_1 = arith.constant 0 : i32
    return %c0_i32, %c0_i32_0 : i32, i32
  }
  func.func @transform_23(%arg0: i32, %arg1: i32) -> (i32, i32) {
    %c0_i32 = arith.constant 0 : i32
    %c0_i32_0 = arith.constant 0 : i32
    %c0_i32_1 = arith.constant 0 : i32
    return %c0_i32, %c0_i32_0 : i32, i32
  }
  func.func @transform_24(%arg0: i32, %arg1: i32) -> (i32, i32) {
    %c0_i32 = arith.constant 0 : i32
    %c0_i32_0 = arith.constant 0 : i32
    %c0_i32_1 = arith.constant 0 : i32
    return %c0_i32, %c0_i32_0 : i32, i32
  }
  func.func @transform_25(%arg0: i32, %arg1: i32) -> (i32, i32) {
    %c0_i32 = arith.constant 0 : i32
    %c0_i32_0 = arith.constant 0 : i32
    %c0_i32_1 = arith.constant 0 : i32
    return %c0_i32, %c0_i32_0 : i32, i32
  }
  func.func @transform_26(%arg0: i32, %arg1: i32) -> (i32, i32) {
    %c0_i32 = arith.constant 0 : i32
    %c0_i32_0 = arith.constant 0 : i32
    %c0_i32_1 = arith.constant 0 : i32
    return %c0_i32, %c0_i32_0 : i32, i32
  }
  func.func @transform_27(%arg0: i32, %arg1: i32) -> (i32, i32) {
    %c0_i32 = arith.constant 0 : i32
    %c0_i32_0 = arith.constant 0 : i32
    %c0_i32_1 = arith.constant 0 : i32
    return %c0_i32, %c0_i32_0 : i32, i32
  }
  func.func @transform_28(%arg0: i32, %arg1: i32) -> (i32, i32) {
    %c0_i32 = arith.constant 0 : i32
    %c0_i32_0 = arith.constant 0 : i32
    %c0_i32_1 = arith.constant 0 : i32
    return %c0_i32, %c0_i32_0 : i32, i32
  }
  func.func @transform_29(%arg0: i32, %arg1: i32) -> (i32, i32) {
    %c0_i32 = arith.constant 0 : i32
    %c0_i32_0 = arith.constant 0 : i32
    %c0_i32_1 = arith.constant 0 : i32
    return %c0_i32, %c0_i32_0 : i32, i32
  }
  func.func @transform_30(%arg0: i32, %arg1: i32) -> (i32, i32) {
    %c0_i32 = arith.constant 0 : i32
    %c0_i32_0 = arith.constant 0 : i32
    %c0_i32_1 = arith.constant 0 : i32
    return %c0_i32, %c0_i32_0 : i32, i32
  }
  func.func @transform_31(%arg0: i32, %arg1: i32) -> (i32, i32) {
    %c0_i32 = arith.constant 0 : i32
    %c0_i32_0 = arith.constant 0 : i32
    %c0_i32_1 = arith.constant 0 : i32
    return %c0_i32, %c0_i32_0 : i32, i32
  }
  func.func @transform_32(%arg0: i32, %arg1: i32) -> (i32, i32) {
    %c0_i32 = arith.constant 0 : i32
    %c0_i32_0 = arith.constant 0 : i32
    %c0_i32_1 = arith.constant 0 : i32
    return %c0_i32, %c0_i32_0 : i32, i32
  }
  func.func @transform_33(%arg0: i32, %arg1: i32) -> (i32, i32) {
    %c0_i32 = arith.constant 0 : i32
    %c0_i32_0 = arith.constant 0 : i32
    %c0_i32_1 = arith.constant 0 : i32
    return %c0_i32, %c0_i32_0 : i32, i32
  }
  func.func @transform_34(%arg0: i32, %arg1: i32) -> (i32, i32) {
    %c0_i32 = arith.constant 0 : i32
    %c0_i32_0 = arith.constant 0 : i32
    %c0_i32_1 = arith.constant 0 : i32
    return %c0_i32, %c0_i32_0 : i32, i32
  }
  func.func @transform_35(%arg0: i32, %arg1: i32) -> (i32, i32) {
    %c0_i32 = arith.constant 0 : i32
    %c0_i32_0 = arith.constant 0 : i32
    %c0_i32_1 = arith.constant 0 : i32
    return %c0_i32, %c0_i32_0 : i32, i32
  }
  func.func @transform_36(%arg0: i32, %arg1: i32) -> (i32, i32) {
    %c0_i32 = arith.constant 0 : i32
    %c0_i32_0 = arith.constant 0 : i32
    %c0_i32_1 = arith.constant 0 : i32
    return %c0_i32, %c0_i32_0 : i32, i32
  }
  func.func @transform_37(%arg0: i32, %arg1: i32) -> (i32, i32, i32) {
    %c0_i32 = arith.constant 0 : i32
    %c0_i32_0 = arith.constant 0 : i32
    return %arg0, %arg1, %c0_i32 : i32, i32, i32
  }
}

</mosaic_0001>

<llo_original>
// kernel: tpu_custom_call.1
$region0: #{tpu_custom_call.1}
  #allocation0 [shape = 'u32[]', space=smem, size = 0x4, offset = 0x4, fixed_abs, tag = 'smem constant byte address 0x4 - core index']
  #allocation1 [shape = 'u32[144,128]{1,0:T(1,128)}', space=vmem, size = 0x12000, scoped, tag = 'internal scratch']
  #allocation2 [shape = 'f32[8,32]{1,0:T(8,128)}', space=vmem, size = 0x1000, scoped, tag = 'scratch operand']
  #allocation3 [shape = 'f32[8,32]{1,0:T(8,128)}', space=vmem, size = 0x1000, scoped, tag = 'scratch operand']
  #allocation4 [shape = 'f32[16,8]{1,0:T(8,128)}', space=vmem, size = 0x2000, scoped, tag = 'scratch operand']
  #allocation5 [shape = 'f32[16,8]{1,0:T(8,128)}', space=vmem, size = 0x2000, scoped, tag = 'scratch operand']
  #allocation6 [shape = 'f32[16,8]{1,0:T(8,128)}', space=vmem, size = 0x2000, scoped, tag = 'scratch operand']
  #allocation7 [shape = 'f32[8,32]{1,0:T(8,128)}', space=vmem, size = 0x1000, scoped, tag = 'scratch operand']
  #allocation8 [shape = 'f32[8,32]{1,0:T(8,128)}', space=vmem, size = 0x1000, scoped, tag = 'scratch operand']
  #allocation9 [shape = 'f32[8,32]{1,0:T(8,128)}', space=vmem, size = 0x1000, scoped, tag = 'scratch operand']
  #allocation10 [shape = 'f32[4,8,8]{2,1,0:T(8,128)}', space=vmem, size = 0x4000, scoped, tag = 'scratch operand']
  #allocation11 [shape = 'f32[8,32]{1,0:T(8,128)}', space=vmem, size = 0x1000, scoped, tag = 'scratch operand']
  #allocation12 [shape = 'f32[8,32]{1,0:T(8,128)}', space=vmem, size = 0x1000, scoped, tag = 'scratch operand']
  #allocation13 [shape = 'f32[8,32]{1,0:T(8,128)}', space=vmem, size = 0x1000, scoped, tag = 'scratch operand']
  #allocation14 [shape = 'f32[8,32]{1,0:T(8,128)}', space=vmem, size = 0x1000, scoped, tag = 'scratch operand']
  %s0 = inlined_call_operand.smem [shape: u32[38], index: -1, kind: input, shape index: {}]
  %s1 = sld [smem:[%s0]]
  %s2 = scalar_lea.smem %s0, 1
  %s3 = sld [smem:[%s2]]
  %s4 = scalar_lea.smem %s0, 2
  %s5 = sld [smem:[%s4]]
  %s6 = scalar_lea.smem %s0, 3
  %s7 = sld [smem:[%s6]]
  %s8 = scalar_lea.smem %s0, 4
  %s9 = sld [smem:[%s8]]
  %s10 = scalar_lea.smem %s0, 5
  %s11 = sld [smem:[%s10]]
  %s12 = scalar_lea.smem %s0, 6
  %s13 = sld [smem:[%s12]]
  %s14 = scalar_lea.smem %s0, 7
  %s15 = sld [smem:[%s14]]
  %s16 = scalar_lea.smem %s0, 8
  %s17 = sld [smem:[%s16]]
  %s18 = scalar_lea.smem %s0, 9
  %s19 = sld [smem:[%s18]]
  %s20 = scalar_lea.smem %s0, 10
  %s21 = sld [smem:[%s20]]
  %s22 = scalar_lea.smem %s0, 11
  %s23 = sld [smem:[%s22]]
  %s24 = scalar_lea.smem %s0, 12
  %s25 = sld [smem:[%s24]]
  %s26 = scalar_lea.smem %s0, 13
  %s27 = sld [smem:[%s26]]
  %s28 = scalar_lea.smem %s0, 14
  %s29 = sld [smem:[%s28]]
  %s30 = scalar_lea.smem %s0, 15
  %s31 = sld [smem:[%s30]]
  %s32 = scalar_lea.smem %s0, 16
  %s33 = sld [smem:[%s32]]
  %s34 = scalar_lea.smem %s0, 17
  %s35 = sld [smem:[%s34]]
  %s36 = scalar_lea.smem %s0, 18
  %s37 = sld [smem:[%s36]]
  %s38 = scalar_lea.smem %s0, 19
  %s39 = sld [smem:[%s38]]
  %s40 = scalar_lea.smem %s0, 20
  %s41 = sld [smem:[%s40]]
  %s42 = scalar_lea.smem %s0, 21
  %s43 = sld [smem:[%s42]]
  %s44 = scalar_lea.smem %s0, 22
  %s45 = sld [smem:[%s44]]
  %s46 = scalar_lea.smem %s0, 23
  %s47 = sld [smem:[%s46]]
  %s48 = scalar_lea.smem %s0, 24
  %s49 = sld [smem:[%s48]]
  %s50 = scalar_lea.smem %s0, 25
  %s51 = sld [smem:[%s50]]
  %s52 = scalar_lea.smem %s0, 26
  %s53 = sld [smem:[%s52]]
  %s54 = scalar_lea.smem %s0, 27
  %s55 = sld [smem:[%s54]]
  %s56 = scalar_lea.smem %s0, 28
  %s57 = sld [smem:[%s56]]
  %s58 = scalar_lea.smem %s0, 29
  %s59 = sld [smem:[%s58]]
  %s60 = scalar_lea.smem %s0, 30
  %s61 = sld [smem:[%s60]]
  %s62 = scalar_lea.smem %s0, 31
  %s63 = sld [smem:[%s62]]
  %s64 = scalar_lea.smem %s0, 32
  %s65 = sld [smem:[%s64]]
  %s66 = scalar_lea.smem %s0, 33
  %s67 = sld [smem:[%s66]]
  %s68 = scalar_lea.smem %s0, 34
  %s69 = sld [smem:[%s68]]
  %s70 = scalar_lea.smem %s0, 35
  %s71 = sld [smem:[%s70]]
  %s72 = scalar_lea.smem %s0, 36
  %s73 = sld [smem:[%s72]]
  %s74 = scalar_lea.smem %s0, 37
  %s75 = sld [smem:[%s74]]
  %s76 = sld [smem:[#allocation0]]
  $region221: #{tpu_custom_call.1} parent=0
    _
  %s78 = ssub.s32 1, %s76
  %s79 = scalar_select 0, %s78, %s76
  $region1: #{tpu_custom_call.1} parent=0
    #allocation15 [shape = 'u8[8192]{0}', space=vmem, size = 0x2000, scoped, tag = 'input window, operand 0']
    #allocation16 [shape = 's32[2]{0}', space=sflag, size = 0x8, scoped, tag = 'scoped memory for tpu_custom_call.1']
    #allocation17 [shape = 's32[2]{0}', space=sflag, size = 0x8, scoped, tag = 'scoped memory for tpu_custom_call.1']
    #allocation18 [shape = 'u8[8192]{0}', space=vmem, size = 0x2000, scoped, tag = 'input window, operand 1']
    #allocation19 [shape = 's32[2]{0}', space=sflag, size = 0x8, scoped, tag = 'scoped memory for tpu_custom_call.1']
    #allocation20 [shape = 'u8[8192]{0}', space=vmem, size = 0x2000, scoped, tag = 'input window, operand 5']
    #allocation21 [shape = 'u8[8192]{0}', space=vmem, size = 0x2000, scoped, tag = 'input window, operand 6']
    #allocation22 [shape = 's32[2]{0}', space=sflag, size = 0x8, scoped, tag = 'scoped memory for tpu_custom_call.1']
    #allocation23 [shape = 'u8[512]{0}', space=vmem, size = 0x400, scoped, tag = 'input window, operand 8, single buffered']
    #allocation24 [shape = 'u8[512]{0}', space=vmem, size = 0x400, scoped, tag = 'input window, operand 9, single buffered']
    #allocation25 [shape = 's32[1]{0}', space=sflag, size = 0x4, scoped, tag = 'scoped memory for tpu_custom_call.1']
    #allocation26 [shape = 'u8[512]{0}', space=vmem, size = 0x400, scoped, tag = 'input window, operand 23, single buffered']
    #allocation27 [shape = 'u8[16384]{0}', space=vmem, size = 0x4000, scoped, tag = 'input window, operand 29, single buffered']
    #allocation28 [shape = 's32[1]{0}', space=sflag, size = 0x4, scoped, tag = 'scoped memory for tpu_custom_call.1']
    #allocation29 [shape = 'u8[16384]{0}', space=vmem, size = 0x4000, scoped, tag = 'input window, operand 33, single buffered']
    #allocation30 [shape = 'u8[8192]{0}', space=vmem, size = 0x2000, scoped, tag = 'output window, operand 0']
    %80 = vsyncpa [#allocation16], 0
    %s81 = scalar_lea.sflag [#allocation16], 1
    %82 = vsyncpa %s81, 0
    %83 = vsyncpa [#allocation19], 0
    %s84 = scalar_lea.sflag [#allocation19], 1
    %85 = vsyncpa %s84, 0
    %86 = vsyncpa [#allocation22], 0
    %s87 = scalar_lea.sflag [#allocation22], 1
    %88 = vsyncpa %s87, 0
    %89 = vsyncpa [#allocation25], 0
    %90 = vsyncpa [#allocation28], 0
    %91 = vsyncpa [#allocation17], 0
    %s92 = scalar_lea.sflag [#allocation17], 1
    %93 = vsyncpa %s92, 0
    loop: start=0, step=1, limit=4
    $region2: #{tpu_custom_call.1} parent=1 // loop_pre_header
      _
    $region3: #{tpu_custom_call.1} parent=1 // loop_header
      %s95 = sphi 0, %s99
      %p96 = scmp.ge.s32.totalorder %s95, 4
      %s102 = sphi 0, %s114
      %s103 = sphi 0, %s110
      %s104 = sphi 0, %s102
      %s105 = sphi 0, %s103
      %s106 = sphi 0, %s104
      %s107 = sphi 0, %s105
      %s117 = sphi 0, %s119
      %s120 = sphi 0, %s117
      %s121 = sphi 0, %s120
      %s137 = sphi 0, %s121
      %s145 = sphi 0, %s147
      %s148 = sphi 0, %s145
      %s149 = sphi 0, %s148
      %s165 = sphi 0, %s149
      %s173 = sphi 0, %s175
      %s176 = sphi 0, %s173
      %s177 = sphi 0, %s176
      %s193 = sphi 0, %s177
      %s199 = sphi 0, %s201
      %s202 = sphi 0, %s199
      %s203 = sphi 0, %s202
      %s219 = sphi 0, %s203
      %s227 = sphi 0, %s229
      %s230 = sphi 0, %s227
      %s231 = sphi 0, %s230
      %s247 = sphi 0, %s231
      %s253 = sphi 0, %s255
      %s256 = sphi 0, %s253
      %s257 = sphi 0, %s256
      %s273 = sphi 0, %s257
      %s281 = sphi 0, %s283
      %s284 = sphi 0, %s281
      %s285 = sphi 0, %s284
      %s301 = sphi 0, %s285
      %s309 = sphi 0, %s311
      %s312 = sphi 0, %s309
      %s313 = sphi 0, %s312
      %s329 = sphi 0, %s313
      %s333 = sphi 0, %s333
      %s335 = sphi 0, %s333
      %s336 = sphi 0, %s335
      %s350 = sphi 0, %s336
      %s354 = sphi 0, %s354
      %s356 = sphi 0, %s354
      %s357 = sphi 0, %s356
      %s371 = sphi 0, %s357
      %s375 = sphi 0, %s375
      %s377 = sphi 0, %s375
      %s378 = sphi 0, %s377
      %s392 = sphi 0, %s378
      %s396 = sphi 0, %s396
      %s398 = sphi 0, %s396
      %s399 = sphi 0, %s398
      %s413 = sphi 0, %s399
      %s417 = sphi 0, %s417
      %s419 = sphi 0, %s417
      %s420 = sphi 0, %s419
      %s434 = sphi 0, %s420
      %s438 = sphi 0, %s438
      %s440 = sphi 0, %s438
      %s441 = sphi 0, %s440
      %s455 = sphi 0, %s441
      %s459 = sphi 0, %s459
      %s461 = sphi 0, %s459
      %s462 = sphi 0, %s461
      %s476 = sphi 0, %s462
      %s480 = sphi 0, %s480
      %s482 = sphi 0, %s480
      %s483 = sphi 0, %s482
      %s497 = sphi 0, %s483
      %s501 = sphi 0, %s501
      %s503 = sphi 0, %s501
      %s504 = sphi 0, %s503
      %s518 = sphi 0, %s504
      %s522 = sphi 0, %s522
      %s524 = sphi 0, %s522
      %s525 = sphi 0, %s524
      %s539 = sphi 0, %s525
      %s543 = sphi 0, %s543
      %s545 = sphi 0, %s543
      %s546 = sphi 0, %s545
      %s560 = sphi 0, %s546
      %s564 = sphi 0, %s564
      %s566 = sphi 0, %s564
      %s567 = sphi 0, %s566
      %s581 = sphi 0, %s567
      %s585 = sphi 0, %s585
      %s587 = sphi 0, %s585
      %s588 = sphi 0, %s587
      %s602 = sphi 0, %s588
      %s606 = sphi 0, %s606
      %s608 = sphi 0, %s606
      %s609 = sphi 0, %s608
      %s623 = sphi 0, %s609
      %s627 = sphi 0, %s627
      %s629 = sphi 0, %s627
      %s630 = sphi 0, %s629
      %s644 = sphi 0, %s630
      %s648 = sphi 0, %s648
      %s650 = sphi 0, %s648
      %s651 = sphi 0, %s650
      %s665 = sphi 0, %s651
      %s669 = sphi 0, %s669
      %s671 = sphi 0, %s669
      %s672 = sphi 0, %s671
      %s686 = sphi 0, %s672
      %s690 = sphi 0, %s690
      %s692 = sphi 0, %s690
      %s693 = sphi 0, %s692
      %s707 = sphi 0, %s693
      %s711 = sphi 0, %s711
      %s713 = sphi 0, %s711
      %s714 = sphi 0, %s713
      %s728 = sphi 0, %s714
      %s732 = sphi 0, %s732
      %s734 = sphi 0, %s732
      %s735 = sphi 0, %s734
      %s749 = sphi 0, %s735
      %s753 = sphi 0, %s753
      %s755 = sphi 0, %s753
      %s756 = sphi 0, %s755
      %s770 = sphi 0, %s756
      %s774 = sphi 0, %s774
      %s776 = sphi 0, %s774
      %s777 = sphi 0, %s776
      %s791 = sphi 0, %s777
      %s795 = sphi 0, %s795
      %s797 = sphi 0, %s795
      %s798 = sphi 0, %s797
      %s812 = sphi 0, %s798
      %s816 = sphi 0, %s816
      %s818 = sphi 0, %s816
      %s819 = sphi 0, %s818
      %s833 = sphi 0, %s819
      %s837 = sphi 0, %s837
      %s839 = sphi 0, %s837
      %s840 = sphi 0, %s839
      %s854 = sphi 0, %s840
      %s858 = sphi 0, %s858
      %s860 = sphi 0, %s858
      %s861 = sphi 0, %s860
      %s875 = sphi 0, %s861
      %s879 = sphi 0, %s879
      %s881 = sphi 0, %s879
      %s882 = sphi 0, %s881
      %s896 = sphi 0, %s882
      %s900 = sphi 0, %s900
      %s902 = sphi 0, %s900
      %s903 = sphi 0, %s902
      %s917 = sphi 0, %s903
      %s921 = sphi 0, %s921
      %s923 = sphi 0, %s921
      %s924 = sphi 0, %s923
      %s938 = sphi 0, %s924
      %s946 = sphi 0, %s948
      %s949 = sphi 0, %s946
      %s950 = sphi 0, %s949
      %s966 = sphi 0, %s950
    $region4: #{tpu_custom_call.1} parent=1 // loop_header_branch
      %98 = sbr.rel (%p96) target = $region8
    $region5: #{tpu_custom_call.1} parent=1 // loop_body
      %s100 = ssub.s32 %s95, 1
      %s101 = ssub.s32 %s95, 2
      %s108 = sadd.s32 1, %s103
      %p109 = scmp.ge.s32.totalorder %s108, 1
      %s110 = scalar_select %p109, 0, %s108
      %s111 = sadd.s32 1, %s102
      %s112 = scalar_select %p109, %s111, %s102
      %p113 = scmp.ge.s32.totalorder %s112, 2
      %s114 = scalar_select %p113, 0, %s112
      %s115 = ssub.s32 %s102, %s114
      %p116 = scmp.eq.s32.totalorder %s115, 0
      %s118 = sadd.s32 %s117, 1
      %s119 = scalar_select %p116, %s117, %s118
      %p122 = pneg %p116
      %p123 = scmp.eq.s32.totalorder %s95, 1
      %p124 = por %p122, %p123
      %p125 = scmp.ne.s32.totalorder %s117, %s120
      %p126 = scmp.eq.s32.totalorder %s95, 0
      %p127 = por %p125, %p126
      %p128 = scmp.ne.s32.totalorder %s117, %s120
      %p129 = scmp.eq.s32.totalorder %s100, 1
      %p130 = por %p128, %p129
      %p131 = scmp.ne.s32.totalorder %s120, %s121
      %p132 = scmp.eq.s32.totalorder %s100, 0
      %p133 = por %p131, %p132
      %p134 = scmp.ne.s32.totalorder %s120, %s121
      %p135 = scmp.eq.s32.totalorder %s101, 1
      %p136 = por %p134, %p135
      %p138 = scmp.ne.s32.totalorder %s121, %s137
      %p139 = scmp.eq.s32.totalorder %s101, 0
      %p140 = por %p138, %p139
      %s141 = ssub.s32 %s102, %s114
      %s142 = ssub.s32 %s103, %s110
      %s143 = sor.u32 %s141, %s142
      %p144 = scmp.eq.s32.totalorder %s143, 0
      %s146 = sadd.s32 %s145, 1
      %s147 = scalar_select %p144, %s145, %s146
      %p150 = pneg %p144
      %p151 = scmp.eq.s32.totalorder %s95, 1
      %p152 = por %p150, %p151
      %p153 = scmp.ne.s32.totalorder %s145, %s148
      %p154 = scmp.eq.s32.totalorder %s95, 0
      %p155 = por %p153, %p154
      %p156 = scmp.ne.s32.totalorder %s145, %s148
      %p157 = scmp.eq.s32.totalorder %s100, 1
      %p158 = por %p156, %p157
      %p159 = scmp.ne.s32.totalorder %s148, %s149
      %p160 = scmp.eq.s32.totalorder %s100, 0
      %p161 = por %p159, %p160
      %p162 = scmp.ne.s32.totalorder %s148, %s149
      %p163 = scmp.eq.s32.totalorder %s101, 1
      %p164 = por %p162, %p163
      %p166 = scmp.ne.s32.totalorder %s149, %s165
      %p167 = scmp.eq.s32.totalorder %s101, 0
      %p168 = por %p166, %p167
      %s169 = ssub.s32 %s102, %s114
      %s170 = ssub.s32 %s103, %s110
      %s171 = sor.u32 %s169, %s170
      %p172 = scmp.eq.s32.totalorder %s171, 0
      %s174 = sadd.s32 %s173, 1
      %s175 = scalar_select %p172, %s173, %s174
      %p178 = pneg %p172
      %p179 = scmp.eq.s32.totalorder %s95, 1
      %p180 = por %p178, %p179
      %p181 = scmp.ne.s32.totalorder %s173, %s176
      %p182 = scmp.eq.s32.totalorder %s95, 0
      %p183 = por %p181, %p182
      %p184 = scmp.ne.s32.totalorder %s173, %s176
      %p185 = scmp.eq.s32.totalorder %s100, 1
      %p186 = por %p184, %p185
      %p187 = scmp.ne.s32.totalorder %s176, %s177
      %p188 = scmp.eq.s32.totalorder %s100, 0
      %p189 = por %p187, %p188
      %p190 = scmp.ne.s32.totalorder %s176, %s177
      %p191 = scmp.eq.s32.totalorder %s101, 1
      %p192 = por %p190, %p191
      %p194 = scmp.ne.s32.totalorder %s177, %s193
      %p195 = scmp.eq.s32.totalorder %s101, 0
      %p196 = por %p194, %p195
      %s197 = ssub.s32 %s102, %s114
      %p198 = scmp.eq.s32.totalorder %s197, 0
      %s200 = sadd.s32 %s199, 1
      %s201 = scalar_select %p198, %s199, %s200
      %p204 = pneg %p198
      %p205 = scmp.eq.s32.totalorder %s95, 1
      %p206 = por %p204, %p205
      %p207 = scmp.ne.s32.totalorder %s199, %s202
      %p208 = scmp.eq.s32.totalorder %s95, 0
      %p209 = por %p207, %p208
      %p210 = scmp.ne.s32.totalorder %s199, %s202
      %p211 = scmp.eq.s32.totalorder %s100, 1
      %p212 = por %p210, %p211
      %p213 = scmp.ne.s32.totalorder %s202, %s203
      %p214 = scmp.eq.s32.totalorder %s100, 0
      %p215 = por %p213, %p214
      %p216 = scmp.ne.s32.totalorder %s202, %s203
      %p217 = scmp.eq.s32.totalorder %s101, 1
      %p218 = por %p216, %p217
      %p220 = scmp.ne.s32.totalorder %s203, %s219
      %p221 = scmp.eq.s32.totalorder %s101, 0
      %p222 = por %p220, %p221
      %s223 = ssub.s32 %s102, %s114
      %s224 = ssub.s32 %s103, %s110
      %s225 = sor.u32 %s223, %s224
      %p226 = scmp.eq.s32.totalorder %s225, 0
      %s228 = sadd.s32 %s227, 1
      %s229 = scalar_select %p226, %s227, %s228
      %p232 = pneg %p226
      %p233 = scmp.eq.s32.totalorder %s95, 1
      %p234 = por %p232, %p233
      %p235 = scmp.ne.s32.totalorder %s227, %s230
      %p236 = scmp.eq.s32.totalorder %s95, 0
      %p237 = por %p235, %p236
      %p238 = scmp.ne.s32.totalorder %s227, %s230
      %p239 = scmp.eq.s32.totalorder %s100, 1
      %p240 = por %p238, %p239
      %p241 = scmp.ne.s32.totalorder %s230, %s231
      %p242 = scmp.eq.s32.totalorder %s100, 0
      %p243 = por %p241, %p242
      %p244 = scmp.ne.s32.totalorder %s230, %s231
      %p245 = scmp.eq.s32.totalorder %s101, 1
      %p246 = por %p244, %p245
      %p248 = scmp.ne.s32.totalorder %s231, %s247
      %p249 = scmp.eq.s32.totalorder %s101, 0
      %p250 = por %p248, %p249
      %s251 = ssub.s32 %s102, %s114
      %p252 = scmp.eq.s32.totalorder %s251, 0
      %s254 = sadd.s32 %s253, 1
      %s255 = scalar_select %p252, %s253, %s254
      %p258 = pneg %p252
      %p259 = scmp.eq.s32.totalorder %s95, 1
      %p260 = por %p258, %p259
      %p261 = scmp.ne.s32.totalorder %s253, %s256
      %p262 = scmp.eq.s32.totalorder %s95, 0
      %p263 = por %p261, %p262
      %p264 = scmp.ne.s32.totalorder %s253, %s256
      %p265 = scmp.eq.s32.totalorder %s100, 1
      %p266 = por %p264, %p265
      %p267 = scmp.ne.s32.totalorder %s256, %s257
      %p268 = scmp.eq.s32.totalorder %s100, 0
      %p269 = por %p267, %p268
      %p270 = scmp.ne.s32.totalorder %s256, %s257
      %p271 = scmp.eq.s32.totalorder %s101, 1
      %p272 = por %p270, %p271
      %p274 = scmp.ne.s32.totalorder %s257, %s273
      %p275 = scmp.eq.s32.totalorder %s101, 0
      %p276 = por %p274, %p275
      %s277 = ssub.s32 %s102, %s114
      %s278 = ssub.s32 %s103, %s110
      %s279 = sor.u32 %s277, %s278
      %p280 = scmp.eq.s32.totalorder %s279, 0
      %s282 = sadd.s32 %s281, 1
      %s283 = scalar_select %p280, %s281, %s282
      %p286 = pneg %p280
      %p287 = scmp.eq.s32.totalorder %s95, 1
      %p288 = por %p286, %p287
      %p289 = scmp.ne.s32.totalorder %s281, %s284
      %p290 = scmp.eq.s32.totalorder %s95, 0
      %p291 = por %p289, %p290
      %p292 = scmp.ne.s32.totalorder %s281, %s284
      %p293 = scmp.eq.s32.totalorder %s100, 1
      %p294 = por %p292, %p293
      %p295 = scmp.ne.s32.totalorder %s284, %s285
      %p296 = scmp.eq.s32.totalorder %s100, 0
      %p297 = por %p295, %p296
      %p298 = scmp.ne.s32.totalorder %s284, %s285
      %p299 = scmp.eq.s32.totalorder %s101, 1
      %p300 = por %p298, %p299
      %p302 = scmp.ne.s32.totalorder %s285, %s301
      %p303 = scmp.eq.s32.totalorder %s101, 0
      %p304 = por %p302, %p303
      %s305 = ssub.s32 %s102, %s114
      %s306 = ssub.s32 %s103, %s110
      %s307 = sor.u32 %s305, %s306
      %p308 = scmp.eq.s32.totalorder %s307, 0
      %s310 = sadd.s32 %s309, 1
      %s311 = scalar_select %p308, %s309, %s310
      %p314 = pneg %p308
      %p315 = scmp.eq.s32.totalorder %s95, 1
      %p316 = por %p314, %p315
      %p317 = scmp.ne.s32.totalorder %s309, %s312
      %p318 = scmp.eq.s32.totalorder %s95, 0
      %p319 = por %p317, %p318
      %p320 = scmp.ne.s32.totalorder %s309, %s312
      %p321 = scmp.eq.s32.totalorder %s100, 1
      %p322 = por %p320, %p321
      %p323 = scmp.ne.s32.totalorder %s312, %s313
      %p324 = scmp.eq.s32.totalorder %s100, 0
      %p325 = por %p323, %p324
      %p326 = scmp.ne.s32.totalorder %s312, %s313
      %p327 = scmp.eq.s32.totalorder %s101, 1
      %p328 = por %p326, %p327
      %p330 = scmp.ne.s32.totalorder %s313, %s329
      %p331 = scmp.eq.s32.totalorder %s101, 0
      %p332 = por %p330, %p331
      %s334 = sadd.s32 %s333, 1
      %p337 = scmp.eq.s32.totalorder %s95, 1
      %p338 = scmp.ne.s32.totalorder %s333, %s335
      %p339 = scmp.eq.s32.totalorder %s95, 0
      %p340 = por %p338, %p339
      %p341 = scmp.ne.s32.totalorder %s333, %s335
      %p342 = scmp.eq.s32.totalorder %s100, 1
      %p343 = por %p341, %p342
      %p344 = scmp.ne.s32.totalorder %s335, %s336
      %p345 = scmp.eq.s32.totalorder %s100, 0
      %p346 = por %p344, %p345
      %p347 = scmp.ne.s32.totalorder %s335, %s336
      %p348 = scmp.eq.s32.totalorder %s101, 1
      %p349 = por %p347, %p348
      %p351 = scmp.ne.s32.totalorder %s336, %s350
      %p352 = scmp.eq.s32.totalorder %s101, 0
      %p353 = por %p351, %p352
      %s355 = sadd.s32 %s354, 1
      %p358 = scmp.eq.s32.totalorder %s95, 1
      %p359 = scmp.ne.s32.totalorder %s354, %s356
      %p360 = scmp.eq.s32.totalorder %s95, 0
      %p361 = por %p359, %p360
      %p362 = scmp.ne.s32.totalorder %s354, %s356
      %p363 = scmp.eq.s32.totalorder %s100, 1
      %p364 = por %p362, %p363
      %p365 = scmp.ne.s32.totalorder %s356, %s357
      %p366 = scmp.eq.s32.totalorder %s100, 0
      %p367 = por %p365, %p366
      %p368 = scmp.ne.s32.totalorder %s356, %s357
      %p369 = scmp.eq.s32.totalorder %s101, 1
      %p370 = por %p368, %p369
      %p372 = scmp.ne.s32.totalorder %s357, %s371
      %p373 = scmp.eq.s32.totalorder %s101, 0
      %p374 = por %p372, %p373
      %s376 = sadd.s32 %s375, 1
      %p379 = scmp.eq.s32.totalorder %s95, 1
      %p380 = scmp.ne.s32.totalorder %s375, %s377
      %p381 = scmp.eq.s32.totalorder %s95, 0
      %p382 = por %p380, %p381
      %p383 = scmp.ne.s32.totalorder %s375, %s377
      %p384 = scmp.eq.s32.totalorder %s100, 1
      %p385 = por %p383, %p384
      %p386 = scmp.ne.s32.totalorder %s377, %s378
      %p387 = scmp.eq.s32.totalorder %s100, 0
      %p388 = por %p386, %p387
      %p389 = scmp.ne.s32.totalorder %s377, %s378
      %p390 = scmp.eq.s32.totalorder %s101, 1
      %p391 = por %p389, %p390
      %p393 = scmp.ne.s32.totalorder %s378, %s392
      %p394 = scmp.eq.s32.totalorder %s101, 0
      %p395 = por %p393, %p394
      %s397 = sadd.s32 %s396, 1
      %p400 = scmp.eq.s32.totalorder %s95, 1
      %p401 = scmp.ne.s32.totalorder %s396, %s398
      %p402 = scmp.eq.s32.totalorder %s95, 0
      %p403 = por %p401, %p402
      %p404 = scmp.ne.s32.totalorder %s396, %s398
      %p405 = scmp.eq.s32.totalorder %s100, 1
      %p406 = por %p404, %p405
      %p407 = scmp.ne.s32.totalorder %s398, %s399
      %p408 = scmp.eq.s32.totalorder %s100, 0
      %p409 = por %p407, %p408
      %p410 = scmp.ne.s32.totalorder %s398, %s399
      %p411 = scmp.eq.s32.totalorder %s101, 1
      %p412 = por %p410, %p411
      %p414 = scmp.ne.s32.totalorder %s399, %s413
      %p415 = scmp.eq.s32.totalorder %s101, 0
      %p416 = por %p414, %p415
      %s418 = sadd.s32 %s417, 1
      %p421 = scmp.eq.s32.totalorder %s95, 1
      %p422 = scmp.ne.s32.totalorder %s417, %s419
      %p423 = scmp.eq.s32.totalorder %s95, 0
      %p424 = por %p422, %p423
      %p425 = scmp.ne.s32.totalorder %s417, %s419
      %p426 = scmp.eq.s32.totalorder %s100, 1
      %p427 = por %p425, %p426
      %p428 = scmp.ne.s32.totalorder %s419, %s420
      %p429 = scmp.eq.s32.totalorder %s100, 0
      %p430 = por %p428, %p429
      %p431 = scmp.ne.s32.totalorder %s419, %s420
      %p432 = scmp.eq.s32.totalorder %s101, 1
      %p433 = por %p431, %p432
      %p435 = scmp.ne.s32.totalorder %s420, %s434
      %p436 = scmp.eq.s32.totalorder %s101, 0
      %p437 = por %p435, %p436
      %s439 = sadd.s32 %s438, 1
      %p442 = scmp.eq.s32.totalorder %s95, 1
      %p443 = scmp.ne.s32.totalorder %s438, %s440
      %p444 = scmp.eq.s32.totalorder %s95, 0
      %p445 = por %p443, %p444
      %p446 = scmp.ne.s32.totalorder %s438, %s440
      %p447 = scmp.eq.s32.totalorder %s100, 1
      %p448 = por %p446, %p447
      %p449 = scmp.ne.s32.totalorder %s440, %s441
      %p450 = scmp.eq.s32.totalorder %s100, 0
      %p451 = por %p449, %p450
      %p452 = scmp.ne.s32.totalorder %s440, %s441
      %p453 = scmp.eq.s32.totalorder %s101, 1
      %p454 = por %p452, %p453
      %p456 = scmp.ne.s32.totalorder %s441, %s455
      %p457 = scmp.eq.s32.totalorder %s101, 0
      %p458 = por %p456, %p457
      %s460 = sadd.s32 %s459, 1
      %p463 = scmp.eq.s32.totalorder %s95, 1
      %p464 = scmp.ne.s32.totalorder %s459, %s461
      %p465 = scmp.eq.s32.totalorder %s95, 0
      %p466 = por %p464, %p465
      %p467 = scmp.ne.s32.totalorder %s459, %s461
      %p468 = scmp.eq.s32.totalorder %s100, 1
      %p469 = por %p467, %p468
      %p470 = scmp.ne.s32.totalorder %s461, %s462
      %p471 = scmp.eq.s32.totalorder %s100, 0
      %p472 = por %p470, %p471
      %p473 = scmp.ne.s32.totalorder %s461, %s462
      %p474 = scmp.eq.s32.totalorder %s101, 1
      %p475 = por %p473, %p474
      %p477 = scmp.ne.s32.totalorder %s462, %s476
      %p478 = scmp.eq.s32.totalorder %s101, 0
      %p479 = por %p477, %p478
      %s481 = sadd.s32 %s480, 1
      %p484 = scmp.eq.s32.totalorder %s95, 1
      %p485 = scmp.ne.s32.totalorder %s480, %s482
      %p486 = scmp.eq.s32.totalorder %s95, 0
      %p487 = por %p485, %p486
      %p488 = scmp.ne.s32.totalorder %s480, %s482
      %p489 = scmp.eq.s32.totalorder %s100, 1
      %p490 = por %p488, %p489
      %p491 = scmp.ne.s32.totalorder %s482, %s483
      %p492 = scmp.eq.s32.totalorder %s100, 0
      %p493 = por %p491, %p492
      %p494 = scmp.ne.s32.totalorder %s482, %s483
      %p495 = scmp.eq.s32.totalorder %s101, 1
      %p496 = por %p494, %p495
      %p498 = scmp.ne.s32.totalorder %s483, %s497
      %p499 = scmp.eq.s32.totalorder %s101, 0
      %p500 = por %p498, %p499
      %s502 = sadd.s32 %s501, 1
      %p505 = scmp.eq.s32.totalorder %s95, 1
      %p506 = scmp.ne.s32.totalorder %s501, %s503
      %p507 = scmp.eq.s32.totalorder %s95, 0
      %p508 = por %p506, %p507
      %p509 = scmp.ne.s32.totalorder %s501, %s503
      %p510 = scmp.eq.s32.totalorder %s100, 1
      %p511 = por %p509, %p510
      %p512 = scmp.ne.s32.totalorder %s503, %s504
      %p513 = scmp.eq.s32.totalorder %s100, 0
      %p514 = por %p512, %p513
      %p515 = scmp.ne.s32.totalorder %s503, %s504
      %p516 = scmp.eq.s32.totalorder %s101, 1
      %p517 = por %p515, %p516
      %p519 = scmp.ne.s32.totalorder %s504, %s518
      %p520 = scmp.eq.s32.totalorder %s101, 0
      %p521 = por %p519, %p520
      %s523 = sadd.s32 %s522, 1
      %p526 = scmp.eq.s32.totalorder %s95, 1
      %p527 = scmp.ne.s32.totalorder %s522, %s524
      %p528 = scmp.eq.s32.totalorder %s95, 0
      %p529 = por %p527, %p528
      %p530 = scmp.ne.s32.totalorder %s522, %s524
      %p531 = scmp.eq.s32.totalorder %s100, 1
      %p532 = por %p530, %p531
      %p533 = scmp.ne.s32.totalorder %s524, %s525
      %p534 = scmp.eq.s32.totalorder %s100, 0
      %p535 = por %p533, %p534
      %p536 = scmp.ne.s32.totalorder %s524, %s525
      %p537 = scmp.eq.s32.totalorder %s101, 1
      %p538 = por %p536, %p537
      %p540 = scmp.ne.s32.totalorder %s525, %s539
      %p541 = scmp.eq.s32.totalorder %s101, 0
      %p542 = por %p540, %p541
      %s544 = sadd.s32 %s543, 1
      %p547 = scmp.eq.s32.totalorder %s95, 1
      %p548 = scmp.ne.s32.totalorder %s543, %s545
      %p549 = scmp.eq.s32.totalorder %s95, 0
      %p550 = por %p548, %p549
      %p551 = scmp.ne.s32.totalorder %s543, %s545
      %p552 = scmp.eq.s32.totalorder %s100, 1
      %p553 = por %p551, %p552
      %p554 = scmp.ne.s32.totalorder %s545, %s546
      %p555 = scmp.eq.s32.totalorder %s100, 0
      %p556 = por %p554, %p555
      %p557 = scmp.ne.s32.totalorder %s545, %s546
      %p558 = scmp.eq.s32.totalorder %s101, 1
      %p559 = por %p557, %p558
      %p561 = scmp.ne.s32.totalorder %s546, %s560
      %p562 = scmp.eq.s32.totalorder %s101, 0
      %p563 = por %p561, %p562
      %s565 = sadd.s32 %s564, 1
      %p568 = scmp.eq.s32.totalorder %s95, 1
      %p569 = scmp.ne.s32.totalorder %s564, %s566
      %p570 = scmp.eq.s32.totalorder %s95, 0
      %p571 = por %p569, %p570
      %p572 = scmp.ne.s32.totalorder %s564, %s566
      %p573 = scmp.eq.s32.totalorder %s100, 1
      %p574 = por %p572, %p573
      %p575 = scmp.ne.s32.totalorder %s566, %s567
      %p576 = scmp.eq.s32.totalorder %s100, 0
      %p577 = por %p575, %p576
      %p578 = scmp.ne.s32.totalorder %s566, %s567
      %p579 = scmp.eq.s32.totalorder %s101, 1
      %p580 = por %p578, %p579
      %p582 = scmp.ne.s32.totalorder %s567, %s581
      %p583 = scmp.eq.s32.totalorder %s101, 0
      %p584 = por %p582, %p583
      %s586 = sadd.s32 %s585, 1
      %p589 = scmp.eq.s32.totalorder %s95, 1
      %p590 = scmp.ne.s32.totalorder %s585, %s587
      %p591 = scmp.eq.s32.totalorder %s95, 0
      %p592 = por %p590, %p591
      %p593 = scmp.ne.s32.totalorder %s585, %s587
      %p594 = scmp.eq.s32.totalorder %s100, 1
      %p595 = por %p593, %p594
      %p596 = scmp.ne.s32.totalorder %s587, %s588
      %p597 = scmp.eq.s32.totalorder %s100, 0
      %p598 = por %p596, %p597
      %p599 = scmp.ne.s32.totalorder %s587, %s588
      %p600 = scmp.eq.s32.totalorder %s101, 1
      %p601 = por %p599, %p600
      %p603 = scmp.ne.s32.totalorder %s588, %s602
      %p604 = scmp.eq.s32.totalorder %s101, 0
      %p605 = por %p603, %p604
      %s607 = sadd.s32 %s606, 1
      %p610 = scmp.eq.s32.totalorder %s95, 1
      %p611 = scmp.ne.s32.totalorder %s606, %s608
      %p612 = scmp.eq.s32.totalorder %s95, 0
      %p613 = por %p611, %p612
      %p614 = scmp.ne.s32.totalorder %s606, %s608
      %p615 = scmp.eq.s32.totalorder %s100, 1
      %p616 = por %p614, %p615
      %p617 = scmp.ne.s32.totalorder %s608, %s609
      %p618 = scmp.eq.s32.totalorder %s100, 0
      %p619 = por %p617, %p618
      %p620 = scmp.ne.s32.totalorder %s608, %s609
      %p621 = scmp.eq.s32.totalorder %s101, 1
      %p622 = por %p620, %p621
      %p624 = scmp.ne.s32.totalorder %s609, %s623
      %p625 = scmp.eq.s32.totalorder %s101, 0
      %p626 = por %p624, %p625
      %s628 = sadd.s32 %s627, 1
      %p631 = scmp.eq.s32.totalorder %s95, 1
      %p632 = scmp.ne.s32.totalorder %s627, %s629
      %p633 = scmp.eq.s32.totalorder %s95, 0
      %p634 = por %p632, %p633
      %p635 = scmp.ne.s32.totalorder %s627, %s629
      %p636 = scmp.eq.s32.totalorder %s100, 1
      %p637 = por %p635, %p636
      %p638 = scmp.ne.s32.totalorder %s629, %s630
      %p639 = scmp.eq.s32.totalorder %s100, 0
      %p640 = por %p638, %p639
      %p641 = scmp.ne.s32.totalorder %s629, %s630
      %p642 = scmp.eq.s32.totalorder %s101, 1
      %p643 = por %p641, %p642
      %p645 = scmp.ne.s32.totalorder %s630, %s644
      %p646 = scmp.eq.s32.totalorder %s101, 0
      %p647 = por %p645, %p646
      %s649 = sadd.s32 %s648, 1
      %p652 = scmp.eq.s32.totalorder %s95, 1
      %p653 = scmp.ne.s32.totalorder %s648, %s650
      %p654 = scmp.eq.s32.totalorder %s95, 0
      %p655 = por %p653, %p654
      %p656 = scmp.ne.s32.totalorder %s648, %s650
      %p657 = scmp.eq.s32.totalorder %s100, 1
      %p658 = por %p656, %p657
      %p659 = scmp.ne.s32.totalorder %s650, %s651
      %p660 = scmp.eq.s32.totalorder %s100, 0
      %p661 = por %p659, %p660
      %p662 = scmp.ne.s32.totalorder %s650, %s651
      %p663 = scmp.eq.s32.totalorder %s101, 1
      %p664 = por %p662, %p663
      %p666 = scmp.ne.s32.totalorder %s651, %s665
      %p667 = scmp.eq.s32.totalorder %s101, 0
      %p668 = por %p666, %p667
      %s670 = sadd.s32 %s669, 1
      %p673 = scmp.eq.s32.totalorder %s95, 1
      %p674 = scmp.ne.s32.totalorder %s669, %s671
      %p675 = scmp.eq.s32.totalorder %s95, 0
      %p676 = por %p674, %p675
      %p677 = scmp.ne.s32.totalorder %s669, %s671
      %p678 = scmp.eq.s32.totalorder %s100, 1
      %p679 = por %p677, %p678
      %p680 = scmp.ne.s32.totalorder %s671, %s672
      %p681 = scmp.eq.s32.totalorder %s100, 0
      %p682 = por %p680, %p681
      %p683 = scmp.ne.s32.totalorder %s671, %s672
      %p684 = scmp.eq.s32.totalorder %s101, 1
      %p685 = por %p683, %p684
      %p687 = scmp.ne.s32.totalorder %s672, %s686
      %p688 = scmp.eq.s32.totalorder %s101, 0
      %p689 = por %p687, %p688
      %s691 = sadd.s32 %s690, 1
      %p694 = scmp.eq.s32.totalorder %s95, 1
      %p695 = scmp.ne.s32.totalorder %s690, %s692
      %p696 = scmp.eq.s32.totalorder %s95, 0
      %p697 = por %p695, %p696
      %p698 = scmp.ne.s32.totalorder %s690, %s692
      %p699 = scmp.eq.s32.totalorder %s100, 1
      %p700 = por %p698, %p699
      %p701 = scmp.ne.s32.totalorder %s692, %s693
      %p702 = scmp.eq.s32.totalorder %s100, 0
      %p703 = por %p701, %p702
      %p704 = scmp.ne.s32.totalorder %s692, %s693
      %p705 = scmp.eq.s32.totalorder %s101, 1
      %p706 = por %p704, %p705
      %p708 = scmp.ne.s32.totalorder %s693, %s707
      %p709 = scmp.eq.s32.totalorder %s101, 0
      %p710 = por %p708, %p709
      %s712 = sadd.s32 %s711, 1
      %p715 = scmp.eq.s32.totalorder %s95, 1
      %p716 = scmp.ne.s32.totalorder %s711, %s713
      %p717 = scmp.eq.s32.totalorder %s95, 0
      %p718 = por %p716, %p717
      %p719 = scmp.ne.s32.totalorder %s711, %s713
      %p720 = scmp.eq.s32.totalorder %s100, 1
      %p721 = por %p719, %p720
      %p722 = scmp.ne.s32.totalorder %s713, %s714
      %p723 = scmp.eq.s32.totalorder %s100, 0
      %p724 = por %p722, %p723
      %p725 = scmp.ne.s32.totalorder %s713, %s714
      %p726 = scmp.eq.s32.totalorder %s101, 1
      %p727 = por %p725, %p726
      %p729 = scmp.ne.s32.totalorder %s714, %s728
      %p730 = scmp.eq.s32.totalorder %s101, 0
      %p731 = por %p729, %p730
      %s733 = sadd.s32 %s732, 1
      %p736 = scmp.eq.s32.totalorder %s95, 1
      %p737 = scmp.ne.s32.totalorder %s732, %s734
      %p738 = scmp.eq.s32.totalorder %s95, 0
      %p739 = por %p737, %p738
      %p740 = scmp.ne.s32.totalorder %s732, %s734
      %p741 = scmp.eq.s32.totalorder %s100, 1
      %p742 = por %p740, %p741
      %p743 = scmp.ne.s32.totalorder %s734, %s735
      %p744 = scmp.eq.s32.totalorder %s100, 0
      %p745 = por %p743, %p744
      %p746 = scmp.ne.s32.totalorder %s734, %s735
      %p747 = scmp.eq.s32.totalorder %s101, 1
      %p748 = por %p746, %p747
      %p750 = scmp.ne.s32.totalorder %s735, %s749
      %p751 = scmp.eq.s32.totalorder %s101, 0
      %p752 = por %p750, %p751
      %s754 = sadd.s32 %s753, 1
      %p757 = scmp.eq.s32.totalorder %s95, 1
      %p758 = scmp.ne.s32.totalorder %s753, %s755
      %p759 = scmp.eq.s32.totalorder %s95, 0
      %p760 = por %p758, %p759
      %p761 = scmp.ne.s32.totalorder %s753, %s755
      %p762 = scmp.eq.s32.totalorder %s100, 1
      %p763 = por %p761, %p762
      %p764 = scmp.ne.s32.totalorder %s755, %s756
      %p765 = scmp.eq.s32.totalorder %s100, 0
      %p766 = por %p764, %p765
      %p767 = scmp.ne.s32.totalorder %s755, %s756
      %p768 = scmp.eq.s32.totalorder %s101, 1
      %p769 = por %p767, %p768
      %p771 = scmp.ne.s32.totalorder %s756, %s770
      %p772 = scmp.eq.s32.totalorder %s101, 0
      %p773 = por %p771, %p772
      %s775 = sadd.s32 %s774, 1
      %p778 = scmp.eq.s32.totalorder %s95, 1
      %p779 = scmp.ne.s32.totalorder %s774, %s776
      %p780 = scmp.eq.s32.totalorder %s95, 0
      %p781 = por %p779, %p780
      %p782 = scmp.ne.s32.totalorder %s774, %s776
      %p783 = scmp.eq.s32.totalorder %s100, 1
      %p784 = por %p782, %p783
      %p785 = scmp.ne.s32.totalorder %s776, %s777
      %p786 = scmp.eq.s32.totalorder %s100, 0
      %p787 = por %p785, %p786
      %p788 = scmp.ne.s32.totalorder %s776, %s777
      %p789 = scmp.eq.s32.totalorder %s101, 1
      %p790 = por %p788, %p789
      %p792 = scmp.ne.s32.totalorder %s777, %s791
      %p793 = scmp.eq.s32.totalorder %s101, 0
      %p794 = por %p792, %p793
      %s796 = sadd.s32 %s795, 1
      %p799 = scmp.eq.s32.totalorder %s95, 1
      %p800 = scmp.ne.s32.totalorder %s795, %s797
      %p801 = scmp.eq.s32.totalorder %s95, 0
      %p802 = por %p800, %p801
      %p803 = scmp.ne.s32.totalorder %s795, %s797
      %p804 = scmp.eq.s32.totalorder %s100, 1
      %p805 = por %p803, %p804
      %p806 = scmp.ne.s32.totalorder %s797, %s798
      %p807 = scmp.eq.s32.totalorder %s100, 0
      %p808 = por %p806, %p807
      %p809 = scmp.ne.s32.totalorder %s797, %s798
      %p810 = scmp.eq.s32.totalorder %s101, 1
      %p811 = por %p809, %p810
      %p813 = scmp.ne.s32.totalorder %s798, %s812
      %p814 = scmp.eq.s32.totalorder %s101, 0
      %p815 = por %p813, %p814
      %s817 = sadd.s32 %s816, 1
      %p820 = scmp.eq.s32.totalorder %s95, 1
      %p821 = scmp.ne.s32.totalorder %s816, %s818
      %p822 = scmp.eq.s32.totalorder %s95, 0
      %p823 = por %p821, %p822
      %p824 = scmp.ne.s32.totalorder %s816, %s818
      %p825 = scmp.eq.s32.totalorder %s100, 1
      %p826 = por %p824, %p825
      %p827 = scmp.ne.s32.totalorder %s818, %s819
      %p828 = scmp.eq.s32.totalorder %s100, 0
      %p829 = por %p827, %p828
      %p830 = scmp.ne.s32.totalorder %s818, %s819
      %p831 = scmp.eq.s32.totalorder %s101, 1
      %p832 = por %p830, %p831
      %p834 = scmp.ne.s32.totalorder %s819, %s833
      %p835 = scmp.eq.s32.totalorder %s101, 0
      %p836 = por %p834, %p835
      %s838 = sadd.s32 %s837, 1
      %p841 = scmp.eq.s32.totalorder %s95, 1
      %p842 = scmp.ne.s32.totalorder %s837, %s839
      %p843 = scmp.eq.s32.totalorder %s95, 0
      %p844 = por %p842, %p843
      %p845 = scmp.ne.s32.totalorder %s837, %s839
      %p846 = scmp.eq.s32.totalorder %s100, 1
      %p847 = por %p845, %p846
      %p848 = scmp.ne.s32.totalorder %s839, %s840
      %p849 = scmp.eq.s32.totalorder %s100, 0
      %p850 = por %p848, %p849
      %p851 = scmp.ne.s32.totalorder %s839, %s840
      %p852 = scmp.eq.s32.totalorder %s101, 1
      %p853 = por %p851, %p852
      %p855 = scmp.ne.s32.totalorder %s840, %s854
      %p856 = scmp.eq.s32.totalorder %s101, 0
      %p857 = por %p855, %p856
      %s859 = sadd.s32 %s858, 1
      %p862 = scmp.eq.s32.totalorder %s95, 1
      %p863 = scmp.ne.s32.totalorder %s858, %s860
      %p864 = scmp.eq.s32.totalorder %s95, 0
      %p865 = por %p863, %p864
      %p866 = scmp.ne.s32.totalorder %s858, %s860
      %p867 = scmp.eq.s32.totalorder %s100, 1
      %p868 = por %p866, %p867
      %p869 = scmp.ne.s32.totalorder %s860, %s861
      %p870 = scmp.eq.s32.totalorder %s100, 0
      %p871 = por %p869, %p870
      %p872 = scmp.ne.s32.totalorder %s860, %s861
      %p873 = scmp.eq.s32.totalorder %s101, 1
      %p874 = por %p872, %p873
      %p876 = scmp.ne.s32.totalorder %s861, %s875
      %p877 = scmp.eq.s32.totalorder %s101, 0
      %p878 = por %p876, %p877
      %s880 = sadd.s32 %s879, 1
      %p883 = scmp.eq.s32.totalorder %s95, 1
      %p884 = scmp.ne.s32.totalorder %s879, %s881
      %p885 = scmp.eq.s32.totalorder %s95, 0
      %p886 = por %p884, %p885
      %p887 = scmp.ne.s32.totalorder %s879, %s881
      %p888 = scmp.eq.s32.totalorder %s100, 1
      %p889 = por %p887, %p888
      %p890 = scmp.ne.s32.totalorder %s881, %s882
      %p891 = scmp.eq.s32.totalorder %s100, 0
      %p892 = por %p890, %p891
      %p893 = scmp.ne.s32.totalorder %s881, %s882
      %p894 = scmp.eq.s32.totalorder %s101, 1
      %p895 = por %p893, %p894
      %p897 = scmp.ne.s32.totalorder %s882, %s896
      %p898 = scmp.eq.s32.totalorder %s101, 0
      %p899 = por %p897, %p898
      %s901 = sadd.s32 %s900, 1
      %p904 = scmp.eq.s32.totalorder %s95, 1
      %p905 = scmp.ne.s32.totalorder %s900, %s902
      %p906 = scmp.eq.s32.totalorder %s95, 0
      %p907 = por %p905, %p906
      %p908 = scmp.ne.s32.totalorder %s900, %s902
      %p909 = scmp.eq.s32.totalorder %s100, 1
      %p910 = por %p908, %p909
      %p911 = scmp.ne.s32.totalorder %s902, %s903
      %p912 = scmp.eq.s32.totalorder %s100, 0
      %p913 = por %p911, %p912
      %p914 = scmp.ne.s32.totalorder %s902, %s903
      %p915 = scmp.eq.s32.totalorder %s101, 1
      %p916 = por %p914, %p915
      %p918 = scmp.ne.s32.totalorder %s903, %s917
      %p919 = scmp.eq.s32.totalorder %s101, 0
      %p920 = por %p918, %p919
      %s922 = sadd.s32 %s921, 1
      %p925 = scmp.eq.s32.totalorder %s95, 1
      %p926 = scmp.ne.s32.totalorder %s921, %s923
      %p927 = scmp.eq.s32.totalorder %s95, 0
      %p928 = por %p926, %p927
      %p929 = scmp.ne.s32.totalorder %s921, %s923
      %p930 = scmp.eq.s32.totalorder %s100, 1
      %p931 = por %p929, %p930
      %p932 = scmp.ne.s32.totalorder %s923, %s924
      %p933 = scmp.eq.s32.totalorder %s100, 0
      %p934 = por %p932, %p933
      %p935 = scmp.ne.s32.totalorder %s923, %s924
      %p936 = scmp.eq.s32.totalorder %s101, 1
      %p937 = por %p935, %p936
      %p939 = scmp.ne.s32.totalorder %s924, %s938
      %p940 = scmp.eq.s32.totalorder %s101, 0
      %p941 = por %p939, %p940
      %s942 = ssub.s32 %s102, %s114
      %s943 = ssub.s32 %s103, %s110
      %s944 = sor.u32 %s942, %s943
      %p945 = scmp.eq.s32.totalorder %s944, 0
      %s947 = sadd.s32 %s946, 1
      %s948 = scalar_select %p945, %s946, %s947
      %p951 = pneg %p945
      %p952 = scmp.eq.s32.totalorder %s95, 1
      %p953 = por %p951, %p952
      %p954 = scmp.ne.s32.totalorder %s946, %s949
      %p955 = scmp.eq.s32.totalorder %s95, 0
      %p956 = por %p954, %p955
      %p957 = scmp.ne.s32.totalorder %s946, %s949
      %p958 = scmp.eq.s32.totalorder %s100, 1
      %p959 = por %p957, %p958
      %p960 = scmp.ne.s32.totalorder %s949, %s950
      %p961 = scmp.eq.s32.totalorder %s100, 0
      %p962 = por %p960, %p961
      %p963 = scmp.ne.s32.totalorder %s949, %s950
      %p964 = scmp.eq.s32.totalorder %s101, 1
      %p965 = por %p963, %p964
      %p967 = scmp.ne.s32.totalorder %s950, %s966
      %p968 = scmp.eq.s32.totalorder %s101, 0
      %p969 = por %p967, %p968
      %p970 = scmp.le.s32.totalorder 1, %s95
      %p971 = scmp.lt.s32.totalorder %s95, 3
      %p972 = pnand %p970, %p971
      %p973 = pneg %p972
      // Predicated region
      $region9: #{tpu_custom_call.1} parent=5 // pred_check
        _
      $region10: #{tpu_custom_call.1} parent=5 // pred_check_branch
        %975 = sbr.rel (%p972) target = $region12
      $region11: #{tpu_custom_call.1} parent=5 // pred_region
        %s976 = ssub.s32 %s95, 1
        // Predicated region
        $region13: #{tpu_custom_call.1} parent=11 // pred_check
          %p977 = pneg %p346
        $region14: #{tpu_custom_call.1} parent=11 // pred_check_branch
          %979 = sbr.rel (%p977) target = $region16
        $region15: #{tpu_custom_call.1} parent=11 // pred_region
          %s981 = ssub.s32 16, 16
          %982 = vsyncadd [#allocation22], %s981
          %s984 = sshll.u32 [#allocation23], 4
          %s985 = int_to_ptr.vmem [resolvable:$true] %s984
          %987 = dma.hbm_to_vmem [thread:$0]  %s17, 16, %s985, [#allocation22]
        $region16: #{tpu_custom_call.1} parent=11 // pred_fallthru
          _
        // Predicated region
        $region17: #{tpu_custom_call.1} parent=11 // pred_check
          %p988 = pneg %p367
        $region18: #{tpu_custom_call.1} parent=11 // pred_check_branch
          %990 = sbr.rel (%p988) target = $region20
        $region19: #{tpu_custom_call.1} parent=11 // pred_region
          %s992 = ssub.s32 16, 16
          %993 = vsyncadd [#allocation25], %s992
          %s995 = sshll.u32 [#allocation24], 4
          %s996 = int_to_ptr.vmem [resolvable:$true] %s995
          %998 = dma.hbm_to_vmem [thread:$0]  %s19, 16, %s996, [#allocation25]
        $region20: #{tpu_custom_call.1} parent=11 // pred_fallthru
          _
        // Predicated region
        $region21: #{tpu_custom_call.1} parent=11 // pred_check
          %p999 = pneg %p388
        $region22: #{tpu_custom_call.1} parent=11 // pred_check_branch
          %1001 = sbr.rel (%p999) target = $region24
        $region23: #{tpu_custom_call.1} parent=11 // pred_region
          _
        $region24: #{tpu_custom_call.1} parent=11 // pred_fallthru
          _
        // Predicated region
        $region25: #{tpu_custom_call.1} parent=11 // pred_check
          %p1002 = pneg %p409
        $region26: #{tpu_custom_call.1} parent=11 // pred_check_branch
          %1004 = sbr.rel (%p1002) target = $region28
        $region27: #{tpu_custom_call.1} parent=11 // pred_region
          _
        $region28: #{tpu_custom_call.1} parent=11 // pred_fallthru
          _
        // Predicated region
        $region29: #{tpu_custom_call.1} parent=11 // pred_check
          %p1005 = pneg %p430
        $region30: #{tpu_custom_call.1} parent=11 // pred_check_branch
          %1007 = sbr.rel (%p1005) target = $region32
        $region31: #{tpu_custom_call.1} parent=11 // pred_region
          _
        $region32: #{tpu_custom_call.1} parent=11 // pred_fallthru
          _
        // Predicated region
        $region33: #{tpu_custom_call.1} parent=11 // pred_check
          %p1008 = pneg %p451
        $region34: #{tpu_custom_call.1} parent=11 // pred_check_branch
          %1010 = sbr.rel (%p1008) target = $region36
        $region35: #{tpu_custom_call.1} parent=11 // pred_region
          _
        $region36: #{tpu_custom_call.1} parent=11 // pred_fallthru
          _
        // Predicated region
        $region37: #{tpu_custom_call.1} parent=11 // pred_check
          %p1011 = pneg %p472
        $region38: #{tpu_custom_call.1} parent=11 // pred_check_branch
          %1013 = sbr.rel (%p1011) target = $region40
        $region39: #{tpu_custom_call.1} parent=11 // pred_region
          _
        $region40: #{tpu_custom_call.1} parent=11 // pred_fallthru
          _
        // Predicated region
        $region41: #{tpu_custom_call.1} parent=11 // pred_check
          %p1014 = pneg %p493
        $region42: #{tpu_custom_call.1} parent=11 // pred_check_branch
          %1016 = sbr.rel (%p1014) target = $region44
        $region43: #{tpu_custom_call.1} parent=11 // pred_region
          _
        $region44: #{tpu_custom_call.1} parent=11 // pred_fallthru
          _
        // Predicated region
        $region45: #{tpu_custom_call.1} parent=11 // pred_check
          %p1017 = pneg %p514
        $region46: #{tpu_custom_call.1} parent=11 // pred_check_branch
          %1019 = sbr.rel (%p1017) target = $region48
        $region47: #{tpu_custom_call.1} parent=11 // pred_region
          _
        $region48: #{tpu_custom_call.1} parent=11 // pred_fallthru
          _
        // Predicated region
        $region49: #{tpu_custom_call.1} parent=11 // pred_check
          %p1020 = pneg %p535
        $region50: #{tpu_custom_call.1} parent=11 // pred_check_branch
          %1022 = sbr.rel (%p1020) target = $region52
        $region51: #{tpu_custom_call.1} parent=11 // pred_region
          _
        $region52: #{tpu_custom_call.1} parent=11 // pred_fallthru
          _
        // Predicated region
        $region53: #{tpu_custom_call.1} parent=11 // pred_check
          %p1023 = pneg %p556
        $region54: #{tpu_custom_call.1} parent=11 // pred_check_branch
          %1025 = sbr.rel (%p1023) target = $region56
        $region55: #{tpu_custom_call.1} parent=11 // pred_region
          _
        $region56: #{tpu_custom_call.1} parent=11 // pred_fallthru
          _
        // Predicated region
        $region57: #{tpu_custom_call.1} parent=11 // pred_check
          %p1026 = pneg %p577
        $region58: #{tpu_custom_call.1} parent=11 // pred_check_branch
          %1028 = sbr.rel (%p1026) target = $region60
        $region59: #{tpu_custom_call.1} parent=11 // pred_region
          _
        $region60: #{tpu_custom_call.1} parent=11 // pred_fallthru
          _
        // Predicated region
        $region61: #{tpu_custom_call.1} parent=11 // pred_check
          %p1029 = pneg %p598
        $region62: #{tpu_custom_call.1} parent=11 // pred_check_branch
          %1031 = sbr.rel (%p1029) target = $region64
        $region63: #{tpu_custom_call.1} parent=11 // pred_region
          _
        $region64: #{tpu_custom_call.1} parent=11 // pred_fallthru
          _
        // Predicated region
        $region65: #{tpu_custom_call.1} parent=11 // pred_check
          %p1032 = pneg %p619
        $region66: #{tpu_custom_call.1} parent=11 // pred_check_branch
          %1034 = sbr.rel (%p1032) target = $region68
        $region67: #{tpu_custom_call.1} parent=11 // pred_region
          _
        $region68: #{tpu_custom_call.1} parent=11 // pred_fallthru
          _
        // Predicated region
        $region69: #{tpu_custom_call.1} parent=11 // pred_check
          %p1035 = pneg %p640
        $region70: #{tpu_custom_call.1} parent=11 // pred_check_branch
          %1037 = sbr.rel (%p1035) target = $region72
        $region71: #{tpu_custom_call.1} parent=11 // pred_region
          _
        $region72: #{tpu_custom_call.1} parent=11 // pred_fallthru
          _
        // Predicated region
        $region73: #{tpu_custom_call.1} parent=11 // pred_check
          %p1038 = pneg %p661
        $region74: #{tpu_custom_call.1} parent=11 // pred_check_branch
          %1040 = sbr.rel (%p1038) target = $region76
        $region75: #{tpu_custom_call.1} parent=11 // pred_region
          %s1042 = ssub.s32 16, 16
          %1043 = vsyncadd [#allocation25], %s1042
          %s1045 = sshll.u32 [#allocation26], 4
          %s1046 = int_to_ptr.vmem [resolvable:$true] %s1045
          %1048 = dma.hbm_to_vmem [thread:$0]  %s47, 16, %s1046, [#allocation25]
        $region76: #{tpu_custom_call.1} parent=11 // pred_fallthru
          _
        // Predicated region
        $region77: #{tpu_custom_call.1} parent=11 // pred_check
          %p1049 = pneg %p682
        $region78: #{tpu_custom_call.1} parent=11 // pred_check_branch
          %1051 = sbr.rel (%p1049) target = $region80
        $region79: #{tpu_custom_call.1} parent=11 // pred_region
          _
        $region80: #{tpu_custom_call.1} parent=11 // pred_fallthru
          _
        // Predicated region
        $region81: #{tpu_custom_call.1} parent=11 // pred_check
          %p1052 = pneg %p703
        $region82: #{tpu_custom_call.1} parent=11 // pred_check_branch
          %1054 = sbr.rel (%p1052) target = $region84
        $region83: #{tpu_custom_call.1} parent=11 // pred_region
          _
        $region84: #{tpu_custom_call.1} parent=11 // pred_fallthru
          _
        // Predicated region
        $region85: #{tpu_custom_call.1} parent=11 // pred_check
          %p1055 = pneg %p724
        $region86: #{tpu_custom_call.1} parent=11 // pred_check_branch
          %1057 = sbr.rel (%p1055) target = $region88
        $region87: #{tpu_custom_call.1} parent=11 // pred_region
          _
        $region88: #{tpu_custom_call.1} parent=11 // pred_fallthru
          _
        // Predicated region
        $region89: #{tpu_custom_call.1} parent=11 // pred_check
          %p1058 = pneg %p745
        $region90: #{tpu_custom_call.1} parent=11 // pred_check_branch
          %1060 = sbr.rel (%p1058) target = $region92
        $region91: #{tpu_custom_call.1} parent=11 // pred_region
          _
        $region92: #{tpu_custom_call.1} parent=11 // pred_fallthru
          _
        // Predicated region
        $region93: #{tpu_custom_call.1} parent=11 // pred_check
          %p1061 = pneg %p766
        $region94: #{tpu_custom_call.1} parent=11 // pred_check_branch
          %1063 = sbr.rel (%p1061) target = $region96
        $region95: #{tpu_custom_call.1} parent=11 // pred_region
          _
        $region96: #{tpu_custom_call.1} parent=11 // pred_fallthru
          _
        // Predicated region
        $region97: #{tpu_custom_call.1} parent=11 // pred_check
          %p1064 = pneg %p787
        $region98: #{tpu_custom_call.1} parent=11 // pred_check_branch
          %1066 = sbr.rel (%p1064) target = $region100
        $region99: #{tpu_custom_call.1} parent=11 // pred_region
          %s1068 = ssub.s32 512, 512
          %1069 = vsyncadd [#allocation28], %s1068
          %s1070 = sshll.u32 [#allocation27], 4
          %s1071 = int_to_ptr.vmem [resolvable:$true] %s1070
          %1076 = dma.hbm_to_vmem [thread:$0]  %s59, 512, %s1071, [#allocation28], 128, 128, 8
        $region100: #{tpu_custom_call.1} parent=11 // pred_fallthru
          _
        // Predicated region
        $region101: #{tpu_custom_call.1} parent=11 // pred_check
          %p1077 = pneg %p808
        $region102: #{tpu_custom_call.1} parent=11 // pred_check_branch
          %1079 = sbr.rel (%p1077) target = $region104
        $region103: #{tpu_custom_call.1} parent=11 // pred_region
          _
        $region104: #{tpu_custom_call.1} parent=11 // pred_fallthru
          _
        // Predicated region
        $region105: #{tpu_custom_call.1} parent=11 // pred_check
          %p1080 = pneg %p829
        $region106: #{tpu_custom_call.1} parent=11 // pred_check_branch
          %1082 = sbr.rel (%p1080) target = $region108
        $region107: #{tpu_custom_call.1} parent=11 // pred_region
          _
        $region108: #{tpu_custom_call.1} parent=11 // pred_fallthru
          _
        // Predicated region
        $region109: #{tpu_custom_call.1} parent=11 // pred_check
          %p1083 = pneg %p850
        $region110: #{tpu_custom_call.1} parent=11 // pred_check_branch
          %1085 = sbr.rel (%p1083) target = $region112
        $region111: #{tpu_custom_call.1} parent=11 // pred_region
          _
        $region112: #{tpu_custom_call.1} parent=11 // pred_fallthru
          _
        // Predicated region
        $region113: #{tpu_custom_call.1} parent=11 // pred_check
          %p1086 = pneg %p871
        $region114: #{tpu_custom_call.1} parent=11 // pred_check_branch
          %1088 = sbr.rel (%p1086) target = $region116
        $region115: #{tpu_custom_call.1} parent=11 // pred_region
          %s1090 = ssub.s32 512, 512
          %1091 = vsyncadd [#allocation28], %s1090
          %s1092 = sshll.u32 [#allocation29], 4
          %s1093 = int_to_ptr.vmem [resolvable:$true] %s1092
          %1098 = dma.hbm_to_vmem [thread:$0]  %s67, 512, %s1093, [#allocation28], 128, 128, 8
        $region116: #{tpu_custom_call.1} parent=11 // pred_fallthru
          _
        // Predicated region
        $region117: #{tpu_custom_call.1} parent=11 // pred_check
          %p1099 = pneg %p892
        $region118: #{tpu_custom_call.1} parent=11 // pred_check_branch
          %1101 = sbr.rel (%p1099) target = $region120
        $region119: #{tpu_custom_call.1} parent=11 // pred_region
          _
        $region120: #{tpu_custom_call.1} parent=11 // pred_fallthru
          _
        // Predicated region
        $region121: #{tpu_custom_call.1} parent=11 // pred_check
          %p1102 = pneg %p913
        $region122: #{tpu_custom_call.1} parent=11 // pred_check_branch
          %1104 = sbr.rel (%p1102) target = $region124
        $region123: #{tpu_custom_call.1} parent=11 // pred_region
          _
        $region124: #{tpu_custom_call.1} parent=11 // pred_fallthru
          _
        // Predicated region
        $region125: #{tpu_custom_call.1} parent=11 // pred_check
          %p1105 = pneg %p934
        $region126: #{tpu_custom_call.1} parent=11 // pred_check_branch
          %1107 = sbr.rel (%p1105) target = $region128
        $region127: #{tpu_custom_call.1} parent=11 // pred_region
          _
        $region128: #{tpu_custom_call.1} parent=11 // pred_fallthru
          _
      $region12: #{tpu_custom_call.1} parent=5 // pred_fallthru
        _
      %p1108 = scmp.lt.s32.totalorder %s95, 2
      // Predicated region
      $region129: #{tpu_custom_call.1} parent=5 // pred_check
        %p1109 = pneg %p1108
      $region130: #{tpu_custom_call.1} parent=5 // pred_check_branch
        %1111 = sbr.rel (%p1109) target = $region132
      $region131: #{tpu_custom_call.1} parent=5 // pred_region
        // Predicated region
        $region133: #{tpu_custom_call.1} parent=131 // pred_check
          %p1112 = pneg %p127
        $region134: #{tpu_custom_call.1} parent=131 // pred_check_branch
          %1114 = sbr.rel (%p1112) target = $region136
        $region135: #{tpu_custom_call.1} parent=131 // pred_region
          %s1115 = sand.u32 %s117, 1
          %s1116 = scalar_lea.sflag [#allocation16], %s1115
          %s1117 = sand.u32 %s117, 1
          %s1118 = smul.addr %s1117, 8
          %s1119 = scalar_lea.vmem [#allocation15], %s1118
          %s1121 = ssub.s32 128, 128
          %1122 = vsyncadd %s1116, %s1121
          %s1123 = smul.addr %s102, 128
          %s1124 = scalar_lea.hbm %s1, %s1123
          %s1126 = sshll.u32 %s1119, 4
          %s1127 = int_to_ptr.vmem [resolvable:$true] %s1126
          %1129 = dma.hbm_to_vmem [thread:$0]  %s1124, 128, %s1127, %s1116
        $region136: #{tpu_custom_call.1} parent=131 // pred_fallthru
          _
        // Predicated region
        $region137: #{tpu_custom_call.1} parent=131 // pred_check
          %p1130 = pneg %p155
        $region138: #{tpu_custom_call.1} parent=131 // pred_check_branch
          %1132 = sbr.rel (%p1130) target = $region140
        $region139: #{tpu_custom_call.1} parent=131 // pred_region
          %s1133 = sand.u32 %s95, 1
          %s1134 = scalar_lea.sflag [#allocation19], %s1133
          %s1135 = sand.u32 %s145, 1
          %s1136 = smul.addr %s1135, 8
          %s1137 = scalar_lea.vmem [#allocation18], %s1136
          %s1139 = ssub.s32 128, 128
          %1140 = vsyncadd %s1134, %s1139
          %s1141 = sadd.s32 %s103, %s102
          %s1142 = smul.addr %s1141, 128
          %s1143 = scalar_lea.hbm %s3, %s1142
          %s1145 = sshll.u32 %s1137, 4
          %s1146 = int_to_ptr.vmem [resolvable:$true] %s1145
          %1148 = dma.hbm_to_vmem [thread:$0]  %s1143, 128, %s1146, %s1134
        $region140: #{tpu_custom_call.1} parent=131 // pred_fallthru
          _
        // Predicated region
        $region141: #{tpu_custom_call.1} parent=131 // pred_check
          %p1149 = pneg %p183
        $region142: #{tpu_custom_call.1} parent=131 // pred_check_branch
          %1151 = sbr.rel (%p1149) target = $region144
        $region143: #{tpu_custom_call.1} parent=131 // pred_region
          %s1152 = smul.u32 8, %s103
          %p1153 = scmp.lt.s32.totalorder %s102, 1
          %s1154 = scalar_select %p1153, %s102, 1
          %p1155 = scmp.lt.s32.totalorder %s1152, 7
          %s1156 = scalar_select %p1155, %s1152, 7
          %s1157 = smul.addr %s1154, 8
          %s1158 = sadd.s32 %s1156, %s1157
          %s1159 = smul.addr %s1158, 8
          %s1160 = scalar_lea.vmem %s5, %s1159
          %s1161 = smul.u32 8, %s103
        $region144: #{tpu_custom_call.1} parent=131 // pred_fallthru
          _
        // Predicated region
        $region145: #{tpu_custom_call.1} parent=131 // pred_check
          %p1162 = pneg %p209
        $region146: #{tpu_custom_call.1} parent=131 // pred_check_branch
          %1164 = sbr.rel (%p1162) target = $region148
        $region147: #{tpu_custom_call.1} parent=131 // pred_region
          %p1165 = scmp.lt.s32.totalorder %s102, 1
          %s1166 = scalar_select %p1165, %s102, 1
          %s1167 = smul.addr %s1166, 8
          %s1168 = scalar_lea.vmem %s7, %s1167
        $region148: #{tpu_custom_call.1} parent=131 // pred_fallthru
          _
        // Predicated region
        $region149: #{tpu_custom_call.1} parent=131 // pred_check
          %p1169 = pneg %p237
        $region150: #{tpu_custom_call.1} parent=131 // pred_check_branch
          %1171 = sbr.rel (%p1169) target = $region152
        $region151: #{tpu_custom_call.1} parent=131 // pred_region
          %p1172 = scmp.lt.s32.totalorder %s102, 1
          %s1173 = scalar_select %p1172, %s102, 1
          %p1174 = scmp.lt.s32.totalorder %s103, 0
          %s1175 = scalar_select %p1174, %s103, 0
          %s1176 = sadd.s32 %s1175, %s1173
          %s1177 = smul.addr %s1176, 8
          %s1178 = scalar_lea.vmem %s9, %s1177
        $region152: #{tpu_custom_call.1} parent=131 // pred_fallthru
          _
        // Predicated region
        $region153: #{tpu_custom_call.1} parent=131 // pred_check
          %p1179 = pneg %p263
        $region154: #{tpu_custom_call.1} parent=131 // pred_check_branch
          %1181 = sbr.rel (%p1179) target = $region156
        $region155: #{tpu_custom_call.1} parent=131 // pred_region
          %s1182 = sand.u32 %s95, 1
          %s1183 = scalar_lea.sflag [#allocation19], %s1182
          %s1184 = sand.u32 %s253, 1
          %s1185 = smul.addr %s1184, 8
          %s1186 = scalar_lea.vmem [#allocation20], %s1185
          %s1188 = ssub.s32 128, 128
          %1189 = vsyncadd %s1183, %s1188
          %s1190 = smul.addr %s102, 128
          %s1191 = scalar_lea.hbm %s11, %s1190
          %s1193 = sshll.u32 %s1186, 4
          %s1194 = int_to_ptr.vmem [resolvable:$true] %s1193
          %1196 = dma.hbm_to_vmem [thread:$0]  %s1191, 128, %s1194, %s1183
        $region156: #{tpu_custom_call.1} parent=131 // pred_fallthru
          _
        // Predicated region
        $region157: #{tpu_custom_call.1} parent=131 // pred_check
          %p1197 = pneg %p291
        $region158: #{tpu_custom_call.1} parent=131 // pred_check_branch
          %1199 = sbr.rel (%p1197) target = $region160
        $region159: #{tpu_custom_call.1} parent=131 // pred_region
          %s1200 = sand.u32 %s95, 1
          %s1201 = scalar_lea.sflag [#allocation22], %s1200
          %s1202 = sand.u32 %s281, 1
          %s1203 = smul.addr %s1202, 8
          %s1204 = scalar_lea.vmem [#allocation21], %s1203
          %s1206 = ssub.s32 128, 128
          %1207 = vsyncadd %s1201, %s1206
          %s1208 = sadd.s32 %s103, %s102
          %s1209 = smul.addr %s1208, 128
          %s1210 = scalar_lea.hbm %s13, %s1209
          %s1212 = sshll.u32 %s1204, 4
          %s1213 = int_to_ptr.vmem [resolvable:$true] %s1212
          %1215 = dma.hbm_to_vmem [thread:$0]  %s1210, 128, %s1213, %s1201
        $region160: #{tpu_custom_call.1} parent=131 // pred_fallthru
          _
        // Predicated region
        $region161: #{tpu_custom_call.1} parent=131 // pred_check
          %p1216 = pneg %p319
        $region162: #{tpu_custom_call.1} parent=131 // pred_check_branch
          %1218 = sbr.rel (%p1216) target = $region164
        $region163: #{tpu_custom_call.1} parent=131 // pred_region
          %p1219 = scmp.lt.s32.totalorder %s102, 1
          %s1220 = scalar_select %p1219, %s102, 1
          %p1221 = scmp.lt.s32.totalorder %s103, 0
          %s1222 = scalar_select %p1221, %s103, 0
          %s1223 = smul.addr %s1220, 4
          %s1224 = sadd.s32 %s1222, %s1223
          %s1225 = smul.addr %s1224, 8
          %s1226 = scalar_lea.vmem %s15, %s1225
        $region164: #{tpu_custom_call.1} parent=131 // pred_fallthru
          _
      $region132: #{tpu_custom_call.1} parent=5 // pred_fallthru
        _
      %p1227 = scmp.le.s32.totalorder 1, %s95
      %p1228 = scmp.lt.s32.totalorder %s95, 3
      %p1229 = pnand %p1227, %p1228
      %p1230 = pneg %p1229
      // Predicated region
      $region165: #{tpu_custom_call.1} parent=5 // pred_check
        _
      $region166: #{tpu_custom_call.1} parent=5 // pred_check_branch
        %1232 = sbr.rel (%p1229) target = $region168
      $region167: #{tpu_custom_call.1} parent=5 // pred_region
        %s1233 = ssub.s32 %s95, 1
        %s1234 = sand.u32 %s120, 1
        %s1235 = scalar_lea.sflag [#allocation16], %s1234
        %s1236 = sand.u32 %s120, 1
        %s1237 = smul.addr %s1236, 8
        %s1238 = scalar_lea.vmem [#allocation15], %s1237
        // Predicated region
        $region169: #{tpu_custom_call.1} parent=167 // pred_check
          %p1239 = pneg %p133
        $region170: #{tpu_custom_call.1} parent=167 // pred_check_branch
          %1241 = sbr.rel (%p1239) target = $region172
        $region171: #{tpu_custom_call.1} parent=167 // pred_region
          %1242 = dma.done %s1235, 128
        $region172: #{tpu_custom_call.1} parent=167 // pred_fallthru
          _
        %s1243 = sand.u32 %s100, 1
        %s1244 = scalar_lea.sflag [#allocation19], %s1243
        %s1245 = sand.u32 %s148, 1
        %s1246 = smul.addr %s1245, 8
        %s1247 = scalar_lea.vmem [#allocation18], %s1246
        // Predicated region
        $region173: #{tpu_custom_call.1} parent=167 // pred_check
          %p1248 = pneg %p161
        $region174: #{tpu_custom_call.1} parent=167 // pred_check_branch
          %1250 = sbr.rel (%p1248) target = $region176
        $region175: #{tpu_custom_call.1} parent=167 // pred_region
          %1251 = dma.done %s1244, 128
        $region176: #{tpu_custom_call.1} parent=167 // pred_fallthru
          _
        %s1252 = sand.u32 %s100, 1
        %s1253 = scalar_lea.sflag [#allocation19], %s1252
        %s1254 = sand.u32 %s256, 1
        %s1255 = smul.addr %s1254, 8
        %s1256 = scalar_lea.vmem [#allocation20], %s1255
        // Predicated region
        $region177: #{tpu_custom_call.1} parent=167 // pred_check
          %p1257 = pneg %p269
        $region178: #{tpu_custom_call.1} parent=167 // pred_check_branch
          %1259 = sbr.rel (%p1257) target = $region180
        $region179: #{tpu_custom_call.1} parent=167 // pred_region
          %1260 = dma.done %s1253, 128
        $region180: #{tpu_custom_call.1} parent=167 // pred_fallthru
          _
        %s1261 = sand.u32 %s100, 1
        %s1262 = scalar_lea.sflag [#allocation22], %s1261
        %s1263 = sand.u32 %s284, 1
        %s1264 = smul.addr %s1263, 8
        %s1265 = scalar_lea.vmem [#allocation21], %s1264
        // Predicated region
        $region181: #{tpu_custom_call.1} parent=167 // pred_check
          %p1266 = pneg %p297
        $region182: #{tpu_custom_call.1} parent=167 // pred_check_branch
          %1268 = sbr.rel (%p1266) target = $region184
        $region183: #{tpu_custom_call.1} parent=167 // pred_region
          %1269 = dma.done %s1262, 128
        $region184: #{tpu_custom_call.1} parent=167 // pred_fallthru
          _
        // Predicated region
        $region185: #{tpu_custom_call.1} parent=167 // pred_check
          %p1270 = pneg %p346
        $region186: #{tpu_custom_call.1} parent=167 // pred_check_branch
          %1272 = sbr.rel (%p1270) target = $region188
        $region187: #{tpu_custom_call.1} parent=167 // pred_region
          %1273 = dma.done [#allocation22], 16
        $region188: #{tpu_custom_call.1} parent=167 // pred_fallthru
          _
        // Predicated region
        $region189: #{tpu_custom_call.1} parent=167 // pred_check
          %p1274 = pneg %p367
        $region190: #{tpu_custom_call.1} parent=167 // pred_check_branch
          %1276 = sbr.rel (%p1274) target = $region192
        $region191: #{tpu_custom_call.1} parent=167 // pred_region
          %1277 = dma.done [#allocation25], 16
        $region192: #{tpu_custom_call.1} parent=167 // pred_fallthru
          _
        // Predicated region
        $region193: #{tpu_custom_call.1} parent=167 // pred_check
          %p1278 = pneg %p661
        $region194: #{tpu_custom_call.1} parent=167 // pred_check_branch
          %1280 = sbr.rel (%p1278) target = $region196
        $region195: #{tpu_custom_call.1} parent=167 // pred_region
          %1281 = dma.done [#allocation25], 16
        $region196: #{tpu_custom_call.1} parent=167 // pred_fallthru
          _
        // Predicated region
        $region197: #{tpu_custom_call.1} parent=167 // pred_check
          %p1282 = pneg %p787
        $region198: #{tpu_custom_call.1} parent=167 // pred_check_branch
          %1284 = sbr.rel (%p1282) target = $region200
        $region199: #{tpu_custom_call.1} parent=167 // pred_region
          %1285 = dma.done [#allocation28], 512
        $region200: #{tpu_custom_call.1} parent=167 // pred_fallthru
          _
        // Predicated region
        $region201: #{tpu_custom_call.1} parent=167 // pred_check
          %p1286 = pneg %p871
        $region202: #{tpu_custom_call.1} parent=167 // pred_check_branch
          %1288 = sbr.rel (%p1286) target = $region204
        $region203: #{tpu_custom_call.1} parent=167 // pred_region
          %1289 = dma.done [#allocation28], 512
        $region204: #{tpu_custom_call.1} parent=167 // pred_fallthru
          _
        %s1290 = sand.u32 %s120, 1
        %s1291 = scalar_lea.sflag [#allocation16], %s1290
        %s1292 = sand.u32 %s120, 1
        %s1293 = smul.addr %s1292, 8
        %s1294 = scalar_lea.vmem [#allocation15], %s1293
        %p1295 = pneg %p133
        %p1296 = pneg %p130
        %s1297 = sand.u32 %s100, 1
        %s1298 = scalar_lea.sflag [#allocation19], %s1297
        %s1299 = sand.u32 %s148, 1
        %s1300 = smul.addr %s1299, 8
        %s1301 = scalar_lea.vmem [#allocation18], %s1300
        %p1302 = pneg %p161
        %p1303 = pneg %p158
        %s1304 = smul.u32 8, %s105
        %p1305 = scmp.lt.s32.totalorder %s104, 1
        %s1306 = scalar_select %p1305, %s104, 1
        %p1307 = scmp.lt.s32.totalorder %s1304, 7
        %s1308 = scalar_select %p1307, %s1304, 7
        %s1309 = smul.addr %s1306, 8
        %s1310 = sadd.s32 %s1308, %s1309
        %s1311 = smul.addr %s1310, 8
        %s1312 = scalar_lea.vmem %s5, %s1311
        %p1313 = pneg %p189
        %p1314 = pneg %p186
        %p1315 = scmp.lt.s32.totalorder %s104, 1
        %s1316 = scalar_select %p1315, %s104, 1
        %s1317 = smul.addr %s1316, 8
        %s1318 = scalar_lea.vmem %s7, %s1317
        %p1319 = pneg %p215
        %p1320 = pneg %p212
        %p1321 = scmp.lt.s32.totalorder %s104, 1
        %s1322 = scalar_select %p1321, %s104, 1
        %p1323 = scmp.lt.s32.totalorder %s105, 0
        %s1324 = scalar_select %p1323, %s105, 0
        %s1325 = sadd.s32 %s1324, %s1322
        %s1326 = smul.addr %s1325, 8
        %s1327 = scalar_lea.vmem %s9, %s1326
        %p1328 = pneg %p243
        %p1329 = pneg %p240
        %s1330 = sand.u32 %s100, 1
        %s1331 = scalar_lea.sflag [#allocation19], %s1330
        %s1332 = sand.u32 %s256, 1
        %s1333 = smul.addr %s1332, 8
        %s1334 = scalar_lea.vmem [#allocation20], %s1333
        %p1335 = pneg %p269
        %p1336 = pneg %p266
        %s1337 = sand.u32 %s100, 1
        %s1338 = scalar_lea.sflag [#allocation22], %s1337
        %s1339 = sand.u32 %s284, 1
        %s1340 = smul.addr %s1339, 8
        %s1341 = scalar_lea.vmem [#allocation21], %s1340
        %p1342 = pneg %p297
        %p1343 = pneg %p294
        %p1344 = scmp.lt.s32.totalorder %s104, 1
        %s1345 = scalar_select %p1344, %s104, 1
        %p1346 = scmp.lt.s32.totalorder %s105, 0
        %s1347 = scalar_select %p1346, %s105, 0
        %s1348 = smul.addr %s1345, 4
        %s1349 = sadd.s32 %s1347, %s1348
        %s1350 = smul.addr %s1349, 8
        %s1351 = scalar_lea.vmem %s15, %s1350
        %p1352 = pneg %p325
        %p1353 = pneg %p322
        %p1354 = pneg %p346
        %p1355 = pneg %p343
        %p1356 = pneg %p367
        %p1357 = pneg %p364
        %p1358 = pneg %p388
        %p1359 = pneg %p385
        %p1360 = pneg %p409
        %p1361 = pneg %p406
        %p1362 = pneg %p430
        %p1363 = pneg %p427
        %p1364 = pneg %p451
        %p1365 = pneg %p448
        %p1366 = pneg %p472
        %p1367 = pneg %p469
        %p1368 = pneg %p493
        %p1369 = pneg %p490
        %p1370 = pneg %p514
        %p1371 = pneg %p511
        %p1372 = pneg %p535
        %p1373 = pneg %p532
        %p1374 = pneg %p556
        %p1375 = pneg %p553
        %p1376 = pneg %p577
        %p1377 = pneg %p574
        %p1378 = pneg %p598
        %p1379 = pneg %p595
        %p1380 = pneg %p619
        %p1381 = pneg %p616
        %p1382 = pneg %p640
        %p1383 = pneg %p637
        %p1384 = pneg %p661
        %p1385 = pneg %p658
        %p1386 = pneg %p682
        %p1387 = pneg %p679
        %p1388 = pneg %p703
        %p1389 = pneg %p700
        %p1390 = pneg %p724
        %p1391 = pneg %p721
        %p1392 = pneg %p745
        %p1393 = pneg %p742
        %p1394 = pneg %p766
        %p1395 = pneg %p763
        %p1396 = pneg %p787
        %p1397 = pneg %p784
        %p1398 = pneg %p808
        %p1399 = pneg %p805
        %p1400 = pneg %p829
        %p1401 = pneg %p826
        %p1402 = pneg %p850
        %p1403 = pneg %p847
        %p1404 = pneg %p871
        %p1405 = pneg %p868
        %p1406 = pneg %p892
        %p1407 = pneg %p889
        %p1408 = pneg %p913
        %p1409 = pneg %p910
        %p1410 = pneg %p934
        %p1411 = pneg %p931
        %p1412 = pneg %p962
        %p1413 = pneg %p959
        %s1414 = sand.u32 %s949, 1
        %s1415 = scalar_lea.sflag [#allocation17], %s1414
        %s1416 = sand.u32 %s949, 1
        %s1417 = smul.addr %s1416, 8
        %s1418 = scalar_lea.vmem [#allocation30], %s1417
        %s1419 = smul.u32 8, %s105
        %p1420 = scmp.lt.s32.totalorder %s104, 1
        %s1421 = scalar_select %p1420, %s104, 1
        %p1422 = scmp.lt.s32.totalorder %s1419, 7
        %s1423 = scalar_select %p1422, %s1419, 7
        %s1424 = smul.addr %s1421, 8
        %s1425 = sadd.s32 %s1423, %s1424
        %s1426 = smul.addr %s1425, 8
        %s1427 = scalar_lea.vmem %s5, %s1426
        %s1428 = smul.u32 8, %s105
        %p1429 = scmp.lt.s32.totalorder %s104, 1
        %s1430 = scalar_select %p1429, %s104, 1
        %s1431 = smul.addr %s1430, 8
        %s1432 = scalar_lea.vmem %s7, %s1431
        %p1433 = scmp.lt.s32.totalorder %s104, 1
        %s1434 = scalar_select %p1433, %s104, 1
        %p1435 = scmp.lt.s32.totalorder %s105, 0
        %s1436 = scalar_select %p1435, %s105, 0
        %s1437 = sadd.s32 %s1436, %s1434
        %s1438 = smul.addr %s1437, 8
        %s1439 = scalar_lea.vmem %s9, %s1438
        %p1440 = scmp.lt.s32.totalorder %s104, 1
        %s1441 = scalar_select %p1440, %s104, 1
        %p1442 = scmp.lt.s32.totalorder %s105, 0
        %s1443 = scalar_select %p1442, %s105, 0
        %s1444 = smul.addr %s1441, 4
        %s1445 = sadd.s32 %s1443, %s1444
        %s1446 = smul.addr %s1445, 8
        %s1447 = scalar_lea.vmem %s15, %s1446
        %v1448 = vld [vmem:[#allocation23] sm:$0x1]
        %v1449 = vld [vmem:[#allocation24] sm:$0x1]
        %p1450 = scmp.eq.s32.totalorder %s105, 0
        // Predicated region
        $region205: #{tpu_custom_call.1} parent=167 // pred_check
          %p1451 = pneg %p1450
        $region206: #{tpu_custom_call.1} parent=167 // pred_check_branch
          %1453 = sbr.rel (%p1451) target = $region208
        $region207: #{tpu_custom_call.1} parent=167 // pred_region
          %v1454 = vld [vmem:[%s1238] sm:$0xff]
          %vm1455 = vcmask 261120
          %v1456 = vsel %vm1455, %v1454, 0.0
          %1457 = vadd.xlane.f32.xlu0 %v1456
          %v1458 = vpop.xlane.xlu0 %1457
          %v1459 = vrcp.pop 32.0
          %v1460 = vmul.f32 %v1458, %v1459
          %v1461 = vsub.f32 %v1454, %v1460
          %v1462 = vmul.f32 %v1461, %v1461
          %v1463 = vsel %vm1455, %v1462, 0.0
          %1464 = vadd.xlane.f32.xlu0 %v1463
          %v1465 = vpop.xlane.xlu0 %1464
          %v1466 = vmul.f32 %v1465, %v1459
          %v1467 = vadd.f32 %v1466, 1e-05
          %v1468 = vrsqrt.pop %v1467
          %v1469 = vmul.f32 %v1461, %v1468
          %v1471 = vlaneseq
          %v1472 = vshrl.u32 %v1471, 7
          %v1473 = vsub.s32 0, %v1472
          %v1474 = vrot.slane %v1448, %v1473
          %v1476 = vmul.f32 %v1469, %v1474
          %v1478 = vlaneseq
          %v1479 = vshrl.u32 %v1478, 7
          %v1480 = vsub.s32 0, %v1479
          %v1481 = vrot.slane %v1449, %v1480
          %v1483 = vadd.f32 %v1476, %v1481
          %v1484 = vld [vmem:[%s23] sm:$0xff]
          %v1485 = vld [vmem:[%s23 + $0x8] sm:$0xff]
          %v1486 = vld [vmem:[%s23 + $0x10] sm:$0xff]
          %v1487 = vld [vmem:[%s23 + $0x18] sm:$0xff]
          %v1489 = vsel %vm1455, %v1483, 0
          %1491 = vmatprep.subr.mxu0 0.0
          %1492 = vmatpush1.msra.mxu0 0.0
          %1493 = vmatprep.subr.mxu0 0.0
          %1494 = vmatpush1.msra.mxu0 0.0
          %1495 = vmatprep.subr.mxu0 0.0
          %1496 = vmatpush1.msra.mxu0 0.0
          %1497 = vmatprep.subr.mxu0 0.0
          %1498 = vmatpush1.msra.mxu0 0.0
          %1499 = vmatprep.subr.mxu0 0.0
          %1500 = vmatpush1.msra.mxu0 0.0
          %1501 = vmatprep.subr.mxu0 0.0
          %1502 = vmatpush1.msra.mxu0 0.0
          %1503 = vmatprep.subr.mxu0 0.0
          %1504 = vmatpush1.msra.mxu0 0.0
          %1505 = vmatprep.subr.mxu0 0.0
          %1506 = vmatpush1.msra.mxu0 0.0
          %1507 = vmatprep.subr.mxu0 0.0
          %1508 = vmatpush1.msra.mxu0 0.0
          %1509 = vmatprep.subr.mxu0 0.0
          %1510 = vmatpush1.msra.mxu0 0.0
          %1511 = vmatprep.subr.mxu0 0.0
          %1512 = vmatpush1.msra.mxu0 0.0
          %1513 = vmatprep.subr.mxu0 0.0
          %1514 = vmatpush1.msra.mxu0 0.0
          %1515 = vmatprep.subr.mxu0 0.0
          %1516 = vmatpush1.msra.mxu0 %v1487
          %1517 = vmatprep.subr.mxu0 0.0
          %1518 = vmatpush1.msra.mxu0 %v1486
          %1519 = vmatprep.subr.mxu0 0.0
          %1520 = vmatpush1.msra.mxu0 %v1485
          %1521 = vmatprep.subr.mxu0 0.0
          %1522 = vmatpush1.msra.mxu0 %v1484
          %1523 = vmatprep.subr.mxu0 0.0
          %1524 = vmatpush2.msra.mxu0 0.0
          %1525 = vmatprep.subr.mxu0 0.0
          %1526 = vmatpush2.msra.mxu0 0.0
          %1527 = vmatprep.subr.mxu0 0.0
          %1528 = vmatpush2.msra.mxu0 0.0
          %1529 = vmatprep.subr.mxu0 0.0
          %1530 = vmatpush2.msra.mxu0 0.0
          %1531 = vmatprep.subr.mxu0 0.0
          %1532 = vmatpush2.msra.mxu0 0.0
          %1533 = vmatprep.subr.mxu0 0.0
          %1534 = vmatpush2.msra.mxu0 0.0
          %1535 = vmatprep.subr.mxu0 0.0
          %1536 = vmatpush2.msra.mxu0 0.0
          %1537 = vmatprep.subr.mxu0 0.0
          %1538 = vmatpush2.msra.mxu0 0.0
          %1539 = vmatprep.subr.mxu0 0.0
          %1540 = vmatpush2.msra.mxu0 0.0
          %1541 = vmatprep.subr.mxu0 0.0
          %1542 = vmatpush2.msra.mxu0 0.0
          %1543 = vmatprep.subr.mxu0 0.0
          %1544 = vmatpush2.msra.mxu0 0.0
          %1545 = vmatprep.subr.mxu0 0.0
          %1546 = vmatpush2.msra.mxu0 0.0
          %1547 = vmatprep.subr.mxu0 0.0
          %1548 = vmatpush2.msra.mxu0 0.0
          %1549 = vmatprep.subr.mxu0 0.0
          %1550 = vmatpush2.msra.mxu0 0.0
          %1551 = vmatprep.subr.mxu0 0.0
          %1552 = vmatpush2.msra.mxu0 0.0
          %1553 = vmatprep.subr.mxu0 0.0
          %1554 = vmatpush2.msra.mxu0 0.0
          %1555 = vmatprep.mubr.f32.mxu0 0.0
          %1556 = vmatmul.mubr.f32.gmra.mxu0 %v1489
          %v1557 = vpop.f32.mrf.mxu0
          %v1558 = vadd.f32 0.0, %v1557
          %v1559 = vpop.f32.mrf.mxu0
          %1560 = vdwg.mxu0
          %1561 = vst.msk [vmem:[#allocation2] sm:$0xff] %vm1455, %v1558
          %v1562 = vld [vmem:[%s25] sm:$0xff]
          %v1563 = vld [vmem:[%s25 + $0x8] sm:$0xff]
          %v1564 = vld [vmem:[%s25 + $0x10] sm:$0xff]
          %v1565 = vld [vmem:[%s25 + $0x18] sm:$0xff]
          %1566 = vmatprep.subr.mxu0 0.0
          %1567 = vmatpush1.msra.mxu0 0.0
          %1568 = vmatprep.subr.mxu0 0.0
          %1569 = vmatpush1.msra.mxu0 0.0
          %1570 = vmatprep.subr.mxu0 0.0
          %1571 = vmatpush1.msra.mxu0 0.0
          %1572 = vmatprep.subr.mxu0 0.0
          %1573 = vmatpush1.msra.mxu0 0.0
          %1574 = vmatprep.subr.mxu0 0.0
          %1575 = vmatpush1.msra.mxu0 0.0
          %1576 = vmatprep.subr.mxu0 0.0
          %1577 = vmatpush1.msra.mxu0 0.0
          %1578 = vmatprep.subr.mxu0 0.0
          %1579 = vmatpush1.msra.mxu0 0.0
          %1580 = vmatprep.subr.mxu0 0.0
          %1581 = vmatpush1.msra.mxu0 0.0
          %1582 = vmatprep.subr.mxu0 0.0
          %1583 = vmatpush1.msra.mxu0 0.0
          %1584 = vmatprep.subr.mxu0 0.0
          %1585 = vmatpush1.msra.mxu0 0.0
          %1586 = vmatprep.subr.mxu0 0.0
          %1587 = vmatpush1.msra.mxu0 0.0
          %1588 = vmatprep.subr.mxu0 0.0
          %1589 = vmatpush1.msra.mxu0 0.0
          %1590 = vmatprep.subr.mxu0 0.0
          %1591 = vmatpush1.msra.mxu0 %v1565
          %1592 = vmatprep.subr.mxu0 0.0
          %1593 = vmatpush1.msra.mxu0 %v1564
          %1594 = vmatprep.subr.mxu0 0.0
          %1595 = vmatpush1.msra.mxu0 %v1563
          %1596 = vmatprep.subr.mxu0 0.0
          %1597 = vmatpush1.msra.mxu0 %v1562
          %1598 = vmatprep.subr.mxu0 0.0
          %1599 = vmatpush2.msra.mxu0 0.0
          %1600 = vmatprep.subr.mxu0 0.0
          %1601 = vmatpush2.msra.mxu0 0.0
          %1602 = vmatprep.subr.mxu0 0.0
          %1603 = vmatpush2.msra.mxu0 0.0
          %1604 = vmatprep.subr.mxu0 0.0
          %1605 = vmatpush2.msra.mxu0 0.0
          %1606 = vmatprep.subr.mxu0 0.0
          %1607 = vmatpush2.msra.mxu0 0.0
          %1608 = vmatprep.subr.mxu0 0.0
          %1609 = vmatpush2.msra.mxu0 0.0
          %1610 = vmatprep.subr.mxu0 0.0
          %1611 = vmatpush2.msra.mxu0 0.0
          %1612 = vmatprep.subr.mxu0 0.0
          %1613 = vmatpush2.msra.mxu0 0.0
          %1614 = vmatprep.subr.mxu0 0.0
          %1615 = vmatpush2.msra.mxu0 0.0
          %1616 = vmatprep.subr.mxu0 0.0
          %1617 = vmatpush2.msra.mxu0 0.0
          %1618 = vmatprep.subr.mxu0 0.0
          %1619 = vmatpush2.msra.mxu0 0.0
          %1620 = vmatprep.subr.mxu0 0.0
          %1621 = vmatpush2.msra.mxu0 0.0
          %1622 = vmatprep.subr.mxu0 0.0
          %1623 = vmatpush2.msra.mxu0 0.0
          %1624 = vmatprep.subr.mxu0 0.0
          %1625 = vmatpush2.msra.mxu0 0.0
          %1626 = vmatprep.subr.mxu0 0.0
          %1627 = vmatpush2.msra.mxu0 0.0
          %1628 = vmatprep.subr.mxu0 0.0
          %1629 = vmatpush2.msra.mxu0 0.0
          %1630 = vmatprep.mubr.f32.mxu0 0.0
          %1631 = vmatmul.mubr.f32.gmra.mxu0 %v1489
          %v1632 = vpop.f32.mrf.mxu0
          %v1633 = vadd.f32 0.0, %v1632
          %v1634 = vpop.f32.mrf.mxu0
          %1635 = vdwg.mxu0
          %1636 = vst.msk [vmem:[#allocation3] sm:$0xff] %vm1455, %v1633
          %v1637 = vld [vmem:[%s35] sm:$0xff]
          %v1638 = vld [vmem:[%s35 + $0x8] sm:$0xff]
          %v1639 = vld [vmem:[%s35 + $0x10] sm:$0xff]
          %v1640 = vld [vmem:[%s35 + $0x18] sm:$0xff]
          %1641 = vmatprep.subr.mxu0 0.0
          %1642 = vmatpush1.msra.mxu0 0.0
          %1643 = vmatprep.subr.mxu0 0.0
          %1644 = vmatpush1.msra.mxu0 0.0
          %1645 = vmatprep.subr.mxu0 0.0
          %1646 = vmatpush1.msra.mxu0 0.0
          %1647 = vmatprep.subr.mxu0 0.0
          %1648 = vmatpush1.msra.mxu0 0.0
          %1649 = vmatprep.subr.mxu0 0.0
          %1650 = vmatpush1.msra.mxu0 0.0
          %1651 = vmatprep.subr.mxu0 0.0
          %1652 = vmatpush1.msra.mxu0 0.0
          %1653 = vmatprep.subr.mxu0 0.0
          %1654 = vmatpush1.msra.mxu0 0.0
          %1655 = vmatprep.subr.mxu0 0.0
          %1656 = vmatpush1.msra.mxu0 0.0
          %1657 = vmatprep.subr.mxu0 0.0
          %1658 = vmatpush1.msra.mxu0 0.0
          %1659 = vmatprep.subr.mxu0 0.0
          %1660 = vmatpush1.msra.mxu0 0.0
          %1661 = vmatprep.subr.mxu0 0.0
          %1662 = vmatpush1.msra.mxu0 0.0
          %1663 = vmatprep.subr.mxu0 0.0
          %1664 = vmatpush1.msra.mxu0 0.0
          %1665 = vmatprep.subr.mxu0 0.0
          %1666 = vmatpush1.msra.mxu0 %v1640
          %1667 = vmatprep.subr.mxu0 0.0
          %1668 = vmatpush1.msra.mxu0 %v1639
          %1669 = vmatprep.subr.mxu0 0.0
          %1670 = vmatpush1.msra.mxu0 %v1638
          %1671 = vmatprep.subr.mxu0 0.0
          %1672 = vmatpush1.msra.mxu0 %v1637
          %1673 = vmatprep.subr.mxu0 0.0
          %1674 = vmatpush2.msra.mxu0 0.0
          %1675 = vmatprep.subr.mxu0 0.0
          %1676 = vmatpush2.msra.mxu0 0.0
          %1677 = vmatprep.subr.mxu0 0.0
          %1678 = vmatpush2.msra.mxu0 0.0
          %1679 = vmatprep.subr.mxu0 0.0
          %1680 = vmatpush2.msra.mxu0 0.0
          %1681 = vmatprep.subr.mxu0 0.0
          %1682 = vmatpush2.msra.mxu0 0.0
          %1683 = vmatprep.subr.mxu0 0.0
          %1684 = vmatpush2.msra.mxu0 0.0
          %1685 = vmatprep.subr.mxu0 0.0
          %1686 = vmatpush2.msra.mxu0 0.0
          %1687 = vmatprep.subr.mxu0 0.0
          %1688 = vmatpush2.msra.mxu0 0.0
          %1689 = vmatprep.subr.mxu0 0.0
          %1690 = vmatpush2.msra.mxu0 0.0
          %1691 = vmatprep.subr.mxu0 0.0
          %1692 = vmatpush2.msra.mxu0 0.0
          %1693 = vmatprep.subr.mxu0 0.0
          %1694 = vmatpush2.msra.mxu0 0.0
          %1695 = vmatprep.subr.mxu0 0.0
          %1696 = vmatpush2.msra.mxu0 0.0
          %1697 = vmatprep.subr.mxu0 0.0
          %1698 = vmatpush2.msra.mxu0 0.0
          %1699 = vmatprep.subr.mxu0 0.0
          %1700 = vmatpush2.msra.mxu0 0.0
          %1701 = vmatprep.subr.mxu0 0.0
          %1702 = vmatpush2.msra.mxu0 0.0
          %1703 = vmatprep.subr.mxu0 0.0
          %1704 = vmatpush2.msra.mxu0 0.0
          %1705 = vmatprep.mubr.f32.mxu0 0.0
          %1706 = vmatmul.mubr.f32.gmra.mxu0 %v1489
          %v1707 = vpop.f32.mrf.mxu0
          %v1708 = vadd.f32 0.0, %v1707
          %v1709 = vpop.f32.mrf.mxu0
          %1710 = vdwg.mxu0
          %v1711 = vld [vmem:[%s37] sm:$0xff]
          %v1712 = vld [vmem:[%s37 + $0x8] sm:$0xff]
          %v1713 = vld [vmem:[%s37 + $0x10] sm:$0xff]
          %v1714 = vld [vmem:[%s37 + $0x18] sm:$0xff]
          %1715 = vmatprep.subr.mxu0 0.0
          %1716 = vmatpush1.msra.mxu0 0.0
          %1717 = vmatprep.subr.mxu0 0.0
          %1718 = vmatpush1.msra.mxu0 0.0
          %1719 = vmatprep.subr.mxu0 0.0
          %1720 = vmatpush1.msra.mxu0 0.0
          %1721 = vmatprep.subr.mxu0 0.0
          %1722 = vmatpush1.msra.mxu0 0.0
          %1723 = vmatprep.subr.mxu0 0.0
          %1724 = vmatpush1.msra.mxu0 0.0
          %1725 = vmatprep.subr.mxu0 0.0
          %1726 = vmatpush1.msra.mxu0 0.0
          %1727 = vmatprep.subr.mxu0 0.0
          %1728 = vmatpush1.msra.mxu0 0.0
          %1729 = vmatprep.subr.mxu0 0.0
          %1730 = vmatpush1.msra.mxu0 0.0
          %1731 = vmatprep.subr.mxu0 0.0
          %1732 = vmatpush1.msra.mxu0 0.0
          %1733 = vmatprep.subr.mxu0 0.0
          %1734 = vmatpush1.msra.mxu0 0.0
          %1735 = vmatprep.subr.mxu0 0.0
          %1736 = vmatpush1.msra.mxu0 0.0
          %1737 = vmatprep.subr.mxu0 0.0
          %1738 = vmatpush1.msra.mxu0 0.0
          %1739 = vmatprep.subr.mxu0 0.0
          %1740 = vmatpush1.msra.mxu0 %v1714
          %1741 = vmatprep.subr.mxu0 0.0
          %1742 = vmatpush1.msra.mxu0 %v1713
          %1743 = vmatprep.subr.mxu0 0.0
          %1744 = vmatpush1.msra.mxu0 %v1712
          %1745 = vmatprep.subr.mxu0 0.0
          %1746 = vmatpush1.msra.mxu0 %v1711
          %1747 = vmatprep.subr.mxu0 0.0
          %1748 = vmatpush2.msra.mxu0 0.0
          %1749 = vmatprep.subr.mxu0 0.0
          %1750 = vmatpush2.msra.mxu0 0.0
          %1751 = vmatprep.subr.mxu0 0.0
          %1752 = vmatpush2.msra.mxu0 0.0
          %1753 = vmatprep.subr.mxu0 0.0
          %1754 = vmatpush2.msra.mxu0 0.0
          %1755 = vmatprep.subr.mxu0 0.0
          %1756 = vmatpush2.msra.mxu0 0.0
          %1757 = vmatprep.subr.mxu0 0.0
          %1758 = vmatpush2.msra.mxu0 0.0
          %1759 = vmatprep.subr.mxu0 0.0
          %1760 = vmatpush2.msra.mxu0 0.0
          %1761 = vmatprep.subr.mxu0 0.0
          %1762 = vmatpush2.msra.mxu0 0.0
          %1763 = vmatprep.subr.mxu0 0.0
          %1764 = vmatpush2.msra.mxu0 0.0
          %1765 = vmatprep.subr.mxu0 0.0
          %1766 = vmatpush2.msra.mxu0 0.0
          %1767 = vmatprep.subr.mxu0 0.0
          %1768 = vmatpush2.msra.mxu0 0.0
          %1769 = vmatprep.subr.mxu0 0.0
          %1770 = vmatpush2.msra.mxu0 0.0
          %1771 = vmatprep.subr.mxu0 0.0
          %1772 = vmatpush2.msra.mxu0 0.0
          %1773 = vmatprep.subr.mxu0 0.0
          %1774 = vmatpush2.msra.mxu0 0.0
          %1775 = vmatprep.subr.mxu0 0.0
          %1776 = vmatpush2.msra.mxu0 0.0
          %1777 = vmatprep.subr.mxu0 0.0
          %1778 = vmatpush2.msra.mxu0 0.0
          %1779 = vmatprep.mubr.f32.mxu0 0.0
          %1780 = vmatmul.mubr.f32.gmra.mxu0 %v1489
          %v1781 = vpop.f32.mrf.mxu0
          %v1782 = vadd.f32 0.0, %v1781
          %v1783 = vpop.f32.mrf.mxu0
          %1784 = vdwg.mxu0
          %v1785 = vld [vmem:[%s39] sm:$0xff]
          %v1786 = vld [vmem:[%s39 + $0x8] sm:$0xff]
          %v1787 = vld [vmem:[%s39 + $0x10] sm:$0xff]
          %v1788 = vld [vmem:[%s39 + $0x18] sm:$0xff]
          %1789 = vmatprep.subr.mxu0 0.0
          %1790 = vmatpush1.msra.mxu0 0.0
          %1791 = vmatprep.subr.mxu0 0.0
          %1792 = vmatpush1.msra.mxu0 0.0
          %1793 = vmatprep.subr.mxu0 0.0
          %1794 = vmatpush1.msra.mxu0 0.0
          %1795 = vmatprep.subr.mxu0 0.0
          %1796 = vmatpush1.msra.mxu0 0.0
          %1797 = vmatprep.subr.mxu0 0.0
          %1798 = vmatpush1.msra.mxu0 0.0
          %1799 = vmatprep.subr.mxu0 0.0
          %1800 = vmatpush1.msra.mxu0 0.0
          %1801 = vmatprep.subr.mxu0 0.0
          %1802 = vmatpush1.msra.mxu0 0.0
          %1803 = vmatprep.subr.mxu0 0.0
          %1804 = vmatpush1.msra.mxu0 0.0
          %1805 = vmatprep.subr.mxu0 0.0
          %1806 = vmatpush1.msra.mxu0 0.0
          %1807 = vmatprep.subr.mxu0 0.0
          %1808 = vmatpush1.msra.mxu0 0.0
          %1809 = vmatprep.subr.mxu0 0.0
          %1810 = vmatpush1.msra.mxu0 0.0
          %1811 = vmatprep.subr.mxu0 0.0
          %1812 = vmatpush1.msra.mxu0 0.0
          %1813 = vmatprep.subr.mxu0 0.0
          %1814 = vmatpush1.msra.mxu0 %v1788
          %1815 = vmatprep.subr.mxu0 0.0
          %1816 = vmatpush1.msra.mxu0 %v1787
          %1817 = vmatprep.subr.mxu0 0.0
          %1818 = vmatpush1.msra.mxu0 %v1786
          %1819 = vmatprep.subr.mxu0 0.0
          %1820 = vmatpush1.msra.mxu0 %v1785
          %1821 = vmatprep.subr.mxu0 0.0
          %1822 = vmatpush2.msra.mxu0 0.0
          %1823 = vmatprep.subr.mxu0 0.0
          %1824 = vmatpush2.msra.mxu0 0.0
          %1825 = vmatprep.subr.mxu0 0.0
          %1826 = vmatpush2.msra.mxu0 0.0
          %1827 = vmatprep.subr.mxu0 0.0
          %1828 = vmatpush2.msra.mxu0 0.0
          %1829 = vmatprep.subr.mxu0 0.0
          %1830 = vmatpush2.msra.mxu0 0.0
          %1831 = vmatprep.subr.mxu0 0.0
          %1832 = vmatpush2.msra.mxu0 0.0
          %1833 = vmatprep.subr.mxu0 0.0
          %1834 = vmatpush2.msra.mxu0 0.0
          %1835 = vmatprep.subr.mxu0 0.0
          %1836 = vmatpush2.msra.mxu0 0.0
          %1837 = vmatprep.subr.mxu0 0.0
          %1838 = vmatpush2.msra.mxu0 0.0
          %1839 = vmatprep.subr.mxu0 0.0
          %1840 = vmatpush2.msra.mxu0 0.0
          %1841 = vmatprep.subr.mxu0 0.0
          %1842 = vmatpush2.msra.mxu0 0.0
          %1843 = vmatprep.subr.mxu0 0.0
          %1844 = vmatpush2.msra.mxu0 0.0
          %1845 = vmatprep.subr.mxu0 0.0
          %1846 = vmatpush2.msra.mxu0 0.0
          %1847 = vmatprep.subr.mxu0 0.0
          %1848 = vmatpush2.msra.mxu0 0.0
          %1849 = vmatprep.subr.mxu0 0.0
          %1850 = vmatpush2.msra.mxu0 0.0
          %1851 = vmatprep.subr.mxu0 0.0
          %1852 = vmatpush2.msra.mxu0 0.0
          %1853 = vmatprep.mubr.f32.mxu0 0.0
          %1854 = vmatmul.mubr.f32.gmra.mxu0 %v1489
          %v1855 = vpop.f32.mrf.mxu0
          %v1856 = vadd.f32 0.0, %v1855
          %v1857 = vpop.f32.mrf.mxu0
          %1858 = vdwg.mxu0
          %v1859 = vld [vmem:[%s41] sm:$0xff]
          %v1860 = vld [vmem:[%s41 + $0x8] sm:$0xff]
          %v1861 = vld [vmem:[%s41 + $0x10] sm:$0xff]
          %v1862 = vld [vmem:[%s41 + $0x18] sm:$0xff]
          %1863 = vmatprep.subr.mxu0 0.0
          %1864 = vmatpush1.msra.mxu0 0.0
          %1865 = vmatprep.subr.mxu0 0.0
          %1866 = vmatpush1.msra.mxu0 0.0
          %1867 = vmatprep.subr.mxu0 0.0
          %1868 = vmatpush1.msra.mxu0 0.0
          %1869 = vmatprep.subr.mxu0 0.0
          %1870 = vmatpush1.msra.mxu0 0.0
          %1871 = vmatprep.subr.mxu0 0.0
          %1872 = vmatpush1.msra.mxu0 0.0
          %1873 = vmatprep.subr.mxu0 0.0
          %1874 = vmatpush1.msra.mxu0 0.0
          %1875 = vmatprep.subr.mxu0 0.0
          %1876 = vmatpush1.msra.mxu0 0.0
          %1877 = vmatprep.subr.mxu0 0.0
          %1878 = vmatpush1.msra.mxu0 0.0
          %1879 = vmatprep.subr.mxu0 0.0
          %1880 = vmatpush1.msra.mxu0 0.0
          %1881 = vmatprep.subr.mxu0 0.0
          %1882 = vmatpush1.msra.mxu0 0.0
          %1883 = vmatprep.subr.mxu0 0.0
          %1884 = vmatpush1.msra.mxu0 0.0
          %1885 = vmatprep.subr.mxu0 0.0
          %1886 = vmatpush1.msra.mxu0 0.0
          %1887 = vmatprep.subr.mxu0 0.0
          %1888 = vmatpush1.msra.mxu0 %v1862
          %1889 = vmatprep.subr.mxu0 0.0
          %1890 = vmatpush1.msra.mxu0 %v1861
          %1891 = vmatprep.subr.mxu0 0.0
          %1892 = vmatpush1.msra.mxu0 %v1860
          %1893 = vmatprep.subr.mxu0 0.0
          %1894 = vmatpush1.msra.mxu0 %v1859
          %1895 = vmatprep.subr.mxu0 0.0
          %1896 = vmatpush2.msra.mxu0 0.0
          %1897 = vmatprep.subr.mxu0 0.0
          %1898 = vmatpush2.msra.mxu0 0.0
          %1899 = vmatprep.subr.mxu0 0.0
          %1900 = vmatpush2.msra.mxu0 0.0
          %1901 = vmatprep.subr.mxu0 0.0
          %1902 = vmatpush2.msra.mxu0 0.0
          %1903 = vmatprep.subr.mxu0 0.0
          %1904 = vmatpush2.msra.mxu0 0.0
          %1905 = vmatprep.subr.mxu0 0.0
          %1906 = vmatpush2.msra.mxu0 0.0
          %1907 = vmatprep.subr.mxu0 0.0
          %1908 = vmatpush2.msra.mxu0 0.0
          %1909 = vmatprep.subr.mxu0 0.0
          %1910 = vmatpush2.msra.mxu0 0.0
          %1911 = vmatprep.subr.mxu0 0.0
          %1912 = vmatpush2.msra.mxu0 0.0
          %1913 = vmatprep.subr.mxu0 0.0
          %1914 = vmatpush2.msra.mxu0 0.0
          %1915 = vmatprep.subr.mxu0 0.0
          %1916 = vmatpush2.msra.mxu0 0.0
          %1917 = vmatprep.subr.mxu0 0.0
          %1918 = vmatpush2.msra.mxu0 0.0
          %1919 = vmatprep.subr.mxu0 0.0
          %1920 = vmatpush2.msra.mxu0 0.0
          %1921 = vmatprep.subr.mxu0 0.0
          %1922 = vmatpush2.msra.mxu0 0.0
          %1923 = vmatprep.subr.mxu0 0.0
          %1924 = vmatpush2.msra.mxu0 0.0
          %1925 = vmatprep.subr.mxu0 0.0
          %1926 = vmatpush2.msra.mxu0 0.0
          %1927 = vmatprep.mubr.f32.mxu0 0.0
          %1928 = vmatmul.mubr.f32.gmra.mxu0 %v1489
          %v1929 = vpop.f32.mrf.mxu0
          %v1930 = vadd.f32 0.0, %v1929
          %v1931 = vpop.f32.mrf.mxu0
          %1932 = vdwg.mxu0
          %v1933 = vld [vmem:[%s43] sm:$0xff]
          %v1934 = vld [vmem:[%s43 + $0x8] sm:$0xff]
          %v1935 = vld [vmem:[%s43 + $0x10] sm:$0xff]
          %v1936 = vld [vmem:[%s43 + $0x18] sm:$0xff]
          %1937 = vmatprep.subr.mxu0 0.0
          %1938 = vmatpush1.msra.mxu0 0.0
          %1939 = vmatprep.subr.mxu0 0.0
          %1940 = vmatpush1.msra.mxu0 0.0
          %1941 = vmatprep.subr.mxu0 0.0
          %1942 = vmatpush1.msra.mxu0 0.0
          %1943 = vmatprep.subr.mxu0 0.0
          %1944 = vmatpush1.msra.mxu0 0.0
          %1945 = vmatprep.subr.mxu0 0.0
          %1946 = vmatpush1.msra.mxu0 0.0
          %1947 = vmatprep.subr.mxu0 0.0
          %1948 = vmatpush1.msra.mxu0 0.0
          %1949 = vmatprep.subr.mxu0 0.0
          %1950 = vmatpush1.msra.mxu0 0.0
          %1951 = vmatprep.subr.mxu0 0.0
          %1952 = vmatpush1.msra.mxu0 0.0
          %1953 = vmatprep.subr.mxu0 0.0
          %1954 = vmatpush1.msra.mxu0 0.0
          %1955 = vmatprep.subr.mxu0 0.0
          %1956 = vmatpush1.msra.mxu0 0.0
          %1957 = vmatprep.subr.mxu0 0.0
          %1958 = vmatpush1.msra.mxu0 0.0
          %1959 = vmatprep.subr.mxu0 0.0
          %1960 = vmatpush1.msra.mxu0 0.0
          %1961 = vmatprep.subr.mxu0 0.0
          %1962 = vmatpush1.msra.mxu0 %v1936
          %1963 = vmatprep.subr.mxu0 0.0
          %1964 = vmatpush1.msra.mxu0 %v1935
          %1965 = vmatprep.subr.mxu0 0.0
          %1966 = vmatpush1.msra.mxu0 %v1934
          %1967 = vmatprep.subr.mxu0 0.0
          %1968 = vmatpush1.msra.mxu0 %v1933
          %1969 = vmatprep.subr.mxu0 0.0
          %1970 = vmatpush2.msra.mxu0 0.0
          %1971 = vmatprep.subr.mxu0 0.0
          %1972 = vmatpush2.msra.mxu0 0.0
          %1973 = vmatprep.subr.mxu0 0.0
          %1974 = vmatpush2.msra.mxu0 0.0
          %1975 = vmatprep.subr.mxu0 0.0
          %1976 = vmatpush2.msra.mxu0 0.0
          %1977 = vmatprep.subr.mxu0 0.0
          %1978 = vmatpush2.msra.mxu0 0.0
          %1979 = vmatprep.subr.mxu0 0.0
          %1980 = vmatpush2.msra.mxu0 0.0
          %1981 = vmatprep.subr.mxu0 0.0
          %1982 = vmatpush2.msra.mxu0 0.0
          %1983 = vmatprep.subr.mxu0 0.0
          %1984 = vmatpush2.msra.mxu0 0.0
          %1985 = vmatprep.subr.mxu0 0.0
          %1986 = vmatpush2.msra.mxu0 0.0
          %1987 = vmatprep.subr.mxu0 0.0
          %1988 = vmatpush2.msra.mxu0 0.0
          %1989 = vmatprep.subr.mxu0 0.0
          %1990 = vmatpush2.msra.mxu0 0.0
          %1991 = vmatprep.subr.mxu0 0.0
          %1992 = vmatpush2.msra.mxu0 0.0
          %1993 = vmatprep.subr.mxu0 0.0
          %1994 = vmatpush2.msra.mxu0 0.0
          %1995 = vmatprep.subr.mxu0 0.0
          %1996 = vmatpush2.msra.mxu0 0.0
          %1997 = vmatprep.subr.mxu0 0.0
          %1998 = vmatpush2.msra.mxu0 0.0
          %1999 = vmatprep.subr.mxu0 0.0
          %2000 = vmatpush2.msra.mxu0 0.0
          %2001 = vmatprep.mubr.f32.mxu0 0.0
          %2002 = vmatmul.mubr.f32.gmra.mxu0 %v1489
          %v2003 = vpop.f32.mrf.mxu0
          %v2004 = vadd.f32 0.0, %v2003
          %v2005 = vpop.f32.mrf.mxu0
          %2006 = vdwg.mxu0
          %v2007 = vld [vmem:[%s45] sm:$0xff]
          %v2008 = vld [vmem:[%s45 + $0x8] sm:$0xff]
          %v2009 = vld [vmem:[%s45 + $0x10] sm:$0xff]
          %v2010 = vld [vmem:[%s45 + $0x18] sm:$0xff]
          %2011 = vmatprep.subr.mxu0 0.0
          %2012 = vmatpush1.msra.mxu0 0.0
          %2013 = vmatprep.subr.mxu0 0.0
          %2014 = vmatpush1.msra.mxu0 0.0
          %2015 = vmatprep.subr.mxu0 0.0
          %2016 = vmatpush1.msra.mxu0 0.0
          %2017 = vmatprep.subr.mxu0 0.0
          %2018 = vmatpush1.msra.mxu0 0.0
          %2019 = vmatprep.subr.mxu0 0.0
          %2020 = vmatpush1.msra.mxu0 0.0
          %2021 = vmatprep.subr.mxu0 0.0
          %2022 = vmatpush1.msra.mxu0 0.0
          %2023 = vmatprep.subr.mxu0 0.0
          %2024 = vmatpush1.msra.mxu0 0.0
          %2025 = vmatprep.subr.mxu0 0.0
          %2026 = vmatpush1.msra.mxu0 0.0
          %2027 = vmatprep.subr.mxu0 0.0
          %2028 = vmatpush1.msra.mxu0 0.0
          %2029 = vmatprep.subr.mxu0 0.0
          %2030 = vmatpush1.msra.mxu0 0.0
          %2031 = vmatprep.subr.mxu0 0.0
          %2032 = vmatpush1.msra.mxu0 0.0
          %2033 = vmatprep.subr.mxu0 0.0
          %2034 = vmatpush1.msra.mxu0 0.0
          %2035 = vmatprep.subr.mxu0 0.0
          %2036 = vmatpush1.msra.mxu0 %v2010
          %2037 = vmatprep.subr.mxu0 0.0
          %2038 = vmatpush1.msra.mxu0 %v2009
          %2039 = vmatprep.subr.mxu0 0.0
          %2040 = vmatpush1.msra.mxu0 %v2008
          %2041 = vmatprep.subr.mxu0 0.0
          %2042 = vmatpush1.msra.mxu0 %v2007
          %2043 = vmatprep.subr.mxu0 0.0
          %2044 = vmatpush2.msra.mxu0 0.0
          %2045 = vmatprep.subr.mxu0 0.0
          %2046 = vmatpush2.msra.mxu0 0.0
          %2047 = vmatprep.subr.mxu0 0.0
          %2048 = vmatpush2.msra.mxu0 0.0
          %2049 = vmatprep.subr.mxu0 0.0
          %2050 = vmatpush2.msra.mxu0 0.0
          %2051 = vmatprep.subr.mxu0 0.0
          %2052 = vmatpush2.msra.mxu0 0.0
          %2053 = vmatprep.subr.mxu0 0.0
          %2054 = vmatpush2.msra.mxu0 0.0
          %2055 = vmatprep.subr.mxu0 0.0
          %2056 = vmatpush2.msra.mxu0 0.0
          %2057 = vmatprep.subr.mxu0 0.0
          %2058 = vmatpush2.msra.mxu0 0.0
          %2059 = vmatprep.subr.mxu0 0.0
          %2060 = vmatpush2.msra.mxu0 0.0
          %2061 = vmatprep.subr.mxu0 0.0
          %2062 = vmatpush2.msra.mxu0 0.0
          %2063 = vmatprep.subr.mxu0 0.0
          %2064 = vmatpush2.msra.mxu0 0.0
          %2065 = vmatprep.subr.mxu0 0.0
          %2066 = vmatpush2.msra.mxu0 0.0
          %2067 = vmatprep.subr.mxu0 0.0
          %2068 = vmatpush2.msra.mxu0 0.0
          %2069 = vmatprep.subr.mxu0 0.0
          %2070 = vmatpush2.msra.mxu0 0.0
          %2071 = vmatprep.subr.mxu0 0.0
          %2072 = vmatpush2.msra.mxu0 0.0
          %2073 = vmatprep.subr.mxu0 0.0
          %2074 = vmatpush2.msra.mxu0 0.0
          %2075 = vmatprep.mubr.f32.mxu0 0.0
          %2076 = vmatmul.mubr.f32.gmra.mxu0 %v1489
          %v2077 = vpop.f32.mrf.mxu0
          %v2078 = vadd.f32 0.0, %v2077
          %v2079 = vpop.f32.mrf.mxu0
          %2080 = vdwg.mxu0
          %v2081 = vld [vmem:[%s1256] sm:$0xff]
          %v2082 = vld [vmem:[%s1432] sm:$0xff]
          %2084 = vset.pattern.permute.xlu0 0
          %2085 = vperm.xlu0 %2084, %v2081
          %v2086 = vpop.permute.xlu0 %2085
          %v2088 = vmul.f32 %v2086, %v1708
          %2089 = vset.pattern.permute.xlu0 1
          %2090 = vperm.xlu0 %2089, %v2081
          %v2091 = vpop.permute.xlu0 %2090
          %v2093 = vmul.f32 %v2091, %v1782
          %v2094 = vadd.f32 %v2088, %v2093
          %2095 = vset.pattern.permute.xlu0 2
          %2096 = vperm.xlu0 %2095, %v2081
          %v2097 = vpop.permute.xlu0 %2096
          %v2099 = vmul.f32 %v2097, %v1856
          %v2100 = vadd.f32 %v2094, %v2099
          %2102 = vset.pattern.permute.xlu0 0
          %2103 = vperm.xlu0 %2102, %v2082
          %v2104 = vpop.permute.xlu0 %2103
          %v2106 = vadd.f32 %v2100, %v2104
          %2107 = vset.pattern.permute.xlu0 3
          %2108 = vperm.xlu0 %2107, %v2081
          %v2109 = vpop.permute.xlu0 %2108
          %v2111 = vmul.f32 %v2109, %v1708
          %2112 = vset.pattern.permute.xlu0 4
          %2113 = vperm.xlu0 %2112, %v2081
          %v2114 = vpop.permute.xlu0 %2113
          %v2116 = vmul.f32 %v2114, %v1782
          %v2117 = vadd.f32 %v2111, %v2116
          %2118 = vset.pattern.permute.xlu0 5
          %2119 = vperm.xlu0 %2118, %v2081
          %v2120 = vpop.permute.xlu0 %2119
          %v2122 = vmul.f32 %v2120, %v1856
          %v2123 = vadd.f32 %v2117, %v2122
          %2124 = vset.pattern.permute.xlu0 1
          %2125 = vperm.xlu0 %2124, %v2082
          %v2126 = vpop.permute.xlu0 %2125
          %v2128 = vadd.f32 %v2123, %v2126
          %2129 = vset.pattern.permute.xlu0 6
          %2130 = vperm.xlu0 %2129, %v2081
          %v2131 = vpop.permute.xlu0 %2130
          %v2133 = vmul.f32 %v2131, %v1708
          %2134 = vset.pattern.permute.xlu0 7
          %2135 = vperm.xlu0 %2134, %v2081
          %v2136 = vpop.permute.xlu0 %2135
          %v2138 = vmul.f32 %v2136, %v1782
          %v2139 = vadd.f32 %v2133, %v2138
          %2140 = vset.pattern.permute.xlu0 8
          %2141 = vperm.xlu0 %2140, %v2081
          %v2142 = vpop.permute.xlu0 %2141
          %v2144 = vmul.f32 %v2142, %v1856
          %v2145 = vadd.f32 %v2139, %v2144
          %2146 = vset.pattern.permute.xlu0 2
          %2147 = vperm.xlu0 %2146, %v2082
          %v2148 = vpop.permute.xlu0 %2147
          %v2150 = vadd.f32 %v2145, %v2148
          %v2151 = vmul.f32 %v2086, %v1930
          %v2152 = vmul.f32 %v2091, %v2004
          %v2153 = vadd.f32 %v2151, %v2152
          %v2154 = vmul.f32 %v2097, %v2078
          %v2155 = vadd.f32 %v2153, %v2154
          %v2156 = vadd.f32 %v2155, %v2104
          %v2157 = vmul.f32 %v2109, %v1930
          %v2158 = vmul.f32 %v2114, %v2004
          %v2159 = vadd.f32 %v2157, %v2158
          %v2160 = vmul.f32 %v2120, %v2078
          %v2161 = vadd.f32 %v2159, %v2160
          %v2162 = vadd.f32 %v2161, %v2126
          %v2163 = vmul.f32 %v2131, %v1930
          %v2164 = vmul.f32 %v2136, %v2004
          %v2165 = vadd.f32 %v2163, %v2164
          %v2166 = vmul.f32 %v2142, %v2078
          %v2167 = vadd.f32 %v2165, %v2166
          %v2168 = vadd.f32 %v2167, %v2148
          %2169 = vxpose.xlu0.b32.start [1/16] %v2106, 128
          %2170 = vxpose.xlu0.b32.cont [2/16] 0.0, 128
          %2171 = vxpose.xlu0.b32.cont [3/16] 0.0, 128
          %2172 = vxpose.xlu0.b32.cont [4/16] 0.0, 128
          %2173 = vxpose.xlu0.b32.cont [5/16] 0.0, 128
          %2174 = vxpose.xlu0.b32.cont [6/16] 0.0, 128
          %2175 = vxpose.xlu0.b32.cont [7/16] 0.0, 128
          %2176 = vxpose.xlu0.b32.cont [8/16] 0.0, 128
          %2177 = vxpose.xlu0.b32.cont [9/16] 0.0, 128
          %2178 = vxpose.xlu0.b32.cont [10/16] 0.0, 128
          %2179 = vxpose.xlu0.b32.cont [11/16] 0.0, 128
          %2180 = vxpose.xlu0.b32.cont [12/16] 0.0, 128
          %2181 = vxpose.xlu0.b32.cont [13/16] 0.0, 128
          %2182 = vxpose.xlu0.b32.cont [14/16] 0.0, 128
          %2183 = vxpose.xlu0.b32.cont [15/16] 0.0, 128
          %2184 = vxpose.xlu0.b32.end [16/16] 0.0, 128
          %v2185 = vpop.trf.xlu0
          %v2186 = vpop.trf.xlu0
          %v2187 = vpop.trf.xlu0
          %v2188 = vpop.trf.xlu0
          %v2189 = vpop.trf.xlu0
          %v2190 = vpop.trf.xlu0
          %v2191 = vpop.trf.xlu0
          %v2192 = vpop.trf.xlu0
          %v2193 = vpop.trf.xlu0
          %v2194 = vpop.trf.xlu0
          %v2195 = vpop.trf.xlu0
          %v2196 = vpop.trf.xlu0
          %v2197 = vpop.trf.xlu0
          %v2198 = vpop.trf.xlu0
          %v2199 = vpop.trf.xlu0
          %v2200 = vpop.trf.xlu0
          %vm2201 = vcmask 64512
          %2202 = vst.msk [vmem:[#allocation4] sm:$0xff] %vm2201, %v2185
          %2203 = vst.msk [vmem:[#allocation4 + $0x8] sm:$0xff] %vm2201, %v2186
          %2204 = vxpose.xlu0.b32.start [1/16] %v2128, 128
          %2205 = vxpose.xlu0.b32.cont [2/16] 0.0, 128
          %2206 = vxpose.xlu0.b32.cont [3/16] 0.0, 128
          %2207 = vxpose.xlu0.b32.cont [4/16] 0.0, 128
          %2208 = vxpose.xlu0.b32.cont [5/16] 0.0, 128
          %2209 = vxpose.xlu0.b32.cont [6/16] 0.0, 128
          %2210 = vxpose.xlu0.b32.cont [7/16] 0.0, 128
          %2211 = vxpose.xlu0.b32.cont [8/16] 0.0, 128
          %2212 = vxpose.xlu0.b32.cont [9/16] 0.0, 128
          %2213 = vxpose.xlu0.b32.cont [10/16] 0.0, 128
          %2214 = vxpose.xlu0.b32.cont [11/16] 0.0, 128
          %2215 = vxpose.xlu0.b32.cont [12/16] 0.0, 128
          %2216 = vxpose.xlu0.b32.cont [13/16] 0.0, 128
          %2217 = vxpose.xlu0.b32.cont [14/16] 0.0, 128
          %2218 = vxpose.xlu0.b32.cont [15/16] 0.0, 128
          %2219 = vxpose.xlu0.b32.end [16/16] 0.0, 128
          %v2220 = vpop.trf.xlu0
          %v2221 = vpop.trf.xlu0
          %v2222 = vpop.trf.xlu0
          %v2223 = vpop.trf.xlu0
          %v2224 = vpop.trf.xlu0
          %v2225 = vpop.trf.xlu0
          %v2226 = vpop.trf.xlu0
          %v2227 = vpop.trf.xlu0
          %v2228 = vpop.trf.xlu0
          %v2229 = vpop.trf.xlu0
          %v2230 = vpop.trf.xlu0
          %v2231 = vpop.trf.xlu0
          %v2232 = vpop.trf.xlu0
          %v2233 = vpop.trf.xlu0
          %v2234 = vpop.trf.xlu0
          %v2235 = vpop.trf.xlu0
          %2236 = vst.msk [vmem:[#allocation5] sm:$0xff] %vm2201, %v2220
          %2237 = vst.msk [vmem:[#allocation5 + $0x8] sm:$0xff] %vm2201, %v2221
          %2238 = vxpose.xlu0.b32.start [1/16] %v2150, 128
          %2239 = vxpose.xlu0.b32.cont [2/16] 0.0, 128
          %2240 = vxpose.xlu0.b32.cont [3/16] 0.0, 128
          %2241 = vxpose.xlu0.b32.cont [4/16] 0.0, 128
          %2242 = vxpose.xlu0.b32.cont [5/16] 0.0, 128
          %2243 = vxpose.xlu0.b32.cont [6/16] 0.0, 128
          %2244 = vxpose.xlu0.b32.cont [7/16] 0.0, 128
          %2245 = vxpose.xlu0.b32.cont [8/16] 0.0, 128
          %2246 = vxpose.xlu0.b32.cont [9/16] 0.0, 128
          %2247 = vxpose.xlu0.b32.cont [10/16] 0.0, 128
          %2248 = vxpose.xlu0.b32.cont [11/16] 0.0, 128
          %2249 = vxpose.xlu0.b32.cont [12/16] 0.0, 128
          %2250 = vxpose.xlu0.b32.cont [13/16] 0.0, 128
          %2251 = vxpose.xlu0.b32.cont [14/16] 0.0, 128
          %2252 = vxpose.xlu0.b32.cont [15/16] 0.0, 128
          %2253 = vxpose.xlu0.b32.end [16/16] 0.0, 128
          %v2254 = vpop.trf.xlu0
          %v2255 = vpop.trf.xlu0
          %v2256 = vpop.trf.xlu0
          %v2257 = vpop.trf.xlu0
          %v2258 = vpop.trf.xlu0
          %v2259 = vpop.trf.xlu0
          %v2260 = vpop.trf.xlu0
          %v2261 = vpop.trf.xlu0
          %v2262 = vpop.trf.xlu0
          %v2263 = vpop.trf.xlu0
          %v2264 = vpop.trf.xlu0
          %v2265 = vpop.trf.xlu0
          %v2266 = vpop.trf.xlu0
          %v2267 = vpop.trf.xlu0
          %v2268 = vpop.trf.xlu0
          %v2269 = vpop.trf.xlu0
          %2270 = vst.msk [vmem:[#allocation6] sm:$0xff] %vm2201, %v2254
          %2271 = vst.msk [vmem:[#allocation6 + $0x8] sm:$0xff] %vm2201, %v2255
          %2272 = vst.msk [vmem:[#allocation7] sm:$0xff] %vm1455, %v2156
          %2273 = vst.msk [vmem:[#allocation8] sm:$0xff] %vm1455, %v2162
          %2274 = vst.msk [vmem:[#allocation9] sm:$0xff] %vm1455, %v2168
        $region208: #{tpu_custom_call.1} parent=167 // pred_fallthru
          _
        %v2275 = vld [vmem:[%s1247] sm:$0xff]
        %vm2276 = vcmask 261120
        %v2277 = vsel %vm2276, %v2275, 0.0
        %2278 = vadd.xlane.f32.xlu0 %v2277
        %v2279 = vpop.xlane.xlu0 %2278
        %v2280 = vrcp.pop 32.0
        %v2281 = vmul.f32 %v2279, %v2280
        %v2282 = vsub.f32 %v2275, %v2281
        %v2283 = vmul.f32 %v2282, %v2282
        %v2284 = vsel %vm2276, %v2283, 0.0
        %2285 = vadd.xlane.f32.xlu0 %v2284
        %v2286 = vpop.xlane.xlu0 %2285
        %v2287 = vmul.f32 %v2286, %v2280
        %v2288 = vadd.f32 %v2287, 1e-05
        %v2289 = vrsqrt.pop %v2288
        %v2290 = vmul.f32 %v2282, %v2289
        %v2292 = vlaneseq
        %v2293 = vshrl.u32 %v2292, 7
        %v2294 = vsub.s32 0, %v2293
        %v2295 = vrot.slane %v1448, %v2294
        %v2297 = vmul.f32 %v2290, %v2295
        %v2299 = vlaneseq
        %v2300 = vshrl.u32 %v2299, 7
        %v2301 = vsub.s32 0, %v2300
        %v2302 = vrot.slane %v1449, %v2301
        %v2304 = vadd.f32 %v2297, %v2302
        %v2305 = vld [vmem:[%s21] sm:$0xff]
        %v2306 = vld [vmem:[%s21 + $0x8] sm:$0xff]
        %v2307 = vld [vmem:[%s21 + $0x10] sm:$0xff]
        %v2308 = vld [vmem:[%s21 + $0x18] sm:$0xff]
        %v2310 = vsel %vm2276, %v2304, 0
        %2312 = vmatprep.subr.mxu0 0.0
        %2313 = vmatpush1.msra.mxu0 0.0
        %2314 = vmatprep.subr.mxu0 0.0
        %2315 = vmatpush1.msra.mxu0 0.0
        %2316 = vmatprep.subr.mxu0 0.0
        %2317 = vmatpush1.msra.mxu0 0.0
        %2318 = vmatprep.subr.mxu0 0.0
        %2319 = vmatpush1.msra.mxu0 0.0
        %2320 = vmatprep.subr.mxu0 0.0
        %2321 = vmatpush1.msra.mxu0 0.0
        %2322 = vmatprep.subr.mxu0 0.0
        %2323 = vmatpush1.msra.mxu0 0.0
        %2324 = vmatprep.subr.mxu0 0.0
        %2325 = vmatpush1.msra.mxu0 0.0
        %2326 = vmatprep.subr.mxu0 0.0
        %2327 = vmatpush1.msra.mxu0 0.0
        %2328 = vmatprep.subr.mxu0 0.0
        %2329 = vmatpush1.msra.mxu0 0.0
        %2330 = vmatprep.subr.mxu0 0.0
        %2331 = vmatpush1.msra.mxu0 0.0
        %2332 = vmatprep.subr.mxu0 0.0
        %2333 = vmatpush1.msra.mxu0 0.0
        %2334 = vmatprep.subr.mxu0 0.0
        %2335 = vmatpush1.msra.mxu0 0.0
        %2336 = vmatprep.subr.mxu0 0.0
        %2337 = vmatpush1.msra.mxu0 %v2308
        %2338 = vmatprep.subr.mxu0 0.0
        %2339 = vmatpush1.msra.mxu0 %v2307
        %2340 = vmatprep.subr.mxu0 0.0
        %2341 = vmatpush1.msra.mxu0 %v2306
        %2342 = vmatprep.subr.mxu0 0.0
        %2343 = vmatpush1.msra.mxu0 %v2305
        %2344 = vmatprep.subr.mxu0 0.0
        %2345 = vmatpush2.msra.mxu0 0.0
        %2346 = vmatprep.subr.mxu0 0.0
        %2347 = vmatpush2.msra.mxu0 0.0
        %2348 = vmatprep.subr.mxu0 0.0
        %2349 = vmatpush2.msra.mxu0 0.0
        %2350 = vmatprep.subr.mxu0 0.0
        %2351 = vmatpush2.msra.mxu0 0.0
        %2352 = vmatprep.subr.mxu0 0.0
        %2353 = vmatpush2.msra.mxu0 0.0
        %2354 = vmatprep.subr.mxu0 0.0
        %2355 = vmatpush2.msra.mxu0 0.0
        %2356 = vmatprep.subr.mxu0 0.0
        %2357 = vmatpush2.msra.mxu0 0.0
        %2358 = vmatprep.subr.mxu0 0.0
        %2359 = vmatpush2.msra.mxu0 0.0
        %2360 = vmatprep.subr.mxu0 0.0
        %2361 = vmatpush2.msra.mxu0 0.0
        %2362 = vmatprep.subr.mxu0 0.0
        %2363 = vmatpush2.msra.mxu0 0.0
        %2364 = vmatprep.subr.mxu0 0.0
        %2365 = vmatpush2.msra.mxu0 0.0
        %2366 = vmatprep.subr.mxu0 0.0
        %2367 = vmatpush2.msra.mxu0 0.0
        %2368 = vmatprep.subr.mxu0 0.0
        %2369 = vmatpush2.msra.mxu0 0.0
        %2370 = vmatprep.subr.mxu0 0.0
        %2371 = vmatpush2.msra.mxu0 0.0
        %2372 = vmatprep.subr.mxu0 0.0
        %2373 = vmatpush2.msra.mxu0 0.0
        %2374 = vmatprep.subr.mxu0 0.0
        %2375 = vmatpush2.msra.mxu0 0.0
        %2376 = vmatprep.mubr.f32.mxu0 0.0
        %2377 = vmatmul.mubr.f32.gmra.mxu0 %v2310
        %v2378 = vpop.f32.mrf.mxu0
        %v2379 = vadd.f32 0.0, %v2378
        %v2380 = vpop.f32.mrf.mxu0
        %2381 = vdwg.mxu0
        %v2382 = vmul.f32 %v2379, 0.20412415
        %v2383 = vld [vmem:[%s29] sm:$0xff]
        %v2384 = vld [vmem:[%s29 + $0x8] sm:$0xff]
        %v2385 = vld [vmem:[%s29 + $0x10] sm:$0xff]
        %v2386 = vld [vmem:[%s29 + $0x18] sm:$0xff]
        %2387 = vmatprep.subr.mxu0 0.0
        %2388 = vmatpush1.msra.mxu0 0.0
        %2389 = vmatprep.subr.mxu0 0.0
        %2390 = vmatpush1.msra.mxu0 0.0
        %2391 = vmatprep.subr.mxu0 0.0
        %2392 = vmatpush1.msra.mxu0 0.0
        %2393 = vmatprep.subr.mxu0 0.0
        %2394 = vmatpush1.msra.mxu0 0.0
        %2395 = vmatprep.subr.mxu0 0.0
        %2396 = vmatpush1.msra.mxu0 0.0
        %2397 = vmatprep.subr.mxu0 0.0
        %2398 = vmatpush1.msra.mxu0 0.0
        %2399 = vmatprep.subr.mxu0 0.0
        %2400 = vmatpush1.msra.mxu0 0.0
        %2401 = vmatprep.subr.mxu0 0.0
        %2402 = vmatpush1.msra.mxu0 0.0
        %2403 = vmatprep.subr.mxu0 0.0
        %2404 = vmatpush1.msra.mxu0 0.0
        %2405 = vmatprep.subr.mxu0 0.0
        %2406 = vmatpush1.msra.mxu0 0.0
        %2407 = vmatprep.subr.mxu0 0.0
        %2408 = vmatpush1.msra.mxu0 0.0
        %2409 = vmatprep.subr.mxu0 0.0
        %2410 = vmatpush1.msra.mxu0 0.0
        %2411 = vmatprep.subr.mxu0 0.0
        %2412 = vmatpush1.msra.mxu0 %v2386
        %2413 = vmatprep.subr.mxu0 0.0
        %2414 = vmatpush1.msra.mxu0 %v2385
        %2415 = vmatprep.subr.mxu0 0.0
        %2416 = vmatpush1.msra.mxu0 %v2384
        %2417 = vmatprep.subr.mxu0 0.0
        %2418 = vmatpush1.msra.mxu0 %v2383
        %2419 = vmatprep.subr.mxu0 0.0
        %2420 = vmatpush2.msra.mxu0 0.0
        %2421 = vmatprep.subr.mxu0 0.0
        %2422 = vmatpush2.msra.mxu0 0.0
        %2423 = vmatprep.subr.mxu0 0.0
        %2424 = vmatpush2.msra.mxu0 0.0
        %2425 = vmatprep.subr.mxu0 0.0
        %2426 = vmatpush2.msra.mxu0 0.0
        %2427 = vmatprep.subr.mxu0 0.0
        %2428 = vmatpush2.msra.mxu0 0.0
        %2429 = vmatprep.subr.mxu0 0.0
        %2430 = vmatpush2.msra.mxu0 0.0
        %2431 = vmatprep.subr.mxu0 0.0
        %2432 = vmatpush2.msra.mxu0 0.0
        %2433 = vmatprep.subr.mxu0 0.0
        %2434 = vmatpush2.msra.mxu0 0.0
        %2435 = vmatprep.subr.mxu0 0.0
        %2436 = vmatpush2.msra.mxu0 0.0
        %2437 = vmatprep.subr.mxu0 0.0
        %2438 = vmatpush2.msra.mxu0 0.0
        %2439 = vmatprep.subr.mxu0 0.0
        %2440 = vmatpush2.msra.mxu0 0.0
        %2441 = vmatprep.subr.mxu0 0.0
        %2442 = vmatpush2.msra.mxu0 0.0
        %2443 = vmatprep.subr.mxu0 0.0
        %2444 = vmatpush2.msra.mxu0 0.0
        %2445 = vmatprep.subr.mxu0 0.0
        %2446 = vmatpush2.msra.mxu0 0.0
        %2447 = vmatprep.subr.mxu0 0.0
        %2448 = vmatpush2.msra.mxu0 0.0
        %2449 = vmatprep.subr.mxu0 0.0
        %2450 = vmatpush2.msra.mxu0 0.0
        %2451 = vmatprep.mubr.f32.mxu0 0.0
        %2452 = vmatmul.mubr.f32.gmra.mxu0 %v2310
        %v2453 = vpop.f32.mrf.mxu0
        %v2454 = vadd.f32 0.0, %v2453
        %v2455 = vpop.f32.mrf.mxu0
        %2456 = vdwg.mxu0
        %v2457 = vld [vmem:[%s31] sm:$0xff]
        %v2458 = vld [vmem:[%s31 + $0x8] sm:$0xff]
        %v2459 = vld [vmem:[%s31 + $0x10] sm:$0xff]
        %v2460 = vld [vmem:[%s31 + $0x18] sm:$0xff]
        %2461 = vmatprep.subr.mxu0 0.0
        %2462 = vmatpush1.msra.mxu0 0.0
        %2463 = vmatprep.subr.mxu0 0.0
        %2464 = vmatpush1.msra.mxu0 0.0
        %2465 = vmatprep.subr.mxu0 0.0
        %2466 = vmatpush1.msra.mxu0 0.0
        %2467 = vmatprep.subr.mxu0 0.0
        %2468 = vmatpush1.msra.mxu0 0.0
        %2469 = vmatprep.subr.mxu0 0.0
        %2470 = vmatpush1.msra.mxu0 0.0
        %2471 = vmatprep.subr.mxu0 0.0
        %2472 = vmatpush1.msra.mxu0 0.0
        %2473 = vmatprep.subr.mxu0 0.0
        %2474 = vmatpush1.msra.mxu0 0.0
        %2475 = vmatprep.subr.mxu0 0.0
        %2476 = vmatpush1.msra.mxu0 0.0
        %2477 = vmatprep.subr.mxu0 0.0
        %2478 = vmatpush1.msra.mxu0 0.0
        %2479 = vmatprep.subr.mxu0 0.0
        %2480 = vmatpush1.msra.mxu0 0.0
        %2481 = vmatprep.subr.mxu0 0.0
        %2482 = vmatpush1.msra.mxu0 0.0
        %2483 = vmatprep.subr.mxu0 0.0
        %2484 = vmatpush1.msra.mxu0 0.0
        %2485 = vmatprep.subr.mxu0 0.0
        %2486 = vmatpush1.msra.mxu0 %v2460
        %2487 = vmatprep.subr.mxu0 0.0
        %2488 = vmatpush1.msra.mxu0 %v2459
        %2489 = vmatprep.subr.mxu0 0.0
        %2490 = vmatpush1.msra.mxu0 %v2458
        %2491 = vmatprep.subr.mxu0 0.0
        %2492 = vmatpush1.msra.mxu0 %v2457
        %2493 = vmatprep.subr.mxu0 0.0
        %2494 = vmatpush2.msra.mxu0 0.0
        %2495 = vmatprep.subr.mxu0 0.0
        %2496 = vmatpush2.msra.mxu0 0.0
        %2497 = vmatprep.subr.mxu0 0.0
        %2498 = vmatpush2.msra.mxu0 0.0
        %2499 = vmatprep.subr.mxu0 0.0
        %2500 = vmatpush2.msra.mxu0 0.0
        %2501 = vmatprep.subr.mxu0 0.0
        %2502 = vmatpush2.msra.mxu0 0.0
        %2503 = vmatprep.subr.mxu0 0.0
        %2504 = vmatpush2.msra.mxu0 0.0
        %2505 = vmatprep.subr.mxu0 0.0
        %2506 = vmatpush2.msra.mxu0 0.0
        %2507 = vmatprep.subr.mxu0 0.0
        %2508 = vmatpush2.msra.mxu0 0.0
        %2509 = vmatprep.subr.mxu0 0.0
        %2510 = vmatpush2.msra.mxu0 0.0
        %2511 = vmatprep.subr.mxu0 0.0
        %2512 = vmatpush2.msra.mxu0 0.0
        %2513 = vmatprep.subr.mxu0 0.0
        %2514 = vmatpush2.msra.mxu0 0.0
        %2515 = vmatprep.subr.mxu0 0.0
        %2516 = vmatpush2.msra.mxu0 0.0
        %2517 = vmatprep.subr.mxu0 0.0
        %2518 = vmatpush2.msra.mxu0 0.0
        %2519 = vmatprep.subr.mxu0 0.0
        %2520 = vmatpush2.msra.mxu0 0.0
        %2521 = vmatprep.subr.mxu0 0.0
        %2522 = vmatpush2.msra.mxu0 0.0
        %2523 = vmatprep.subr.mxu0 0.0
        %2524 = vmatpush2.msra.mxu0 0.0
        %2525 = vmatprep.mubr.f32.mxu0 0.0
        %2526 = vmatmul.mubr.f32.gmra.mxu0 %v2310
        %v2527 = vpop.f32.mrf.mxu0
        %v2528 = vadd.f32 0.0, %v2527
        %v2529 = vpop.f32.mrf.mxu0
        %2530 = vdwg.mxu0
        %v2531 = vld [vmem:[%s33] sm:$0xff]
        %v2532 = vld [vmem:[%s33 + $0x8] sm:$0xff]
        %v2533 = vld [vmem:[%s33 + $0x10] sm:$0xff]
        %v2534 = vld [vmem:[%s33 + $0x18] sm:$0xff]
        %2535 = vmatprep.subr.mxu0 0.0
        %2536 = vmatpush1.msra.mxu0 0.0
        %2537 = vmatprep.subr.mxu0 0.0
        %2538 = vmatpush1.msra.mxu0 0.0
        %2539 = vmatprep.subr.mxu0 0.0
        %2540 = vmatpush1.msra.mxu0 0.0
        %2541 = vmatprep.subr.mxu0 0.0
        %2542 = vmatpush1.msra.mxu0 0.0
        %2543 = vmatprep.subr.mxu0 0.0
        %2544 = vmatpush1.msra.mxu0 0.0
        %2545 = vmatprep.subr.mxu0 0.0
        %2546 = vmatpush1.msra.mxu0 0.0
        %2547 = vmatprep.subr.mxu0 0.0
        %2548 = vmatpush1.msra.mxu0 0.0
        %2549 = vmatprep.subr.mxu0 0.0
        %2550 = vmatpush1.msra.mxu0 0.0
        %2551 = vmatprep.subr.mxu0 0.0
        %2552 = vmatpush1.msra.mxu0 0.0
        %2553 = vmatprep.subr.mxu0 0.0
        %2554 = vmatpush1.msra.mxu0 0.0
        %2555 = vmatprep.subr.mxu0 0.0
        %2556 = vmatpush1.msra.mxu0 0.0
        %2557 = vmatprep.subr.mxu0 0.0
        %2558 = vmatpush1.msra.mxu0 0.0
        %2559 = vmatprep.subr.mxu0 0.0
        %2560 = vmatpush1.msra.mxu0 %v2534
        %2561 = vmatprep.subr.mxu0 0.0
        %2562 = vmatpush1.msra.mxu0 %v2533
        %2563 = vmatprep.subr.mxu0 0.0
        %2564 = vmatpush1.msra.mxu0 %v2532
        %2565 = vmatprep.subr.mxu0 0.0
        %2566 = vmatpush1.msra.mxu0 %v2531
        %2567 = vmatprep.subr.mxu0 0.0
        %2568 = vmatpush2.msra.mxu0 0.0
        %2569 = vmatprep.subr.mxu0 0.0
        %2570 = vmatpush2.msra.mxu0 0.0
        %2571 = vmatprep.subr.mxu0 0.0
        %2572 = vmatpush2.msra.mxu0 0.0
        %2573 = vmatprep.subr.mxu0 0.0
        %2574 = vmatpush2.msra.mxu0 0.0
        %2575 = vmatprep.subr.mxu0 0.0
        %2576 = vmatpush2.msra.mxu0 0.0
        %2577 = vmatprep.subr.mxu0 0.0
        %2578 = vmatpush2.msra.mxu0 0.0
        %2579 = vmatprep.subr.mxu0 0.0
        %2580 = vmatpush2.msra.mxu0 0.0
        %2581 = vmatprep.subr.mxu0 0.0
        %2582 = vmatpush2.msra.mxu0 0.0
        %2583 = vmatprep.subr.mxu0 0.0
        %2584 = vmatpush2.msra.mxu0 0.0
        %2585 = vmatprep.subr.mxu0 0.0
        %2586 = vmatpush2.msra.mxu0 0.0
        %2587 = vmatprep.subr.mxu0 0.0
        %2588 = vmatpush2.msra.mxu0 0.0
        %2589 = vmatprep.subr.mxu0 0.0
        %2590 = vmatpush2.msra.mxu0 0.0
        %2591 = vmatprep.subr.mxu0 0.0
        %2592 = vmatpush2.msra.mxu0 0.0
        %2593 = vmatprep.subr.mxu0 0.0
        %2594 = vmatpush2.msra.mxu0 0.0
        %2595 = vmatprep.subr.mxu0 0.0
        %2596 = vmatpush2.msra.mxu0 0.0
        %2597 = vmatprep.subr.mxu0 0.0
        %2598 = vmatpush2.msra.mxu0 0.0
        %2599 = vmatprep.mubr.f32.mxu0 0.0
        %2600 = vmatmul.mubr.f32.gmra.mxu0 %v2310
        %v2601 = vpop.f32.mrf.mxu0
        %v2602 = vadd.f32 0.0, %v2601
        %v2603 = vpop.f32.mrf.mxu0
        %2604 = vdwg.mxu0
        %v2605 = vld [vmem:[%s1265] sm:$0xff]
        %v2606 = vld [vmem:[%s1439] sm:$0xff]
        %2608 = vset.pattern.permute.xlu0 0
        %2609 = vperm.xlu0 %2608, %v2605
        %v2610 = vpop.permute.xlu0 %2609
        %v2612 = vmul.f32 %v2610, %v2454
        %2613 = vset.pattern.permute.xlu0 1
        %2614 = vperm.xlu0 %2613, %v2605
        %v2615 = vpop.permute.xlu0 %2614
        %v2617 = vmul.f32 %v2615, %v2528
        %v2618 = vadd.f32 %v2612, %v2617
        %2619 = vset.pattern.permute.xlu0 2
        %2620 = vperm.xlu0 %2619, %v2605
        %v2621 = vpop.permute.xlu0 %2620
        %v2623 = vmul.f32 %v2621, %v2602
        %v2624 = vadd.f32 %v2618, %v2623
        %2626 = vset.pattern.permute.xlu0 0
        %2627 = vperm.xlu0 %2626, %v2606
        %v2628 = vpop.permute.xlu0 %2627
        %v2630 = vadd.f32 %v2624, %v2628
        %2631 = vset.pattern.permute.xlu0 3
        %2632 = vperm.xlu0 %2631, %v2605
        %v2633 = vpop.permute.xlu0 %2632
        %v2635 = vmul.f32 %v2633, %v2454
        %2636 = vset.pattern.permute.xlu0 4
        %2637 = vperm.xlu0 %2636, %v2605
        %v2638 = vpop.permute.xlu0 %2637
        %v2640 = vmul.f32 %v2638, %v2528
        %v2641 = vadd.f32 %v2635, %v2640
        %2642 = vset.pattern.permute.xlu0 5
        %2643 = vperm.xlu0 %2642, %v2605
        %v2644 = vpop.permute.xlu0 %2643
        %v2646 = vmul.f32 %v2644, %v2602
        %v2647 = vadd.f32 %v2641, %v2646
        %2648 = vset.pattern.permute.xlu0 1
        %2649 = vperm.xlu0 %2648, %v2606
        %v2650 = vpop.permute.xlu0 %2649
        %v2652 = vadd.f32 %v2647, %v2650
        %2653 = vset.pattern.permute.xlu0 6
        %2654 = vperm.xlu0 %2653, %v2605
        %v2655 = vpop.permute.xlu0 %2654
        %v2657 = vmul.f32 %v2655, %v2454
        %2658 = vset.pattern.permute.xlu0 7
        %2659 = vperm.xlu0 %2658, %v2605
        %v2660 = vpop.permute.xlu0 %2659
        %v2662 = vmul.f32 %v2660, %v2528
        %v2663 = vadd.f32 %v2657, %v2662
        %2664 = vset.pattern.permute.xlu0 8
        %2665 = vperm.xlu0 %2664, %v2605
        %v2666 = vpop.permute.xlu0 %2665
        %v2668 = vmul.f32 %v2666, %v2602
        %v2669 = vadd.f32 %v2663, %v2668
        %2670 = vset.pattern.permute.xlu0 2
        %2671 = vperm.xlu0 %2670, %v2606
        %v2672 = vpop.permute.xlu0 %2671
        %v2674 = vadd.f32 %v2669, %v2672
        %v2675 = vld [vmem:[%s1427] sm:$0xff]
        %v2676 = vld [vmem:[%s1427 + $0x8] sm:$0xff]
        %v2677 = vld [vmem:[%s1427 + $0x10] sm:$0xff]
        %v2678 = vld [vmem:[%s1427 + $0x18] sm:$0xff]
        %v2679 = vld [vmem:[%s1427 + $0x20] sm:$0xff]
        %v2680 = vld [vmem:[%s1427 + $0x28] sm:$0xff]
        %v2681 = vld [vmem:[%s1427 + $0x30] sm:$0xff]
        %v2682 = vld [vmem:[%s1427 + $0x38] sm:$0xff]
        %v2683 = vld [vmem:[%s27] sm:$0xff]
        %v2684 = vld [vmem:[%s27 + $0x8] sm:$0xff]
        %vm2685 = vcmask 130048
        %v2687 = vsel %vm2685, %v2675, 0
        %v2690 = vsel %vm2685, %v2676, 0
        %v2693 = vsel %vm2685, %v2677, 0
        %v2696 = vsel %vm2685, %v2678, 0
        %v2699 = vsel %vm2685, %v2679, 0
        %v2702 = vsel %vm2685, %v2680, 0
        %v2705 = vsel %vm2685, %v2681, 0
        %v2708 = vsel %vm2685, %v2682, 0
        %2710 = vmatprep.subr.mxu0 0.0
        %2711 = vmatpush1.msra.mxu0 0.0
        %2712 = vmatprep.subr.mxu0 0.0
        %2713 = vmatpush1.msra.mxu0 0.0
        %2714 = vmatprep.subr.mxu0 0.0
        %2715 = vmatpush1.msra.mxu0 0.0
        %2716 = vmatprep.subr.mxu0 0.0
        %2717 = vmatpush1.msra.mxu0 0.0
        %2718 = vmatprep.subr.mxu0 0.0
        %2719 = vmatpush1.msra.mxu0 0.0
        %2720 = vmatprep.subr.mxu0 0.0
        %2721 = vmatpush1.msra.mxu0 0.0
        %2722 = vmatprep.subr.mxu0 0.0
        %2723 = vmatpush1.msra.mxu0 0.0
        %2724 = vmatprep.subr.mxu0 0.0
        %2725 = vmatpush1.msra.mxu0 0.0
        %2726 = vmatprep.subr.mxu0 0.0
        %2727 = vmatpush1.msra.mxu0 0.0
        %2728 = vmatprep.subr.mxu0 0.0
        %2729 = vmatpush1.msra.mxu0 0.0
        %2730 = vmatprep.subr.mxu0 0.0
        %2731 = vmatpush1.msra.mxu0 0.0
        %2732 = vmatprep.subr.mxu0 0.0
        %2733 = vmatpush1.msra.mxu0 0.0
        %2734 = vmatprep.subr.mxu0 0.0
        %2735 = vmatpush1.msra.mxu0 0.0
        %2736 = vmatprep.subr.mxu0 0.0
        %2737 = vmatpush1.msra.mxu0 0.0
        %2738 = vmatprep.subr.mxu0 0.0
        %2739 = vmatpush1.msra.mxu0 %v2684
        %2740 = vmatprep.subr.mxu0 0.0
        %2741 = vmatpush1.msra.mxu0 %v2683
        %2742 = vmatprep.subr.mxu0 0.0
        %2743 = vmatpush2.msra.mxu0 0.0
        %2744 = vmatprep.subr.mxu0 0.0
        %2745 = vmatpush2.msra.mxu0 0.0
        %2746 = vmatprep.subr.mxu0 0.0
        %2747 = vmatpush2.msra.mxu0 0.0
        %2748 = vmatprep.subr.mxu0 0.0
        %2749 = vmatpush2.msra.mxu0 0.0
        %2750 = vmatprep.subr.mxu0 0.0
        %2751 = vmatpush2.msra.mxu0 0.0
        %2752 = vmatprep.subr.mxu0 0.0
        %2753 = vmatpush2.msra.mxu0 0.0
        %2754 = vmatprep.subr.mxu0 0.0
        %2755 = vmatpush2.msra.mxu0 0.0
        %2756 = vmatprep.subr.mxu0 0.0
        %2757 = vmatpush2.msra.mxu0 0.0
        %2758 = vmatprep.subr.mxu0 0.0
        %2759 = vmatpush2.msra.mxu0 0.0
        %2760 = vmatprep.subr.mxu0 0.0
        %2761 = vmatpush2.msra.mxu0 0.0
        %2762 = vmatprep.subr.mxu0 0.0
        %2763 = vmatpush2.msra.mxu0 0.0
        %2764 = vmatprep.subr.mxu0 0.0
        %2765 = vmatpush2.msra.mxu0 0.0
        %2766 = vmatprep.subr.mxu0 0.0
        %2767 = vmatpush2.msra.mxu0 0.0
        %2768 = vmatprep.subr.mxu0 0.0
        %2769 = vmatpush2.msra.mxu0 0.0
        %2770 = vmatprep.subr.mxu0 0.0
        %2771 = vmatpush2.msra.mxu0 0.0
        %2772 = vmatprep.subr.mxu0 0.0
        %2773 = vmatpush2.msra.mxu0 0.0
        %2774 = vmatprep.mubr.f32.mxu0 0.0
        %2775 = vmatmul.mubr.f32.gmra.mxu0 %v2687
        %v2776 = vpop.f32.mrf.mxu0
        %v2777 = vadd.f32 0.0, %v2776
        %v2778 = vpop.f32.mrf.mxu0
        %2779 = vmatprep.mubr.f32.mxu0 0.0
        %2780 = vmatmul.mubr.f32.gmra.mxu0 %v2690
        %v2781 = vpop.f32.mrf.mxu0
        %v2782 = vadd.f32 0.0, %v2781
        %v2783 = vpop.f32.mrf.mxu0
        %2784 = vmatprep.mubr.f32.mxu0 0.0
        %2785 = vmatmul.mubr.f32.gmra.mxu0 %v2693
        %v2786 = vpop.f32.mrf.mxu0
        %v2787 = vadd.f32 0.0, %v2786
        %v2788 = vpop.f32.mrf.mxu0
        %2789 = vmatprep.mubr.f32.mxu0 0.0
        %2790 = vmatmul.mubr.f32.gmra.mxu0 %v2696
        %v2791 = vpop.f32.mrf.mxu0
        %v2792 = vadd.f32 0.0, %v2791
        %v2793 = vpop.f32.mrf.mxu0
        %2794 = vmatprep.mubr.f32.mxu0 0.0
        %2795 = vmatmul.mubr.f32.gmra.mxu0 %v2699
        %v2796 = vpop.f32.mrf.mxu0
        %v2797 = vadd.f32 0.0, %v2796
        %v2798 = vpop.f32.mrf.mxu0
        %2799 = vmatprep.mubr.f32.mxu0 0.0
        %2800 = vmatmul.mubr.f32.gmra.mxu0 %v2702
        %v2801 = vpop.f32.mrf.mxu0
        %v2802 = vadd.f32 0.0, %v2801
        %v2803 = vpop.f32.mrf.mxu0
        %2804 = vmatprep.mubr.f32.mxu0 0.0
        %2805 = vmatmul.mubr.f32.gmra.mxu0 %v2705
        %v2806 = vpop.f32.mrf.mxu0
        %v2807 = vadd.f32 0.0, %v2806
        %v2808 = vpop.f32.mrf.mxu0
        %2809 = vmatprep.mubr.f32.mxu0 0.0
        %2810 = vmatmul.mubr.f32.gmra.mxu0 %v2708
        %v2811 = vpop.f32.mrf.mxu0
        %v2812 = vadd.f32 0.0, %v2811
        %v2813 = vpop.f32.mrf.mxu0
        %2814 = vdwg.mxu0
        %v2815 = vmul.f32 %v2777, 0.57735026
        %v2816 = vmul.f32 %v2782, 0.57735026
        %v2817 = vmul.f32 %v2787, 0.57735026
        %v2818 = vmul.f32 %v2792, 0.57735026
        %v2819 = vmul.f32 %v2797, 0.57735026
        %v2820 = vmul.f32 %v2802, 0.57735026
        %v2821 = vmul.f32 %v2807, 0.57735026
        %v2822 = vmul.f32 %v2812, 0.57735026
        %2823 = vxpose.xlu0.b32.start [1/16] %v2815, 128
        %2824 = vxpose.xlu0.b32.cont [2/16] 0.0, 128
        %2825 = vxpose.xlu0.b32.cont [3/16] 0.0, 128
        %2826 = vxpose.xlu0.b32.cont [4/16] 0.0, 128
        %2827 = vxpose.xlu0.b32.cont [5/16] 0.0, 128
        %2828 = vxpose.xlu0.b32.cont [6/16] 0.0, 128
        %2829 = vxpose.xlu0.b32.cont [7/16] 0.0, 128
        %2830 = vxpose.xlu0.b32.cont [8/16] 0.0, 128
        %2831 = vxpose.xlu0.b32.cont [9/16] 0.0, 128
        %2832 = vxpose.xlu0.b32.cont [10/16] 0.0, 128
        %2833 = vxpose.xlu0.b32.cont [11/16] 0.0, 128
        %2834 = vxpose.xlu0.b32.cont [12/16] 0.0, 128
        %2835 = vxpose.xlu0.b32.cont [13/16] 0.0, 128
        %2836 = vxpose.xlu0.b32.cont [14/16] 0.0, 128
        %2837 = vxpose.xlu0.b32.cont [15/16] 0.0, 128
        %2838 = vxpose.xlu0.b32.end [16/16] 0.0, 128
        %v2839 = vpop.trf.xlu0
        %v2840 = vpop.trf.xlu0
        %v2841 = vpop.trf.xlu0
        %v2842 = vpop.trf.xlu0
        %v2843 = vpop.trf.xlu0
        %v2844 = vpop.trf.xlu0
        %v2845 = vpop.trf.xlu0
        %v2846 = vpop.trf.xlu0
        %v2847 = vpop.trf.xlu0
        %v2848 = vpop.trf.xlu0
        %v2849 = vpop.trf.xlu0
        %v2850 = vpop.trf.xlu0
        %v2851 = vpop.trf.xlu0
        %v2852 = vpop.trf.xlu0
        %v2853 = vpop.trf.xlu0
        %v2854 = vpop.trf.xlu0
        %2855 = vxpose.xlu0.b32.start [1/16] %v2816, 128
        %2856 = vxpose.xlu0.b32.cont [2/16] 0.0, 128
        %2857 = vxpose.xlu0.b32.cont [3/16] 0.0, 128
        %2858 = vxpose.xlu0.b32.cont [4/16] 0.0, 128
        %2859 = vxpose.xlu0.b32.cont [5/16] 0.0, 128
        %2860 = vxpose.xlu0.b32.cont [6/16] 0.0, 128
        %2861 = vxpose.xlu0.b32.cont [7/16] 0.0, 128
        %2862 = vxpose.xlu0.b32.cont [8/16] 0.0, 128
        %2863 = vxpose.xlu0.b32.cont [9/16] 0.0, 128
        %2864 = vxpose.xlu0.b32.cont [10/16] 0.0, 128
        %2865 = vxpose.xlu0.b32.cont [11/16] 0.0, 128
        %2866 = vxpose.xlu0.b32.cont [12/16] 0.0, 128
        %2867 = vxpose.xlu0.b32.cont [13/16] 0.0, 128
        %2868 = vxpose.xlu0.b32.cont [14/16] 0.0, 128
        %2869 = vxpose.xlu0.b32.cont [15/16] 0.0, 128
        %2870 = vxpose.xlu0.b32.end [16/16] 0.0, 128
        %v2871 = vpop.trf.xlu0
        %v2872 = vpop.trf.xlu0
        %v2873 = vpop.trf.xlu0
        %v2874 = vpop.trf.xlu0
        %v2875 = vpop.trf.xlu0
        %v2876 = vpop.trf.xlu0
        %v2877 = vpop.trf.xlu0
        %v2878 = vpop.trf.xlu0
        %v2879 = vpop.trf.xlu0
        %v2880 = vpop.trf.xlu0
        %v2881 = vpop.trf.xlu0
        %v2882 = vpop.trf.xlu0
        %v2883 = vpop.trf.xlu0
        %v2884 = vpop.trf.xlu0
        %v2885 = vpop.trf.xlu0
        %v2886 = vpop.trf.xlu0
        %2887 = vxpose.xlu0.b32.start [1/16] %v2817, 128
        %2888 = vxpose.xlu0.b32.cont [2/16] 0.0, 128
        %2889 = vxpose.xlu0.b32.cont [3/16] 0.0, 128
        %2890 = vxpose.xlu0.b32.cont [4/16] 0.0, 128
        %2891 = vxpose.xlu0.b32.cont [5/16] 0.0, 128
        %2892 = vxpose.xlu0.b32.cont [6/16] 0.0, 128
        %2893 = vxpose.xlu0.b32.cont [7/16] 0.0, 128
        %2894 = vxpose.xlu0.b32.cont [8/16] 0.0, 128
        %2895 = vxpose.xlu0.b32.cont [9/16] 0.0, 128
        %2896 = vxpose.xlu0.b32.cont [10/16] 0.0, 128
        %2897 = vxpose.xlu0.b32.cont [11/16] 0.0, 128
        %2898 = vxpose.xlu0.b32.cont [12/16] 0.0, 128
        %2899 = vxpose.xlu0.b32.cont [13/16] 0.0, 128
        %2900 = vxpose.xlu0.b32.cont [14/16] 0.0, 128
        %2901 = vxpose.xlu0.b32.cont [15/16] 0.0, 128
        %2902 = vxpose.xlu0.b32.end [16/16] 0.0, 128
        %v2903 = vpop.trf.xlu0
        %v2904 = vpop.trf.xlu0
        %v2905 = vpop.trf.xlu0
        %v2906 = vpop.trf.xlu0
        %v2907 = vpop.trf.xlu0
        %v2908 = vpop.trf.xlu0
        %v2909 = vpop.trf.xlu0
        %v2910 = vpop.trf.xlu0
        %v2911 = vpop.trf.xlu0
        %v2912 = vpop.trf.xlu0
        %v2913 = vpop.trf.xlu0
        %v2914 = vpop.trf.xlu0
        %v2915 = vpop.trf.xlu0
        %v2916 = vpop.trf.xlu0
        %v2917 = vpop.trf.xlu0
        %v2918 = vpop.trf.xlu0
        %2919 = vxpose.xlu0.b32.start [1/16] %v2818, 128
        %2920 = vxpose.xlu0.b32.cont [2/16] 0.0, 128
        %2921 = vxpose.xlu0.b32.cont [3/16] 0.0, 128
        %2922 = vxpose.xlu0.b32.cont [4/16] 0.0, 128
        %2923 = vxpose.xlu0.b32.cont [5/16] 0.0, 128
        %2924 = vxpose.xlu0.b32.cont [6/16] 0.0, 128
        %2925 = vxpose.xlu0.b32.cont [7/16] 0.0, 128
        %2926 = vxpose.xlu0.b32.cont [8/16] 0.0, 128
        %2927 = vxpose.xlu0.b32.cont [9/16] 0.0, 128
        %2928 = vxpose.xlu0.b32.cont [10/16] 0.0, 128
        %2929 = vxpose.xlu0.b32.cont [11/16] 0.0, 128
        %2930 = vxpose.xlu0.b32.cont [12/16] 0.0, 128
        %2931 = vxpose.xlu0.b32.cont [13/16] 0.0, 128
        %2932 = vxpose.xlu0.b32.cont [14/16] 0.0, 128
        %2933 = vxpose.xlu0.b32.cont [15/16] 0.0, 128
        %2934 = vxpose.xlu0.b32.end [16/16] 0.0, 128
        %v2935 = vpop.trf.xlu0
        %v2936 = vpop.trf.xlu0
        %v2937 = vpop.trf.xlu0
        %v2938 = vpop.trf.xlu0
        %v2939 = vpop.trf.xlu0
        %v2940 = vpop.trf.xlu0
        %v2941 = vpop.trf.xlu0
        %v2942 = vpop.trf.xlu0
        %v2943 = vpop.trf.xlu0
        %v2944 = vpop.trf.xlu0
        %v2945 = vpop.trf.xlu0
        %v2946 = vpop.trf.xlu0
        %v2947 = vpop.trf.xlu0
        %v2948 = vpop.trf.xlu0
        %v2949 = vpop.trf.xlu0
        %v2950 = vpop.trf.xlu0
        %2951 = vxpose.xlu0.b32.start [1/16] %v2819, 128
        %2952 = vxpose.xlu0.b32.cont [2/16] 0.0, 128
        %2953 = vxpose.xlu0.b32.cont [3/16] 0.0, 128
        %2954 = vxpose.xlu0.b32.cont [4/16] 0.0, 128
        %2955 = vxpose.xlu0.b32.cont [5/16] 0.0, 128
        %2956 = vxpose.xlu0.b32.cont [6/16] 0.0, 128
        %2957 = vxpose.xlu0.b32.cont [7/16] 0.0, 128
        %2958 = vxpose.xlu0.b32.cont [8/16] 0.0, 128
        %2959 = vxpose.xlu0.b32.cont [9/16] 0.0, 128
        %2960 = vxpose.xlu0.b32.cont [10/16] 0.0, 128
        %2961 = vxpose.xlu0.b32.cont [11/16] 0.0, 128
        %2962 = vxpose.xlu0.b32.cont [12/16] 0.0, 128
        %2963 = vxpose.xlu0.b32.cont [13/16] 0.0, 128
        %2964 = vxpose.xlu0.b32.cont [14/16] 0.0, 128
        %2965 = vxpose.xlu0.b32.cont [15/16] 0.0, 128
        %2966 = vxpose.xlu0.b32.end [16/16] 0.0, 128
        %v2967 = vpop.trf.xlu0
        %v2968 = vpop.trf.xlu0
        %v2969 = vpop.trf.xlu0
        %v2970 = vpop.trf.xlu0
        %v2971 = vpop.trf.xlu0
        %v2972 = vpop.trf.xlu0
        %v2973 = vpop.trf.xlu0
        %v2974 = vpop.trf.xlu0
        %v2975 = vpop.trf.xlu0
        %v2976 = vpop.trf.xlu0
        %v2977 = vpop.trf.xlu0
        %v2978 = vpop.trf.xlu0
        %v2979 = vpop.trf.xlu0
        %v2980 = vpop.trf.xlu0
        %v2981 = vpop.trf.xlu0
        %v2982 = vpop.trf.xlu0
        %2983 = vxpose.xlu0.b32.start [1/16] %v2820, 128
        %2984 = vxpose.xlu0.b32.cont [2/16] 0.0, 128
        %2985 = vxpose.xlu0.b32.cont [3/16] 0.0, 128
        %2986 = vxpose.xlu0.b32.cont [4/16] 0.0, 128
        %2987 = vxpose.xlu0.b32.cont [5/16] 0.0, 128
        %2988 = vxpose.xlu0.b32.cont [6/16] 0.0, 128
        %2989 = vxpose.xlu0.b32.cont [7/16] 0.0, 128
        %2990 = vxpose.xlu0.b32.cont [8/16] 0.0, 128
        %2991 = vxpose.xlu0.b32.cont [9/16] 0.0, 128
        %2992 = vxpose.xlu0.b32.cont [10/16] 0.0, 128
        %2993 = vxpose.xlu0.b32.cont [11/16] 0.0, 128
        %2994 = vxpose.xlu0.b32.cont [12/16] 0.0, 128
        %2995 = vxpose.xlu0.b32.cont [13/16] 0.0, 128
        %2996 = vxpose.xlu0.b32.cont [14/16] 0.0, 128
        %2997 = vxpose.xlu0.b32.cont [15/16] 0.0, 128
        %2998 = vxpose.xlu0.b32.end [16/16] 0.0, 128
        %v2999 = vpop.trf.xlu0
        %v3000 = vpop.trf.xlu0
        %v3001 = vpop.trf.xlu0
        %v3002 = vpop.trf.xlu0
        %v3003 = vpop.trf.xlu0
        %v3004 = vpop.trf.xlu0
        %v3005 = vpop.trf.xlu0
        %v3006 = vpop.trf.xlu0
        %v3007 = vpop.trf.xlu0
        %v3008 = vpop.trf.xlu0
        %v3009 = vpop.trf.xlu0
        %v3010 = vpop.trf.xlu0
        %v3011 = vpop.trf.xlu0
        %v3012 = vpop.trf.xlu0
        %v3013 = vpop.trf.xlu0
        %v3014 = vpop.trf.xlu0
        %3015 = vxpose.xlu0.b32.start [1/16] %v2821, 128
        %3016 = vxpose.xlu0.b32.cont [2/16] 0.0, 128
        %3017 = vxpose.xlu0.b32.cont [3/16] 0.0, 128
        %3018 = vxpose.xlu0.b32.cont [4/16] 0.0, 128
        %3019 = vxpose.xlu0.b32.cont [5/16] 0.0, 128
        %3020 = vxpose.xlu0.b32.cont [6/16] 0.0, 128
        %3021 = vxpose.xlu0.b32.cont [7/16] 0.0, 128
        %3022 = vxpose.xlu0.b32.cont [8/16] 0.0, 128
        %3023 = vxpose.xlu0.b32.cont [9/16] 0.0, 128
        %3024 = vxpose.xlu0.b32.cont [10/16] 0.0, 128
        %3025 = vxpose.xlu0.b32.cont [11/16] 0.0, 128
        %3026 = vxpose.xlu0.b32.cont [12/16] 0.0, 128
        %3027 = vxpose.xlu0.b32.cont [13/16] 0.0, 128
        %3028 = vxpose.xlu0.b32.cont [14/16] 0.0, 128
        %3029 = vxpose.xlu0.b32.cont [15/16] 0.0, 128
        %3030 = vxpose.xlu0.b32.end [16/16] 0.0, 128
        %v3031 = vpop.trf.xlu0
        %v3032 = vpop.trf.xlu0
        %v3033 = vpop.trf.xlu0
        %v3034 = vpop.trf.xlu0
        %v3035 = vpop.trf.xlu0
        %v3036 = vpop.trf.xlu0
        %v3037 = vpop.trf.xlu0
        %v3038 = vpop.trf.xlu0
        %v3039 = vpop.trf.xlu0
        %v3040 = vpop.trf.xlu0
        %v3041 = vpop.trf.xlu0
        %v3042 = vpop.trf.xlu0
        %v3043 = vpop.trf.xlu0
        %v3044 = vpop.trf.xlu0
        %v3045 = vpop.trf.xlu0
        %v3046 = vpop.trf.xlu0
        %3047 = vxpose.xlu0.b32.start [1/16] %v2822, 128
        %3048 = vxpose.xlu0.b32.cont [2/16] 0.0, 128
        %3049 = vxpose.xlu0.b32.cont [3/16] 0.0, 128
        %3050 = vxpose.xlu0.b32.cont [4/16] 0.0, 128
        %3051 = vxpose.xlu0.b32.cont [5/16] 0.0, 128
        %3052 = vxpose.xlu0.b32.cont [6/16] 0.0, 128
        %3053 = vxpose.xlu0.b32.cont [7/16] 0.0, 128
        %3054 = vxpose.xlu0.b32.cont [8/16] 0.0, 128
        %3055 = vxpose.xlu0.b32.cont [9/16] 0.0, 128
        %3056 = vxpose.xlu0.b32.cont [10/16] 0.0, 128
        %3057 = vxpose.xlu0.b32.cont [11/16] 0.0, 128
        %3058 = vxpose.xlu0.b32.cont [12/16] 0.0, 128
        %3059 = vxpose.xlu0.b32.cont [13/16] 0.0, 128
        %3060 = vxpose.xlu0.b32.cont [14/16] 0.0, 128
        %3061 = vxpose.xlu0.b32.cont [15/16] 0.0, 128
        %3062 = vxpose.xlu0.b32.end [16/16] 0.0, 128
        %v3063 = vpop.trf.xlu0
        %v3064 = vpop.trf.xlu0
        %v3065 = vpop.trf.xlu0
        %v3066 = vpop.trf.xlu0
        %v3067 = vpop.trf.xlu0
        %v3068 = vpop.trf.xlu0
        %v3069 = vpop.trf.xlu0
        %v3070 = vpop.trf.xlu0
        %v3071 = vpop.trf.xlu0
        %v3072 = vpop.trf.xlu0
        %v3073 = vpop.trf.xlu0
        %v3074 = vpop.trf.xlu0
        %v3075 = vpop.trf.xlu0
        %v3076 = vpop.trf.xlu0
        %v3077 = vpop.trf.xlu0
        %v3078 = vpop.trf.xlu0
        %v3079 = vcombine.low %v2839, %v2903
        %v3081 = vunpack.c.l.s4 1983009808
        %v3082 = vunpack.c.0.s8 %v3081
        %v3083 = vlaneseq
        %v3084 = vshrl.u32 %v3083, 7
        %v3085 = vsub.s32 %v3082, %v3084
        %v3086 = vrot.slane %v3079, %v3085
        %v3087 = vcombine.low %v2871, %v2935
        %v3089 = vunpack.c.l.s4 1983009808
        %v3090 = vunpack.c.0.s8 %v3089
        %v3091 = vlaneseq
        %v3092 = vshrl.u32 %v3091, 7
        %v3093 = vsub.s32 %v3090, %v3092
        %v3094 = vrot.slane %v3087, %v3093
        %v3095 = vcombine.low %v2967, %v3031
        %v3097 = vunpack.c.l.s4 1983009808
        %v3098 = vunpack.c.0.s8 %v3097
        %v3099 = vlaneseq
        %v3100 = vshrl.u32 %v3099, 7
        %v3101 = vsub.s32 %v3098, %v3100
        %v3102 = vrot.slane %v3095, %v3101
        %v3103 = vcombine.low %v2999, %v3063
        %v3105 = vunpack.c.l.s4 1983009808
        %v3106 = vunpack.c.0.s8 %v3105
        %v3107 = vlaneseq
        %v3108 = vshrl.u32 %v3107, 7
        %v3109 = vsub.s32 %v3106, %v3108
        %v3110 = vrot.slane %v3103, %v3109
        %v3111 = vcombine.low %v3086, %v3094
        %v3112 = vcombine.high %v3086, %v3094
        %v3114 = vunpack.c.l.s4 1934713408
        %v3115 = vunpack.c.0.s8 %v3114
        %v3116 = vlaneseq
        %v3117 = vshrl.u32 %v3116, 7
        %v3118 = vsub.s32 %v3115, %v3117
        %v3119 = vrot.slane %v3111, %v3118
        %v3121 = vunpack.c.l.s4 1934713408
        %v3122 = vunpack.c.0.s8 %v3121
        %v3123 = vlaneseq
        %v3124 = vshrl.u32 %v3123, 7
        %v3125 = vsub.s32 %v3122, %v3124
        %v3126 = vrot.slane %v3112, %v3125
        %v3127 = vcombine.low %v3102, %v3110
        %v3128 = vcombine.high %v3102, %v3110
        %v3130 = vunpack.c.l.s4 1934713408
        %v3131 = vunpack.c.0.s8 %v3130
        %v3132 = vlaneseq
        %v3133 = vshrl.u32 %v3132, 7
        %v3134 = vsub.s32 %v3131, %v3133
        %v3135 = vrot.slane %v3127, %v3134
        %v3137 = vunpack.c.l.s4 1934713408
        %v3138 = vunpack.c.0.s8 %v3137
        %v3139 = vlaneseq
        %v3140 = vshrl.u32 %v3139, 7
        %v3141 = vsub.s32 %v3138, %v3140
        %v3142 = vrot.slane %v3128, %v3141
        %v3143 = vcombine.low %v3119, %v3135
        %v3144 = vcombine.high %v3119, %v3135
        %v3145 = vcombine.low %v3126, %v3142
        %v3146 = vcombine.high %v3126, %v3142
        %v3147 = vld [vmem:[#allocation26] sm:$0x1]
        %v3148 = vmax.f32 %v3147, 0.0
        %v3149 = vand.u32 2147483647, %v3147
        %v3150 = vsub.f32 0.0, %v3149
        %v3151 = vmul.f32 %v3150, 1.442695
        %v3152 = vpow.pop %v3151
        %v3153 = vadd.f32 %v3152, 1.0
        %v3154 = vlog2.pop %v3153
        %v3155 = vmul.f32 %v3154, 0.6931472
        %v3156 = vadd.f32 %v3148, %v3155
        %v3157 = vmul.f32 %v3156, 0.13608277
        %v3158 = vld [vmem:[#allocation2] sm:$0xff]
        %v3159 = vld [vmem:[#allocation3] sm:$0xff]
        %v3160 = vld [vmem:[#allocation4] sm:$0xff]
        %v3161 = vld [vmem:[#allocation4 + $0x8] sm:$0xff]
        %v3162 = vld [vmem:[#allocation5] sm:$0xff]
        %v3163 = vld [vmem:[#allocation5 + $0x8] sm:$0xff]
        %v3164 = vld [vmem:[#allocation6] sm:$0xff]
        %v3165 = vld [vmem:[#allocation6 + $0x8] sm:$0xff]
        %v3166 = vld [vmem:[#allocation7] sm:$0xff]
        %v3167 = vld [vmem:[#allocation8] sm:$0xff]
        %v3168 = vld [vmem:[#allocation9] sm:$0xff]
        %v3169 = vld [vmem:[%s1447] sm:$0xff]
        %v3170 = vld [vmem:[%s1447 + $0x8] sm:$0xff]
        %v3171 = vld [vmem:[%s1447 + $0x10] sm:$0xff]
        %v3172 = vld [vmem:[%s1447 + $0x18] sm:$0xff]
        %vm3173 = vcmask 64512
        %v3175 = vsel %vm3173, %v2382, 0
        %v3178 = vsel %vm3173, %v3158, 0
        %3180 = vmatprep.subr.mxu0 0.0
        %3181 = vmatpush1.xpose.msra.mxu0 0.0
        %3182 = vmatprep.subr.mxu0 0.0
        %3183 = vmatpush1.xpose.msra.mxu0 0.0
        %3184 = vmatprep.subr.mxu0 0.0
        %3185 = vmatpush1.xpose.msra.mxu0 0.0
        %3186 = vmatprep.subr.mxu0 0.0
        %3187 = vmatpush1.xpose.msra.mxu0 0.0
        %3188 = vmatprep.subr.mxu0 0.0
        %3189 = vmatpush1.xpose.msra.mxu0 0.0
        %3190 = vmatprep.subr.mxu0 0.0
        %3191 = vmatpush1.xpose.msra.mxu0 0.0
        %3192 = vmatprep.subr.mxu0 0.0
        %3193 = vmatpush1.xpose.msra.mxu0 0.0
        %3194 = vmatprep.subr.mxu0 0.0
        %3195 = vmatpush1.xpose.msra.mxu0 0.0
        %3196 = vmatprep.subr.mxu0 0.0
        %3197 = vmatpush1.xpose.msra.mxu0 0.0
        %3198 = vmatprep.subr.mxu0 0.0
        %3199 = vmatpush1.xpose.msra.mxu0 0.0
        %3200 = vmatprep.subr.mxu0 0.0
        %3201 = vmatpush1.xpose.msra.mxu0 0.0
        %3202 = vmatprep.subr.mxu0 0.0
        %3203 = vmatpush1.xpose.msra.mxu0 0.0
        %3204 = vmatprep.subr.mxu0 0.0
        %3205 = vmatpush1.xpose.msra.mxu0 0.0
        %3206 = vmatprep.subr.mxu0 0.0
        %3207 = vmatpush1.xpose.msra.mxu0 0.0
        %3208 = vmatprep.subr.mxu0 0.0
        %3209 = vmatpush1.xpose.msra.mxu0 0.0
        %3210 = vmatprep.subr.mxu0 0.0
        %3211 = vmatpush1.xpose.msra.mxu0 %v3178
        %3212 = vmatprep.subr.mxu0 0.0
        %3213 = vmatpush2.xpose.msra.mxu0 0.0
        %3214 = vmatprep.subr.mxu0 0.0
        %3215 = vmatpush2.xpose.msra.mxu0 0.0
        %3216 = vmatprep.subr.mxu0 0.0
        %3217 = vmatpush2.xpose.msra.mxu0 0.0
        %3218 = vmatprep.subr.mxu0 0.0
        %3219 = vmatpush2.xpose.msra.mxu0 0.0
        %3220 = vmatprep.subr.mxu0 0.0
        %3221 = vmatpush2.xpose.msra.mxu0 0.0
        %3222 = vmatprep.subr.mxu0 0.0
        %3223 = vmatpush2.xpose.msra.mxu0 0.0
        %3224 = vmatprep.subr.mxu0 0.0
        %3225 = vmatpush2.xpose.msra.mxu0 0.0
        %3226 = vmatprep.subr.mxu0 0.0
        %3227 = vmatpush2.xpose.msra.mxu0 0.0
        %3228 = vmatprep.subr.mxu0 0.0
        %3229 = vmatpush2.xpose.msra.mxu0 0.0
        %3230 = vmatprep.subr.mxu0 0.0
        %3231 = vmatpush2.xpose.msra.mxu0 0.0
        %3232 = vmatprep.subr.mxu0 0.0
        %3233 = vmatpush2.xpose.msra.mxu0 0.0
        %3234 = vmatprep.subr.mxu0 0.0
        %3235 = vmatpush2.xpose.msra.mxu0 0.0
        %3236 = vmatprep.subr.mxu0 0.0
        %3237 = vmatpush2.xpose.msra.mxu0 0.0
        %3238 = vmatprep.subr.mxu0 0.0
        %3239 = vmatpush2.xpose.msra.mxu0 0.0
        %3240 = vmatprep.subr.mxu0 0.0
        %3241 = vmatpush2.xpose.msra.mxu0 0.0
        %3242 = vmatprep.subr.mxu0 0.0
        %3243 = vmatpush2.xpose.msra.mxu0 0.0
        %3244 = vmatprep.mubr.f32.mxu0 0.0
        %3245 = vmatmul.mubr.f32.gmra.mxu0 %v3175
        %v3246 = vpop.f32.mrf.mxu0
        %v3247 = vadd.f32 0.0, %v3246
        %v3248 = vpop.f32.mrf.mxu0
        %3249 = vdwg.mxu0
        %3251 = vset.pattern.permute.xlu0 0
        %3252 = vperm.xlu0 %3251, %v2630
        %v3253 = vpop.permute.xlu0 %3252
        %v3255 = vlaneseq
        %v3256 = vshrl.u32 %v3255, 7
        %v3257 = vsub.s32 0, %v3256
        %v3258 = vrot.slane %v3160, %v3257
        %v3259 = vsub.f32 %v3253, %v3258
        %3261 = vset.pattern.permute.xlu0 0
        %3262 = vperm.xlu0 %3261, %v2652
        %v3263 = vpop.permute.xlu0 %3262
        %v3265 = vlaneseq
        %v3266 = vshrl.u32 %v3265, 7
        %v3267 = vsub.s32 0, %v3266
        %v3268 = vrot.slane %v3162, %v3267
        %v3269 = vsub.f32 %v3263, %v3268
        %3271 = vset.pattern.permute.xlu0 0
        %3272 = vperm.xlu0 %3271, %v2674
        %v3273 = vpop.permute.xlu0 %3272
        %v3275 = vlaneseq
        %v3276 = vshrl.u32 %v3275, 7
        %v3277 = vsub.s32 0, %v3276
        %v3278 = vrot.slane %v3164, %v3277
        %v3279 = vsub.f32 %v3273, %v3278
        %v3280 = vmul.f32 %v3259, %v3259
        %v3281 = vmul.f32 %v3269, %v3269
        %v3282 = vadd.f32 %v3280, %v3281
        %v3283 = vmul.f32 %v3279, %v3279
        %v3284 = vadd.f32 %v3282, %v3283
        %v3285 = vrsqrt.pop %v3284
        %v3286 = vmul.f32 %v3284, %v3285
        %vm3287 = vcmp.eq.f32.partialorder %v3284, inf
        %v3288 = vsel %vm3287, %v3284, %v3286
        %vm3289 = vcmp.eq.f32.partialorder %v3284, 0.0
        %v3290 = vand.u32 %v3284, 2147483648
        %v3291 = vsel %vm3289, %v3290, %v3288
        %v3292 = vadd.f32 %v3291, 0.0
        %3293 = vset.pattern.permute.xlu0 1
        %3294 = vperm.xlu0 %3293, %v2630
        %v3295 = vpop.permute.xlu0 %3294
        %v3297 = vlaneseq
        %v3298 = vshrl.u32 %v3297, 7
        %v3299 = vsub.s32 1, %v3298
        %v3300 = vrot.slane %v3160, %v3299
        %v3301 = vsub.f32 %v3295, %v3300
        %3302 = vset.pattern.permute.xlu0 1
        %3303 = vperm.xlu0 %3302, %v2652
        %v3304 = vpop.permute.xlu0 %3303
        %v3306 = vlaneseq
        %v3307 = vshrl.u32 %v3306, 7
        %v3308 = vsub.s32 1, %v3307
        %v3309 = vrot.slane %v3162, %v3308
        %v3310 = vsub.f32 %v3304, %v3309
        %3311 = vset.pattern.permute.xlu0 1
        %3312 = vperm.xlu0 %3311, %v2674
        %v3313 = vpop.permute.xlu0 %3312
        %v3315 = vlaneseq
        %v3316 = vshrl.u32 %v3315, 7
        %v3317 = vsub.s32 1, %v3316
        %v3318 = vrot.slane %v3164, %v3317
        %v3319 = vsub.f32 %v3313, %v3318
        %v3320 = vmul.f32 %v3301, %v3301
        %v3321 = vmul.f32 %v3310, %v3310
        %v3322 = vadd.f32 %v3320, %v3321
        %v3323 = vmul.f32 %v3319, %v3319
        %v3324 = vadd.f32 %v3322, %v3323
        %v3325 = vrsqrt.pop %v3324
        %v3326 = vmul.f32 %v3324, %v3325
        %vm3327 = vcmp.eq.f32.partialorder %v3324, inf
        %v3328 = vsel %vm3327, %v3324, %v3326
        %vm3329 = vcmp.eq.f32.partialorder %v3324, 0.0
        %v3330 = vand.u32 %v3324, 2147483648
        %v3331 = vsel %vm3329, %v3330, %v3328
        %v3332 = vadd.f32 %v3292, %v3331
        %3333 = vset.pattern.permute.xlu0 2
        %3334 = vperm.xlu0 %3333, %v2630
        %v3335 = vpop.permute.xlu0 %3334
        %v3337 = vlaneseq
        %v3338 = vshrl.u32 %v3337, 7
        %v3339 = vsub.s32 2, %v3338
        %v3340 = vrot.slane %v3160, %v3339
        %v3341 = vsub.f32 %v3335, %v3340
        %3342 = vset.pattern.permute.xlu0 2
        %3343 = vperm.xlu0 %3342, %v2652
        %v3344 = vpop.permute.xlu0 %3343
        %v3346 = vlaneseq
        %v3347 = vshrl.u32 %v3346, 7
        %v3348 = vsub.s32 2, %v3347
        %v3349 = vrot.slane %v3162, %v3348
        %v3350 = vsub.f32 %v3344, %v3349
        %3351 = vset.pattern.permute.xlu0 2
        %3352 = vperm.xlu0 %3351, %v2674
        %v3353 = vpop.permute.xlu0 %3352
        %v3355 = vlaneseq
        %v3356 = vshrl.u32 %v3355, 7
        %v3357 = vsub.s32 2, %v3356
        %v3358 = vrot.slane %v3164, %v3357
        %v3359 = vsub.f32 %v3353, %v3358
        %v3360 = vmul.f32 %v3341, %v3341
        %v3361 = vmul.f32 %v3350, %v3350
        %v3362 = vadd.f32 %v3360, %v3361
        %v3363 = vmul.f32 %v3359, %v3359
        %v3364 = vadd.f32 %v3362, %v3363
        %v3365 = vrsqrt.pop %v3364
        %v3366 = vmul.f32 %v3364, %v3365
        %vm3367 = vcmp.eq.f32.partialorder %v3364, inf
        %v3368 = vsel %vm3367, %v3364, %v3366
        %vm3369 = vcmp.eq.f32.partialorder %v3364, 0.0
        %v3370 = vand.u32 %v3364, 2147483648
        %v3371 = vsel %vm3369, %v3370, %v3368
        %v3372 = vadd.f32 %v3332, %v3371
        %3373 = vset.pattern.permute.xlu0 3
        %3374 = vperm.xlu0 %3373, %v2630
        %v3375 = vpop.permute.xlu0 %3374
        %v3377 = vlaneseq
        %v3378 = vshrl.u32 %v3377, 7
        %v3379 = vsub.s32 3, %v3378
        %v3380 = vrot.slane %v3160, %v3379
        %v3381 = vsub.f32 %v3375, %v3380
        %3382 = vset.pattern.permute.xlu0 3
        %3383 = vperm.xlu0 %3382, %v2652
        %v3384 = vpop.permute.xlu0 %3383
        %v3386 = vlaneseq
        %v3387 = vshrl.u32 %v3386, 7
        %v3388 = vsub.s32 3, %v3387
        %v3389 = vrot.slane %v3162, %v3388
        %v3390 = vsub.f32 %v3384, %v3389
        %3391 = vset.pattern.permute.xlu0 3
        %3392 = vperm.xlu0 %3391, %v2674
        %v3393 = vpop.permute.xlu0 %3392
        %v3395 = vlaneseq
        %v3396 = vshrl.u32 %v3395, 7
        %v3397 = vsub.s32 3, %v3396
        %v3398 = vrot.slane %v3164, %v3397
        %v3399 = vsub.f32 %v3393, %v3398
        %v3400 = vmul.f32 %v3381, %v3381
        %v3401 = vmul.f32 %v3390, %v3390
        %v3402 = vadd.f32 %v3400, %v3401
        %v3403 = vmul.f32 %v3399, %v3399
        %v3404 = vadd.f32 %v3402, %v3403
        %v3405 = vrsqrt.pop %v3404
        %v3406 = vmul.f32 %v3404, %v3405
        %vm3407 = vcmp.eq.f32.partialorder %v3404, inf
        %v3408 = vsel %vm3407, %v3404, %v3406
        %vm3409 = vcmp.eq.f32.partialorder %v3404, 0.0
        %v3410 = vand.u32 %v3404, 2147483648
        %v3411 = vsel %vm3409, %v3410, %v3408
        %v3412 = vadd.f32 %v3372, %v3411
        %v3413 = vmul.f32 %v3157, 0.5
        %v3415 = vlaneseq
        %v3416 = vshrl.u32 %v3415, 7
        %v3417 = vsub.s32 0, %v3416
        %v3418 = vrot.slane %v3413, %v3417
        %3419 = vset.pattern.permute.xlu0 0
        %3420 = vperm.xlu0 %3419, %v3418
        %v3421 = vpop.permute.xlu0 %3420
        %v3423 = vmul.f32 %v3421, %v3412
        %v3424 = vsub.f32 %v3247, %v3423
        %v3425 = vadd.f32 %v3424, %v3143
        %v3426 = vadd.f32 %v3425, %v3169
        %v3427 = vsel %vm3173, %v3426, -inf
        %3428 = vmax.xlane.f32.xlu0 %v3427
        %v3429 = vpop.xlane.xlu0 %3428
        %v3430 = vsub.f32 %v3426, %v3429
        %v3431 = vmul.f32 %v3430, 1.442695
        %v3432 = vpow.pop %v3431
        %v3433 = vsel %vm3173, %v3432, 0.0
        %3434 = vadd.xlane.f32.xlu0 %v3433
        %v3435 = vpop.xlane.xlu0 %3434
        %v3436 = vrcp.pop %v3435
        %v3437 = vmul.f32 %v3432, %v3436
        %3438 = vst.msk [vmem:[#allocation10] sm:$0xff] %vm3173, %v3437
        %v3440 = vsel %vm3173, %v3437, 0
        %3442 = vmatprep.subr.mxu0 0.0
        %3443 = vmatpush1.msra.mxu0 0.0
        %3444 = vmatprep.subr.mxu0 0.0
        %3445 = vmatpush1.msra.mxu0 0.0
        %3446 = vmatprep.subr.mxu0 0.0
        %3447 = vmatpush1.msra.mxu0 0.0
        %3448 = vmatprep.subr.mxu0 0.0
        %3449 = vmatpush1.msra.mxu0 0.0
        %3450 = vmatprep.subr.mxu0 0.0
        %3451 = vmatpush1.msra.mxu0 0.0
        %3452 = vmatprep.subr.mxu0 0.0
        %3453 = vmatpush1.msra.mxu0 0.0
        %3454 = vmatprep.subr.mxu0 0.0
        %3455 = vmatpush1.msra.mxu0 0.0
        %3456 = vmatprep.subr.mxu0 0.0
        %3457 = vmatpush1.msra.mxu0 0.0
        %3458 = vmatprep.subr.mxu0 0.0
        %3459 = vmatpush1.msra.mxu0 0.0
        %3460 = vmatprep.subr.mxu0 0.0
        %3461 = vmatpush1.msra.mxu0 0.0
        %3462 = vmatprep.subr.mxu0 0.0
        %3463 = vmatpush1.msra.mxu0 0.0
        %3464 = vmatprep.subr.mxu0 0.0
        %3465 = vmatpush1.msra.mxu0 0.0
        %3466 = vmatprep.subr.mxu0 0.0
        %3467 = vmatpush1.msra.mxu0 0.0
        %3468 = vmatprep.subr.mxu0 0.0
        %3469 = vmatpush1.msra.mxu0 0.0
        %3470 = vmatprep.subr.mxu0 0.0
        %3471 = vmatpush1.msra.mxu0 0.0
        %3472 = vmatprep.subr.mxu0 0.0
        %3473 = vmatpush1.msra.mxu0 %v3159
        %3474 = vmatprep.subr.mxu0 0.0
        %3475 = vmatpush2.msra.mxu0 0.0
        %3476 = vmatprep.subr.mxu0 0.0
        %3477 = vmatpush2.msra.mxu0 0.0
        %3478 = vmatprep.subr.mxu0 0.0
        %3479 = vmatpush2.msra.mxu0 0.0
        %3480 = vmatprep.subr.mxu0 0.0
        %3481 = vmatpush2.msra.mxu0 0.0
        %3482 = vmatprep.subr.mxu0 0.0
        %3483 = vmatpush2.msra.mxu0 0.0
        %3484 = vmatprep.subr.mxu0 0.0
        %3485 = vmatpush2.msra.mxu0 0.0
        %3486 = vmatprep.subr.mxu0 0.0
        %3487 = vmatpush2.msra.mxu0 0.0
        %3488 = vmatprep.subr.mxu0 0.0
        %3489 = vmatpush2.msra.mxu0 0.0
        %3490 = vmatprep.subr.mxu0 0.0
        %3491 = vmatpush2.msra.mxu0 0.0
        %3492 = vmatprep.subr.mxu0 0.0
        %3493 = vmatpush2.msra.mxu0 0.0
        %3494 = vmatprep.subr.mxu0 0.0
        %3495 = vmatpush2.msra.mxu0 0.0
        %3496 = vmatprep.subr.mxu0 0.0
        %3497 = vmatpush2.msra.mxu0 0.0
        %3498 = vmatprep.subr.mxu0 0.0
        %3499 = vmatpush2.msra.mxu0 0.0
        %3500 = vmatprep.subr.mxu0 0.0
        %3501 = vmatpush2.msra.mxu0 0.0
        %3502 = vmatprep.subr.mxu0 0.0
        %3503 = vmatpush2.msra.mxu0 0.0
        %3504 = vmatprep.subr.mxu0 0.0
        %3505 = vmatpush2.msra.mxu0 0.0
        %3506 = vmatprep.mubr.f32.mxu0 0.0
        %3507 = vmatmul.mubr.f32.gmra.mxu0 %v3440
        %v3508 = vpop.f32.mrf.mxu0
        %v3509 = vadd.f32 0.0, %v3508
        %v3510 = vpop.f32.mrf.mxu0
        %3511 = vdwg.mxu0
        %3512 = vst.msk [vmem:[#allocation11] sm:$0xff] %vm3173, %v3509
        %3513 = vmatprep.subr.mxu0 0.0
        %3514 = vmatpush1.msra.mxu0 0.0
        %3515 = vmatprep.subr.mxu0 0.0
        %3516 = vmatpush1.msra.mxu0 0.0
        %3517 = vmatprep.subr.mxu0 0.0
        %3518 = vmatpush1.msra.mxu0 0.0
        %3519 = vmatprep.subr.mxu0 0.0
        %3520 = vmatpush1.msra.mxu0 0.0
        %3521 = vmatprep.subr.mxu0 0.0
        %3522 = vmatpush1.msra.mxu0 0.0
        %3523 = vmatprep.subr.mxu0 0.0
        %3524 = vmatpush1.msra.mxu0 0.0
        %3525 = vmatprep.subr.mxu0 0.0
        %3526 = vmatpush1.msra.mxu0 0.0
        %3527 = vmatprep.subr.mxu0 0.0
        %3528 = vmatpush1.msra.mxu0 0.0
        %3529 = vmatprep.subr.mxu0 0.0
        %3530 = vmatpush1.msra.mxu0 0.0
        %3531 = vmatprep.subr.mxu0 0.0
        %3532 = vmatpush1.msra.mxu0 0.0
        %3533 = vmatprep.subr.mxu0 0.0
        %3534 = vmatpush1.msra.mxu0 0.0
        %3535 = vmatprep.subr.mxu0 0.0
        %3536 = vmatpush1.msra.mxu0 0.0
        %3537 = vmatprep.subr.mxu0 0.0
        %3538 = vmatpush1.msra.mxu0 0.0
        %3539 = vmatprep.subr.mxu0 0.0
        %3540 = vmatpush1.msra.mxu0 0.0
        %3541 = vmatprep.subr.mxu0 0.0
        %3542 = vmatpush1.msra.mxu0 0.0
        %3543 = vmatprep.subr.mxu0 0.0
        %3544 = vmatpush1.msra.mxu0 %v3166
        %3545 = vmatprep.subr.mxu0 0.0
        %3546 = vmatpush2.msra.mxu0 0.0
        %3547 = vmatprep.subr.mxu0 0.0
        %3548 = vmatpush2.msra.mxu0 0.0
        %3549 = vmatprep.subr.mxu0 0.0
        %3550 = vmatpush2.msra.mxu0 0.0
        %3551 = vmatprep.subr.mxu0 0.0
        %3552 = vmatpush2.msra.mxu0 0.0
        %3553 = vmatprep.subr.mxu0 0.0
        %3554 = vmatpush2.msra.mxu0 0.0
        %3555 = vmatprep.subr.mxu0 0.0
        %3556 = vmatpush2.msra.mxu0 0.0
        %3557 = vmatprep.subr.mxu0 0.0
        %3558 = vmatpush2.msra.mxu0 0.0
        %3559 = vmatprep.subr.mxu0 0.0
        %3560 = vmatpush2.msra.mxu0 0.0
        %3561 = vmatprep.subr.mxu0 0.0
        %3562 = vmatpush2.msra.mxu0 0.0
        %3563 = vmatprep.subr.mxu0 0.0
        %3564 = vmatpush2.msra.mxu0 0.0
        %3565 = vmatprep.subr.mxu0 0.0
        %3566 = vmatpush2.msra.mxu0 0.0
        %3567 = vmatprep.subr.mxu0 0.0
        %3568 = vmatpush2.msra.mxu0 0.0
        %3569 = vmatprep.subr.mxu0 0.0
        %3570 = vmatpush2.msra.mxu0 0.0
        %3571 = vmatprep.subr.mxu0 0.0
        %3572 = vmatpush2.msra.mxu0 0.0
        %3573 = vmatprep.subr.mxu0 0.0
        %3574 = vmatpush2.msra.mxu0 0.0
        %3575 = vmatprep.subr.mxu0 0.0
        %3576 = vmatpush2.msra.mxu0 0.0
        %3577 = vmatprep.mubr.f32.mxu0 0.0
        %3578 = vmatmul.mubr.f32.gmra.mxu0 %v3440
        %v3579 = vpop.f32.mrf.mxu0
        %v3580 = vadd.f32 0.0, %v3579
        %v3581 = vpop.f32.mrf.mxu0
        %3582 = vdwg.mxu0
        %3583 = vst.msk [vmem:[#allocation12] sm:$0xff] %vm3173, %v3580
        %3584 = vmatprep.subr.mxu0 0.0
        %3585 = vmatpush1.msra.mxu0 0.0
        %3586 = vmatprep.subr.mxu0 0.0
        %3587 = vmatpush1.msra.mxu0 0.0
        %3588 = vmatprep.subr.mxu0 0.0
        %3589 = vmatpush1.msra.mxu0 0.0
        %3590 = vmatprep.subr.mxu0 0.0
        %3591 = vmatpush1.msra.mxu0 0.0
        %3592 = vmatprep.subr.mxu0 0.0
        %3593 = vmatpush1.msra.mxu0 0.0
        %3594 = vmatprep.subr.mxu0 0.0
        %3595 = vmatpush1.msra.mxu0 0.0
        %3596 = vmatprep.subr.mxu0 0.0
        %3597 = vmatpush1.msra.mxu0 0.0
        %3598 = vmatprep.subr.mxu0 0.0
        %3599 = vmatpush1.msra.mxu0 0.0
        %3600 = vmatprep.subr.mxu0 0.0
        %3601 = vmatpush1.msra.mxu0 0.0
        %3602 = vmatprep.subr.mxu0 0.0
        %3603 = vmatpush1.msra.mxu0 0.0
        %3604 = vmatprep.subr.mxu0 0.0
        %3605 = vmatpush1.msra.mxu0 0.0
        %3606 = vmatprep.subr.mxu0 0.0
        %3607 = vmatpush1.msra.mxu0 0.0
        %3608 = vmatprep.subr.mxu0 0.0
        %3609 = vmatpush1.msra.mxu0 0.0
        %3610 = vmatprep.subr.mxu0 0.0
        %3611 = vmatpush1.msra.mxu0 0.0
        %3612 = vmatprep.subr.mxu0 0.0
        %3613 = vmatpush1.msra.mxu0 0.0
        %3614 = vmatprep.subr.mxu0 0.0
        %3615 = vmatpush1.msra.mxu0 %v3167
        %3616 = vmatprep.subr.mxu0 0.0
        %3617 = vmatpush2.msra.mxu0 0.0
        %3618 = vmatprep.subr.mxu0 0.0
        %3619 = vmatpush2.msra.mxu0 0.0
        %3620 = vmatprep.subr.mxu0 0.0
        %3621 = vmatpush2.msra.mxu0 0.0
        %3622 = vmatprep.subr.mxu0 0.0
        %3623 = vmatpush2.msra.mxu0 0.0
        %3624 = vmatprep.subr.mxu0 0.0
        %3625 = vmatpush2.msra.mxu0 0.0
        %3626 = vmatprep.subr.mxu0 0.0
        %3627 = vmatpush2.msra.mxu0 0.0
        %3628 = vmatprep.subr.mxu0 0.0
        %3629 = vmatpush2.msra.mxu0 0.0
        %3630 = vmatprep.subr.mxu0 0.0
        %3631 = vmatpush2.msra.mxu0 0.0
        %3632 = vmatprep.subr.mxu0 0.0
        %3633 = vmatpush2.msra.mxu0 0.0
        %3634 = vmatprep.subr.mxu0 0.0
        %3635 = vmatpush2.msra.mxu0 0.0
        %3636 = vmatprep.subr.mxu0 0.0
        %3637 = vmatpush2.msra.mxu0 0.0
        %3638 = vmatprep.subr.mxu0 0.0
        %3639 = vmatpush2.msra.mxu0 0.0
        %3640 = vmatprep.subr.mxu0 0.0
        %3641 = vmatpush2.msra.mxu0 0.0
        %3642 = vmatprep.subr.mxu0 0.0
        %3643 = vmatpush2.msra.mxu0 0.0
        %3644 = vmatprep.subr.mxu0 0.0
        %3645 = vmatpush2.msra.mxu0 0.0
        %3646 = vmatprep.subr.mxu0 0.0
        %3647 = vmatpush2.msra.mxu0 0.0
        %3648 = vmatprep.mubr.f32.mxu0 0.0
        %3649 = vmatmul.mubr.f32.gmra.mxu0 %v3440
        %v3650 = vpop.f32.mrf.mxu0
        %v3651 = vadd.f32 0.0, %v3650
        %v3652 = vpop.f32.mrf.mxu0
        %3653 = vdwg.mxu0
        %3654 = vst.msk [vmem:[#allocation13] sm:$0xff] %vm3173, %v3651
        %3655 = vmatprep.subr.mxu0 0.0
        %3656 = vmatpush1.msra.mxu0 0.0
        %3657 = vmatprep.subr.mxu0 0.0
        %3658 = vmatpush1.msra.mxu0 0.0
        %3659 = vmatprep.subr.mxu0 0.0
        %3660 = vmatpush1.msra.mxu0 0.0
        %3661 = vmatprep.subr.mxu0 0.0
        %3662 = vmatpush1.msra.mxu0 0.0
        %3663 = vmatprep.subr.mxu0 0.0
        %3664 = vmatpush1.msra.mxu0 0.0
        %3665 = vmatprep.subr.mxu0 0.0
        %3666 = vmatpush1.msra.mxu0 0.0
        %3667 = vmatprep.subr.mxu0 0.0
        %3668 = vmatpush1.msra.mxu0 0.0
        %3669 = vmatprep.subr.mxu0 0.0
        %3670 = vmatpush1.msra.mxu0 0.0
        %3671 = vmatprep.subr.mxu0 0.0
        %3672 = vmatpush1.msra.mxu0 0.0
        %3673 = vmatprep.subr.mxu0 0.0
        %3674 = vmatpush1.msra.mxu0 0.0
        %3675 = vmatprep.subr.mxu0 0.0
        %3676 = vmatpush1.msra.mxu0 0.0
        %3677 = vmatprep.subr.mxu0 0.0
        %3678 = vmatpush1.msra.mxu0 0.0
        %3679 = vmatprep.subr.mxu0 0.0
        %3680 = vmatpush1.msra.mxu0 0.0
        %3681 = vmatprep.subr.mxu0 0.0
        %3682 = vmatpush1.msra.mxu0 0.0
        %3683 = vmatprep.subr.mxu0 0.0
        %3684 = vmatpush1.msra.mxu0 0.0
        %3685 = vmatprep.subr.mxu0 0.0
        %3686 = vmatpush1.msra.mxu0 %v3168
        %3687 = vmatprep.subr.mxu0 0.0
        %3688 = vmatpush2.msra.mxu0 0.0
        %3689 = vmatprep.subr.mxu0 0.0
        %3690 = vmatpush2.msra.mxu0 0.0
        %3691 = vmatprep.subr.mxu0 0.0
        %3692 = vmatpush2.msra.mxu0 0.0
        %3693 = vmatprep.subr.mxu0 0.0
        %3694 = vmatpush2.msra.mxu0 0.0
        %3695 = vmatprep.subr.mxu0 0.0
        %3696 = vmatpush2.msra.mxu0 0.0
        %3697 = vmatprep.subr.mxu0 0.0
        %3698 = vmatpush2.msra.mxu0 0.0
        %3699 = vmatprep.subr.mxu0 0.0
        %3700 = vmatpush2.msra.mxu0 0.0
        %3701 = vmatprep.subr.mxu0 0.0
        %3702 = vmatpush2.msra.mxu0 0.0
        %3703 = vmatprep.subr.mxu0 0.0
        %3704 = vmatpush2.msra.mxu0 0.0
        %3705 = vmatprep.subr.mxu0 0.0
        %3706 = vmatpush2.msra.mxu0 0.0
        %3707 = vmatprep.subr.mxu0 0.0
        %3708 = vmatpush2.msra.mxu0 0.0
        %3709 = vmatprep.subr.mxu0 0.0
        %3710 = vmatpush2.msra.mxu0 0.0
        %3711 = vmatprep.subr.mxu0 0.0
        %3712 = vmatpush2.msra.mxu0 0.0
        %3713 = vmatprep.subr.mxu0 0.0
        %3714 = vmatpush2.msra.mxu0 0.0
        %3715 = vmatprep.subr.mxu0 0.0
        %3716 = vmatpush2.msra.mxu0 0.0
        %3717 = vmatprep.subr.mxu0 0.0
        %3718 = vmatpush2.msra.mxu0 0.0
        %3719 = vmatprep.mubr.f32.mxu0 0.0
        %3720 = vmatmul.mubr.f32.gmra.mxu0 %v3440
        %v3721 = vpop.f32.mrf.mxu0
        %v3722 = vadd.f32 0.0, %v3721
        %v3723 = vpop.f32.mrf.mxu0
        %3724 = vdwg.mxu0
        %3725 = vst.msk [vmem:[#allocation14] sm:$0xff] %vm3173, %v3722
        %3726 = vrot.lane.b32.xlu0 %v2382, 120
        %v3727 = vpop.permute.xlu0 %3726
        %3728 = vrot.lane.b32.xlu0 %v3158, 120
        %v3729 = vpop.permute.xlu0 %3728
        %v3730 = vsel %vm3173, %v3727, 0
        %v3732 = vsel %vm3173, %v3729, 0
        %3734 = vmatprep.subr.mxu0 0.0
        %3735 = vmatpush1.xpose.msra.mxu0 0.0
        %3736 = vmatprep.subr.mxu0 0.0
        %3737 = vmatpush1.xpose.msra.mxu0 0.0
        %3738 = vmatprep.subr.mxu0 0.0
        %3739 = vmatpush1.xpose.msra.mxu0 0.0
        %3740 = vmatprep.subr.mxu0 0.0
        %3741 = vmatpush1.xpose.msra.mxu0 0.0
        %3742 = vmatprep.subr.mxu0 0.0
        %3743 = vmatpush1.xpose.msra.mxu0 0.0
        %3744 = vmatprep.subr.mxu0 0.0
        %3745 = vmatpush1.xpose.msra.mxu0 0.0
        %3746 = vmatprep.subr.mxu0 0.0
        %3747 = vmatpush1.xpose.msra.mxu0 0.0
        %3748 = vmatprep.subr.mxu0 0.0
        %3749 = vmatpush1.xpose.msra.mxu0 0.0
        %3750 = vmatprep.subr.mxu0 0.0
        %3751 = vmatpush1.xpose.msra.mxu0 0.0
        %3752 = vmatprep.subr.mxu0 0.0
        %3753 = vmatpush1.xpose.msra.mxu0 0.0
        %3754 = vmatprep.subr.mxu0 0.0
        %3755 = vmatpush1.xpose.msra.mxu0 0.0
        %3756 = vmatprep.subr.mxu0 0.0
        %3757 = vmatpush1.xpose.msra.mxu0 0.0
        %3758 = vmatprep.subr.mxu0 0.0
        %3759 = vmatpush1.xpose.msra.mxu0 0.0
        %3760 = vmatprep.subr.mxu0 0.0
        %3761 = vmatpush1.xpose.msra.mxu0 0.0
        %3762 = vmatprep.subr.mxu0 0.0
        %3763 = vmatpush1.xpose.msra.mxu0 0.0
        %3764 = vmatprep.subr.mxu0 0.0
        %3765 = vmatpush1.xpose.msra.mxu0 %v3732
        %3766 = vmatprep.subr.mxu0 0.0
        %3767 = vmatpush2.xpose.msra.mxu0 0.0
        %3768 = vmatprep.subr.mxu0 0.0
        %3769 = vmatpush2.xpose.msra.mxu0 0.0
        %3770 = vmatprep.subr.mxu0 0.0
        %3771 = vmatpush2.xpose.msra.mxu0 0.0
        %3772 = vmatprep.subr.mxu0 0.0
        %3773 = vmatpush2.xpose.msra.mxu0 0.0
        %3774 = vmatprep.subr.mxu0 0.0
        %3775 = vmatpush2.xpose.msra.mxu0 0.0
        %3776 = vmatprep.subr.mxu0 0.0
        %3777 = vmatpush2.xpose.msra.mxu0 0.0
        %3778 = vmatprep.subr.mxu0 0.0
        %3779 = vmatpush2.xpose.msra.mxu0 0.0
        %3780 = vmatprep.subr.mxu0 0.0
        %3781 = vmatpush2.xpose.msra.mxu0 0.0
        %3782 = vmatprep.subr.mxu0 0.0
        %3783 = vmatpush2.xpose.msra.mxu0 0.0
        %3784 = vmatprep.subr.mxu0 0.0
        %3785 = vmatpush2.xpose.msra.mxu0 0.0
        %3786 = vmatprep.subr.mxu0 0.0
        %3787 = vmatpush2.xpose.msra.mxu0 0.0
        %3788 = vmatprep.subr.mxu0 0.0
        %3789 = vmatpush2.xpose.msra.mxu0 0.0
        %3790 = vmatprep.subr.mxu0 0.0
        %3791 = vmatpush2.xpose.msra.mxu0 0.0
        %3792 = vmatprep.subr.mxu0 0.0
        %3793 = vmatpush2.xpose.msra.mxu0 0.0
        %3794 = vmatprep.subr.mxu0 0.0
        %3795 = vmatpush2.xpose.msra.mxu0 0.0
        %3796 = vmatprep.subr.mxu0 0.0
        %3797 = vmatpush2.xpose.msra.mxu0 0.0
        %3798 = vmatprep.mubr.f32.mxu0 0.0
        %3799 = vmatmul.mubr.f32.gmra.mxu0 %v3730
        %v3800 = vpop.f32.mrf.mxu0
        %v3801 = vadd.f32 0.0, %v3800
        %v3802 = vpop.f32.mrf.mxu0
        %3803 = vdwg.mxu0
        %3804 = vset.pattern.permute.xlu0 4
        %3805 = vperm.xlu0 %3804, %v2630
        %v3806 = vpop.permute.xlu0 %3805
        %v3808 = vlaneseq
        %v3809 = vshrl.u32 %v3808, 7
        %v3810 = vsub.s32 4, %v3809
        %v3811 = vrot.slane %v3160, %v3810
        %v3812 = vsub.f32 %v3806, %v3811
        %3813 = vset.pattern.permute.xlu0 4
        %3814 = vperm.xlu0 %3813, %v2652
        %v3815 = vpop.permute.xlu0 %3814
        %v3817 = vlaneseq
        %v3818 = vshrl.u32 %v3817, 7
        %v3819 = vsub.s32 4, %v3818
        %v3820 = vrot.slane %v3162, %v3819
        %v3821 = vsub.f32 %v3815, %v3820
        %3822 = vset.pattern.permute.xlu0 4
        %3823 = vperm.xlu0 %3822, %v2674
        %v3824 = vpop.permute.xlu0 %3823
        %v3826 = vlaneseq
        %v3827 = vshrl.u32 %v3826, 7
        %v3828 = vsub.s32 4, %v3827
        %v3829 = vrot.slane %v3164, %v3828
        %v3830 = vsub.f32 %v3824, %v3829
        %v3831 = vmul.f32 %v3812, %v3812
        %v3832 = vmul.f32 %v3821, %v3821
        %v3833 = vadd.f32 %v3831, %v3832
        %v3834 = vmul.f32 %v3830, %v3830
        %v3835 = vadd.f32 %v3833, %v3834
        %v3836 = vrsqrt.pop %v3835
        %v3837 = vmul.f32 %v3835, %v3836
        %vm3838 = vcmp.eq.f32.partialorder %v3835, inf
        %v3839 = vsel %vm3838, %v3835, %v3837
        %vm3840 = vcmp.eq.f32.partialorder %v3835, 0.0
        %v3841 = vand.u32 %v3835, 2147483648
        %v3842 = vsel %vm3840, %v3841, %v3839
        %v3843 = vadd.f32 %v3842, 0.0
        %3844 = vset.pattern.permute.xlu0 5
        %3845 = vperm.xlu0 %3844, %v2630
        %v3846 = vpop.permute.xlu0 %3845
        %v3848 = vlaneseq
        %v3849 = vshrl.u32 %v3848, 7
        %v3850 = vsub.s32 5, %v3849
        %v3851 = vrot.slane %v3160, %v3850
        %v3852 = vsub.f32 %v3846, %v3851
        %3853 = vset.pattern.permute.xlu0 5
        %3854 = vperm.xlu0 %3853, %v2652
        %v3855 = vpop.permute.xlu0 %3854
        %v3857 = vlaneseq
        %v3858 = vshrl.u32 %v3857, 7
        %v3859 = vsub.s32 5, %v3858
        %v3860 = vrot.slane %v3162, %v3859
        %v3861 = vsub.f32 %v3855, %v3860
        %3862 = vset.pattern.permute.xlu0 5
        %3863 = vperm.xlu0 %3862, %v2674
        %v3864 = vpop.permute.xlu0 %3863
        %v3866 = vlaneseq
        %v3867 = vshrl.u32 %v3866, 7
        %v3868 = vsub.s32 5, %v3867
        %v3869 = vrot.slane %v3164, %v3868
        %v3870 = vsub.f32 %v3864, %v3869
        %v3871 = vmul.f32 %v3852, %v3852
        %v3872 = vmul.f32 %v3861, %v3861
        %v3873 = vadd.f32 %v3871, %v3872
        %v3874 = vmul.f32 %v3870, %v3870
        %v3875 = vadd.f32 %v3873, %v3874
        %v3876 = vrsqrt.pop %v3875
        %v3877 = vmul.f32 %v3875, %v3876
        %vm3878 = vcmp.eq.f32.partialorder %v3875, inf
        %v3879 = vsel %vm3878, %v3875, %v3877
        %vm3880 = vcmp.eq.f32.partialorder %v3875, 0.0
        %v3881 = vand.u32 %v3875, 2147483648
        %v3882 = vsel %vm3880, %v3881, %v3879
        %v3883 = vadd.f32 %v3843, %v3882
        %3884 = vset.pattern.permute.xlu0 6
        %3885 = vperm.xlu0 %3884, %v2630
        %v3886 = vpop.permute.xlu0 %3885
        %v3888 = vlaneseq
        %v3889 = vshrl.u32 %v3888, 7
        %v3890 = vsub.s32 6, %v3889
        %v3891 = vrot.slane %v3160, %v3890
        %v3892 = vsub.f32 %v3886, %v3891
        %3893 = vset.pattern.permute.xlu0 6
        %3894 = vperm.xlu0 %3893, %v2652
        %v3895 = vpop.permute.xlu0 %3894
        %v3897 = vlaneseq
        %v3898 = vshrl.u32 %v3897, 7
        %v3899 = vsub.s32 6, %v3898
        %v3900 = vrot.slane %v3162, %v3899
        %v3901 = vsub.f32 %v3895, %v3900
        %3902 = vset.pattern.permute.xlu0 6
        %3903 = vperm.xlu0 %3902, %v2674
        %v3904 = vpop.permute.xlu0 %3903
        %v3906 = vlaneseq
        %v3907 = vshrl.u32 %v3906, 7
        %v3908 = vsub.s32 6, %v3907
        %v3909 = vrot.slane %v3164, %v3908
        %v3910 = vsub.f32 %v3904, %v3909
        %v3911 = vmul.f32 %v3892, %v3892
        %v3912 = vmul.f32 %v3901, %v3901
        %v3913 = vadd.f32 %v3911, %v3912
        %v3914 = vmul.f32 %v3910, %v3910
        %v3915 = vadd.f32 %v3913, %v3914
        %v3916 = vrsqrt.pop %v3915
        %v3917 = vmul.f32 %v3915, %v3916
        %vm3918 = vcmp.eq.f32.partialorder %v3915, inf
        %v3919 = vsel %vm3918, %v3915, %v3917
        %vm3920 = vcmp.eq.f32.partialorder %v3915, 0.0
        %v3921 = vand.u32 %v3915, 2147483648
        %v3922 = vsel %vm3920, %v3921, %v3919
        %v3923 = vadd.f32 %v3883, %v3922
        %3924 = vset.pattern.permute.xlu0 7
        %3925 = vperm.xlu0 %3924, %v2630
        %v3926 = vpop.permute.xlu0 %3925
        %v3928 = vlaneseq
        %v3929 = vshrl.u32 %v3928, 7
        %v3930 = vsub.s32 7, %v3929
        %v3931 = vrot.slane %v3160, %v3930
        %v3932 = vsub.f32 %v3926, %v3931
        %3933 = vset.pattern.permute.xlu0 7
        %3934 = vperm.xlu0 %3933, %v2652
        %v3935 = vpop.permute.xlu0 %3934
        %v3937 = vlaneseq
        %v3938 = vshrl.u32 %v3937, 7
        %v3939 = vsub.s32 7, %v3938
        %v3940 = vrot.slane %v3162, %v3939
        %v3941 = vsub.f32 %v3935, %v3940
        %3942 = vset.pattern.permute.xlu0 7
        %3943 = vperm.xlu0 %3942, %v2674
        %v3944 = vpop.permute.xlu0 %3943
        %v3946 = vlaneseq
        %v3947 = vshrl.u32 %v3946, 7
        %v3948 = vsub.s32 7, %v3947
        %v3949 = vrot.slane %v3164, %v3948
        %v3950 = vsub.f32 %v3944, %v3949
        %v3951 = vmul.f32 %v3932, %v3932
        %v3952 = vmul.f32 %v3941, %v3941
        %v3953 = vadd.f32 %v3951, %v3952
        %v3954 = vmul.f32 %v3950, %v3950
        %v3955 = vadd.f32 %v3953, %v3954
        %v3956 = vrsqrt.pop %v3955
        %v3957 = vmul.f32 %v3955, %v3956
        %vm3958 = vcmp.eq.f32.partialorder %v3955, inf
        %v3959 = vsel %vm3958, %v3955, %v3957
        %vm3960 = vcmp.eq.f32.partialorder %v3955, 0.0
        %v3961 = vand.u32 %v3955, 2147483648
        %v3962 = vsel %vm3960, %v3961, %v3959
        %v3963 = vadd.f32 %v3923, %v3962
        %3964 = vset.pattern.permute.xlu0 1
        %3965 = vperm.xlu0 %3964, %v3418
        %v3966 = vpop.permute.xlu0 %3965
        %v3968 = vmul.f32 %v3966, %v3963
        %v3969 = vsub.f32 %v3801, %v3968
        %v3970 = vadd.f32 %v3969, %v3144
        %v3971 = vadd.f32 %v3970, %v3170
        %v3972 = vsel %vm3173, %v3971, -inf
        %3973 = vmax.xlane.f32.xlu0 %v3972
        %v3974 = vpop.xlane.xlu0 %3973
        %v3975 = vsub.f32 %v3971, %v3974
        %v3976 = vmul.f32 %v3975, 1.442695
        %v3977 = vpow.pop %v3976
        %v3978 = vsel %vm3173, %v3977, 0.0
        %3979 = vadd.xlane.f32.xlu0 %v3978
        %v3980 = vpop.xlane.xlu0 %3979
        %v3981 = vrcp.pop %v3980
        %v3982 = vmul.f32 %v3977, %v3981
        %s3983 = scalar_lea.vmem [#allocation10], 8
        %3984 = vst.msk [vmem:[%s3983] sm:$0xff] %vm3173, %v3982
        %3986 = vrot.lane.b32.xlu0 %v3159, 120
        %v3987 = vpop.permute.xlu0 %3986
        %v3990 = vsel %vm3173, %v3982, 0
        %3992 = vmatprep.subr.mxu0 0.0
        %3993 = vmatpush1.msra.mxu0 0.0
        %3994 = vmatprep.subr.mxu0 0.0
        %3995 = vmatpush1.msra.mxu0 0.0
        %3996 = vmatprep.subr.mxu0 0.0
        %3997 = vmatpush1.msra.mxu0 0.0
        %3998 = vmatprep.subr.mxu0 0.0
        %3999 = vmatpush1.msra.mxu0 0.0
        %4000 = vmatprep.subr.mxu0 0.0
        %4001 = vmatpush1.msra.mxu0 0.0
        %4002 = vmatprep.subr.mxu0 0.0
        %4003 = vmatpush1.msra.mxu0 0.0
        %4004 = vmatprep.subr.mxu0 0.0
        %4005 = vmatpush1.msra.mxu0 0.0
        %4006 = vmatprep.subr.mxu0 0.0
        %4007 = vmatpush1.msra.mxu0 0.0
        %4008 = vmatprep.subr.mxu0 0.0
        %4009 = vmatpush1.msra.mxu0 0.0
        %4010 = vmatprep.subr.mxu0 0.0
        %4011 = vmatpush1.msra.mxu0 0.0
        %4012 = vmatprep.subr.mxu0 0.0
        %4013 = vmatpush1.msra.mxu0 0.0
        %4014 = vmatprep.subr.mxu0 0.0
        %4015 = vmatpush1.msra.mxu0 0.0
        %4016 = vmatprep.subr.mxu0 0.0
        %4017 = vmatpush1.msra.mxu0 0.0
        %4018 = vmatprep.subr.mxu0 0.0
        %4019 = vmatpush1.msra.mxu0 0.0
        %4020 = vmatprep.subr.mxu0 0.0
        %4021 = vmatpush1.msra.mxu0 0.0
        %4022 = vmatprep.subr.mxu0 0.0
        %4023 = vmatpush1.msra.mxu0 %v3987
        %4024 = vmatprep.subr.mxu0 0.0
        %4025 = vmatpush2.msra.mxu0 0.0
        %4026 = vmatprep.subr.mxu0 0.0
        %4027 = vmatpush2.msra.mxu0 0.0
        %4028 = vmatprep.subr.mxu0 0.0
        %4029 = vmatpush2.msra.mxu0 0.0
        %4030 = vmatprep.subr.mxu0 0.0
        %4031 = vmatpush2.msra.mxu0 0.0
        %4032 = vmatprep.subr.mxu0 0.0
        %4033 = vmatpush2.msra.mxu0 0.0
        %4034 = vmatprep.subr.mxu0 0.0
        %4035 = vmatpush2.msra.mxu0 0.0
        %4036 = vmatprep.subr.mxu0 0.0
        %4037 = vmatpush2.msra.mxu0 0.0
        %4038 = vmatprep.subr.mxu0 0.0
        %4039 = vmatpush2.msra.mxu0 0.0
        %4040 = vmatprep.subr.mxu0 0.0
        %4041 = vmatpush2.msra.mxu0 0.0
        %4042 = vmatprep.subr.mxu0 0.0
        %4043 = vmatpush2.msra.mxu0 0.0
        %4044 = vmatprep.subr.mxu0 0.0
        %4045 = vmatpush2.msra.mxu0 0.0
        %4046 = vmatprep.subr.mxu0 0.0
        %4047 = vmatpush2.msra.mxu0 0.0
        %4048 = vmatprep.subr.mxu0 0.0
        %4049 = vmatpush2.msra.mxu0 0.0
        %4050 = vmatprep.subr.mxu0 0.0
        %4051 = vmatpush2.msra.mxu0 0.0
        %4052 = vmatprep.subr.mxu0 0.0
        %4053 = vmatpush2.msra.mxu0 0.0
        %4054 = vmatprep.subr.mxu0 0.0
        %4055 = vmatpush2.msra.mxu0 0.0
        %4056 = vmatprep.mubr.f32.mxu0 0.0
        %4057 = vmatmul.mubr.f32.gmra.mxu0 %v3990
        %v4058 = vpop.f32.mrf.mxu0
        %v4059 = vadd.f32 0.0, %v4058
        %v4060 = vpop.f32.mrf.mxu0
        %4061 = vdwg.mxu0
        %4063 = vrot.lane.b32.xlu0 %v4059, 8
        %v4064 = vpop.permute.xlu0 %4063
        %vm4066 = vcmask 130112
        %4067 = vst.msk [vmem:[#allocation11] sm:$0xff] %vm4066, %v4064
        %4069 = vrot.lane.b32.xlu0 %v3166, 120
        %v4070 = vpop.permute.xlu0 %4069
        %4072 = vmatprep.subr.mxu0 0.0
        %4073 = vmatpush1.msra.mxu0 0.0
        %4074 = vmatprep.subr.mxu0 0.0
        %4075 = vmatpush1.msra.mxu0 0.0
        %4076 = vmatprep.subr.mxu0 0.0
        %4077 = vmatpush1.msra.mxu0 0.0
        %4078 = vmatprep.subr.mxu0 0.0
        %4079 = vmatpush1.msra.mxu0 0.0
        %4080 = vmatprep.subr.mxu0 0.0
        %4081 = vmatpush1.msra.mxu0 0.0
        %4082 = vmatprep.subr.mxu0 0.0
        %4083 = vmatpush1.msra.mxu0 0.0
        %4084 = vmatprep.subr.mxu0 0.0
        %4085 = vmatpush1.msra.mxu0 0.0
        %4086 = vmatprep.subr.mxu0 0.0
        %4087 = vmatpush1.msra.mxu0 0.0
        %4088 = vmatprep.subr.mxu0 0.0
        %4089 = vmatpush1.msra.mxu0 0.0
        %4090 = vmatprep.subr.mxu0 0.0
        %4091 = vmatpush1.msra.mxu0 0.0
        %4092 = vmatprep.subr.mxu0 0.0
        %4093 = vmatpush1.msra.mxu0 0.0
        %4094 = vmatprep.subr.mxu0 0.0
        %4095 = vmatpush1.msra.mxu0 0.0
        %4096 = vmatprep.subr.mxu0 0.0
        %4097 = vmatpush1.msra.mxu0 0.0
        %4098 = vmatprep.subr.mxu0 0.0
        %4099 = vmatpush1.msra.mxu0 0.0
        %4100 = vmatprep.subr.mxu0 0.0
        %4101 = vmatpush1.msra.mxu0 0.0
        %4102 = vmatprep.subr.mxu0 0.0
        %4103 = vmatpush1.msra.mxu0 %v4070
        %4104 = vmatprep.subr.mxu0 0.0
        %4105 = vmatpush2.msra.mxu0 0.0
        %4106 = vmatprep.subr.mxu0 0.0
        %4107 = vmatpush2.msra.mxu0 0.0
        %4108 = vmatprep.subr.mxu0 0.0
        %4109 = vmatpush2.msra.mxu0 0.0
        %4110 = vmatprep.subr.mxu0 0.0
        %4111 = vmatpush2.msra.mxu0 0.0
        %4112 = vmatprep.subr.mxu0 0.0
        %4113 = vmatpush2.msra.mxu0 0.0
        %4114 = vmatprep.subr.mxu0 0.0
        %4115 = vmatpush2.msra.mxu0 0.0
        %4116 = vmatprep.subr.mxu0 0.0
        %4117 = vmatpush2.msra.mxu0 0.0
        %4118 = vmatprep.subr.mxu0 0.0
        %4119 = vmatpush2.msra.mxu0 0.0
        %4120 = vmatprep.subr.mxu0 0.0
        %4121 = vmatpush2.msra.mxu0 0.0
        %4122 = vmatprep.subr.mxu0 0.0
        %4123 = vmatpush2.msra.mxu0 0.0
        %4124 = vmatprep.subr.mxu0 0.0
        %4125 = vmatpush2.msra.mxu0 0.0
        %4126 = vmatprep.subr.mxu0 0.0
        %4127 = vmatpush2.msra.mxu0 0.0
        %4128 = vmatprep.subr.mxu0 0.0
        %4129 = vmatpush2.msra.mxu0 0.0
        %4130 = vmatprep.subr.mxu0 0.0
        %4131 = vmatpush2.msra.mxu0 0.0
        %4132 = vmatprep.subr.mxu0 0.0
        %4133 = vmatpush2.msra.mxu0 0.0
        %4134 = vmatprep.subr.mxu0 0.0
        %4135 = vmatpush2.msra.mxu0 0.0
        %4136 = vmatprep.mubr.f32.mxu0 0.0
        %4137 = vmatmul.mubr.f32.gmra.mxu0 %v3990
        %v4138 = vpop.f32.mrf.mxu0
        %v4139 = vadd.f32 0.0, %v4138
        %v4140 = vpop.f32.mrf.mxu0
        %4141 = vdwg.mxu0
        %4143 = vrot.lane.b32.xlu0 %v4139, 8
        %v4144 = vpop.permute.xlu0 %4143
        %4146 = vst.msk [vmem:[#allocation12] sm:$0xff] %vm4066, %v4144
        %4148 = vrot.lane.b32.xlu0 %v3167, 120
        %v4149 = vpop.permute.xlu0 %4148
        %4151 = vmatprep.subr.mxu0 0.0
        %4152 = vmatpush1.msra.mxu0 0.0
        %4153 = vmatprep.subr.mxu0 0.0
        %4154 = vmatpush1.msra.mxu0 0.0
        %4155 = vmatprep.subr.mxu0 0.0
        %4156 = vmatpush1.msra.mxu0 0.0
        %4157 = vmatprep.subr.mxu0 0.0
        %4158 = vmatpush1.msra.mxu0 0.0
        %4159 = vmatprep.subr.mxu0 0.0
        %4160 = vmatpush1.msra.mxu0 0.0
        %4161 = vmatprep.subr.mxu0 0.0
        %4162 = vmatpush1.msra.mxu0 0.0
        %4163 = vmatprep.subr.mxu0 0.0
        %4164 = vmatpush1.msra.mxu0 0.0
        %4165 = vmatprep.subr.mxu0 0.0
        %4166 = vmatpush1.msra.mxu0 0.0
        %4167 = vmatprep.subr.mxu0 0.0
        %4168 = vmatpush1.msra.mxu0 0.0
        %4169 = vmatprep.subr.mxu0 0.0
        %4170 = vmatpush1.msra.mxu0 0.0
        %4171 = vmatprep.subr.mxu0 0.0
        %4172 = vmatpush1.msra.mxu0 0.0
        %4173 = vmatprep.subr.mxu0 0.0
        %4174 = vmatpush1.msra.mxu0 0.0
        %4175 = vmatprep.subr.mxu0 0.0
        %4176 = vmatpush1.msra.mxu0 0.0
        %4177 = vmatprep.subr.mxu0 0.0
        %4178 = vmatpush1.msra.mxu0 0.0
        %4179 = vmatprep.subr.mxu0 0.0
        %4180 = vmatpush1.msra.mxu0 0.0
        %4181 = vmatprep.subr.mxu0 0.0
        %4182 = vmatpush1.msra.mxu0 %v4149
        %4183 = vmatprep.subr.mxu0 0.0
        %4184 = vmatpush2.msra.mxu0 0.0
        %4185 = vmatprep.subr.mxu0 0.0
        %4186 = vmatpush2.msra.mxu0 0.0
        %4187 = vmatprep.subr.mxu0 0.0
        %4188 = vmatpush2.msra.mxu0 0.0
        %4189 = vmatprep.subr.mxu0 0.0
        %4190 = vmatpush2.msra.mxu0 0.0
        %4191 = vmatprep.subr.mxu0 0.0
        %4192 = vmatpush2.msra.mxu0 0.0
        %4193 = vmatprep.subr.mxu0 0.0
        %4194 = vmatpush2.msra.mxu0 0.0
        %4195 = vmatprep.subr.mxu0 0.0
        %4196 = vmatpush2.msra.mxu0 0.0
        %4197 = vmatprep.subr.mxu0 0.0
        %4198 = vmatpush2.msra.mxu0 0.0
        %4199 = vmatprep.subr.mxu0 0.0
        %4200 = vmatpush2.msra.mxu0 0.0
        %4201 = vmatprep.subr.mxu0 0.0
        %4202 = vmatpush2.msra.mxu0 0.0
        %4203 = vmatprep.subr.mxu0 0.0
        %4204 = vmatpush2.msra.mxu0 0.0
        %4205 = vmatprep.subr.mxu0 0.0
        %4206 = vmatpush2.msra.mxu0 0.0
        %4207 = vmatprep.subr.mxu0 0.0
        %4208 = vmatpush2.msra.mxu0 0.0
        %4209 = vmatprep.subr.mxu0 0.0
        %4210 = vmatpush2.msra.mxu0 0.0
        %4211 = vmatprep.subr.mxu0 0.0
        %4212 = vmatpush2.msra.mxu0 0.0
        %4213 = vmatprep.subr.mxu0 0.0
        %4214 = vmatpush2.msra.mxu0 0.0
        %4215 = vmatprep.mubr.f32.mxu0 0.0
        %4216 = vmatmul.mubr.f32.gmra.mxu0 %v3990
        %v4217 = vpop.f32.mrf.mxu0
        %v4218 = vadd.f32 0.0, %v4217
        %v4219 = vpop.f32.mrf.mxu0
        %4220 = vdwg.mxu0
        %4222 = vrot.lane.b32.xlu0 %v4218, 8
        %v4223 = vpop.permute.xlu0 %4222
        %4225 = vst.msk [vmem:[#allocation13] sm:$0xff] %vm4066, %v4223
        %4227 = vrot.lane.b32.xlu0 %v3168, 120
        %v4228 = vpop.permute.xlu0 %4227
        %4230 = vmatprep.subr.mxu0 0.0
        %4231 = vmatpush1.msra.mxu0 0.0
        %4232 = vmatprep.subr.mxu0 0.0
        %4233 = vmatpush1.msra.mxu0 0.0
        %4234 = vmatprep.subr.mxu0 0.0
        %4235 = vmatpush1.msra.mxu0 0.0
        %4236 = vmatprep.subr.mxu0 0.0
        %4237 = vmatpush1.msra.mxu0 0.0
        %4238 = vmatprep.subr.mxu0 0.0
        %4239 = vmatpush1.msra.mxu0 0.0
        %4240 = vmatprep.subr.mxu0 0.0
        %4241 = vmatpush1.msra.mxu0 0.0
        %4242 = vmatprep.subr.mxu0 0.0
        %4243 = vmatpush1.msra.mxu0 0.0
        %4244 = vmatprep.subr.mxu0 0.0
        %4245 = vmatpush1.msra.mxu0 0.0
        %4246 = vmatprep.subr.mxu0 0.0
        %4247 = vmatpush1.msra.mxu0 0.0
        %4248 = vmatprep.subr.mxu0 0.0
        %4249 = vmatpush1.msra.mxu0 0.0
        %4250 = vmatprep.subr.mxu0 0.0
        %4251 = vmatpush1.msra.mxu0 0.0
        %4252 = vmatprep.subr.mxu0 0.0
        %4253 = vmatpush1.msra.mxu0 0.0
        %4254 = vmatprep.subr.mxu0 0.0
        %4255 = vmatpush1.msra.mxu0 0.0
        %4256 = vmatprep.subr.mxu0 0.0
        %4257 = vmatpush1.msra.mxu0 0.0
        %4258 = vmatprep.subr.mxu0 0.0
        %4259 = vmatpush1.msra.mxu0 0.0
        %4260 = vmatprep.subr.mxu0 0.0
        %4261 = vmatpush1.msra.mxu0 %v4228
        %4262 = vmatprep.subr.mxu0 0.0
        %4263 = vmatpush2.msra.mxu0 0.0
        %4264 = vmatprep.subr.mxu0 0.0
        %4265 = vmatpush2.msra.mxu0 0.0
        %4266 = vmatprep.subr.mxu0 0.0
        %4267 = vmatpush2.msra.mxu0 0.0
        %4268 = vmatprep.subr.mxu0 0.0
        %4269 = vmatpush2.msra.mxu0 0.0
        %4270 = vmatprep.subr.mxu0 0.0
        %4271 = vmatpush2.msra.mxu0 0.0
        %4272 = vmatprep.subr.mxu0 0.0
        %4273 = vmatpush2.msra.mxu0 0.0
        %4274 = vmatprep.subr.mxu0 0.0
        %4275 = vmatpush2.msra.mxu0 0.0
        %4276 = vmatprep.subr.mxu0 0.0
        %4277 = vmatpush2.msra.mxu0 0.0
        %4278 = vmatprep.subr.mxu0 0.0
        %4279 = vmatpush2.msra.mxu0 0.0
        %4280 = vmatprep.subr.mxu0 0.0
        %4281 = vmatpush2.msra.mxu0 0.0
        %4282 = vmatprep.subr.mxu0 0.0
        %4283 = vmatpush2.msra.mxu0 0.0
        %4284 = vmatprep.subr.mxu0 0.0
        %4285 = vmatpush2.msra.mxu0 0.0
        %4286 = vmatprep.subr.mxu0 0.0
        %4287 = vmatpush2.msra.mxu0 0.0
        %4288 = vmatprep.subr.mxu0 0.0
        %4289 = vmatpush2.msra.mxu0 0.0
        %4290 = vmatprep.subr.mxu0 0.0
        %4291 = vmatpush2.msra.mxu0 0.0
        %4292 = vmatprep.subr.mxu0 0.0
        %4293 = vmatpush2.msra.mxu0 0.0
        %4294 = vmatprep.mubr.f32.mxu0 0.0
        %4295 = vmatmul.mubr.f32.gmra.mxu0 %v3990
        %v4296 = vpop.f32.mrf.mxu0
        %v4297 = vadd.f32 0.0, %v4296
        %v4298 = vpop.f32.mrf.mxu0
        %4299 = vdwg.mxu0
        %4301 = vrot.lane.b32.xlu0 %v4297, 8
        %v4302 = vpop.permute.xlu0 %4301
        %4304 = vst.msk [vmem:[#allocation14] sm:$0xff] %vm4066, %v4302
        %4305 = vrot.lane.b32.xlu0 %v2382, 112
        %v4306 = vpop.permute.xlu0 %4305
        %4307 = vrot.lane.b32.xlu0 %v3158, 112
        %v4308 = vpop.permute.xlu0 %4307
        %v4309 = vsel %vm3173, %v4306, 0
        %v4311 = vsel %vm3173, %v4308, 0
        %4313 = vmatprep.subr.mxu0 0.0
        %4314 = vmatpush1.xpose.msra.mxu0 0.0
        %4315 = vmatprep.subr.mxu0 0.0
        %4316 = vmatpush1.xpose.msra.mxu0 0.0
        %4317 = vmatprep.subr.mxu0 0.0
        %4318 = vmatpush1.xpose.msra.mxu0 0.0
        %4319 = vmatprep.subr.mxu0 0.0
        %4320 = vmatpush1.xpose.msra.mxu0 0.0
        %4321 = vmatprep.subr.mxu0 0.0
        %4322 = vmatpush1.xpose.msra.mxu0 0.0
        %4323 = vmatprep.subr.mxu0 0.0
        %4324 = vmatpush1.xpose.msra.mxu0 0.0
        %4325 = vmatprep.subr.mxu0 0.0
        %4326 = vmatpush1.xpose.msra.mxu0 0.0
        %4327 = vmatprep.subr.mxu0 0.0
        %4328 = vmatpush1.xpose.msra.mxu0 0.0
        %4329 = vmatprep.subr.mxu0 0.0
        %4330 = vmatpush1.xpose.msra.mxu0 0.0
        %4331 = vmatprep.subr.mxu0 0.0
        %4332 = vmatpush1.xpose.msra.mxu0 0.0
        %4333 = vmatprep.subr.mxu0 0.0
        %4334 = vmatpush1.xpose.msra.mxu0 0.0
        %4335 = vmatprep.subr.mxu0 0.0
        %4336 = vmatpush1.xpose.msra.mxu0 0.0
        %4337 = vmatprep.subr.mxu0 0.0
        %4338 = vmatpush1.xpose.msra.mxu0 0.0
        %4339 = vmatprep.subr.mxu0 0.0
        %4340 = vmatpush1.xpose.msra.mxu0 0.0
        %4341 = vmatprep.subr.mxu0 0.0
        %4342 = vmatpush1.xpose.msra.mxu0 0.0
        %4343 = vmatprep.subr.mxu0 0.0
        %4344 = vmatpush1.xpose.msra.mxu0 %v4311
        %4345 = vmatprep.subr.mxu0 0.0
        %4346 = vmatpush2.xpose.msra.mxu0 0.0
        %4347 = vmatprep.subr.mxu0 0.0
        %4348 = vmatpush2.xpose.msra.mxu0 0.0
        %4349 = vmatprep.subr.mxu0 0.0
        %4350 = vmatpush2.xpose.msra.mxu0 0.0
        %4351 = vmatprep.subr.mxu0 0.0
        %4352 = vmatpush2.xpose.msra.mxu0 0.0
        %4353 = vmatprep.subr.mxu0 0.0
        %4354 = vmatpush2.xpose.msra.mxu0 0.0
        %4355 = vmatprep.subr.mxu0 0.0
        %4356 = vmatpush2.xpose.msra.mxu0 0.0
        %4357 = vmatprep.subr.mxu0 0.0
        %4358 = vmatpush2.xpose.msra.mxu0 0.0
        %4359 = vmatprep.subr.mxu0 0.0
        %4360 = vmatpush2.xpose.msra.mxu0 0.0
        %4361 = vmatprep.subr.mxu0 0.0
        %4362 = vmatpush2.xpose.msra.mxu0 0.0
        %4363 = vmatprep.subr.mxu0 0.0
        %4364 = vmatpush2.xpose.msra.mxu0 0.0
        %4365 = vmatprep.subr.mxu0 0.0
        %4366 = vmatpush2.xpose.msra.mxu0 0.0
        %4367 = vmatprep.subr.mxu0 0.0
        %4368 = vmatpush2.xpose.msra.mxu0 0.0
        %4369 = vmatprep.subr.mxu0 0.0
        %4370 = vmatpush2.xpose.msra.mxu0 0.0
        %4371 = vmatprep.subr.mxu0 0.0
        %4372 = vmatpush2.xpose.msra.mxu0 0.0
        %4373 = vmatprep.subr.mxu0 0.0
        %4374 = vmatpush2.xpose.msra.mxu0 0.0
        %4375 = vmatprep.subr.mxu0 0.0
        %4376 = vmatpush2.xpose.msra.mxu0 0.0
        %4377 = vmatprep.mubr.f32.mxu0 0.0
        %4378 = vmatmul.mubr.f32.gmra.mxu0 %v4309
        %v4379 = vpop.f32.mrf.mxu0
        %v4380 = vadd.f32 0.0, %v4379
        %v4381 = vpop.f32.mrf.mxu0
        %4382 = vdwg.mxu0
        %4383 = vset.pattern.permute.xlu0 8
        %4384 = vperm.xlu0 %4383, %v2630
        %v4385 = vpop.permute.xlu0 %4384
        %v4387 = vlaneseq
        %v4388 = vshrl.u32 %v4387, 7
        %v4389 = vsub.s32 0, %v4388
        %v4390 = vrot.slane %v3161, %v4389
        %v4391 = vsub.f32 %v4385, %v4390
        %4392 = vset.pattern.permute.xlu0 8
        %4393 = vperm.xlu0 %4392, %v2652
        %v4394 = vpop.permute.xlu0 %4393
        %v4396 = vlaneseq
        %v4397 = vshrl.u32 %v4396, 7
        %v4398 = vsub.s32 0, %v4397
        %v4399 = vrot.slane %v3163, %v4398
        %v4400 = vsub.f32 %v4394, %v4399
        %4401 = vset.pattern.permute.xlu0 8
        %4402 = vperm.xlu0 %4401, %v2674
        %v4403 = vpop.permute.xlu0 %4402
        %v4405 = vlaneseq
        %v4406 = vshrl.u32 %v4405, 7
        %v4407 = vsub.s32 0, %v4406
        %v4408 = vrot.slane %v3165, %v4407
        %v4409 = vsub.f32 %v4403, %v4408
        %v4410 = vmul.f32 %v4391, %v4391
        %v4411 = vmul.f32 %v4400, %v4400
        %v4412 = vadd.f32 %v4410, %v4411
        %v4413 = vmul.f32 %v4409, %v4409
        %v4414 = vadd.f32 %v4412, %v4413
        %v4415 = vrsqrt.pop %v4414
        %v4416 = vmul.f32 %v4414, %v4415
        %vm4417 = vcmp.eq.f32.partialorder %v4414, inf
        %v4418 = vsel %vm4417, %v4414, %v4416
        %vm4419 = vcmp.eq.f32.partialorder %v4414, 0.0
        %v4420 = vand.u32 %v4414, 2147483648
        %v4421 = vsel %vm4419, %v4420, %v4418
        %v4422 = vadd.f32 %v4421, 0.0
        %4423 = vset.pattern.permute.xlu0 9
        %4424 = vperm.xlu0 %4423, %v2630
        %v4425 = vpop.permute.xlu0 %4424
        %v4427 = vlaneseq
        %v4428 = vshrl.u32 %v4427, 7
        %v4429 = vsub.s32 1, %v4428
        %v4430 = vrot.slane %v3161, %v4429
        %v4431 = vsub.f32 %v4425, %v4430
        %4432 = vset.pattern.permute.xlu0 9
        %4433 = vperm.xlu0 %4432, %v2652
        %v4434 = vpop.permute.xlu0 %4433
        %v4436 = vlaneseq
        %v4437 = vshrl.u32 %v4436, 7
        %v4438 = vsub.s32 1, %v4437
        %v4439 = vrot.slane %v3163, %v4438
        %v4440 = vsub.f32 %v4434, %v4439
        %4441 = vset.pattern.permute.xlu0 9
        %4442 = vperm.xlu0 %4441, %v2674
        %v4443 = vpop.permute.xlu0 %4442
        %v4445 = vlaneseq
        %v4446 = vshrl.u32 %v4445, 7
        %v4447 = vsub.s32 1, %v4446
        %v4448 = vrot.slane %v3165, %v4447
        %v4449 = vsub.f32 %v4443, %v4448
        %v4450 = vmul.f32 %v4431, %v4431
        %v4451 = vmul.f32 %v4440, %v4440
        %v4452 = vadd.f32 %v4450, %v4451
        %v4453 = vmul.f32 %v4449, %v4449
        %v4454 = vadd.f32 %v4452, %v4453
        %v4455 = vrsqrt.pop %v4454
        %v4456 = vmul.f32 %v4454, %v4455
        %vm4457 = vcmp.eq.f32.partialorder %v4454, inf
        %v4458 = vsel %vm4457, %v4454, %v4456
        %vm4459 = vcmp.eq.f32.partialorder %v4454, 0.0
        %v4460 = vand.u32 %v4454, 2147483648
        %v4461 = vsel %vm4459, %v4460, %v4458
        %v4462 = vadd.f32 %v4422, %v4461
        %4463 = vset.pattern.permute.xlu0 10
        %4464 = vperm.xlu0 %4463, %v2630
        %v4465 = vpop.permute.xlu0 %4464
        %v4467 = vlaneseq
        %v4468 = vshrl.u32 %v4467, 7
        %v4469 = vsub.s32 2, %v4468
        %v4470 = vrot.slane %v3161, %v4469
        %v4471 = vsub.f32 %v4465, %v4470
        %4472 = vset.pattern.permute.xlu0 10
        %4473 = vperm.xlu0 %4472, %v2652
        %v4474 = vpop.permute.xlu0 %4473
        %v4476 = vlaneseq
        %v4477 = vshrl.u32 %v4476, 7
        %v4478 = vsub.s32 2, %v4477
        %v4479 = vrot.slane %v3163, %v4478
        %v4480 = vsub.f32 %v4474, %v4479
        %4481 = vset.pattern.permute.xlu0 10
        %4482 = vperm.xlu0 %4481, %v2674
        %v4483 = vpop.permute.xlu0 %4482
        %v4485 = vlaneseq
        %v4486 = vshrl.u32 %v4485, 7
        %v4487 = vsub.s32 2, %v4486
        %v4488 = vrot.slane %v3165, %v4487
        %v4489 = vsub.f32 %v4483, %v4488
        %v4490 = vmul.f32 %v4471, %v4471
        %v4491 = vmul.f32 %v4480, %v4480
        %v4492 = vadd.f32 %v4490, %v4491
        %v4493 = vmul.f32 %v4489, %v4489
        %v4494 = vadd.f32 %v4492, %v4493
        %v4495 = vrsqrt.pop %v4494
        %v4496 = vmul.f32 %v4494, %v4495
        %vm4497 = vcmp.eq.f32.partialorder %v4494, inf
        %v4498 = vsel %vm4497, %v4494, %v4496
        %vm4499 = vcmp.eq.f32.partialorder %v4494, 0.0
        %v4500 = vand.u32 %v4494, 2147483648
        %v4501 = vsel %vm4499, %v4500, %v4498
        %v4502 = vadd.f32 %v4462, %v4501
        %4503 = vset.pattern.permute.xlu0 11
        %4504 = vperm.xlu0 %4503, %v2630
        %v4505 = vpop.permute.xlu0 %4504
        %v4507 = vlaneseq
        %v4508 = vshrl.u32 %v4507, 7
        %v4509 = vsub.s32 3, %v4508
        %v4510 = vrot.slane %v3161, %v4509
        %v4511 = vsub.f32 %v4505, %v4510
        %4512 = vset.pattern.permute.xlu0 11
        %4513 = vperm.xlu0 %4512, %v2652
        %v4514 = vpop.permute.xlu0 %4513
        %v4516 = vlaneseq
        %v4517 = vshrl.u32 %v4516, 7
        %v4518 = vsub.s32 3, %v4517
        %v4519 = vrot.slane %v3163, %v4518
        %v4520 = vsub.f32 %v4514, %v4519
        %4521 = vset.pattern.permute.xlu0 11
        %4522 = vperm.xlu0 %4521, %v2674
        %v4523 = vpop.permute.xlu0 %4522
        %v4525 = vlaneseq
        %v4526 = vshrl.u32 %v4525, 7
        %v4527 = vsub.s32 3, %v4526
        %v4528 = vrot.slane %v3165, %v4527
        %v4529 = vsub.f32 %v4523, %v4528
        %v4530 = vmul.f32 %v4511, %v4511
        %v4531 = vmul.f32 %v4520, %v4520
        %v4532 = vadd.f32 %v4530, %v4531
        %v4533 = vmul.f32 %v4529, %v4529
        %v4534 = vadd.f32 %v4532, %v4533
        %v4535 = vrsqrt.pop %v4534
        %v4536 = vmul.f32 %v4534, %v4535
        %vm4537 = vcmp.eq.f32.partialorder %v4534, inf
        %v4538 = vsel %vm4537, %v4534, %v4536
        %vm4539 = vcmp.eq.f32.partialorder %v4534, 0.0
        %v4540 = vand.u32 %v4534, 2147483648
        %v4541 = vsel %vm4539, %v4540, %v4538
        %v4542 = vadd.f32 %v4502, %v4541
        %4543 = vset.pattern.permute.xlu0 2
        %4544 = vperm.xlu0 %4543, %v3418
        %v4545 = vpop.permute.xlu0 %4544
        %v4547 = vmul.f32 %v4545, %v4542
        %v4548 = vsub.f32 %v4380, %v4547
        %v4549 = vadd.f32 %v4548, %v3145
        %v4550 = vadd.f32 %v4549, %v3171
        %v4551 = vsel %vm3173, %v4550, -inf
        %4552 = vmax.xlane.f32.xlu0 %v4551
        %v4553 = vpop.xlane.xlu0 %4552
        %v4554 = vsub.f32 %v4550, %v4553
        %v4555 = vmul.f32 %v4554, 1.442695
        %v4556 = vpow.pop %v4555
        %v4557 = vsel %vm3173, %v4556, 0.0
        %4558 = vadd.xlane.f32.xlu0 %v4557
        %v4559 = vpop.xlane.xlu0 %4558
        %v4560 = vrcp.pop %v4559
        %v4561 = vmul.f32 %v4556, %v4560
        %s4562 = scalar_lea.vmem [#allocation10], 16
        %4563 = vst.msk [vmem:[%s4562] sm:$0xff] %vm3173, %v4561
        %4564 = vrot.lane.b32.xlu0 %v3159, 112
        %v4565 = vpop.permute.xlu0 %4564
        %v4568 = vsel %vm3173, %v4561, 0
        %4570 = vmatprep.subr.mxu0 0.0
        %4571 = vmatpush1.msra.mxu0 0.0
        %4572 = vmatprep.subr.mxu0 0.0
        %4573 = vmatpush1.msra.mxu0 0.0
        %4574 = vmatprep.subr.mxu0 0.0
        %4575 = vmatpush1.msra.mxu0 0.0
        %4576 = vmatprep.subr.mxu0 0.0
        %4577 = vmatpush1.msra.mxu0 0.0
        %4578 = vmatprep.subr.mxu0 0.0
        %4579 = vmatpush1.msra.mxu0 0.0
        %4580 = vmatprep.subr.mxu0 0.0
        %4581 = vmatpush1.msra.mxu0 0.0
        %4582 = vmatprep.subr.mxu0 0.0
        %4583 = vmatpush1.msra.mxu0 0.0
        %4584 = vmatprep.subr.mxu0 0.0
        %4585 = vmatpush1.msra.mxu0 0.0
        %4586 = vmatprep.subr.mxu0 0.0
        %4587 = vmatpush1.msra.mxu0 0.0
        %4588 = vmatprep.subr.mxu0 0.0
        %4589 = vmatpush1.msra.mxu0 0.0
        %4590 = vmatprep.subr.mxu0 0.0
        %4591 = vmatpush1.msra.mxu0 0.0
        %4592 = vmatprep.subr.mxu0 0.0
        %4593 = vmatpush1.msra.mxu0 0.0
        %4594 = vmatprep.subr.mxu0 0.0
        %4595 = vmatpush1.msra.mxu0 0.0
        %4596 = vmatprep.subr.mxu0 0.0
        %4597 = vmatpush1.msra.mxu0 0.0
        %4598 = vmatprep.subr.mxu0 0.0
        %4599 = vmatpush1.msra.mxu0 0.0
        %4600 = vmatprep.subr.mxu0 0.0
        %4601 = vmatpush1.msra.mxu0 %v4565
        %4602 = vmatprep.subr.mxu0 0.0
        %4603 = vmatpush2.msra.mxu0 0.0
        %4604 = vmatprep.subr.mxu0 0.0
        %4605 = vmatpush2.msra.mxu0 0.0
        %4606 = vmatprep.subr.mxu0 0.0
        %4607 = vmatpush2.msra.mxu0 0.0
        %4608 = vmatprep.subr.mxu0 0.0
        %4609 = vmatpush2.msra.mxu0 0.0
        %4610 = vmatprep.subr.mxu0 0.0
        %4611 = vmatpush2.msra.mxu0 0.0
        %4612 = vmatprep.subr.mxu0 0.0
        %4613 = vmatpush2.msra.mxu0 0.0
        %4614 = vmatprep.subr.mxu0 0.0
        %4615 = vmatpush2.msra.mxu0 0.0
        %4616 = vmatprep.subr.mxu0 0.0
        %4617 = vmatpush2.msra.mxu0 0.0
        %4618 = vmatprep.subr.mxu0 0.0
        %4619 = vmatpush2.msra.mxu0 0.0
        %4620 = vmatprep.subr.mxu0 0.0
        %4621 = vmatpush2.msra.mxu0 0.0
        %4622 = vmatprep.subr.mxu0 0.0
        %4623 = vmatpush2.msra.mxu0 0.0
        %4624 = vmatprep.subr.mxu0 0.0
        %4625 = vmatpush2.msra.mxu0 0.0
        %4626 = vmatprep.subr.mxu0 0.0
        %4627 = vmatpush2.msra.mxu0 0.0
        %4628 = vmatprep.subr.mxu0 0.0
        %4629 = vmatpush2.msra.mxu0 0.0
        %4630 = vmatprep.subr.mxu0 0.0
        %4631 = vmatpush2.msra.mxu0 0.0
        %4632 = vmatprep.subr.mxu0 0.0
        %4633 = vmatpush2.msra.mxu0 0.0
        %4634 = vmatprep.mubr.f32.mxu0 0.0
        %4635 = vmatmul.mubr.f32.gmra.mxu0 %v4568
        %v4636 = vpop.f32.mrf.mxu0
        %v4637 = vadd.f32 0.0, %v4636
        %v4638 = vpop.f32.mrf.mxu0
        %4639 = vdwg.mxu0
        %4641 = vrot.lane.b32.xlu0 %v4637, 16
        %v4642 = vpop.permute.xlu0 %4641
        %vm4644 = vcmask 195712
        %4645 = vst.msk [vmem:[#allocation11] sm:$0xff] %vm4644, %v4642
        %4646 = vrot.lane.b32.xlu0 %v3166, 112
        %v4647 = vpop.permute.xlu0 %4646
        %4649 = vmatprep.subr.mxu0 0.0
        %4650 = vmatpush1.msra.mxu0 0.0
        %4651 = vmatprep.subr.mxu0 0.0
        %4652 = vmatpush1.msra.mxu0 0.0
        %4653 = vmatprep.subr.mxu0 0.0
        %4654 = vmatpush1.msra.mxu0 0.0
        %4655 = vmatprep.subr.mxu0 0.0
        %4656 = vmatpush1.msra.mxu0 0.0
        %4657 = vmatprep.subr.mxu0 0.0
        %4658 = vmatpush1.msra.mxu0 0.0
        %4659 = vmatprep.subr.mxu0 0.0
        %4660 = vmatpush1.msra.mxu0 0.0
        %4661 = vmatprep.subr.mxu0 0.0
        %4662 = vmatpush1.msra.mxu0 0.0
        %4663 = vmatprep.subr.mxu0 0.0
        %4664 = vmatpush1.msra.mxu0 0.0
        %4665 = vmatprep.subr.mxu0 0.0
        %4666 = vmatpush1.msra.mxu0 0.0
        %4667 = vmatprep.subr.mxu0 0.0
        %4668 = vmatpush1.msra.mxu0 0.0
        %4669 = vmatprep.subr.mxu0 0.0
        %4670 = vmatpush1.msra.mxu0 0.0
        %4671 = vmatprep.subr.mxu0 0.0
        %4672 = vmatpush1.msra.mxu0 0.0
        %4673 = vmatprep.subr.mxu0 0.0
        %4674 = vmatpush1.msra.mxu0 0.0
        %4675 = vmatprep.subr.mxu0 0.0
        %4676 = vmatpush1.msra.mxu0 0.0
        %4677 = vmatprep.subr.mxu0 0.0
        %4678 = vmatpush1.msra.mxu0 0.0
        %4679 = vmatprep.subr.mxu0 0.0
        %4680 = vmatpush1.msra.mxu0 %v4647
        %4681 = vmatprep.subr.mxu0 0.0
        %4682 = vmatpush2.msra.mxu0 0.0
        %4683 = vmatprep.subr.mxu0 0.0
        %4684 = vmatpush2.msra.mxu0 0.0
        %4685 = vmatprep.subr.mxu0 0.0
        %4686 = vmatpush2.msra.mxu0 0.0
        %4687 = vmatprep.subr.mxu0 0.0
        %4688 = vmatpush2.msra.mxu0 0.0
        %4689 = vmatprep.subr.mxu0 0.0
        %4690 = vmatpush2.msra.mxu0 0.0
        %4691 = vmatprep.subr.mxu0 0.0
        %4692 = vmatpush2.msra.mxu0 0.0
        %4693 = vmatprep.subr.mxu0 0.0
        %4694 = vmatpush2.msra.mxu0 0.0
        %4695 = vmatprep.subr.mxu0 0.0
        %4696 = vmatpush2.msra.mxu0 0.0
        %4697 = vmatprep.subr.mxu0 0.0
        %4698 = vmatpush2.msra.mxu0 0.0
        %4699 = vmatprep.subr.mxu0 0.0
        %4700 = vmatpush2.msra.mxu0 0.0
        %4701 = vmatprep.subr.mxu0 0.0
        %4702 = vmatpush2.msra.mxu0 0.0
        %4703 = vmatprep.subr.mxu0 0.0
        %4704 = vmatpush2.msra.mxu0 0.0
        %4705 = vmatprep.subr.mxu0 0.0
        %4706 = vmatpush2.msra.mxu0 0.0
        %4707 = vmatprep.subr.mxu0 0.0
        %4708 = vmatpush2.msra.mxu0 0.0
        %4709 = vmatprep.subr.mxu0 0.0
        %4710 = vmatpush2.msra.mxu0 0.0
        %4711 = vmatprep.subr.mxu0 0.0
        %4712 = vmatpush2.msra.mxu0 0.0
        %4713 = vmatprep.mubr.f32.mxu0 0.0
        %4714 = vmatmul.mubr.f32.gmra.mxu0 %v4568
        %v4715 = vpop.f32.mrf.mxu0
        %v4716 = vadd.f32 0.0, %v4715
        %v4717 = vpop.f32.mrf.mxu0
        %4718 = vdwg.mxu0
        %4720 = vrot.lane.b32.xlu0 %v4716, 16
        %v4721 = vpop.permute.xlu0 %4720
        %4723 = vst.msk [vmem:[#allocation12] sm:$0xff] %vm4644, %v4721
        %4724 = vrot.lane.b32.xlu0 %v3167, 112
        %v4725 = vpop.permute.xlu0 %4724
        %4727 = vmatprep.subr.mxu0 0.0
        %4728 = vmatpush1.msra.mxu0 0.0
        %4729 = vmatprep.subr.mxu0 0.0
        %4730 = vmatpush1.msra.mxu0 0.0
        %4731 = vmatprep.subr.mxu0 0.0
        %4732 = vmatpush1.msra.mxu0 0.0
        %4733 = vmatprep.subr.mxu0 0.0
        %4734 = vmatpush1.msra.mxu0 0.0
        %4735 = vmatprep.subr.mxu0 0.0
        %4736 = vmatpush1.msra.mxu0 0.0
        %4737 = vmatprep.subr.mxu0 0.0
        %4738 = vmatpush1.msra.mxu0 0.0
        %4739 = vmatprep.subr.mxu0 0.0
        %4740 = vmatpush1.msra.mxu0 0.0
        %4741 = vmatprep.subr.mxu0 0.0
        %4742 = vmatpush1.msra.mxu0 0.0
        %4743 = vmatprep.subr.mxu0 0.0
        %4744 = vmatpush1.msra.mxu0 0.0
        %4745 = vmatprep.subr.mxu0 0.0
        %4746 = vmatpush1.msra.mxu0 0.0
        %4747 = vmatprep.subr.mxu0 0.0
        %4748 = vmatpush1.msra.mxu0 0.0
        %4749 = vmatprep.subr.mxu0 0.0
        %4750 = vmatpush1.msra.mxu0 0.0
        %4751 = vmatprep.subr.mxu0 0.0
        %4752 = vmatpush1.msra.mxu0 0.0
        %4753 = vmatprep.subr.mxu0 0.0
        %4754 = vmatpush1.msra.mxu0 0.0
        %4755 = vmatprep.subr.mxu0 0.0
        %4756 = vmatpush1.msra.mxu0 0.0
        %4757 = vmatprep.subr.mxu0 0.0
        %4758 = vmatpush1.msra.mxu0 %v4725
        %4759 = vmatprep.subr.mxu0 0.0
        %4760 = vmatpush2.msra.mxu0 0.0
        %4761 = vmatprep.subr.mxu0 0.0
        %4762 = vmatpush2.msra.mxu0 0.0
        %4763 = vmatprep.subr.mxu0 0.0
        %4764 = vmatpush2.msra.mxu0 0.0
        %4765 = vmatprep.subr.mxu0 0.0
        %4766 = vmatpush2.msra.mxu0 0.0
        %4767 = vmatprep.subr.mxu0 0.0
        %4768 = vmatpush2.msra.mxu0 0.0
        %4769 = vmatprep.subr.mxu0 0.0
        %4770 = vmatpush2.msra.mxu0 0.0
        %4771 = vmatprep.subr.mxu0 0.0
        %4772 = vmatpush2.msra.mxu0 0.0
        %4773 = vmatprep.subr.mxu0 0.0
        %4774 = vmatpush2.msra.mxu0 0.0
        %4775 = vmatprep.subr.mxu0 0.0
        %4776 = vmatpush2.msra.mxu0 0.0
        %4777 = vmatprep.subr.mxu0 0.0
        %4778 = vmatpush2.msra.mxu0 0.0
        %4779 = vmatprep.subr.mxu0 0.0
        %4780 = vmatpush2.msra.mxu0 0.0
        %4781 = vmatprep.subr.mxu0 0.0
        %4782 = vmatpush2.msra.mxu0 0.0
        %4783 = vmatprep.subr.mxu0 0.0
        %4784 = vmatpush2.msra.mxu0 0.0
        %4785 = vmatprep.subr.mxu0 0.0
        %4786 = vmatpush2.msra.mxu0 0.0
        %4787 = vmatprep.subr.mxu0 0.0
        %4788 = vmatpush2.msra.mxu0 0.0
        %4789 = vmatprep.subr.mxu0 0.0
        %4790 = vmatpush2.msra.mxu0 0.0
        %4791 = vmatprep.mubr.f32.mxu0 0.0
        %4792 = vmatmul.mubr.f32.gmra.mxu0 %v4568
        %v4793 = vpop.f32.mrf.mxu0
        %v4794 = vadd.f32 0.0, %v4793
        %v4795 = vpop.f32.mrf.mxu0
        %4796 = vdwg.mxu0
        %4798 = vrot.lane.b32.xlu0 %v4794, 16
        %v4799 = vpop.permute.xlu0 %4798
        %4801 = vst.msk [vmem:[#allocation13] sm:$0xff] %vm4644, %v4799
        %4802 = vrot.lane.b32.xlu0 %v3168, 112
        %v4803 = vpop.permute.xlu0 %4802
        %4805 = vmatprep.subr.mxu0 0.0
        %4806 = vmatpush1.msra.mxu0 0.0
        %4807 = vmatprep.subr.mxu0 0.0
        %4808 = vmatpush1.msra.mxu0 0.0
        %4809 = vmatprep.subr.mxu0 0.0
        %4810 = vmatpush1.msra.mxu0 0.0
        %4811 = vmatprep.subr.mxu0 0.0
        %4812 = vmatpush1.msra.mxu0 0.0
        %4813 = vmatprep.subr.mxu0 0.0
        %4814 = vmatpush1.msra.mxu0 0.0
        %4815 = vmatprep.subr.mxu0 0.0
        %4816 = vmatpush1.msra.mxu0 0.0
        %4817 = vmatprep.subr.mxu0 0.0
        %4818 = vmatpush1.msra.mxu0 0.0
        %4819 = vmatprep.subr.mxu0 0.0
        %4820 = vmatpush1.msra.mxu0 0.0
        %4821 = vmatprep.subr.mxu0 0.0
        %4822 = vmatpush1.msra.mxu0 0.0
        %4823 = vmatprep.subr.mxu0 0.0
        %4824 = vmatpush1.msra.mxu0 0.0
        %4825 = vmatprep.subr.mxu0 0.0
        %4826 = vmatpush1.msra.mxu0 0.0
        %4827 = vmatprep.subr.mxu0 0.0
        %4828 = vmatpush1.msra.mxu0 0.0
        %4829 = vmatprep.subr.mxu0 0.0
        %4830 = vmatpush1.msra.mxu0 0.0
        %4831 = vmatprep.subr.mxu0 0.0
        %4832 = vmatpush1.msra.mxu0 0.0
        %4833 = vmatprep.subr.mxu0 0.0
        %4834 = vmatpush1.msra.mxu0 0.0
        %4835 = vmatprep.subr.mxu0 0.0
        %4836 = vmatpush1.msra.mxu0 %v4803
        %4837 = vmatprep.subr.mxu0 0.0
        %4838 = vmatpush2.msra.mxu0 0.0
        %4839 = vmatprep.subr.mxu0 0.0
        %4840 = vmatpush2.msra.mxu0 0.0
        %4841 = vmatprep.subr.mxu0 0.0
        %4842 = vmatpush2.msra.mxu0 0.0
        %4843 = vmatprep.subr.mxu0 0.0
        %4844 = vmatpush2.msra.mxu0 0.0
        %4845 = vmatprep.subr.mxu0 0.0
        %4846 = vmatpush2.msra.mxu0 0.0
        %4847 = vmatprep.subr.mxu0 0.0
        %4848 = vmatpush2.msra.mxu0 0.0
        %4849 = vmatprep.subr.mxu0 0.0
        %4850 = vmatpush2.msra.mxu0 0.0
        %4851 = vmatprep.subr.mxu0 0.0
        %4852 = vmatpush2.msra.mxu0 0.0
        %4853 = vmatprep.subr.mxu0 0.0
        %4854 = vmatpush2.msra.mxu0 0.0
        %4855 = vmatprep.subr.mxu0 0.0
        %4856 = vmatpush2.msra.mxu0 0.0
        %4857 = vmatprep.subr.mxu0 0.0
        %4858 = vmatpush2.msra.mxu0 0.0
        %4859 = vmatprep.subr.mxu0 0.0
        %4860 = vmatpush2.msra.mxu0 0.0
        %4861 = vmatprep.subr.mxu0 0.0
        %4862 = vmatpush2.msra.mxu0 0.0
        %4863 = vmatprep.subr.mxu0 0.0
        %4864 = vmatpush2.msra.mxu0 0.0
        %4865 = vmatprep.subr.mxu0 0.0
        %4866 = vmatpush2.msra.mxu0 0.0
        %4867 = vmatprep.subr.mxu0 0.0
        %4868 = vmatpush2.msra.mxu0 0.0
        %4869 = vmatprep.mubr.f32.mxu0 0.0
        %4870 = vmatmul.mubr.f32.gmra.mxu0 %v4568
        %v4871 = vpop.f32.mrf.mxu0
        %v4872 = vadd.f32 0.0, %v4871
        %v4873 = vpop.f32.mrf.mxu0
        %4874 = vdwg.mxu0
        %4876 = vrot.lane.b32.xlu0 %v4872, 16
        %v4877 = vpop.permute.xlu0 %4876
        %4879 = vst.msk [vmem:[#allocation14] sm:$0xff] %vm4644, %v4877
        %4880 = vrot.lane.b32.xlu0 %v2382, 104
        %v4881 = vpop.permute.xlu0 %4880
        %4882 = vrot.lane.b32.xlu0 %v3158, 104
        %v4883 = vpop.permute.xlu0 %4882
        %v4884 = vsel %vm3173, %v4881, 0
        %v4886 = vsel %vm3173, %v4883, 0
        %4888 = vmatprep.subr.mxu0 0.0
        %4889 = vmatpush1.xpose.msra.mxu0 0.0
        %4890 = vmatprep.subr.mxu0 0.0
        %4891 = vmatpush1.xpose.msra.mxu0 0.0
        %4892 = vmatprep.subr.mxu0 0.0
        %4893 = vmatpush1.xpose.msra.mxu0 0.0
        %4894 = vmatprep.subr.mxu0 0.0
        %4895 = vmatpush1.xpose.msra.mxu0 0.0
        %4896 = vmatprep.subr.mxu0 0.0
        %4897 = vmatpush1.xpose.msra.mxu0 0.0
        %4898 = vmatprep.subr.mxu0 0.0
        %4899 = vmatpush1.xpose.msra.mxu0 0.0
        %4900 = vmatprep.subr.mxu0 0.0
        %4901 = vmatpush1.xpose.msra.mxu0 0.0
        %4902 = vmatprep.subr.mxu0 0.0
        %4903 = vmatpush1.xpose.msra.mxu0 0.0
        %4904 = vmatprep.subr.mxu0 0.0
        %4905 = vmatpush1.xpose.msra.mxu0 0.0
        %4906 = vmatprep.subr.mxu0 0.0
        %4907 = vmatpush1.xpose.msra.mxu0 0.0
        %4908 = vmatprep.subr.mxu0 0.0
        %4909 = vmatpush1.xpose.msra.mxu0 0.0
        %4910 = vmatprep.subr.mxu0 0.0
        %4911 = vmatpush1.xpose.msra.mxu0 0.0
        %4912 = vmatprep.subr.mxu0 0.0
        %4913 = vmatpush1.xpose.msra.mxu0 0.0
        %4914 = vmatprep.subr.mxu0 0.0
        %4915 = vmatpush1.xpose.msra.mxu0 0.0
        %4916 = vmatprep.subr.mxu0 0.0
        %4917 = vmatpush1.xpose.msra.mxu0 0.0
        %4918 = vmatprep.subr.mxu0 0.0
        %4919 = vmatpush1.xpose.msra.mxu0 %v4886
        %4920 = vmatprep.subr.mxu0 0.0
        %4921 = vmatpush2.xpose.msra.mxu0 0.0
        %4922 = vmatprep.subr.mxu0 0.0
        %4923 = vmatpush2.xpose.msra.mxu0 0.0
        %4924 = vmatprep.subr.mxu0 0.0
        %4925 = vmatpush2.xpose.msra.mxu0 0.0
        %4926 = vmatprep.subr.mxu0 0.0
        %4927 = vmatpush2.xpose.msra.mxu0 0.0
        %4928 = vmatprep.subr.mxu0 0.0
        %4929 = vmatpush2.xpose.msra.mxu0 0.0
        %4930 = vmatprep.subr.mxu0 0.0
        %4931 = vmatpush2.xpose.msra.mxu0 0.0
        %4932 = vmatprep.subr.mxu0 0.0
        %4933 = vmatpush2.xpose.msra.mxu0 0.0
        %4934 = vmatprep.subr.mxu0 0.0
        %4935 = vmatpush2.xpose.msra.mxu0 0.0
        %4936 = vmatprep.subr.mxu0 0.0
        %4937 = vmatpush2.xpose.msra.mxu0 0.0
        %4938 = vmatprep.subr.mxu0 0.0
        %4939 = vmatpush2.xpose.msra.mxu0 0.0
        %4940 = vmatprep.subr.mxu0 0.0
        %4941 = vmatpush2.xpose.msra.mxu0 0.0
        %4942 = vmatprep.subr.mxu0 0.0
        %4943 = vmatpush2.xpose.msra.mxu0 0.0
        %4944 = vmatprep.subr.mxu0 0.0
        %4945 = vmatpush2.xpose.msra.mxu0 0.0
        %4946 = vmatprep.subr.mxu0 0.0
        %4947 = vmatpush2.xpose.msra.mxu0 0.0
        %4948 = vmatprep.subr.mxu0 0.0
        %4949 = vmatpush2.xpose.msra.mxu0 0.0
        %4950 = vmatprep.subr.mxu0 0.0
        %4951 = vmatpush2.xpose.msra.mxu0 0.0
        %4952 = vmatprep.mubr.f32.mxu0 0.0
        %4953 = vmatmul.mubr.f32.gmra.mxu0 %v4884
        %v4954 = vpop.f32.mrf.mxu0
        %v4955 = vadd.f32 0.0, %v4954
        %v4956 = vpop.f32.mrf.mxu0
        %4957 = vdwg.mxu0
        %4958 = vset.pattern.permute.xlu0 12
        %4959 = vperm.xlu0 %4958, %v2630
        %v4960 = vpop.permute.xlu0 %4959
        %v4962 = vlaneseq
        %v4963 = vshrl.u32 %v4962, 7
        %v4964 = vsub.s32 4, %v4963
        %v4965 = vrot.slane %v3161, %v4964
        %v4966 = vsub.f32 %v4960, %v4965
        %4967 = vset.pattern.permute.xlu0 12
        %4968 = vperm.xlu0 %4967, %v2652
        %v4969 = vpop.permute.xlu0 %4968
        %v4971 = vlaneseq
        %v4972 = vshrl.u32 %v4971, 7
        %v4973 = vsub.s32 4, %v4972
        %v4974 = vrot.slane %v3163, %v4973
        %v4975 = vsub.f32 %v4969, %v4974
        %4976 = vset.pattern.permute.xlu0 12
        %4977 = vperm.xlu0 %4976, %v2674
        %v4978 = vpop.permute.xlu0 %4977
        %v4980 = vlaneseq
        %v4981 = vshrl.u32 %v4980, 7
        %v4982 = vsub.s32 4, %v4981
        %v4983 = vrot.slane %v3165, %v4982
        %v4984 = vsub.f32 %v4978, %v4983
        %v4985 = vmul.f32 %v4966, %v4966
        %v4986 = vmul.f32 %v4975, %v4975
        %v4987 = vadd.f32 %v4985, %v4986
        %v4988 = vmul.f32 %v4984, %v4984
        %v4989 = vadd.f32 %v4987, %v4988
        %v4990 = vrsqrt.pop %v4989
        %v4991 = vmul.f32 %v4989, %v4990
        %vm4992 = vcmp.eq.f32.partialorder %v4989, inf
        %v4993 = vsel %vm4992, %v4989, %v4991
        %vm4994 = vcmp.eq.f32.partialorder %v4989, 0.0
        %v4995 = vand.u32 %v4989, 2147483648
        %v4996 = vsel %vm4994, %v4995, %v4993
        %v4997 = vadd.f32 %v4996, 0.0
        %4998 = vset.pattern.permute.xlu0 13
        %4999 = vperm.xlu0 %4998, %v2630
        %v5000 = vpop.permute.xlu0 %4999
        %v5002 = vlaneseq
        %v5003 = vshrl.u32 %v5002, 7
        %v5004 = vsub.s32 5, %v5003
        %v5005 = vrot.slane %v3161, %v5004
        %v5006 = vsub.f32 %v5000, %v5005
        %5007 = vset.pattern.permute.xlu0 13
        %5008 = vperm.xlu0 %5007, %v2652
        %v5009 = vpop.permute.xlu0 %5008
        %v5011 = vlaneseq
        %v5012 = vshrl.u32 %v5011, 7
        %v5013 = vsub.s32 5, %v5012
        %v5014 = vrot.slane %v3163, %v5013
        %v5015 = vsub.f32 %v5009, %v5014
        %5016 = vset.pattern.permute.xlu0 13
        %5017 = vperm.xlu0 %5016, %v2674
        %v5018 = vpop.permute.xlu0 %5017
        %v5020 = vlaneseq
        %v5021 = vshrl.u32 %v5020, 7
        %v5022 = vsub.s32 5, %v5021
        %v5023 = vrot.slane %v3165, %v5022
        %v5024 = vsub.f32 %v5018, %v5023
        %v5025 = vmul.f32 %v5006, %v5006
        %v5026 = vmul.f32 %v5015, %v5015
        %v5027 = vadd.f32 %v5025, %v5026
        %v5028 = vmul.f32 %v5024, %v5024
        %v5029 = vadd.f32 %v5027, %v5028
        %v5030 = vrsqrt.pop %v5029
        %v5031 = vmul.f32 %v5029, %v5030
        %vm5032 = vcmp.eq.f32.partialorder %v5029, inf
        %v5033 = vsel %vm5032, %v5029, %v5031
        %vm5034 = vcmp.eq.f32.partialorder %v5029, 0.0
        %v5035 = vand.u32 %v5029, 2147483648
        %v5036 = vsel %vm5034, %v5035, %v5033
        %v5037 = vadd.f32 %v4997, %v5036
        %5038 = vset.pattern.permute.xlu0 14
        %5039 = vperm.xlu0 %5038, %v2630
        %v5040 = vpop.permute.xlu0 %5039
        %v5042 = vlaneseq
        %v5043 = vshrl.u32 %v5042, 7
        %v5044 = vsub.s32 6, %v5043
        %v5045 = vrot.slane %v3161, %v5044
        %v5046 = vsub.f32 %v5040, %v5045
        %5047 = vset.pattern.permute.xlu0 14
        %5048 = vperm.xlu0 %5047, %v2652
        %v5049 = vpop.permute.xlu0 %5048
        %v5051 = vlaneseq
        %v5052 = vshrl.u32 %v5051, 7
        %v5053 = vsub.s32 6, %v5052
        %v5054 = vrot.slane %v3163, %v5053
        %v5055 = vsub.f32 %v5049, %v5054
        %5056 = vset.pattern.permute.xlu0 14
        %5057 = vperm.xlu0 %5056, %v2674
        %v5058 = vpop.permute.xlu0 %5057
        %v5060 = vlaneseq
        %v5061 = vshrl.u32 %v5060, 7
        %v5062 = vsub.s32 6, %v5061
        %v5063 = vrot.slane %v3165, %v5062
        %v5064 = vsub.f32 %v5058, %v5063
        %v5065 = vmul.f32 %v5046, %v5046
        %v5066 = vmul.f32 %v5055, %v5055
        %v5067 = vadd.f32 %v5065, %v5066
        %v5068 = vmul.f32 %v5064, %v5064
        %v5069 = vadd.f32 %v5067, %v5068
        %v5070 = vrsqrt.pop %v5069
        %v5071 = vmul.f32 %v5069, %v5070
        %vm5072 = vcmp.eq.f32.partialorder %v5069, inf
        %v5073 = vsel %vm5072, %v5069, %v5071
        %vm5074 = vcmp.eq.f32.partialorder %v5069, 0.0
        %v5075 = vand.u32 %v5069, 2147483648
        %v5076 = vsel %vm5074, %v5075, %v5073
        %v5077 = vadd.f32 %v5037, %v5076
        %5078 = vset.pattern.permute.xlu0 15
        %5079 = vperm.xlu0 %5078, %v2630
        %v5080 = vpop.permute.xlu0 %5079
        %v5082 = vlaneseq
        %v5083 = vshrl.u32 %v5082, 7
        %v5084 = vsub.s32 7, %v5083
        %v5085 = vrot.slane %v3161, %v5084
        %v5086 = vsub.f32 %v5080, %v5085
        %5087 = vset.pattern.permute.xlu0 15
        %5088 = vperm.xlu0 %5087, %v2652
        %v5089 = vpop.permute.xlu0 %5088
        %v5091 = vlaneseq
        %v5092 = vshrl.u32 %v5091, 7
        %v5093 = vsub.s32 7, %v5092
        %v5094 = vrot.slane %v3163, %v5093
        %v5095 = vsub.f32 %v5089, %v5094
        %5096 = vset.pattern.permute.xlu0 15
        %5097 = vperm.xlu0 %5096, %v2674
        %v5098 = vpop.permute.xlu0 %5097
        %v5100 = vlaneseq
        %v5101 = vshrl.u32 %v5100, 7
        %v5102 = vsub.s32 7, %v5101
        %v5103 = vrot.slane %v3165, %v5102
        %v5104 = vsub.f32 %v5098, %v5103
        %v5105 = vmul.f32 %v5086, %v5086
        %v5106 = vmul.f32 %v5095, %v5095
        %v5107 = vadd.f32 %v5105, %v5106
        %v5108 = vmul.f32 %v5104, %v5104
        %v5109 = vadd.f32 %v5107, %v5108
        %v5110 = vrsqrt.pop %v5109
        %v5111 = vmul.f32 %v5109, %v5110
        %vm5112 = vcmp.eq.f32.partialorder %v5109, inf
        %v5113 = vsel %vm5112, %v5109, %v5111
        %vm5114 = vcmp.eq.f32.partialorder %v5109, 0.0
        %v5115 = vand.u32 %v5109, 2147483648
        %v5116 = vsel %vm5114, %v5115, %v5113
        %v5117 = vadd.f32 %v5077, %v5116
        %5118 = vset.pattern.permute.xlu0 3
        %5119 = vperm.xlu0 %5118, %v3418
        %v5120 = vpop.permute.xlu0 %5119
        %v5122 = vmul.f32 %v5120, %v5117
        %v5123 = vsub.f32 %v4955, %v5122
        %v5124 = vadd.f32 %v5123, %v3146
        %v5125 = vadd.f32 %v5124, %v3172
        %v5126 = vsel %vm3173, %v5125, -inf
        %5127 = vmax.xlane.f32.xlu0 %v5126
        %v5128 = vpop.xlane.xlu0 %5127
        %v5129 = vsub.f32 %v5125, %v5128
        %v5130 = vmul.f32 %v5129, 1.442695
        %v5131 = vpow.pop %v5130
        %v5132 = vsel %vm3173, %v5131, 0.0
        %5133 = vadd.xlane.f32.xlu0 %v5132
        %v5134 = vpop.xlane.xlu0 %5133
        %v5135 = vrcp.pop %v5134
        %v5136 = vmul.f32 %v5131, %v5135
        %s5137 = scalar_lea.vmem [#allocation10], 24
        %5138 = vst.msk [vmem:[%s5137] sm:$0xff] %vm3173, %v5136
        %5139 = vrot.lane.b32.xlu0 %v3159, 104
        %v5140 = vpop.permute.xlu0 %5139
        %v5143 = vsel %vm3173, %v5136, 0
        %5145 = vmatprep.subr.mxu0 0.0
        %5146 = vmatpush1.msra.mxu0 0.0
        %5147 = vmatprep.subr.mxu0 0.0
        %5148 = vmatpush1.msra.mxu0 0.0
        %5149 = vmatprep.subr.mxu0 0.0
        %5150 = vmatpush1.msra.mxu0 0.0
        %5151 = vmatprep.subr.mxu0 0.0
        %5152 = vmatpush1.msra.mxu0 0.0
        %5153 = vmatprep.subr.mxu0 0.0
        %5154 = vmatpush1.msra.mxu0 0.0
        %5155 = vmatprep.subr.mxu0 0.0
        %5156 = vmatpush1.msra.mxu0 0.0
        %5157 = vmatprep.subr.mxu0 0.0
        %5158 = vmatpush1.msra.mxu0 0.0
        %5159 = vmatprep.subr.mxu0 0.0
        %5160 = vmatpush1.msra.mxu0 0.0
        %5161 = vmatprep.subr.mxu0 0.0
        %5162 = vmatpush1.msra.mxu0 0.0
        %5163 = vmatprep.subr.mxu0 0.0
        %5164 = vmatpush1.msra.mxu0 0.0
        %5165 = vmatprep.subr.mxu0 0.0
        %5166 = vmatpush1.msra.mxu0 0.0
        %5167 = vmatprep.subr.mxu0 0.0
        %5168 = vmatpush1.msra.mxu0 0.0
        %5169 = vmatprep.subr.mxu0 0.0
        %5170 = vmatpush1.msra.mxu0 0.0
        %5171 = vmatprep.subr.mxu0 0.0
        %5172 = vmatpush1.msra.mxu0 0.0
        %5173 = vmatprep.subr.mxu0 0.0
        %5174 = vmatpush1.msra.mxu0 0.0
        %5175 = vmatprep.subr.mxu0 0.0
        %5176 = vmatpush1.msra.mxu0 %v5140
        %5177 = vmatprep.subr.mxu0 0.0
        %5178 = vmatpush2.msra.mxu0 0.0
        %5179 = vmatprep.subr.mxu0 0.0
        %5180 = vmatpush2.msra.mxu0 0.0
        %5181 = vmatprep.subr.mxu0 0.0
        %5182 = vmatpush2.msra.mxu0 0.0
        %5183 = vmatprep.subr.mxu0 0.0
        %5184 = vmatpush2.msra.mxu0 0.0
        %5185 = vmatprep.subr.mxu0 0.0
        %5186 = vmatpush2.msra.mxu0 0.0
        %5187 = vmatprep.subr.mxu0 0.0
        %5188 = vmatpush2.msra.mxu0 0.0
        %5189 = vmatprep.subr.mxu0 0.0
        %5190 = vmatpush2.msra.mxu0 0.0
        %5191 = vmatprep.subr.mxu0 0.0
        %5192 = vmatpush2.msra.mxu0 0.0
        %5193 = vmatprep.subr.mxu0 0.0
        %5194 = vmatpush2.msra.mxu0 0.0
        %5195 = vmatprep.subr.mxu0 0.0
        %5196 = vmatpush2.msra.mxu0 0.0
        %5197 = vmatprep.subr.mxu0 0.0
        %5198 = vmatpush2.msra.mxu0 0.0
        %5199 = vmatprep.subr.mxu0 0.0
        %5200 = vmatpush2.msra.mxu0 0.0
        %5201 = vmatprep.subr.mxu0 0.0
        %5202 = vmatpush2.msra.mxu0 0.0
        %5203 = vmatprep.subr.mxu0 0.0
        %5204 = vmatpush2.msra.mxu0 0.0
        %5205 = vmatprep.subr.mxu0 0.0
        %5206 = vmatpush2.msra.mxu0 0.0
        %5207 = vmatprep.subr.mxu0 0.0
        %5208 = vmatpush2.msra.mxu0 0.0
        %5209 = vmatprep.mubr.f32.mxu0 0.0
        %5210 = vmatmul.mubr.f32.gmra.mxu0 %v5143
        %v5211 = vpop.f32.mrf.mxu0
        %v5212 = vadd.f32 0.0, %v5211
        %v5213 = vpop.f32.mrf.mxu0
        %5214 = vdwg.mxu0
        %5216 = vrot.lane.b32.xlu0 %v5212, 24
        %v5217 = vpop.permute.xlu0 %5216
        %vm5219 = vcmask 261312
        %5220 = vst.msk [vmem:[#allocation11] sm:$0xff] %vm5219, %v5217
        %5221 = vrot.lane.b32.xlu0 %v3166, 104
        %v5222 = vpop.permute.xlu0 %5221
        %5224 = vmatprep.subr.mxu0 0.0
        %5225 = vmatpush1.msra.mxu0 0.0
        %5226 = vmatprep.subr.mxu0 0.0
        %5227 = vmatpush1.msra.mxu0 0.0
        %5228 = vmatprep.subr.mxu0 0.0
        %5229 = vmatpush1.msra.mxu0 0.0
        %5230 = vmatprep.subr.mxu0 0.0
        %5231 = vmatpush1.msra.mxu0 0.0
        %5232 = vmatprep.subr.mxu0 0.0
        %5233 = vmatpush1.msra.mxu0 0.0
        %5234 = vmatprep.subr.mxu0 0.0
        %5235 = vmatpush1.msra.mxu0 0.0
        %5236 = vmatprep.subr.mxu0 0.0
        %5237 = vmatpush1.msra.mxu0 0.0
        %5238 = vmatprep.subr.mxu0 0.0
        %5239 = vmatpush1.msra.mxu0 0.0
        %5240 = vmatprep.subr.mxu0 0.0
        %5241 = vmatpush1.msra.mxu0 0.0
        %5242 = vmatprep.subr.mxu0 0.0
        %5243 = vmatpush1.msra.mxu0 0.0
        %5244 = vmatprep.subr.mxu0 0.0
        %5245 = vmatpush1.msra.mxu0 0.0
        %5246 = vmatprep.subr.mxu0 0.0
        %5247 = vmatpush1.msra.mxu0 0.0
        %5248 = vmatprep.subr.mxu0 0.0
        %5249 = vmatpush1.msra.mxu0 0.0
        %5250 = vmatprep.subr.mxu0 0.0
        %5251 = vmatpush1.msra.mxu0 0.0
        %5252 = vmatprep.subr.mxu0 0.0
        %5253 = vmatpush1.msra.mxu0 0.0
        %5254 = vmatprep.subr.mxu0 0.0
        %5255 = vmatpush1.msra.mxu0 %v5222
        %5256 = vmatprep.subr.mxu0 0.0
        %5257 = vmatpush2.msra.mxu0 0.0
        %5258 = vmatprep.subr.mxu0 0.0
        %5259 = vmatpush2.msra.mxu0 0.0
        %5260 = vmatprep.subr.mxu0 0.0
        %5261 = vmatpush2.msra.mxu0 0.0
        %5262 = vmatprep.subr.mxu0 0.0
        %5263 = vmatpush2.msra.mxu0 0.0
        %5264 = vmatprep.subr.mxu0 0.0
        %5265 = vmatpush2.msra.mxu0 0.0
        %5266 = vmatprep.subr.mxu0 0.0
        %5267 = vmatpush2.msra.mxu0 0.0
        %5268 = vmatprep.subr.mxu0 0.0
        %5269 = vmatpush2.msra.mxu0 0.0
        %5270 = vmatprep.subr.mxu0 0.0
        %5271 = vmatpush2.msra.mxu0 0.0
        %5272 = vmatprep.subr.mxu0 0.0
        %5273 = vmatpush2.msra.mxu0 0.0
        %5274 = vmatprep.subr.mxu0 0.0
        %5275 = vmatpush2.msra.mxu0 0.0
        %5276 = vmatprep.subr.mxu0 0.0
        %5277 = vmatpush2.msra.mxu0 0.0
        %5278 = vmatprep.subr.mxu0 0.0
        %5279 = vmatpush2.msra.mxu0 0.0
        %5280 = vmatprep.subr.mxu0 0.0
        %5281 = vmatpush2.msra.mxu0 0.0
        %5282 = vmatprep.subr.mxu0 0.0
        %5283 = vmatpush2.msra.mxu0 0.0
        %5284 = vmatprep.subr.mxu0 0.0
        %5285 = vmatpush2.msra.mxu0 0.0
        %5286 = vmatprep.subr.mxu0 0.0
        %5287 = vmatpush2.msra.mxu0 0.0
        %5288 = vmatprep.mubr.f32.mxu0 0.0
        %5289 = vmatmul.mubr.f32.gmra.mxu0 %v5143
        %v5290 = vpop.f32.mrf.mxu0
        %v5291 = vadd.f32 0.0, %v5290
        %v5292 = vpop.f32.mrf.mxu0
        %5293 = vdwg.mxu0
        %5295 = vrot.lane.b32.xlu0 %v5291, 24
        %v5296 = vpop.permute.xlu0 %5295
        %5298 = vst.msk [vmem:[#allocation12] sm:$0xff] %vm5219, %v5296
        %5299 = vrot.lane.b32.xlu0 %v3167, 104
        %v5300 = vpop.permute.xlu0 %5299
        %5302 = vmatprep.subr.mxu0 0.0
        %5303 = vmatpush1.msra.mxu0 0.0
        %5304 = vmatprep.subr.mxu0 0.0
        %5305 = vmatpush1.msra.mxu0 0.0
        %5306 = vmatprep.subr.mxu0 0.0
        %5307 = vmatpush1.msra.mxu0 0.0
        %5308 = vmatprep.subr.mxu0 0.0
        %5309 = vmatpush1.msra.mxu0 0.0
        %5310 = vmatprep.subr.mxu0 0.0
        %5311 = vmatpush1.msra.mxu0 0.0
        %5312 = vmatprep.subr.mxu0 0.0
        %5313 = vmatpush1.msra.mxu0 0.0
        %5314 = vmatprep.subr.mxu0 0.0
        %5315 = vmatpush1.msra.mxu0 0.0
        %5316 = vmatprep.subr.mxu0 0.0
        %5317 = vmatpush1.msra.mxu0 0.0
        %5318 = vmatprep.subr.mxu0 0.0
        %5319 = vmatpush1.msra.mxu0 0.0
        %5320 = vmatprep.subr.mxu0 0.0
        %5321 = vmatpush1.msra.mxu0 0.0
        %5322 = vmatprep.subr.mxu0 0.0
        %5323 = vmatpush1.msra.mxu0 0.0
        %5324 = vmatprep.subr.mxu0 0.0
        %5325 = vmatpush1.msra.mxu0 0.0
        %5326 = vmatprep.subr.mxu0 0.0
        %5327 = vmatpush1.msra.mxu0 0.0
        %5328 = vmatprep.subr.mxu0 0.0
        %5329 = vmatpush1.msra.mxu0 0.0
        %5330 = vmatprep.subr.mxu0 0.0
        %5331 = vmatpush1.msra.mxu0 0.0
        %5332 = vmatprep.subr.mxu0 0.0
        %5333 = vmatpush1.msra.mxu0 %v5300
        %5334 = vmatprep.subr.mxu0 0.0
        %5335 = vmatpush2.msra.mxu0 0.0
        %5336 = vmatprep.subr.mxu0 0.0
        %5337 = vmatpush2.msra.mxu0 0.0
        %5338 = vmatprep.subr.mxu0 0.0
        %5339 = vmatpush2.msra.mxu0 0.0
        %5340 = vmatprep.subr.mxu0 0.0
        %5341 = vmatpush2.msra.mxu0 0.0
        %5342 = vmatprep.subr.mxu0 0.0
        %5343 = vmatpush2.msra.mxu0 0.0
        %5344 = vmatprep.subr.mxu0 0.0
        %5345 = vmatpush2.msra.mxu0 0.0
        %5346 = vmatprep.subr.mxu0 0.0
        %5347 = vmatpush2.msra.mxu0 0.0
        %5348 = vmatprep.subr.mxu0 0.0
        %5349 = vmatpush2.msra.mxu0 0.0
        %5350 = vmatprep.subr.mxu0 0.0
        %5351 = vmatpush2.msra.mxu0 0.0
        %5352 = vmatprep.subr.mxu0 0.0
        %5353 = vmatpush2.msra.mxu0 0.0
        %5354 = vmatprep.subr.mxu0 0.0
        %5355 = vmatpush2.msra.mxu0 0.0
        %5356 = vmatprep.subr.mxu0 0.0
        %5357 = vmatpush2.msra.mxu0 0.0
        %5358 = vmatprep.subr.mxu0 0.0
        %5359 = vmatpush2.msra.mxu0 0.0
        %5360 = vmatprep.subr.mxu0 0.0
        %5361 = vmatpush2.msra.mxu0 0.0
        %5362 = vmatprep.subr.mxu0 0.0
        %5363 = vmatpush2.msra.mxu0 0.0
        %5364 = vmatprep.subr.mxu0 0.0
        %5365 = vmatpush2.msra.mxu0 0.0
        %5366 = vmatprep.mubr.f32.mxu0 0.0
        %5367 = vmatmul.mubr.f32.gmra.mxu0 %v5143
        %v5368 = vpop.f32.mrf.mxu0
        %v5369 = vadd.f32 0.0, %v5368
        %v5370 = vpop.f32.mrf.mxu0
        %5371 = vdwg.mxu0
        %5373 = vrot.lane.b32.xlu0 %v5369, 24
        %v5374 = vpop.permute.xlu0 %5373
        %5376 = vst.msk [vmem:[#allocation13] sm:$0xff] %vm5219, %v5374
        %5377 = vrot.lane.b32.xlu0 %v3168, 104
        %v5378 = vpop.permute.xlu0 %5377
        %5380 = vmatprep.subr.mxu0 0.0
        %5381 = vmatpush1.msra.mxu0 0.0
        %5382 = vmatprep.subr.mxu0 0.0
        %5383 = vmatpush1.msra.mxu0 0.0
        %5384 = vmatprep.subr.mxu0 0.0
        %5385 = vmatpush1.msra.mxu0 0.0
        %5386 = vmatprep.subr.mxu0 0.0
        %5387 = vmatpush1.msra.mxu0 0.0
        %5388 = vmatprep.subr.mxu0 0.0
        %5389 = vmatpush1.msra.mxu0 0.0
        %5390 = vmatprep.subr.mxu0 0.0
        %5391 = vmatpush1.msra.mxu0 0.0
        %5392 = vmatprep.subr.mxu0 0.0
        %5393 = vmatpush1.msra.mxu0 0.0
        %5394 = vmatprep.subr.mxu0 0.0
        %5395 = vmatpush1.msra.mxu0 0.0
        %5396 = vmatprep.subr.mxu0 0.0
        %5397 = vmatpush1.msra.mxu0 0.0
        %5398 = vmatprep.subr.mxu0 0.0
        %5399 = vmatpush1.msra.mxu0 0.0
        %5400 = vmatprep.subr.mxu0 0.0
        %5401 = vmatpush1.msra.mxu0 0.0
        %5402 = vmatprep.subr.mxu0 0.0
        %5403 = vmatpush1.msra.mxu0 0.0
        %5404 = vmatprep.subr.mxu0 0.0
        %5405 = vmatpush1.msra.mxu0 0.0
        %5406 = vmatprep.subr.mxu0 0.0
        %5407 = vmatpush1.msra.mxu0 0.0
        %5408 = vmatprep.subr.mxu0 0.0
        %5409 = vmatpush1.msra.mxu0 0.0
        %5410 = vmatprep.subr.mxu0 0.0
        %5411 = vmatpush1.msra.mxu0 %v5378
        %5412 = vmatprep.subr.mxu0 0.0
        %5413 = vmatpush2.msra.mxu0 0.0
        %5414 = vmatprep.subr.mxu0 0.0
        %5415 = vmatpush2.msra.mxu0 0.0
        %5416 = vmatprep.subr.mxu0 0.0
        %5417 = vmatpush2.msra.mxu0 0.0
        %5418 = vmatprep.subr.mxu0 0.0
        %5419 = vmatpush2.msra.mxu0 0.0
        %5420 = vmatprep.subr.mxu0 0.0
        %5421 = vmatpush2.msra.mxu0 0.0
        %5422 = vmatprep.subr.mxu0 0.0
        %5423 = vmatpush2.msra.mxu0 0.0
        %5424 = vmatprep.subr.mxu0 0.0
        %5425 = vmatpush2.msra.mxu0 0.0
        %5426 = vmatprep.subr.mxu0 0.0
        %5427 = vmatpush2.msra.mxu0 0.0
        %5428 = vmatprep.subr.mxu0 0.0
        %5429 = vmatpush2.msra.mxu0 0.0
        %5430 = vmatprep.subr.mxu0 0.0
        %5431 = vmatpush2.msra.mxu0 0.0
        %5432 = vmatprep.subr.mxu0 0.0
        %5433 = vmatpush2.msra.mxu0 0.0
        %5434 = vmatprep.subr.mxu0 0.0
        %5435 = vmatpush2.msra.mxu0 0.0
        %5436 = vmatprep.subr.mxu0 0.0
        %5437 = vmatpush2.msra.mxu0 0.0
        %5438 = vmatprep.subr.mxu0 0.0
        %5439 = vmatpush2.msra.mxu0 0.0
        %5440 = vmatprep.subr.mxu0 0.0
        %5441 = vmatpush2.msra.mxu0 0.0
        %5442 = vmatprep.subr.mxu0 0.0
        %5443 = vmatpush2.msra.mxu0 0.0
        %5444 = vmatprep.mubr.f32.mxu0 0.0
        %5445 = vmatmul.mubr.f32.gmra.mxu0 %v5143
        %v5446 = vpop.f32.mrf.mxu0
        %v5447 = vadd.f32 0.0, %v5446
        %v5448 = vpop.f32.mrf.mxu0
        %5449 = vdwg.mxu0
        %5451 = vrot.lane.b32.xlu0 %v5447, 24
        %v5452 = vpop.permute.xlu0 %5451
        %5454 = vst.msk [vmem:[#allocation14] sm:$0xff] %vm5219, %v5452
        %v5455 = vld [vmem:[#allocation11] sm:$0xff]
        %v5456 = vld [vmem:[%s49] sm:$0xff]
        %v5457 = vld [vmem:[%s49 + $0x8] sm:$0xff]
        %v5458 = vld [vmem:[%s49 + $0x10] sm:$0xff]
        %v5459 = vld [vmem:[%s49 + $0x18] sm:$0xff]
        %v5460 = vld [vmem:[#allocation10] sm:$0xff]
        %v5461 = vld [vmem:[#allocation10 + $0x8] sm:$0xff]
        %v5462 = vld [vmem:[#allocation10 + $0x10] sm:$0xff]
        %v5463 = vld [vmem:[#allocation10 + $0x18] sm:$0xff]
        %v5464 = vcombine.low %v5460, %v5462
        %v5465 = vcombine.high %v5460, %v5462
        %v5467 = vunpack.c.l.s4 1983009808
        %v5468 = vunpack.c.0.s8 %v5467
        %v5469 = vlaneseq
        %v5470 = vshrl.u32 %v5469, 7
        %v5471 = vsub.s32 %v5468, %v5470
        %v5472 = vrot.slane %v5464, %v5471
        %v5474 = vunpack.c.l.s4 1983009808
        %v5475 = vunpack.c.0.s8 %v5474
        %v5476 = vlaneseq
        %v5477 = vshrl.u32 %v5476, 7
        %v5478 = vsub.s32 %v5475, %v5477
        %v5479 = vrot.slane %v5465, %v5478
        %v5480 = vcombine.low %v5461, %v5463
        %v5481 = vcombine.high %v5461, %v5463
        %v5483 = vunpack.c.l.s4 1983009808
        %v5484 = vunpack.c.0.s8 %v5483
        %v5485 = vlaneseq
        %v5486 = vshrl.u32 %v5485, 7
        %v5487 = vsub.s32 %v5484, %v5486
        %v5488 = vrot.slane %v5480, %v5487
        %v5490 = vunpack.c.l.s4 1983009808
        %v5491 = vunpack.c.0.s8 %v5490
        %v5492 = vlaneseq
        %v5493 = vshrl.u32 %v5492, 7
        %v5494 = vsub.s32 %v5491, %v5493
        %v5495 = vrot.slane %v5481, %v5494
        %v5496 = vcombine.low %v5472, %v5488
        %v5497 = vcombine.high %v5472, %v5488
        %v5499 = vunpack.c.l.s4 1934713408
        %v5500 = vunpack.c.0.s8 %v5499
        %v5501 = vlaneseq
        %v5502 = vshrl.u32 %v5501, 7
        %v5503 = vsub.s32 %v5500, %v5502
        %v5504 = vrot.slane %v5496, %v5503
        %v5506 = vunpack.c.l.s4 1934713408
        %v5507 = vunpack.c.0.s8 %v5506
        %v5508 = vlaneseq
        %v5509 = vshrl.u32 %v5508, 7
        %v5510 = vsub.s32 %v5507, %v5509
        %v5511 = vrot.slane %v5497, %v5510
        %v5512 = vcombine.low %v5479, %v5495
        %v5513 = vcombine.high %v5479, %v5495
        %v5515 = vunpack.c.l.s4 1934713408
        %v5516 = vunpack.c.0.s8 %v5515
        %v5517 = vlaneseq
        %v5518 = vshrl.u32 %v5517, 7
        %v5519 = vsub.s32 %v5516, %v5518
        %v5520 = vrot.slane %v5512, %v5519
        %v5522 = vunpack.c.l.s4 1934713408
        %v5523 = vunpack.c.0.s8 %v5522
        %v5524 = vlaneseq
        %v5525 = vshrl.u32 %v5524, 7
        %v5526 = vsub.s32 %v5523, %v5525
        %v5527 = vrot.slane %v5513, %v5526
        %v5528 = vcombine.high %v5504, 0.0
        %v5529 = vcombine.high %v5511, 0.0
        %v5530 = vcombine.high %v5520, 0.0
        %v5531 = vcombine.high %v5527, 0.0
        %v5533 = vsel %vm3173, %v5504, 0
        %5535 = vmatprep.subr.mxu0 0.0
        %5536 = vmatpush1.msra.mxu0 0.0
        %5537 = vmatprep.subr.mxu0 0.0
        %5538 = vmatpush1.msra.mxu0 0.0
        %5539 = vmatprep.subr.mxu0 0.0
        %5540 = vmatpush1.msra.mxu0 0.0
        %5541 = vmatprep.subr.mxu0 0.0
        %5542 = vmatpush1.msra.mxu0 0.0
        %5543 = vmatprep.subr.mxu0 0.0
        %5544 = vmatpush1.msra.mxu0 0.0
        %5545 = vmatprep.subr.mxu0 0.0
        %5546 = vmatpush1.msra.mxu0 0.0
        %5547 = vmatprep.subr.mxu0 0.0
        %5548 = vmatpush1.msra.mxu0 0.0
        %5549 = vmatprep.subr.mxu0 0.0
        %5550 = vmatpush1.msra.mxu0 0.0
        %5551 = vmatprep.subr.mxu0 0.0
        %5552 = vmatpush1.msra.mxu0 0.0
        %5553 = vmatprep.subr.mxu0 0.0
        %5554 = vmatpush1.msra.mxu0 0.0
        %5555 = vmatprep.subr.mxu0 0.0
        %5556 = vmatpush1.msra.mxu0 0.0
        %5557 = vmatprep.subr.mxu0 0.0
        %5558 = vmatpush1.msra.mxu0 0.0
        %5559 = vmatprep.subr.mxu0 0.0
        %5560 = vmatpush1.msra.mxu0 0.0
        %5561 = vmatprep.subr.mxu0 0.0
        %5562 = vmatpush1.msra.mxu0 0.0
        %5563 = vmatprep.subr.mxu0 0.0
        %5564 = vmatpush1.msra.mxu0 0.0
        %5565 = vmatprep.subr.mxu0 0.0
        %5566 = vmatpush1.msra.mxu0 %v2675
        %5567 = vmatprep.subr.mxu0 0.0
        %5568 = vmatpush2.msra.mxu0 0.0
        %5569 = vmatprep.subr.mxu0 0.0
        %5570 = vmatpush2.msra.mxu0 0.0
        %5571 = vmatprep.subr.mxu0 0.0
        %5572 = vmatpush2.msra.mxu0 0.0
        %5573 = vmatprep.subr.mxu0 0.0
        %5574 = vmatpush2.msra.mxu0 0.0
        %5575 = vmatprep.subr.mxu0 0.0
        %5576 = vmatpush2.msra.mxu0 0.0
        %5577 = vmatprep.subr.mxu0 0.0
        %5578 = vmatpush2.msra.mxu0 0.0
        %5579 = vmatprep.subr.mxu0 0.0
        %5580 = vmatpush2.msra.mxu0 0.0
        %5581 = vmatprep.subr.mxu0 0.0
        %5582 = vmatpush2.msra.mxu0 0.0
        %5583 = vmatprep.subr.mxu0 0.0
        %5584 = vmatpush2.msra.mxu0 0.0
        %5585 = vmatprep.subr.mxu0 0.0
        %5586 = vmatpush2.msra.mxu0 0.0
        %5587 = vmatprep.subr.mxu0 0.0
        %5588 = vmatpush2.msra.mxu0 0.0
        %5589 = vmatprep.subr.mxu0 0.0
        %5590 = vmatpush2.msra.mxu0 0.0
        %5591 = vmatprep.subr.mxu0 0.0
        %5592 = vmatpush2.msra.mxu0 0.0
        %5593 = vmatprep.subr.mxu0 0.0
        %5594 = vmatpush2.msra.mxu0 0.0
        %5595 = vmatprep.subr.mxu0 0.0
        %5596 = vmatpush2.msra.mxu0 0.0
        %5597 = vmatprep.subr.mxu0 0.0
        %5598 = vmatpush2.msra.mxu0 0.0
        %5599 = vmatprep.mubr.f32.mxu0 0.0
        %5600 = vmatmul.mubr.f32.gmra.mxu0 %v5533
        %v5601 = vpop.f32.mrf.mxu0
        %v5602 = vadd.f32 0.0, %v5601
        %v5603 = vpop.f32.mrf.mxu0
        %5604 = vdwg.mxu0
        %v5606 = vsel %vm3173, %v5528, 0
        %5608 = vmatprep.subr.mxu0 0.0
        %5609 = vmatpush1.msra.mxu0 0.0
        %5610 = vmatprep.subr.mxu0 0.0
        %5611 = vmatpush1.msra.mxu0 0.0
        %5612 = vmatprep.subr.mxu0 0.0
        %5613 = vmatpush1.msra.mxu0 0.0
        %5614 = vmatprep.subr.mxu0 0.0
        %5615 = vmatpush1.msra.mxu0 0.0
        %5616 = vmatprep.subr.mxu0 0.0
        %5617 = vmatpush1.msra.mxu0 0.0
        %5618 = vmatprep.subr.mxu0 0.0
        %5619 = vmatpush1.msra.mxu0 0.0
        %5620 = vmatprep.subr.mxu0 0.0
        %5621 = vmatpush1.msra.mxu0 0.0
        %5622 = vmatprep.subr.mxu0 0.0
        %5623 = vmatpush1.msra.mxu0 0.0
        %5624 = vmatprep.subr.mxu0 0.0
        %5625 = vmatpush1.msra.mxu0 0.0
        %5626 = vmatprep.subr.mxu0 0.0
        %5627 = vmatpush1.msra.mxu0 0.0
        %5628 = vmatprep.subr.mxu0 0.0
        %5629 = vmatpush1.msra.mxu0 0.0
        %5630 = vmatprep.subr.mxu0 0.0
        %5631 = vmatpush1.msra.mxu0 0.0
        %5632 = vmatprep.subr.mxu0 0.0
        %5633 = vmatpush1.msra.mxu0 0.0
        %5634 = vmatprep.subr.mxu0 0.0
        %5635 = vmatpush1.msra.mxu0 0.0
        %5636 = vmatprep.subr.mxu0 0.0
        %5637 = vmatpush1.msra.mxu0 0.0
        %5638 = vmatprep.subr.mxu0 0.0
        %5639 = vmatpush1.msra.mxu0 %v2676
        %5640 = vmatprep.subr.mxu0 0.0
        %5641 = vmatpush2.msra.mxu0 0.0
        %5642 = vmatprep.subr.mxu0 0.0
        %5643 = vmatpush2.msra.mxu0 0.0
        %5644 = vmatprep.subr.mxu0 0.0
        %5645 = vmatpush2.msra.mxu0 0.0
        %5646 = vmatprep.subr.mxu0 0.0
        %5647 = vmatpush2.msra.mxu0 0.0
        %5648 = vmatprep.subr.mxu0 0.0
        %5649 = vmatpush2.msra.mxu0 0.0
        %5650 = vmatprep.subr.mxu0 0.0
        %5651 = vmatpush2.msra.mxu0 0.0
        %5652 = vmatprep.subr.mxu0 0.0
        %5653 = vmatpush2.msra.mxu0 0.0
        %5654 = vmatprep.subr.mxu0 0.0
        %5655 = vmatpush2.msra.mxu0 0.0
        %5656 = vmatprep.subr.mxu0 0.0
        %5657 = vmatpush2.msra.mxu0 0.0
        %5658 = vmatprep.subr.mxu0 0.0
        %5659 = vmatpush2.msra.mxu0 0.0
        %5660 = vmatprep.subr.mxu0 0.0
        %5661 = vmatpush2.msra.mxu0 0.0
        %5662 = vmatprep.subr.mxu0 0.0
        %5663 = vmatpush2.msra.mxu0 0.0
        %5664 = vmatprep.subr.mxu0 0.0
        %5665 = vmatpush2.msra.mxu0 0.0
        %5666 = vmatprep.subr.mxu0 0.0
        %5667 = vmatpush2.msra.mxu0 0.0
        %5668 = vmatprep.subr.mxu0 0.0
        %5669 = vmatpush2.msra.mxu0 0.0
        %5670 = vmatprep.subr.mxu0 0.0
        %5671 = vmatpush2.msra.mxu0 0.0
        %5672 = vmatprep.mubr.f32.mxu0 0.0
        %5673 = vmatmul.mubr.f32.gmra.mxu0 %v5606
        %v5674 = vpop.f32.mrf.mxu0
        %v5675 = vadd.f32 0.0, %v5674
        %v5676 = vpop.f32.mrf.mxu0
        %5677 = vdwg.mxu0
        %v5679 = vsel %vm3173, %v5511, 0
        %5681 = vmatprep.subr.mxu0 0.0
        %5682 = vmatpush1.msra.mxu0 0.0
        %5683 = vmatprep.subr.mxu0 0.0
        %5684 = vmatpush1.msra.mxu0 0.0
        %5685 = vmatprep.subr.mxu0 0.0
        %5686 = vmatpush1.msra.mxu0 0.0
        %5687 = vmatprep.subr.mxu0 0.0
        %5688 = vmatpush1.msra.mxu0 0.0
        %5689 = vmatprep.subr.mxu0 0.0
        %5690 = vmatpush1.msra.mxu0 0.0
        %5691 = vmatprep.subr.mxu0 0.0
        %5692 = vmatpush1.msra.mxu0 0.0
        %5693 = vmatprep.subr.mxu0 0.0
        %5694 = vmatpush1.msra.mxu0 0.0
        %5695 = vmatprep.subr.mxu0 0.0
        %5696 = vmatpush1.msra.mxu0 0.0
        %5697 = vmatprep.subr.mxu0 0.0
        %5698 = vmatpush1.msra.mxu0 0.0
        %5699 = vmatprep.subr.mxu0 0.0
        %5700 = vmatpush1.msra.mxu0 0.0
        %5701 = vmatprep.subr.mxu0 0.0
        %5702 = vmatpush1.msra.mxu0 0.0
        %5703 = vmatprep.subr.mxu0 0.0
        %5704 = vmatpush1.msra.mxu0 0.0
        %5705 = vmatprep.subr.mxu0 0.0
        %5706 = vmatpush1.msra.mxu0 0.0
        %5707 = vmatprep.subr.mxu0 0.0
        %5708 = vmatpush1.msra.mxu0 0.0
        %5709 = vmatprep.subr.mxu0 0.0
        %5710 = vmatpush1.msra.mxu0 0.0
        %5711 = vmatprep.subr.mxu0 0.0
        %5712 = vmatpush1.msra.mxu0 %v2677
        %5713 = vmatprep.subr.mxu0 0.0
        %5714 = vmatpush2.msra.mxu0 0.0
        %5715 = vmatprep.subr.mxu0 0.0
        %5716 = vmatpush2.msra.mxu0 0.0
        %5717 = vmatprep.subr.mxu0 0.0
        %5718 = vmatpush2.msra.mxu0 0.0
        %5719 = vmatprep.subr.mxu0 0.0
        %5720 = vmatpush2.msra.mxu0 0.0
        %5721 = vmatprep.subr.mxu0 0.0
        %5722 = vmatpush2.msra.mxu0 0.0
        %5723 = vmatprep.subr.mxu0 0.0
        %5724 = vmatpush2.msra.mxu0 0.0
        %5725 = vmatprep.subr.mxu0 0.0
        %5726 = vmatpush2.msra.mxu0 0.0
        %5727 = vmatprep.subr.mxu0 0.0
        %5728 = vmatpush2.msra.mxu0 0.0
        %5729 = vmatprep.subr.mxu0 0.0
        %5730 = vmatpush2.msra.mxu0 0.0
        %5731 = vmatprep.subr.mxu0 0.0
        %5732 = vmatpush2.msra.mxu0 0.0
        %5733 = vmatprep.subr.mxu0 0.0
        %5734 = vmatpush2.msra.mxu0 0.0
        %5735 = vmatprep.subr.mxu0 0.0
        %5736 = vmatpush2.msra.mxu0 0.0
        %5737 = vmatprep.subr.mxu0 0.0
        %5738 = vmatpush2.msra.mxu0 0.0
        %5739 = vmatprep.subr.mxu0 0.0
        %5740 = vmatpush2.msra.mxu0 0.0
        %5741 = vmatprep.subr.mxu0 0.0
        %5742 = vmatpush2.msra.mxu0 0.0
        %5743 = vmatprep.subr.mxu0 0.0
        %5744 = vmatpush2.msra.mxu0 0.0
        %5745 = vmatprep.mubr.f32.mxu0 0.0
        %5746 = vmatmul.mubr.f32.gmra.mxu0 %v5679
        %v5747 = vpop.f32.mrf.mxu0
        %v5748 = vadd.f32 0.0, %v5747
        %v5749 = vpop.f32.mrf.mxu0
        %5750 = vdwg.mxu0
        %v5752 = vsel %vm3173, %v5529, 0
        %5754 = vmatprep.subr.mxu0 0.0
        %5755 = vmatpush1.msra.mxu0 0.0
        %5756 = vmatprep.subr.mxu0 0.0
        %5757 = vmatpush1.msra.mxu0 0.0
        %5758 = vmatprep.subr.mxu0 0.0
        %5759 = vmatpush1.msra.mxu0 0.0
        %5760 = vmatprep.subr.mxu0 0.0
        %5761 = vmatpush1.msra.mxu0 0.0
        %5762 = vmatprep.subr.mxu0 0.0
        %5763 = vmatpush1.msra.mxu0 0.0
        %5764 = vmatprep.subr.mxu0 0.0
        %5765 = vmatpush1.msra.mxu0 0.0
        %5766 = vmatprep.subr.mxu0 0.0
        %5767 = vmatpush1.msra.mxu0 0.0
        %5768 = vmatprep.subr.mxu0 0.0
        %5769 = vmatpush1.msra.mxu0 0.0
        %5770 = vmatprep.subr.mxu0 0.0
        %5771 = vmatpush1.msra.mxu0 0.0
        %5772 = vmatprep.subr.mxu0 0.0
        %5773 = vmatpush1.msra.mxu0 0.0
        %5774 = vmatprep.subr.mxu0 0.0
        %5775 = vmatpush1.msra.mxu0 0.0
        %5776 = vmatprep.subr.mxu0 0.0
        %5777 = vmatpush1.msra.mxu0 0.0
        %5778 = vmatprep.subr.mxu0 0.0
        %5779 = vmatpush1.msra.mxu0 0.0
        %5780 = vmatprep.subr.mxu0 0.0
        %5781 = vmatpush1.msra.mxu0 0.0
        %5782 = vmatprep.subr.mxu0 0.0
        %5783 = vmatpush1.msra.mxu0 0.0
        %5784 = vmatprep.subr.mxu0 0.0
        %5785 = vmatpush1.msra.mxu0 %v2678
        %5786 = vmatprep.subr.mxu0 0.0
        %5787 = vmatpush2.msra.mxu0 0.0
        %5788 = vmatprep.subr.mxu0 0.0
        %5789 = vmatpush2.msra.mxu0 0.0
        %5790 = vmatprep.subr.mxu0 0.0
        %5791 = vmatpush2.msra.mxu0 0.0
        %5792 = vmatprep.subr.mxu0 0.0
        %5793 = vmatpush2.msra.mxu0 0.0
        %5794 = vmatprep.subr.mxu0 0.0
        %5795 = vmatpush2.msra.mxu0 0.0
        %5796 = vmatprep.subr.mxu0 0.0
        %5797 = vmatpush2.msra.mxu0 0.0
        %5798 = vmatprep.subr.mxu0 0.0
        %5799 = vmatpush2.msra.mxu0 0.0
        %5800 = vmatprep.subr.mxu0 0.0
        %5801 = vmatpush2.msra.mxu0 0.0
        %5802 = vmatprep.subr.mxu0 0.0
        %5803 = vmatpush2.msra.mxu0 0.0
        %5804 = vmatprep.subr.mxu0 0.0
        %5805 = vmatpush2.msra.mxu0 0.0
        %5806 = vmatprep.subr.mxu0 0.0
        %5807 = vmatpush2.msra.mxu0 0.0
        %5808 = vmatprep.subr.mxu0 0.0
        %5809 = vmatpush2.msra.mxu0 0.0
        %5810 = vmatprep.subr.mxu0 0.0
        %5811 = vmatpush2.msra.mxu0 0.0
        %5812 = vmatprep.subr.mxu0 0.0
        %5813 = vmatpush2.msra.mxu0 0.0
        %5814 = vmatprep.subr.mxu0 0.0
        %5815 = vmatpush2.msra.mxu0 0.0
        %5816 = vmatprep.subr.mxu0 0.0
        %5817 = vmatpush2.msra.mxu0 0.0
        %5818 = vmatprep.mubr.f32.mxu0 0.0
        %5819 = vmatmul.mubr.f32.gmra.mxu0 %v5752
        %v5820 = vpop.f32.mrf.mxu0
        %v5821 = vadd.f32 0.0, %v5820
        %v5822 = vpop.f32.mrf.mxu0
        %5823 = vdwg.mxu0
        %v5825 = vsel %vm3173, %v5520, 0
        %5827 = vmatprep.subr.mxu0 0.0
        %5828 = vmatpush1.msra.mxu0 0.0
        %5829 = vmatprep.subr.mxu0 0.0
        %5830 = vmatpush1.msra.mxu0 0.0
        %5831 = vmatprep.subr.mxu0 0.0
        %5832 = vmatpush1.msra.mxu0 0.0
        %5833 = vmatprep.subr.mxu0 0.0
        %5834 = vmatpush1.msra.mxu0 0.0
        %5835 = vmatprep.subr.mxu0 0.0
        %5836 = vmatpush1.msra.mxu0 0.0
        %5837 = vmatprep.subr.mxu0 0.0
        %5838 = vmatpush1.msra.mxu0 0.0
        %5839 = vmatprep.subr.mxu0 0.0
        %5840 = vmatpush1.msra.mxu0 0.0
        %5841 = vmatprep.subr.mxu0 0.0
        %5842 = vmatpush1.msra.mxu0 0.0
        %5843 = vmatprep.subr.mxu0 0.0
        %5844 = vmatpush1.msra.mxu0 0.0
        %5845 = vmatprep.subr.mxu0 0.0
        %5846 = vmatpush1.msra.mxu0 0.0
        %5847 = vmatprep.subr.mxu0 0.0
        %5848 = vmatpush1.msra.mxu0 0.0
        %5849 = vmatprep.subr.mxu0 0.0
        %5850 = vmatpush1.msra.mxu0 0.0
        %5851 = vmatprep.subr.mxu0 0.0
        %5852 = vmatpush1.msra.mxu0 0.0
        %5853 = vmatprep.subr.mxu0 0.0
        %5854 = vmatpush1.msra.mxu0 0.0
        %5855 = vmatprep.subr.mxu0 0.0
        %5856 = vmatpush1.msra.mxu0 0.0
        %5857 = vmatprep.subr.mxu0 0.0
        %5858 = vmatpush1.msra.mxu0 %v2679
        %5859 = vmatprep.subr.mxu0 0.0
        %5860 = vmatpush2.msra.mxu0 0.0
        %5861 = vmatprep.subr.mxu0 0.0
        %5862 = vmatpush2.msra.mxu0 0.0
        %5863 = vmatprep.subr.mxu0 0.0
        %5864 = vmatpush2.msra.mxu0 0.0
        %5865 = vmatprep.subr.mxu0 0.0
        %5866 = vmatpush2.msra.mxu0 0.0
        %5867 = vmatprep.subr.mxu0 0.0
        %5868 = vmatpush2.msra.mxu0 0.0
        %5869 = vmatprep.subr.mxu0 0.0
        %5870 = vmatpush2.msra.mxu0 0.0
        %5871 = vmatprep.subr.mxu0 0.0
        %5872 = vmatpush2.msra.mxu0 0.0
        %5873 = vmatprep.subr.mxu0 0.0
        %5874 = vmatpush2.msra.mxu0 0.0
        %5875 = vmatprep.subr.mxu0 0.0
        %5876 = vmatpush2.msra.mxu0 0.0
        %5877 = vmatprep.subr.mxu0 0.0
        %5878 = vmatpush2.msra.mxu0 0.0
        %5879 = vmatprep.subr.mxu0 0.0
        %5880 = vmatpush2.msra.mxu0 0.0
        %5881 = vmatprep.subr.mxu0 0.0
        %5882 = vmatpush2.msra.mxu0 0.0
        %5883 = vmatprep.subr.mxu0 0.0
        %5884 = vmatpush2.msra.mxu0 0.0
        %5885 = vmatprep.subr.mxu0 0.0
        %5886 = vmatpush2.msra.mxu0 0.0
        %5887 = vmatprep.subr.mxu0 0.0
        %5888 = vmatpush2.msra.mxu0 0.0
        %5889 = vmatprep.subr.mxu0 0.0
        %5890 = vmatpush2.msra.mxu0 0.0
        %5891 = vmatprep.mubr.f32.mxu0 0.0
        %5892 = vmatmul.mubr.f32.gmra.mxu0 %v5825
        %v5893 = vpop.f32.mrf.mxu0
        %v5894 = vadd.f32 0.0, %v5893
        %v5895 = vpop.f32.mrf.mxu0
        %5896 = vdwg.mxu0
        %v5898 = vsel %vm3173, %v5530, 0
        %5900 = vmatprep.subr.mxu0 0.0
        %5901 = vmatpush1.msra.mxu0 0.0
        %5902 = vmatprep.subr.mxu0 0.0
        %5903 = vmatpush1.msra.mxu0 0.0
        %5904 = vmatprep.subr.mxu0 0.0
        %5905 = vmatpush1.msra.mxu0 0.0
        %5906 = vmatprep.subr.mxu0 0.0
        %5907 = vmatpush1.msra.mxu0 0.0
        %5908 = vmatprep.subr.mxu0 0.0
        %5909 = vmatpush1.msra.mxu0 0.0
        %5910 = vmatprep.subr.mxu0 0.0
        %5911 = vmatpush1.msra.mxu0 0.0
        %5912 = vmatprep.subr.mxu0 0.0
        %5913 = vmatpush1.msra.mxu0 0.0
        %5914 = vmatprep.subr.mxu0 0.0
        %5915 = vmatpush1.msra.mxu0 0.0
        %5916 = vmatprep.subr.mxu0 0.0
        %5917 = vmatpush1.msra.mxu0 0.0
        %5918 = vmatprep.subr.mxu0 0.0
        %5919 = vmatpush1.msra.mxu0 0.0
        %5920 = vmatprep.subr.mxu0 0.0
        %5921 = vmatpush1.msra.mxu0 0.0
        %5922 = vmatprep.subr.mxu0 0.0
        %5923 = vmatpush1.msra.mxu0 0.0
        %5924 = vmatprep.subr.mxu0 0.0
        %5925 = vmatpush1.msra.mxu0 0.0
        %5926 = vmatprep.subr.mxu0 0.0
        %5927 = vmatpush1.msra.mxu0 0.0
        %5928 = vmatprep.subr.mxu0 0.0
        %5929 = vmatpush1.msra.mxu0 0.0
        %5930 = vmatprep.subr.mxu0 0.0
        %5931 = vmatpush1.msra.mxu0 %v2680
        %5932 = vmatprep.subr.mxu0 0.0
        %5933 = vmatpush2.msra.mxu0 0.0
        %5934 = vmatprep.subr.mxu0 0.0
        %5935 = vmatpush2.msra.mxu0 0.0
        %5936 = vmatprep.subr.mxu0 0.0
        %5937 = vmatpush2.msra.mxu0 0.0
        %5938 = vmatprep.subr.mxu0 0.0
        %5939 = vmatpush2.msra.mxu0 0.0
        %5940 = vmatprep.subr.mxu0 0.0
        %5941 = vmatpush2.msra.mxu0 0.0
        %5942 = vmatprep.subr.mxu0 0.0
        %5943 = vmatpush2.msra.mxu0 0.0
        %5944 = vmatprep.subr.mxu0 0.0
        %5945 = vmatpush2.msra.mxu0 0.0
        %5946 = vmatprep.subr.mxu0 0.0
        %5947 = vmatpush2.msra.mxu0 0.0
        %5948 = vmatprep.subr.mxu0 0.0
        %5949 = vmatpush2.msra.mxu0 0.0
        %5950 = vmatprep.subr.mxu0 0.0
        %5951 = vmatpush2.msra.mxu0 0.0
        %5952 = vmatprep.subr.mxu0 0.0
        %5953 = vmatpush2.msra.mxu0 0.0
        %5954 = vmatprep.subr.mxu0 0.0
        %5955 = vmatpush2.msra.mxu0 0.0
        %5956 = vmatprep.subr.mxu0 0.0
        %5957 = vmatpush2.msra.mxu0 0.0
        %5958 = vmatprep.subr.mxu0 0.0
        %5959 = vmatpush2.msra.mxu0 0.0
        %5960 = vmatprep.subr.mxu0 0.0
        %5961 = vmatpush2.msra.mxu0 0.0
        %5962 = vmatprep.subr.mxu0 0.0
        %5963 = vmatpush2.msra.mxu0 0.0
        %5964 = vmatprep.mubr.f32.mxu0 0.0
        %5965 = vmatmul.mubr.f32.gmra.mxu0 %v5898
        %v5966 = vpop.f32.mrf.mxu0
        %v5967 = vadd.f32 0.0, %v5966
        %v5968 = vpop.f32.mrf.mxu0
        %5969 = vdwg.mxu0
        %v5971 = vsel %vm3173, %v5527, 0
        %5973 = vmatprep.subr.mxu0 0.0
        %5974 = vmatpush1.msra.mxu0 0.0
        %5975 = vmatprep.subr.mxu0 0.0
        %5976 = vmatpush1.msra.mxu0 0.0
        %5977 = vmatprep.subr.mxu0 0.0
        %5978 = vmatpush1.msra.mxu0 0.0
        %5979 = vmatprep.subr.mxu0 0.0
        %5980 = vmatpush1.msra.mxu0 0.0
        %5981 = vmatprep.subr.mxu0 0.0
        %5982 = vmatpush1.msra.mxu0 0.0
        %5983 = vmatprep.subr.mxu0 0.0
        %5984 = vmatpush1.msra.mxu0 0.0
        %5985 = vmatprep.subr.mxu0 0.0
        %5986 = vmatpush1.msra.mxu0 0.0
        %5987 = vmatprep.subr.mxu0 0.0
        %5988 = vmatpush1.msra.mxu0 0.0
        %5989 = vmatprep.subr.mxu0 0.0
        %5990 = vmatpush1.msra.mxu0 0.0
        %5991 = vmatprep.subr.mxu0 0.0
        %5992 = vmatpush1.msra.mxu0 0.0
        %5993 = vmatprep.subr.mxu0 0.0
        %5994 = vmatpush1.msra.mxu0 0.0
        %5995 = vmatprep.subr.mxu0 0.0
        %5996 = vmatpush1.msra.mxu0 0.0
        %5997 = vmatprep.subr.mxu0 0.0
        %5998 = vmatpush1.msra.mxu0 0.0
        %5999 = vmatprep.subr.mxu0 0.0
        %6000 = vmatpush1.msra.mxu0 0.0
        %6001 = vmatprep.subr.mxu0 0.0
        %6002 = vmatpush1.msra.mxu0 0.0
        %6003 = vmatprep.subr.mxu0 0.0
        %6004 = vmatpush1.msra.mxu0 %v2681
        %6005 = vmatprep.subr.mxu0 0.0
        %6006 = vmatpush2.msra.mxu0 0.0
        %6007 = vmatprep.subr.mxu0 0.0
        %6008 = vmatpush2.msra.mxu0 0.0
        %6009 = vmatprep.subr.mxu0 0.0
        %6010 = vmatpush2.msra.mxu0 0.0
        %6011 = vmatprep.subr.mxu0 0.0
        %6012 = vmatpush2.msra.mxu0 0.0
        %6013 = vmatprep.subr.mxu0 0.0
        %6014 = vmatpush2.msra.mxu0 0.0
        %6015 = vmatprep.subr.mxu0 0.0
        %6016 = vmatpush2.msra.mxu0 0.0
        %6017 = vmatprep.subr.mxu0 0.0
        %6018 = vmatpush2.msra.mxu0 0.0
        %6019 = vmatprep.subr.mxu0 0.0
        %6020 = vmatpush2.msra.mxu0 0.0
        %6021 = vmatprep.subr.mxu0 0.0
        %6022 = vmatpush2.msra.mxu0 0.0
        %6023 = vmatprep.subr.mxu0 0.0
        %6024 = vmatpush2.msra.mxu0 0.0
        %6025 = vmatprep.subr.mxu0 0.0
        %6026 = vmatpush2.msra.mxu0 0.0
        %6027 = vmatprep.subr.mxu0 0.0
        %6028 = vmatpush2.msra.mxu0 0.0
        %6029 = vmatprep.subr.mxu0 0.0
        %6030 = vmatpush2.msra.mxu0 0.0
        %6031 = vmatprep.subr.mxu0 0.0
        %6032 = vmatpush2.msra.mxu0 0.0
        %6033 = vmatprep.subr.mxu0 0.0
        %6034 = vmatpush2.msra.mxu0 0.0
        %6035 = vmatprep.subr.mxu0 0.0
        %6036 = vmatpush2.msra.mxu0 0.0
        %6037 = vmatprep.mubr.f32.mxu0 0.0
        %6038 = vmatmul.mubr.f32.gmra.mxu0 %v5971
        %v6039 = vpop.f32.mrf.mxu0
        %v6040 = vadd.f32 0.0, %v6039
        %v6041 = vpop.f32.mrf.mxu0
        %6042 = vdwg.mxu0
        %v6044 = vsel %vm3173, %v5531, 0
        %6046 = vmatprep.subr.mxu0 0.0
        %6047 = vmatpush1.msra.mxu0 0.0
        %6048 = vmatprep.subr.mxu0 0.0
        %6049 = vmatpush1.msra.mxu0 0.0
        %6050 = vmatprep.subr.mxu0 0.0
        %6051 = vmatpush1.msra.mxu0 0.0
        %6052 = vmatprep.subr.mxu0 0.0
        %6053 = vmatpush1.msra.mxu0 0.0
        %6054 = vmatprep.subr.mxu0 0.0
        %6055 = vmatpush1.msra.mxu0 0.0
        %6056 = vmatprep.subr.mxu0 0.0
        %6057 = vmatpush1.msra.mxu0 0.0
        %6058 = vmatprep.subr.mxu0 0.0
        %6059 = vmatpush1.msra.mxu0 0.0
        %6060 = vmatprep.subr.mxu0 0.0
        %6061 = vmatpush1.msra.mxu0 0.0
        %6062 = vmatprep.subr.mxu0 0.0
        %6063 = vmatpush1.msra.mxu0 0.0
        %6064 = vmatprep.subr.mxu0 0.0
        %6065 = vmatpush1.msra.mxu0 0.0
        %6066 = vmatprep.subr.mxu0 0.0
        %6067 = vmatpush1.msra.mxu0 0.0
        %6068 = vmatprep.subr.mxu0 0.0
        %6069 = vmatpush1.msra.mxu0 0.0
        %6070 = vmatprep.subr.mxu0 0.0
        %6071 = vmatpush1.msra.mxu0 0.0
        %6072 = vmatprep.subr.mxu0 0.0
        %6073 = vmatpush1.msra.mxu0 0.0
        %6074 = vmatprep.subr.mxu0 0.0
        %6075 = vmatpush1.msra.mxu0 0.0
        %6076 = vmatprep.subr.mxu0 0.0
        %6077 = vmatpush1.msra.mxu0 %v2682
        %6078 = vmatprep.subr.mxu0 0.0
        %6079 = vmatpush2.msra.mxu0 0.0
        %6080 = vmatprep.subr.mxu0 0.0
        %6081 = vmatpush2.msra.mxu0 0.0
        %6082 = vmatprep.subr.mxu0 0.0
        %6083 = vmatpush2.msra.mxu0 0.0
        %6084 = vmatprep.subr.mxu0 0.0
        %6085 = vmatpush2.msra.mxu0 0.0
        %6086 = vmatprep.subr.mxu0 0.0
        %6087 = vmatpush2.msra.mxu0 0.0
        %6088 = vmatprep.subr.mxu0 0.0
        %6089 = vmatpush2.msra.mxu0 0.0
        %6090 = vmatprep.subr.mxu0 0.0
        %6091 = vmatpush2.msra.mxu0 0.0
        %6092 = vmatprep.subr.mxu0 0.0
        %6093 = vmatpush2.msra.mxu0 0.0
        %6094 = vmatprep.subr.mxu0 0.0
        %6095 = vmatpush2.msra.mxu0 0.0
        %6096 = vmatprep.subr.mxu0 0.0
        %6097 = vmatpush2.msra.mxu0 0.0
        %6098 = vmatprep.subr.mxu0 0.0
        %6099 = vmatpush2.msra.mxu0 0.0
        %6100 = vmatprep.subr.mxu0 0.0
        %6101 = vmatpush2.msra.mxu0 0.0
        %6102 = vmatprep.subr.mxu0 0.0
        %6103 = vmatpush2.msra.mxu0 0.0
        %6104 = vmatprep.subr.mxu0 0.0
        %6105 = vmatpush2.msra.mxu0 0.0
        %6106 = vmatprep.subr.mxu0 0.0
        %6107 = vmatpush2.msra.mxu0 0.0
        %6108 = vmatprep.subr.mxu0 0.0
        %6109 = vmatpush2.msra.mxu0 0.0
        %6110 = vmatprep.mubr.f32.mxu0 0.0
        %6111 = vmatmul.mubr.f32.gmra.mxu0 %v6044
        %v6112 = vpop.f32.mrf.mxu0
        %v6113 = vadd.f32 0.0, %v6112
        %v6114 = vpop.f32.mrf.mxu0
        %6115 = vdwg.mxu0
        %v6116 = vcombine.low %v5602, %v5748
        %v6118 = vunpack.c.l.s4 1983009808
        %v6119 = vunpack.c.0.s8 %v6118
        %v6120 = vlaneseq
        %v6121 = vshrl.u32 %v6120, 7
        %v6122 = vsub.s32 %v6119, %v6121
        %v6123 = vrot.slane %v6116, %v6122
        %v6124 = vcombine.low %v5675, %v5821
        %v6126 = vunpack.c.l.s4 1983009808
        %v6127 = vunpack.c.0.s8 %v6126
        %v6128 = vlaneseq
        %v6129 = vshrl.u32 %v6128, 7
        %v6130 = vsub.s32 %v6127, %v6129
        %v6131 = vrot.slane %v6124, %v6130
        %v6132 = vcombine.low %v5894, %v6040
        %v6134 = vunpack.c.l.s4 1983009808
        %v6135 = vunpack.c.0.s8 %v6134
        %v6136 = vlaneseq
        %v6137 = vshrl.u32 %v6136, 7
        %v6138 = vsub.s32 %v6135, %v6137
        %v6139 = vrot.slane %v6132, %v6138
        %v6140 = vcombine.low %v5967, %v6113
        %v6142 = vunpack.c.l.s4 1983009808
        %v6143 = vunpack.c.0.s8 %v6142
        %v6144 = vlaneseq
        %v6145 = vshrl.u32 %v6144, 7
        %v6146 = vsub.s32 %v6143, %v6145
        %v6147 = vrot.slane %v6140, %v6146
        %v6148 = vcombine.low %v6123, %v6131
        %v6149 = vcombine.high %v6123, %v6131
        %v6151 = vunpack.c.l.s4 1934713408
        %v6152 = vunpack.c.0.s8 %v6151
        %v6153 = vlaneseq
        %v6154 = vshrl.u32 %v6153, 7
        %v6155 = vsub.s32 %v6152, %v6154
        %v6156 = vrot.slane %v6148, %v6155
        %v6158 = vunpack.c.l.s4 1934713408
        %v6159 = vunpack.c.0.s8 %v6158
        %v6160 = vlaneseq
        %v6161 = vshrl.u32 %v6160, 7
        %v6162 = vsub.s32 %v6159, %v6161
        %v6163 = vrot.slane %v6149, %v6162
        %v6164 = vcombine.low %v6139, %v6147
        %v6165 = vcombine.high %v6139, %v6147
        %v6167 = vunpack.c.l.s4 1934713408
        %v6168 = vunpack.c.0.s8 %v6167
        %v6169 = vlaneseq
        %v6170 = vshrl.u32 %v6169, 7
        %v6171 = vsub.s32 %v6168, %v6170
        %v6172 = vrot.slane %v6164, %v6171
        %v6174 = vunpack.c.l.s4 1934713408
        %v6175 = vunpack.c.0.s8 %v6174
        %v6176 = vlaneseq
        %v6177 = vshrl.u32 %v6176, 7
        %v6178 = vsub.s32 %v6175, %v6177
        %v6179 = vrot.slane %v6165, %v6178
        %v6180 = vcombine.low %v6156, %v6172
        %v6181 = vcombine.high %v6156, %v6172
        %v6182 = vcombine.low %v6163, %v6179
        %v6183 = vcombine.high %v6163, %v6179
        %6185 = vrot.lane.b32.xlu0 %v6181, 16
        %v6186 = vpop.permute.xlu0 %6185
        %6189 = vrot.lane.b32.xlu0 %v6182, 32
        %v6190 = vpop.permute.xlu0 %6189
        %6193 = vrot.lane.b32.xlu0 %v6183, 48
        %v6194 = vpop.permute.xlu0 %6193
        %v6196 = vsel %vm2685, %v6180, %v6186
        %v6197 = vsel %vm2276, %v6196, %v6190
        %vm6198 = vcmask 392192
        %v6199 = vsel %vm6198, %v6197, %v6194
        %v6200 = vld [vmem:[%s57] sm:$0xff]
        %v6201 = vld [vmem:[%s57 + $0x8] sm:$0xff]
        %v6202 = vld [vmem:[%s57 + $0x10] sm:$0xff]
        %v6203 = vld [vmem:[%s57 + $0x18] sm:$0xff]
        %v6204 = vld [vmem:[%s57 + $0x20] sm:$0xff]
        %v6205 = vld [vmem:[%s57 + $0x28] sm:$0xff]
        %v6206 = vld [vmem:[%s57 + $0x30] sm:$0xff]
        %v6207 = vld [vmem:[%s57 + $0x38] sm:$0xff]
        %vm6208 = vcmask 523264
        %v6210 = vsel %vm6208, %v6199, 0
        %6212 = vmatprep.subr.mxu0 0.0
        %6213 = vmatpush1.msra.mxu0 0.0
        %6214 = vmatprep.subr.mxu0 0.0
        %6215 = vmatpush1.msra.mxu0 0.0
        %6216 = vmatprep.subr.mxu0 0.0
        %6217 = vmatpush1.msra.mxu0 0.0
        %6218 = vmatprep.subr.mxu0 0.0
        %6219 = vmatpush1.msra.mxu0 0.0
        %6220 = vmatprep.subr.mxu0 0.0
        %6221 = vmatpush1.msra.mxu0 0.0
        %6222 = vmatprep.subr.mxu0 0.0
        %6223 = vmatpush1.msra.mxu0 0.0
        %6224 = vmatprep.subr.mxu0 0.0
        %6225 = vmatpush1.msra.mxu0 0.0
        %6226 = vmatprep.subr.mxu0 0.0
        %6227 = vmatpush1.msra.mxu0 0.0
        %6228 = vmatprep.subr.mxu0 0.0
        %6229 = vmatpush1.msra.mxu0 %v6207
        %6230 = vmatprep.subr.mxu0 0.0
        %6231 = vmatpush1.msra.mxu0 %v6206
        %6232 = vmatprep.subr.mxu0 0.0
        %6233 = vmatpush1.msra.mxu0 %v6205
        %6234 = vmatprep.subr.mxu0 0.0
        %6235 = vmatpush1.msra.mxu0 %v6204
        %6236 = vmatprep.subr.mxu0 0.0
        %6237 = vmatpush1.msra.mxu0 %v6203
        %6238 = vmatprep.subr.mxu0 0.0
        %6239 = vmatpush1.msra.mxu0 %v6202
        %6240 = vmatprep.subr.mxu0 0.0
        %6241 = vmatpush1.msra.mxu0 %v6201
        %6242 = vmatprep.subr.mxu0 0.0
        %6243 = vmatpush1.msra.mxu0 %v6200
        %6244 = vmatprep.subr.mxu0 0.0
        %6245 = vmatpush2.msra.mxu0 0.0
        %6246 = vmatprep.subr.mxu0 0.0
        %6247 = vmatpush2.msra.mxu0 0.0
        %6248 = vmatprep.subr.mxu0 0.0
        %6249 = vmatpush2.msra.mxu0 0.0
        %6250 = vmatprep.subr.mxu0 0.0
        %6251 = vmatpush2.msra.mxu0 0.0
        %6252 = vmatprep.subr.mxu0 0.0
        %6253 = vmatpush2.msra.mxu0 0.0
        %6254 = vmatprep.subr.mxu0 0.0
        %6255 = vmatpush2.msra.mxu0 0.0
        %6256 = vmatprep.subr.mxu0 0.0
        %6257 = vmatpush2.msra.mxu0 0.0
        %6258 = vmatprep.subr.mxu0 0.0
        %6259 = vmatpush2.msra.mxu0 0.0
        %6260 = vmatprep.subr.mxu0 0.0
        %6261 = vmatpush2.msra.mxu0 0.0
        %6262 = vmatprep.subr.mxu0 0.0
        %6263 = vmatpush2.msra.mxu0 0.0
        %6264 = vmatprep.subr.mxu0 0.0
        %6265 = vmatpush2.msra.mxu0 0.0
        %6266 = vmatprep.subr.mxu0 0.0
        %6267 = vmatpush2.msra.mxu0 0.0
        %6268 = vmatprep.subr.mxu0 0.0
        %6269 = vmatpush2.msra.mxu0 0.0
        %6270 = vmatprep.subr.mxu0 0.0
        %6271 = vmatpush2.msra.mxu0 0.0
        %6272 = vmatprep.subr.mxu0 0.0
        %6273 = vmatpush2.msra.mxu0 0.0
        %6274 = vmatprep.subr.mxu0 0.0
        %6275 = vmatpush2.msra.mxu0 0.0
        %6276 = vmatprep.mubr.f32.mxu0 0.0
        %6277 = vmatmul.mubr.f32.gmra.mxu0 %v6210
        %v6278 = vpop.f32.mrf.mxu0
        %v6279 = vadd.f32 0.0, %v6278
        %v6280 = vpop.f32.mrf.mxu0
        %6281 = vdwg.mxu0
        %v6283 = vsel %vm2276, %v5455, 0
        %6285 = vmatprep.subr.mxu0 0.0
        %6286 = vmatpush1.msra.mxu0 0.0
        %6287 = vmatprep.subr.mxu0 0.0
        %6288 = vmatpush1.msra.mxu0 0.0
        %6289 = vmatprep.subr.mxu0 0.0
        %6290 = vmatpush1.msra.mxu0 0.0
        %6291 = vmatprep.subr.mxu0 0.0
        %6292 = vmatpush1.msra.mxu0 0.0
        %6293 = vmatprep.subr.mxu0 0.0
        %6294 = vmatpush1.msra.mxu0 0.0
        %6295 = vmatprep.subr.mxu0 0.0
        %6296 = vmatpush1.msra.mxu0 0.0
        %6297 = vmatprep.subr.mxu0 0.0
        %6298 = vmatpush1.msra.mxu0 0.0
        %6299 = vmatprep.subr.mxu0 0.0
        %6300 = vmatpush1.msra.mxu0 0.0
        %6301 = vmatprep.subr.mxu0 0.0
        %6302 = vmatpush1.msra.mxu0 0.0
        %6303 = vmatprep.subr.mxu0 0.0
        %6304 = vmatpush1.msra.mxu0 0.0
        %6305 = vmatprep.subr.mxu0 0.0
        %6306 = vmatpush1.msra.mxu0 0.0
        %6307 = vmatprep.subr.mxu0 0.0
        %6308 = vmatpush1.msra.mxu0 0.0
        %6309 = vmatprep.subr.mxu0 0.0
        %6310 = vmatpush1.msra.mxu0 %v5459
        %6311 = vmatprep.subr.mxu0 0.0
        %6312 = vmatpush1.msra.mxu0 %v5458
        %6313 = vmatprep.subr.mxu0 0.0
        %6314 = vmatpush1.msra.mxu0 %v5457
        %6315 = vmatprep.subr.mxu0 0.0
        %6316 = vmatpush1.msra.mxu0 %v5456
        %6317 = vmatprep.subr.mxu0 0.0
        %6318 = vmatpush2.msra.mxu0 0.0
        %6319 = vmatprep.subr.mxu0 0.0
        %6320 = vmatpush2.msra.mxu0 0.0
        %6321 = vmatprep.subr.mxu0 0.0
        %6322 = vmatpush2.msra.mxu0 0.0
        %6323 = vmatprep.subr.mxu0 0.0
        %6324 = vmatpush2.msra.mxu0 0.0
        %6325 = vmatprep.subr.mxu0 0.0
        %6326 = vmatpush2.msra.mxu0 0.0
        %6327 = vmatprep.subr.mxu0 0.0
        %6328 = vmatpush2.msra.mxu0 0.0
        %6329 = vmatprep.subr.mxu0 0.0
        %6330 = vmatpush2.msra.mxu0 0.0
        %6331 = vmatprep.subr.mxu0 0.0
        %6332 = vmatpush2.msra.mxu0 0.0
        %6333 = vmatprep.subr.mxu0 0.0
        %6334 = vmatpush2.msra.mxu0 0.0
        %6335 = vmatprep.subr.mxu0 0.0
        %6336 = vmatpush2.msra.mxu0 0.0
        %6337 = vmatprep.subr.mxu0 0.0
        %6338 = vmatpush2.msra.mxu0 0.0
        %6339 = vmatprep.subr.mxu0 0.0
        %6340 = vmatpush2.msra.mxu0 0.0
        %6341 = vmatprep.subr.mxu0 0.0
        %6342 = vmatpush2.msra.mxu0 0.0
        %6343 = vmatprep.subr.mxu0 0.0
        %6344 = vmatpush2.msra.mxu0 0.0
        %6345 = vmatprep.subr.mxu0 0.0
        %6346 = vmatpush2.msra.mxu0 0.0
        %6347 = vmatprep.subr.mxu0 0.0
        %6348 = vmatpush2.msra.mxu0 0.0
        %6349 = vmatprep.mubr.f32.mxu0 0.0
        %6350 = vmatmul.mubr.f32.gmra.mxu0 %v6283
        %v6351 = vpop.f32.mrf.mxu0
        %v6352 = vadd.f32 %v6279, %v6351
        %v6353 = vpop.f32.mrf.mxu0
        %6354 = vdwg.mxu0
        %v6355 = vld [vmem:[#allocation12] sm:$0xff]
        %v6356 = vsub.f32 %v6355, %v2628
        %v6357 = vld [vmem:[#allocation13] sm:$0xff]
        %v6358 = vsub.f32 %v6357, %v2650
        %v6359 = vld [vmem:[#allocation14] sm:$0xff]
        %v6360 = vsub.f32 %v6359, %v2672
        %v6361 = vmul.f32 %v2610, %v6356
        %v6362 = vmul.f32 %v2633, %v6358
        %v6363 = vadd.f32 %v6361, %v6362
        %v6364 = vmul.f32 %v2655, %v6360
        %v6365 = vadd.f32 %v6363, %v6364
        %v6366 = vmul.f32 %v2615, %v6356
        %v6367 = vmul.f32 %v2638, %v6358
        %v6368 = vadd.f32 %v6366, %v6367
        %v6369 = vmul.f32 %v2660, %v6360
        %v6370 = vadd.f32 %v6368, %v6369
        %v6371 = vmul.f32 %v2621, %v6356
        %v6372 = vmul.f32 %v2644, %v6358
        %v6373 = vadd.f32 %v6371, %v6372
        %v6374 = vmul.f32 %v2666, %v6360
        %v6375 = vadd.f32 %v6373, %v6374
        %v6376 = vmul.f32 %v6365, %v6365
        %v6377 = vmul.f32 %v6370, %v6370
        %v6378 = vadd.f32 %v6376, %v6377
        %v6379 = vmul.f32 %v6375, %v6375
        %v6380 = vadd.f32 %v6378, %v6379
        %v6381 = vrsqrt.pop %v6380
        %v6382 = vmul.f32 %v6380, %v6381
        %vm6383 = vcmp.eq.f32.partialorder %v6380, inf
        %v6384 = vsel %vm6383, %v6380, %v6382
        %vm6385 = vcmp.eq.f32.partialorder %v6380, 0.0
        %v6386 = vand.u32 %v6380, 2147483648
        %v6387 = vsel %vm6385, %v6386, %v6384
        %v6388 = vld [vmem:[%s51] sm:$0xff]
        %v6389 = vld [vmem:[%s51 + $0x8] sm:$0xff]
        %v6390 = vld [vmem:[%s51 + $0x10] sm:$0xff]
        %v6391 = vld [vmem:[%s51 + $0x18] sm:$0xff]
        %v6393 = vsel %vm2276, %v6365, 0
        %6395 = vmatprep.subr.mxu0 0.0
        %6396 = vmatpush1.msra.mxu0 0.0
        %6397 = vmatprep.subr.mxu0 0.0
        %6398 = vmatpush1.msra.mxu0 0.0
        %6399 = vmatprep.subr.mxu0 0.0
        %6400 = vmatpush1.msra.mxu0 0.0
        %6401 = vmatprep.subr.mxu0 0.0
        %6402 = vmatpush1.msra.mxu0 0.0
        %6403 = vmatprep.subr.mxu0 0.0
        %6404 = vmatpush1.msra.mxu0 0.0
        %6405 = vmatprep.subr.mxu0 0.0
        %6406 = vmatpush1.msra.mxu0 0.0
        %6407 = vmatprep.subr.mxu0 0.0
        %6408 = vmatpush1.msra.mxu0 0.0
        %6409 = vmatprep.subr.mxu0 0.0
        %6410 = vmatpush1.msra.mxu0 0.0
        %6411 = vmatprep.subr.mxu0 0.0
        %6412 = vmatpush1.msra.mxu0 0.0
        %6413 = vmatprep.subr.mxu0 0.0
        %6414 = vmatpush1.msra.mxu0 0.0
        %6415 = vmatprep.subr.mxu0 0.0
        %6416 = vmatpush1.msra.mxu0 0.0
        %6417 = vmatprep.subr.mxu0 0.0
        %6418 = vmatpush1.msra.mxu0 0.0
        %6419 = vmatprep.subr.mxu0 0.0
        %6420 = vmatpush1.msra.mxu0 %v6391
        %6421 = vmatprep.subr.mxu0 0.0
        %6422 = vmatpush1.msra.mxu0 %v6390
        %6423 = vmatprep.subr.mxu0 0.0
        %6424 = vmatpush1.msra.mxu0 %v6389
        %6425 = vmatprep.subr.mxu0 0.0
        %6426 = vmatpush1.msra.mxu0 %v6388
        %6427 = vmatprep.subr.mxu0 0.0
        %6428 = vmatpush2.msra.mxu0 0.0
        %6429 = vmatprep.subr.mxu0 0.0
        %6430 = vmatpush2.msra.mxu0 0.0
        %6431 = vmatprep.subr.mxu0 0.0
        %6432 = vmatpush2.msra.mxu0 0.0
        %6433 = vmatprep.subr.mxu0 0.0
        %6434 = vmatpush2.msra.mxu0 0.0
        %6435 = vmatprep.subr.mxu0 0.0
        %6436 = vmatpush2.msra.mxu0 0.0
        %6437 = vmatprep.subr.mxu0 0.0
        %6438 = vmatpush2.msra.mxu0 0.0
        %6439 = vmatprep.subr.mxu0 0.0
        %6440 = vmatpush2.msra.mxu0 0.0
        %6441 = vmatprep.subr.mxu0 0.0
        %6442 = vmatpush2.msra.mxu0 0.0
        %6443 = vmatprep.subr.mxu0 0.0
        %6444 = vmatpush2.msra.mxu0 0.0
        %6445 = vmatprep.subr.mxu0 0.0
        %6446 = vmatpush2.msra.mxu0 0.0
        %6447 = vmatprep.subr.mxu0 0.0
        %6448 = vmatpush2.msra.mxu0 0.0
        %6449 = vmatprep.subr.mxu0 0.0
        %6450 = vmatpush2.msra.mxu0 0.0
        %6451 = vmatprep.subr.mxu0 0.0
        %6452 = vmatpush2.msra.mxu0 0.0
        %6453 = vmatprep.subr.mxu0 0.0
        %6454 = vmatpush2.msra.mxu0 0.0
        %6455 = vmatprep.subr.mxu0 0.0
        %6456 = vmatpush2.msra.mxu0 0.0
        %6457 = vmatprep.subr.mxu0 0.0
        %6458 = vmatpush2.msra.mxu0 0.0
        %6459 = vmatprep.mubr.f32.mxu0 0.0
        %6460 = vmatmul.mubr.f32.gmra.mxu0 %v6393
        %v6461 = vpop.f32.mrf.mxu0
        %v6462 = vadd.f32 0.0, %v6461
        %v6463 = vpop.f32.mrf.mxu0
        %6464 = vdwg.mxu0
        %v6465 = vadd.f32 %v6352, %v6462
        %v6466 = vld [vmem:[%s53] sm:$0xff]
        %v6467 = vld [vmem:[%s53 + $0x8] sm:$0xff]
        %v6468 = vld [vmem:[%s53 + $0x10] sm:$0xff]
        %v6469 = vld [vmem:[%s53 + $0x18] sm:$0xff]
        %v6471 = vsel %vm2276, %v6370, 0
        %6473 = vmatprep.subr.mxu0 0.0
        %6474 = vmatpush1.msra.mxu0 0.0
        %6475 = vmatprep.subr.mxu0 0.0
        %6476 = vmatpush1.msra.mxu0 0.0
        %6477 = vmatprep.subr.mxu0 0.0
        %6478 = vmatpush1.msra.mxu0 0.0
        %6479 = vmatprep.subr.mxu0 0.0
        %6480 = vmatpush1.msra.mxu0 0.0
        %6481 = vmatprep.subr.mxu0 0.0
        %6482 = vmatpush1.msra.mxu0 0.0
        %6483 = vmatprep.subr.mxu0 0.0
        %6484 = vmatpush1.msra.mxu0 0.0
        %6485 = vmatprep.subr.mxu0 0.0
        %6486 = vmatpush1.msra.mxu0 0.0
        %6487 = vmatprep.subr.mxu0 0.0
        %6488 = vmatpush1.msra.mxu0 0.0
        %6489 = vmatprep.subr.mxu0 0.0
        %6490 = vmatpush1.msra.mxu0 0.0
        %6491 = vmatprep.subr.mxu0 0.0
        %6492 = vmatpush1.msra.mxu0 0.0
        %6493 = vmatprep.subr.mxu0 0.0
        %6494 = vmatpush1.msra.mxu0 0.0
        %6495 = vmatprep.subr.mxu0 0.0
        %6496 = vmatpush1.msra.mxu0 0.0
        %6497 = vmatprep.subr.mxu0 0.0
        %6498 = vmatpush1.msra.mxu0 %v6469
        %6499 = vmatprep.subr.mxu0 0.0
        %6500 = vmatpush1.msra.mxu0 %v6468
        %6501 = vmatprep.subr.mxu0 0.0
        %6502 = vmatpush1.msra.mxu0 %v6467
        %6503 = vmatprep.subr.mxu0 0.0
        %6504 = vmatpush1.msra.mxu0 %v6466
        %6505 = vmatprep.subr.mxu0 0.0
        %6506 = vmatpush2.msra.mxu0 0.0
        %6507 = vmatprep.subr.mxu0 0.0
        %6508 = vmatpush2.msra.mxu0 0.0
        %6509 = vmatprep.subr.mxu0 0.0
        %6510 = vmatpush2.msra.mxu0 0.0
        %6511 = vmatprep.subr.mxu0 0.0
        %6512 = vmatpush2.msra.mxu0 0.0
        %6513 = vmatprep.subr.mxu0 0.0
        %6514 = vmatpush2.msra.mxu0 0.0
        %6515 = vmatprep.subr.mxu0 0.0
        %6516 = vmatpush2.msra.mxu0 0.0
        %6517 = vmatprep.subr.mxu0 0.0
        %6518 = vmatpush2.msra.mxu0 0.0
        %6519 = vmatprep.subr.mxu0 0.0
        %6520 = vmatpush2.msra.mxu0 0.0
        %6521 = vmatprep.subr.mxu0 0.0
        %6522 = vmatpush2.msra.mxu0 0.0
        %6523 = vmatprep.subr.mxu0 0.0
        %6524 = vmatpush2.msra.mxu0 0.0
        %6525 = vmatprep.subr.mxu0 0.0
        %6526 = vmatpush2.msra.mxu0 0.0
        %6527 = vmatprep.subr.mxu0 0.0
        %6528 = vmatpush2.msra.mxu0 0.0
        %6529 = vmatprep.subr.mxu0 0.0
        %6530 = vmatpush2.msra.mxu0 0.0
        %6531 = vmatprep.subr.mxu0 0.0
        %6532 = vmatpush2.msra.mxu0 0.0
        %6533 = vmatprep.subr.mxu0 0.0
        %6534 = vmatpush2.msra.mxu0 0.0
        %6535 = vmatprep.subr.mxu0 0.0
        %6536 = vmatpush2.msra.mxu0 0.0
        %6537 = vmatprep.mubr.f32.mxu0 0.0
        %6538 = vmatmul.mubr.f32.gmra.mxu0 %v6471
        %v6539 = vpop.f32.mrf.mxu0
        %v6540 = vadd.f32 0.0, %v6539
        %v6541 = vpop.f32.mrf.mxu0
        %6542 = vdwg.mxu0
        %v6543 = vadd.f32 %v6465, %v6540
        %v6544 = vld [vmem:[%s55] sm:$0xff]
        %v6545 = vld [vmem:[%s55 + $0x8] sm:$0xff]
        %v6546 = vld [vmem:[%s55 + $0x10] sm:$0xff]
        %v6547 = vld [vmem:[%s55 + $0x18] sm:$0xff]
        %v6549 = vsel %vm2276, %v6375, 0
        %6551 = vmatprep.subr.mxu0 0.0
        %6552 = vmatpush1.msra.mxu0 0.0
        %6553 = vmatprep.subr.mxu0 0.0
        %6554 = vmatpush1.msra.mxu0 0.0
        %6555 = vmatprep.subr.mxu0 0.0
        %6556 = vmatpush1.msra.mxu0 0.0
        %6557 = vmatprep.subr.mxu0 0.0
        %6558 = vmatpush1.msra.mxu0 0.0
        %6559 = vmatprep.subr.mxu0 0.0
        %6560 = vmatpush1.msra.mxu0 0.0
        %6561 = vmatprep.subr.mxu0 0.0
        %6562 = vmatpush1.msra.mxu0 0.0
        %6563 = vmatprep.subr.mxu0 0.0
        %6564 = vmatpush1.msra.mxu0 0.0
        %6565 = vmatprep.subr.mxu0 0.0
        %6566 = vmatpush1.msra.mxu0 0.0
        %6567 = vmatprep.subr.mxu0 0.0
        %6568 = vmatpush1.msra.mxu0 0.0
        %6569 = vmatprep.subr.mxu0 0.0
        %6570 = vmatpush1.msra.mxu0 0.0
        %6571 = vmatprep.subr.mxu0 0.0
        %6572 = vmatpush1.msra.mxu0 0.0
        %6573 = vmatprep.subr.mxu0 0.0
        %6574 = vmatpush1.msra.mxu0 0.0
        %6575 = vmatprep.subr.mxu0 0.0
        %6576 = vmatpush1.msra.mxu0 %v6547
        %6577 = vmatprep.subr.mxu0 0.0
        %6578 = vmatpush1.msra.mxu0 %v6546
        %6579 = vmatprep.subr.mxu0 0.0
        %6580 = vmatpush1.msra.mxu0 %v6545
        %6581 = vmatprep.subr.mxu0 0.0
        %6582 = vmatpush1.msra.mxu0 %v6544
        %6583 = vmatprep.subr.mxu0 0.0
        %6584 = vmatpush2.msra.mxu0 0.0
        %6585 = vmatprep.subr.mxu0 0.0
        %6586 = vmatpush2.msra.mxu0 0.0
        %6587 = vmatprep.subr.mxu0 0.0
        %6588 = vmatpush2.msra.mxu0 0.0
        %6589 = vmatprep.subr.mxu0 0.0
        %6590 = vmatpush2.msra.mxu0 0.0
        %6591 = vmatprep.subr.mxu0 0.0
        %6592 = vmatpush2.msra.mxu0 0.0
        %6593 = vmatprep.subr.mxu0 0.0
        %6594 = vmatpush2.msra.mxu0 0.0
        %6595 = vmatprep.subr.mxu0 0.0
        %6596 = vmatpush2.msra.mxu0 0.0
        %6597 = vmatprep.subr.mxu0 0.0
        %6598 = vmatpush2.msra.mxu0 0.0
        %6599 = vmatprep.subr.mxu0 0.0
        %6600 = vmatpush2.msra.mxu0 0.0
        %6601 = vmatprep.subr.mxu0 0.0
        %6602 = vmatpush2.msra.mxu0 0.0
        %6603 = vmatprep.subr.mxu0 0.0
        %6604 = vmatpush2.msra.mxu0 0.0
        %6605 = vmatprep.subr.mxu0 0.0
        %6606 = vmatpush2.msra.mxu0 0.0
        %6607 = vmatprep.subr.mxu0 0.0
        %6608 = vmatpush2.msra.mxu0 0.0
        %6609 = vmatprep.subr.mxu0 0.0
        %6610 = vmatpush2.msra.mxu0 0.0
        %6611 = vmatprep.subr.mxu0 0.0
        %6612 = vmatpush2.msra.mxu0 0.0
        %6613 = vmatprep.subr.mxu0 0.0
        %6614 = vmatpush2.msra.mxu0 0.0
        %6615 = vmatprep.mubr.f32.mxu0 0.0
        %6616 = vmatmul.mubr.f32.gmra.mxu0 %v6549
        %v6617 = vpop.f32.mrf.mxu0
        %v6618 = vadd.f32 0.0, %v6617
        %v6619 = vpop.f32.mrf.mxu0
        %6620 = vdwg.mxu0
        %v6621 = vadd.f32 %v6543, %v6618
        %v6622 = vld [vmem:[#allocation27] sm:$0xff]
        %v6623 = vld [vmem:[#allocation27 + $0x8] sm:$0xff]
        %v6624 = vld [vmem:[#allocation27 + $0x10] sm:$0xff]
        %v6625 = vld [vmem:[#allocation27 + $0x18] sm:$0xff]
        %v6627 = vsel %vm2276, %v6387, 0
        %6629 = vmatprep.subr.mxu0 0.0
        %6630 = vmatpush1.msra.mxu0 0.0
        %6631 = vmatprep.subr.mxu0 0.0
        %6632 = vmatpush1.msra.mxu0 0.0
        %6633 = vmatprep.subr.mxu0 0.0
        %6634 = vmatpush1.msra.mxu0 0.0
        %6635 = vmatprep.subr.mxu0 0.0
        %6636 = vmatpush1.msra.mxu0 0.0
        %6637 = vmatprep.subr.mxu0 0.0
        %6638 = vmatpush1.msra.mxu0 0.0
        %6639 = vmatprep.subr.mxu0 0.0
        %6640 = vmatpush1.msra.mxu0 0.0
        %6641 = vmatprep.subr.mxu0 0.0
        %6642 = vmatpush1.msra.mxu0 0.0
        %6643 = vmatprep.subr.mxu0 0.0
        %6644 = vmatpush1.msra.mxu0 0.0
        %6645 = vmatprep.subr.mxu0 0.0
        %6646 = vmatpush1.msra.mxu0 0.0
        %6647 = vmatprep.subr.mxu0 0.0
        %6648 = vmatpush1.msra.mxu0 0.0
        %6649 = vmatprep.subr.mxu0 0.0
        %6650 = vmatpush1.msra.mxu0 0.0
        %6651 = vmatprep.subr.mxu0 0.0
        %6652 = vmatpush1.msra.mxu0 0.0
        %6653 = vmatprep.subr.mxu0 0.0
        %6654 = vmatpush1.msra.mxu0 %v6625
        %6655 = vmatprep.subr.mxu0 0.0
        %6656 = vmatpush1.msra.mxu0 %v6624
        %6657 = vmatprep.subr.mxu0 0.0
        %6658 = vmatpush1.msra.mxu0 %v6623
        %6659 = vmatprep.subr.mxu0 0.0
        %6660 = vmatpush1.msra.mxu0 %v6622
        %6661 = vmatprep.subr.mxu0 0.0
        %6662 = vmatpush2.msra.mxu0 0.0
        %6663 = vmatprep.subr.mxu0 0.0
        %6664 = vmatpush2.msra.mxu0 0.0
        %6665 = vmatprep.subr.mxu0 0.0
        %6666 = vmatpush2.msra.mxu0 0.0
        %6667 = vmatprep.subr.mxu0 0.0
        %6668 = vmatpush2.msra.mxu0 0.0
        %6669 = vmatprep.subr.mxu0 0.0
        %6670 = vmatpush2.msra.mxu0 0.0
        %6671 = vmatprep.subr.mxu0 0.0
        %6672 = vmatpush2.msra.mxu0 0.0
        %6673 = vmatprep.subr.mxu0 0.0
        %6674 = vmatpush2.msra.mxu0 0.0
        %6675 = vmatprep.subr.mxu0 0.0
        %6676 = vmatpush2.msra.mxu0 0.0
        %6677 = vmatprep.subr.mxu0 0.0
        %6678 = vmatpush2.msra.mxu0 0.0
        %6679 = vmatprep.subr.mxu0 0.0
        %6680 = vmatpush2.msra.mxu0 0.0
        %6681 = vmatprep.subr.mxu0 0.0
        %6682 = vmatpush2.msra.mxu0 0.0
        %6683 = vmatprep.subr.mxu0 0.0
        %6684 = vmatpush2.msra.mxu0 0.0
        %6685 = vmatprep.subr.mxu0 0.0
        %6686 = vmatpush2.msra.mxu0 0.0
        %6687 = vmatprep.subr.mxu0 0.0
        %6688 = vmatpush2.msra.mxu0 0.0
        %6689 = vmatprep.subr.mxu0 0.0
        %6690 = vmatpush2.msra.mxu0 0.0
        %6691 = vmatprep.subr.mxu0 0.0
        %6692 = vmatpush2.msra.mxu0 0.0
        %6693 = vmatprep.mubr.f32.mxu0 0.0
        %6694 = vmatmul.mubr.f32.gmra.mxu0 %v6627
        %v6695 = vpop.f32.mrf.mxu0
        %v6696 = vadd.f32 0.0, %v6695
        %v6697 = vpop.f32.mrf.mxu0
        %6698 = vdwg.mxu0
        %v6699 = vadd.f32 %v6621, %v6696
        %v6700 = vadd.f32 %v2275, %v6699
        %v6701 = vld [vmem:[%s61] sm:$0x1]
        %v6703 = vlaneseq
        %v6704 = vshrl.u32 %v6703, 7
        %v6705 = vsub.s32 0, %v6704
        %v6706 = vrot.slane %v6701, %v6705
        %v6708 = vadd.f32 %v6700, %v6706
        %v6709 = vld [vmem:[%s63] sm:$0x1]
        %v6710 = vld [vmem:[%s65] sm:$0x1]
        %v6711 = vsel %vm2276, %v6708, 0.0
        %6712 = vadd.xlane.f32.xlu0 %v6711
        %v6713 = vpop.xlane.xlu0 %6712
        %v6714 = vmul.f32 %v6713, %v2280
        %v6715 = vsub.f32 %v6708, %v6714
        %v6716 = vmul.f32 %v6715, %v6715
        %v6717 = vsel %vm2276, %v6716, 0.0
        %6718 = vadd.xlane.f32.xlu0 %v6717
        %v6719 = vpop.xlane.xlu0 %6718
        %v6720 = vmul.f32 %v6719, %v2280
        %v6721 = vadd.f32 %v6720, 1e-05
        %v6722 = vrsqrt.pop %v6721
        %v6723 = vmul.f32 %v6715, %v6722
        %v6725 = vlaneseq
        %v6726 = vshrl.u32 %v6725, 7
        %v6727 = vsub.s32 0, %v6726
        %v6728 = vrot.slane %v6709, %v6727
        %v6730 = vmul.f32 %v6723, %v6728
        %v6732 = vlaneseq
        %v6733 = vshrl.u32 %v6732, 7
        %v6734 = vsub.s32 0, %v6733
        %v6735 = vrot.slane %v6710, %v6734
        %v6737 = vadd.f32 %v6730, %v6735
        %v6738 = vld [vmem:[#allocation29] sm:$0xff]
        %v6739 = vld [vmem:[#allocation29 + $0x8] sm:$0xff]
        %v6740 = vld [vmem:[#allocation29 + $0x10] sm:$0xff]
        %v6741 = vld [vmem:[#allocation29 + $0x18] sm:$0xff]
        %v6742 = vld [vmem:[%s69] sm:$0x1]
        %v6744 = vlaneseq
        %v6745 = vshrl.u32 %v6744, 7
        %v6746 = vsub.s32 0, %v6745
        %v6747 = vrot.slane %v6742, %v6746
        %v6750 = vsel %vm2276, %v6737, 0
        %6752 = vmatprep.subr.mxu0 0.0
        %6753 = vmatpush1.msra.mxu0 0.0
        %6754 = vmatprep.subr.mxu0 0.0
        %6755 = vmatpush1.msra.mxu0 0.0
        %6756 = vmatprep.subr.mxu0 0.0
        %6757 = vmatpush1.msra.mxu0 0.0
        %6758 = vmatprep.subr.mxu0 0.0
        %6759 = vmatpush1.msra.mxu0 0.0
        %6760 = vmatprep.subr.mxu0 0.0
        %6761 = vmatpush1.msra.mxu0 0.0
        %6762 = vmatprep.subr.mxu0 0.0
        %6763 = vmatpush1.msra.mxu0 0.0
        %6764 = vmatprep.subr.mxu0 0.0
        %6765 = vmatpush1.msra.mxu0 0.0
        %6766 = vmatprep.subr.mxu0 0.0
        %6767 = vmatpush1.msra.mxu0 0.0
        %6768 = vmatprep.subr.mxu0 0.0
        %6769 = vmatpush1.msra.mxu0 0.0
        %6770 = vmatprep.subr.mxu0 0.0
        %6771 = vmatpush1.msra.mxu0 0.0
        %6772 = vmatprep.subr.mxu0 0.0
        %6773 = vmatpush1.msra.mxu0 0.0
        %6774 = vmatprep.subr.mxu0 0.0
        %6775 = vmatpush1.msra.mxu0 0.0
        %6776 = vmatprep.subr.mxu0 0.0
        %6777 = vmatpush1.msra.mxu0 %v6741
        %6778 = vmatprep.subr.mxu0 0.0
        %6779 = vmatpush1.msra.mxu0 %v6740
        %6780 = vmatprep.subr.mxu0 0.0
        %6781 = vmatpush1.msra.mxu0 %v6739
        %6782 = vmatprep.subr.mxu0 0.0
        %6783 = vmatpush1.msra.mxu0 %v6738
        %6784 = vmatprep.subr.mxu0 0.0
        %6785 = vmatpush2.msra.mxu0 0.0
        %6786 = vmatprep.subr.mxu0 0.0
        %6787 = vmatpush2.msra.mxu0 0.0
        %6788 = vmatprep.subr.mxu0 0.0
        %6789 = vmatpush2.msra.mxu0 0.0
        %6790 = vmatprep.subr.mxu0 0.0
        %6791 = vmatpush2.msra.mxu0 0.0
        %6792 = vmatprep.subr.mxu0 0.0
        %6793 = vmatpush2.msra.mxu0 0.0
        %6794 = vmatprep.subr.mxu0 0.0
        %6795 = vmatpush2.msra.mxu0 0.0
        %6796 = vmatprep.subr.mxu0 0.0
        %6797 = vmatpush2.msra.mxu0 0.0
        %6798 = vmatprep.subr.mxu0 0.0
        %6799 = vmatpush2.msra.mxu0 0.0
        %6800 = vmatprep.subr.mxu0 0.0
        %6801 = vmatpush2.msra.mxu0 0.0
        %6802 = vmatprep.subr.mxu0 0.0
        %6803 = vmatpush2.msra.mxu0 0.0
        %6804 = vmatprep.subr.mxu0 0.0
        %6805 = vmatpush2.msra.mxu0 0.0
        %6806 = vmatprep.subr.mxu0 0.0
        %6807 = vmatpush2.msra.mxu0 0.0
        %6808 = vmatprep.subr.mxu0 0.0
        %6809 = vmatpush2.msra.mxu0 0.0
        %6810 = vmatprep.subr.mxu0 0.0
        %6811 = vmatpush2.msra.mxu0 0.0
        %6812 = vmatprep.subr.mxu0 0.0
        %6813 = vmatpush2.msra.mxu0 0.0
        %6814 = vmatprep.subr.mxu0 0.0
        %6815 = vmatpush2.msra.mxu0 0.0
        %6816 = vmatprep.mubr.f32.mxu0 0.0
        %6817 = vmatmul.mubr.f32.gmra.mxu0 %v6750
        %v6818 = vpop.f32.mrf.mxu0
        %v6819 = vadd.f32 %v6747, %v6818
        %v6820 = vpop.f32.mrf.mxu0
        %6821 = vdwg.mxu0
        %v6822 = vmul.f32 %v6819, 0.5
        %v6823 = vmul.f32 %v6819, 0.70710677
        %vm6824 = vcmp.ge.f32.partialorder %v6823, 0.0
        %v6825 = vsel %vm6824, 1.0, -1.0
        %v6826 = vand.u32 2147483647, %v6823
        %v6827 = vmul.f32 %v6826, 0.3275911
        %v6828 = vadd.f32 %v6827, 1.0
        %v6829 = vrcp.pop %v6828
        %v6830 = vmul.f32 1.0, %v6829
        %v6831 = vmul.f32 %v6830, 1.0614054
        %v6832 = vadd.f32 %v6831, -1.4531521
        %v6833 = vmul.f32 %v6830, %v6832
        %v6834 = vadd.f32 %v6833, 1.4214138
        %v6835 = vmul.f32 %v6830, %v6834
        %v6836 = vadd.f32 %v6835, -0.28449672
        %v6837 = vmul.f32 %v6830, %v6836
        %v6838 = vadd.f32 %v6837, 0.2548296
        %v6839 = vmul.f32 %v6830, %v6838
        %v6840 = vsub.f32 0.0, %v6826
        %v6841 = vmul.f32 %v6840, %v6826
        %v6842 = vmul.f32 %v6841, 1.442695
        %v6843 = vpow.pop %v6842
        %v6844 = vmul.f32 %v6839, %v6843
        %v6845 = vsub.f32 1.0, %v6844
        %v6846 = vmul.f32 %v6825, %v6845
        %v6847 = vadd.f32 %v6846, 1.0
        %v6848 = vmul.f32 %v6822, %v6847
        %v6849 = vld [vmem:[%s71] sm:$0xff]
        %v6850 = vld [vmem:[%s71 + $0x8] sm:$0xff]
        %v6851 = vld [vmem:[%s71 + $0x10] sm:$0xff]
        %v6852 = vld [vmem:[%s71 + $0x18] sm:$0xff]
        %v6853 = vld [vmem:[%s71 + $0x20] sm:$0xff]
        %v6854 = vld [vmem:[%s71 + $0x28] sm:$0xff]
        %v6855 = vld [vmem:[%s71 + $0x30] sm:$0xff]
        %v6856 = vld [vmem:[%s71 + $0x38] sm:$0xff]
        %v6857 = vld [vmem:[%s73] sm:$0x1]
        %v6859 = vlaneseq
        %v6860 = vshrl.u32 %v6859, 7
        %v6861 = vsub.s32 0, %v6860
        %v6862 = vrot.slane %v6857, %v6861
        %v6865 = vsel %vm6208, %v6848, 0
        %6867 = vmatprep.subr.mxu0 0.0
        %6868 = vmatpush1.msra.mxu0 0.0
        %6869 = vmatprep.subr.mxu0 0.0
        %6870 = vmatpush1.msra.mxu0 0.0
        %6871 = vmatprep.subr.mxu0 0.0
        %6872 = vmatpush1.msra.mxu0 0.0
        %6873 = vmatprep.subr.mxu0 0.0
        %6874 = vmatpush1.msra.mxu0 0.0
        %6875 = vmatprep.subr.mxu0 0.0
        %6876 = vmatpush1.msra.mxu0 0.0
        %6877 = vmatprep.subr.mxu0 0.0
        %6878 = vmatpush1.msra.mxu0 0.0
        %6879 = vmatprep.subr.mxu0 0.0
        %6880 = vmatpush1.msra.mxu0 0.0
        %6881 = vmatprep.subr.mxu0 0.0
        %6882 = vmatpush1.msra.mxu0 0.0
        %6883 = vmatprep.subr.mxu0 0.0
        %6884 = vmatpush1.msra.mxu0 %v6856
        %6885 = vmatprep.subr.mxu0 0.0
        %6886 = vmatpush1.msra.mxu0 %v6855
        %6887 = vmatprep.subr.mxu0 0.0
        %6888 = vmatpush1.msra.mxu0 %v6854
        %6889 = vmatprep.subr.mxu0 0.0
        %6890 = vmatpush1.msra.mxu0 %v6853
        %6891 = vmatprep.subr.mxu0 0.0
        %6892 = vmatpush1.msra.mxu0 %v6852
        %6893 = vmatprep.subr.mxu0 0.0
        %6894 = vmatpush1.msra.mxu0 %v6851
        %6895 = vmatprep.subr.mxu0 0.0
        %6896 = vmatpush1.msra.mxu0 %v6850
        %6897 = vmatprep.subr.mxu0 0.0
        %6898 = vmatpush1.msra.mxu0 %v6849
        %6899 = vmatprep.subr.mxu0 0.0
        %6900 = vmatpush2.msra.mxu0 0.0
        %6901 = vmatprep.subr.mxu0 0.0
        %6902 = vmatpush2.msra.mxu0 0.0
        %6903 = vmatprep.subr.mxu0 0.0
        %6904 = vmatpush2.msra.mxu0 0.0
        %6905 = vmatprep.subr.mxu0 0.0
        %6906 = vmatpush2.msra.mxu0 0.0
        %6907 = vmatprep.subr.mxu0 0.0
        %6908 = vmatpush2.msra.mxu0 0.0
        %6909 = vmatprep.subr.mxu0 0.0
        %6910 = vmatpush2.msra.mxu0 0.0
        %6911 = vmatprep.subr.mxu0 0.0
        %6912 = vmatpush2.msra.mxu0 0.0
        %6913 = vmatprep.subr.mxu0 0.0
        %6914 = vmatpush2.msra.mxu0 0.0
        %6915 = vmatprep.subr.mxu0 0.0
        %6916 = vmatpush2.msra.mxu0 0.0
        %6917 = vmatprep.subr.mxu0 0.0
        %6918 = vmatpush2.msra.mxu0 0.0
        %6919 = vmatprep.subr.mxu0 0.0
        %6920 = vmatpush2.msra.mxu0 0.0
        %6921 = vmatprep.subr.mxu0 0.0
        %6922 = vmatpush2.msra.mxu0 0.0
        %6923 = vmatprep.subr.mxu0 0.0
        %6924 = vmatpush2.msra.mxu0 0.0
        %6925 = vmatprep.subr.mxu0 0.0
        %6926 = vmatpush2.msra.mxu0 0.0
        %6927 = vmatprep.subr.mxu0 0.0
        %6928 = vmatpush2.msra.mxu0 0.0
        %6929 = vmatprep.subr.mxu0 0.0
        %6930 = vmatpush2.msra.mxu0 0.0
        %6931 = vmatprep.mubr.f32.mxu0 0.0
        %6932 = vmatmul.mubr.f32.gmra.mxu0 %v6865
        %v6933 = vpop.f32.mrf.mxu0
        %v6934 = vadd.f32 %v6862, %v6933
        %v6935 = vpop.f32.mrf.mxu0
        %6936 = vdwg.mxu0
        %v6937 = vadd.f32 %v6708, %v6934
        %6938 = vst.msk [vmem:[%s1418] sm:$0xff] %vm2276, %v6937
        %s6939 = sand.u32 %s949, 1
        %s6940 = scalar_lea.sflag [#allocation17], %s6939
        %s6941 = sand.u32 %s949, 1
        %s6942 = smul.addr %s6941, 8
        %s6943 = scalar_lea.vmem [#allocation30], %s6942
        // Predicated region
        $region209: #{tpu_custom_call.1} parent=167 // pred_check
          %p6944 = pneg %p959
        $region210: #{tpu_custom_call.1} parent=167 // pred_check_branch
          %6946 = sbr.rel (%p6944) target = $region212
        $region211: #{tpu_custom_call.1} parent=167 // pred_region
          %s6948 = ssub.s32 128, 128
          %6949 = vsyncadd %s6940, %s6948
          %s6950 = sadd.s32 %s105, %s104
          %s6951 = smul.addr %s6950, 128
          %s6952 = scalar_lea.hbm %s75, %s6951
          %s6954 = sshll.u32 %s6943, 4
          %s6955 = int_to_ptr.vmem [resolvable:$true] %s6954
          %6957 = dma.vmem_to_hbm [thread:$0]  %s6955, 128, %s6952, %s6940
        $region212: #{tpu_custom_call.1} parent=167 // pred_fallthru
          _
      $region168: #{tpu_custom_call.1} parent=5 // pred_fallthru
        _
      %p6958 = scmp.le.s32.totalorder 2, %s95
      // Predicated region
      $region213: #{tpu_custom_call.1} parent=5 // pred_check
        %p6959 = pneg %p6958
      $region214: #{tpu_custom_call.1} parent=5 // pred_check_branch
        %6961 = sbr.rel (%p6959) target = $region216
      $region215: #{tpu_custom_call.1} parent=5 // pred_region
        %s6962 = ssub.s32 %s95, 2
        // Predicated region
        $region217: #{tpu_custom_call.1} parent=215 // pred_check
          %p6963 = pneg %p965
        $region218: #{tpu_custom_call.1} parent=215 // pred_check_branch
          %6965 = sbr.rel (%p6963) target = $region220
        $region219: #{tpu_custom_call.1} parent=215 // pred_region
          %s6966 = sand.u32 %s950, 1
          %s6967 = scalar_lea.sflag [#allocation17], %s6966
          %s6968 = sand.u32 %s950, 1
          %s6969 = smul.addr %s6968, 8
          %s6970 = scalar_lea.vmem [#allocation30], %s6969
          %6971 = dma.done %s6967, 128
        $region220: #{tpu_custom_call.1} parent=215 // pred_fallthru
          _
      $region216: #{tpu_custom_call.1} parent=5 // pred_fallthru
        _
    $region6: #{tpu_custom_call.1} parent=1 // loop_footer
      %s99 = sadd.s32 1, %s95
    $region7: #{tpu_custom_call.1} parent=1 // loop_footer_branch
      %94 = sbr.rel target = $region3
    $region8: #{tpu_custom_call.1} parent=1 // loop_exit
      _
    %6972 = vsyncpa [#allocation16], 1
    %s6973 = scalar_lea.sflag [#allocation16], 1
    %6974 = vsyncpa %s6973, 1
    %6975 = vsyncpa [#allocation19], 1
    %s6976 = scalar_lea.sflag [#allocation19], 1
    %6977 = vsyncpa %s6976, 1
    %6978 = vsyncpa [#allocation22], 1
    %s6979 = scalar_lea.sflag [#allocation22], 1
    %6980 = vsyncpa %s6979, 1
    %6981 = vsyncpa [#allocation25], 1
    %6982 = vsyncpa [#allocation28], 1
    %6983 = vsyncpa [#allocation17], 1
    %s6984 = scalar_lea.sflag [#allocation17], 1
    %6985 = vsyncpa %s6984, 1

</llo_original>
